<compile_context>
chip_gen: v7x
topology: tpu7x:2x2x1
jax: 0.10.0
libtpu: 0.0.40
codegen_flags: <defaults>
</compile_context>

<pallas_src>
import functools

import jax
import jax.numpy as jnp
from jax.experimental import pallas as pl
from jax.experimental.pallas import tpu as pltpu


def _mlp_kernel(feat_ref, crd_ref,
                w1f_ref, w1c_ref, b1_ref,
                w2_ref, b2_ref,
                w3_ref, b3_ref,
                w4_ref, b4_ref,
                w5_ref, b5_ref,
                o_ref):
    """One grid step: a tile of tile_m query rows through the full 5-layer MLP."""
    feat = feat_ref[...]                       # (tile_m, F)  f32
    crd = crd_ref[...]                         # (tile_m, 3)  f32

    # ---- Layer 1 (fused concat): features on the MXU in bf16, the 3-wide
    #      coordinate contribution on the VPU (avoids a K=3 matmul). ----
    h = jnp.dot(feat.astype(jnp.bfloat16), w1f_ref[...],
                preferred_element_type=jnp.float32)          # (tile_m, 512) f32
    w1c = w1c_ref[...]                                       # (3, 512) f32
    h = h + (crd[:, 0:1] * w1c[0:1, :]
             + crd[:, 1:2] * w1c[1:2, :]
             + crd[:, 2:3] * w1c[2:3, :])
    h = jnp.maximum(h + b1_ref[...], 0.0)

    # ---- Hidden layers 2-4: bf16 MXU matmul, f32 accumulate, f32 bias/ReLU. ----
    h = jnp.maximum(
        jnp.dot(h.astype(jnp.bfloat16), w2_ref[...],
                preferred_element_type=jnp.float32) + b2_ref[...], 0.0)
    h = jnp.maximum(
        jnp.dot(h.astype(jnp.bfloat16), w3_ref[...],
                preferred_element_type=jnp.float32) + b3_ref[...], 0.0)
    h = jnp.maximum(
        jnp.dot(h.astype(jnp.bfloat16), w4_ref[...],
                preferred_element_type=jnp.float32) + b4_ref[...], 0.0)

    # ---- Output layer 64 -> 1, computed transposed so the stored block is
    #      lane-dense (1, tile_m).  Tiny, so kept in f32 for exactness. ----
    logits_t = jnp.dot(w5_ref[...], h.T,
                       preferred_element_type=jnp.float32) + b5_ref[...]
    o_ref[...] = jax.nn.sigmoid(logits_t).astype(o_ref.dtype)   # (1, tile_m)


def prepare_params(params):
    """One-time conversion of PyTorch-layout params (W [out,in], b [out]).

    Weights are pre-transposed to [in, out] and cast to bf16 here (outside the
    jitted hot path) so no per-call transposes / casts are executed.
    """
    (w1, b1), (w2, b2), (w3, b3), (w4, b4), (w5, b5) = params
    assert w5.shape[0] == 1, "kernel is specialized to output_size=1"
    din = w1.shape[1]
    f = din - 3
    w1t = jnp.transpose(w1).astype(jnp.float32)                 # [F+3, 512]
    return dict(
        w1f=w1t[:f].astype(jnp.bfloat16),                       # [F, 512]  bf16 (MXU)
        w1c=w1t[f:],                                            # [3, 512]  f32  (VPU)
        b1=b1.reshape(1, -1).astype(jnp.float32),
        w2=jnp.transpose(w2).astype(jnp.bfloat16),               # [512, 256]
        b2=b2.reshape(1, -1).astype(jnp.float32),
        w3=jnp.transpose(w3).astype(jnp.bfloat16),               # [256, 128]
        b3=b3.reshape(1, -1).astype(jnp.float32),
        w4=jnp.transpose(w4).astype(jnp.bfloat16),               # [128, 64]
        b4=b4.reshape(1, -1).astype(jnp.float32),
        w5=w5.astype(jnp.float32),                               # [1, 64]  (PyTorch layout)
        b5=b5.reshape(1, 1).astype(jnp.float32),
    )


@functools.partial(jax.jit, static_argnames=("tile_m",))
def implicit_occupancy_decoder(image_features, coords, packed, *, tile_m=512):
    """image_features: [B, N, F], coords: [B, N, 3] -> occupancy [B, N, 1]."""
    B, N, F = image_features.shape
    assert coords.shape == (B, N, 3)
    assert packed["w1f"].shape[0] == F, "feature_size mismatch between params and input"

    M = B * N
    feat2d = image_features.reshape(M, F).astype(jnp.float32)
    crd2d = coords.reshape(M, 3).astype(jnp.float32)

    num_tiles = pl.cdiv(M, tile_m)
    M_pad = num_tiles * tile_m
    if M_pad != M:
        feat2d = jnp.pad(feat2d, ((0, M_pad - M), (0, 0)))
        crd2d = jnp.pad(crd2d, ((0, M_pad - M), (0, 0)))

    w1f, w1c, b1 = packed["w1f"], packed["w1c"], packed["b1"]
    w2, b2 = packed["w2"], packed["b2"]
    w3, b3 = packed["w3"], packed["b3"]
    w4, b4 = packed["w4"], packed["b4"]
    w5, b5 = packed["w5"], packed["b5"]

    H1, H2, H3, H4 = w1f.shape[1], w2.shape[1], w3.shape[1], w4.shape[1]

    def resident(shape):
        # Constant block index => stays VMEM-resident across the whole grid.
        return pl.BlockSpec(shape, lambda i: (0, 0))

    out_t = pl.pallas_call(
        _mlp_kernel,
        out_shape=jax.ShapeDtypeStruct((1, M_pad), jnp.float32),
        grid_spec=pltpu.PrefetchScalarGridSpec(
            num_scalar_prefetch=0,
            grid=(num_tiles,),
            in_specs=[
                pl.BlockSpec((tile_m, F), lambda i: (i, 0)),     # features tile
                pl.BlockSpec((tile_m, 3), lambda i: (i, 0)),     # coords tile
                resident((F, H1)), resident((3, H1)), resident((1, H1)),
                resident((H1, H2)), resident((1, H2)),
                resident((H2, H3)), resident((1, H3)),
                resident((H3, H4)), resident((1, H4)),
                resident((1, H4)), resident((1, 1)),
            ],
            out_specs=pl.BlockSpec((1, tile_m), lambda i: (0, i)),   # lane-dense
        ),
        compiler_params=pltpu.CompilerParams(
            dimension_semantics=("parallel",)),
    )(feat2d, crd2d, w1f, w1c, b1, w2, b2, w3, b3, w4, b4, w5, b5)

    occ = out_t.reshape(M_pad)[:M].reshape(B, N, 1)
    return occ


def init_params(key, feature_size, hidden_sizes=(512, 256, 128, 64), output_size=1):
    """Deterministic synthetic parameters, PyTorch Linear layout: W [out, in], b [out]."""
    params = []
    in_size = feature_size + 3
    sizes = list(hidden_sizes) + [output_size]
    for out_size in sizes:
        key, kw, kb = jax.random.split(key, 3)
        scale = 1.0 / jnp.sqrt(in_size)
        w = jax.random.uniform(kw, (out_size, in_size), jnp.float32, -scale, scale)
        b = jax.random.uniform(kb, (out_size,), jnp.float32, -scale, scale)
        params.append((w, b))
        in_size = out_size
    return params


def _reference(image_features, coords, params):
    x = jnp.concatenate([image_features, coords], axis=-1).astype(jnp.float32)
    h = x
    for (w, b) in params[:-1]:
        h = jnp.maximum(h @ w.T + b, 0.0)
    w, b = params[-1]
    return jax.nn.sigmoid(h @ w.T + b)


if __name__ == "__main__":
    key = jax.random.PRNGKey(0)
    k_feat, k_coord, k_param = jax.random.split(key, 3)

    B, N, F = 2, 1024, 29          # Din = F + 3 = 32, M = 2048 rows -> grid = 4 @ tile_m=512
    image_features = jax.random.normal(k_feat, (B, N, F), jnp.float32)
    coords = jax.random.uniform(k_coord, (B, N, 3), jnp.float32, -1.0, 1.0)

    params = init_params(k_param, F)
    packed = prepare_params(params)          # one-time: transpose + bf16 cast

    occ = implicit_occupancy_decoder(image_features, coords, packed, tile_m=512)
    occ = jax.block_until_ready(occ)

    ref = _reference(image_features, coords, params)
    assert occ.shape == (B, N, 1), occ.shape
    max_err = float(jnp.max(jnp.abs(occ - ref)))
    # bf16 matmuls vs. f32 reference: sigmoid outputs agree well inside 2e-2.
    assert max_err < 2e-2, f"mismatch vs pure-JAX reference, max abs err={max_err}"

    print("KERNEL_OK")
</pallas_src>

<mosaic_0001>
module attributes {stable_mosaic.version = 11 : i64} {
  func.func @_mlp_kernel(%arg0: i32, %arg1: memref<512x29xf32, #tpu.memory_space<vmem>>, %arg2: memref<512x3xf32, #tpu.memory_space<vmem>>, %arg3: memref<29x512xbf16, #tpu.memory_space<vmem>>, %arg4: memref<3x512xf32, #tpu.memory_space<vmem>>, %arg5: memref<1x512xf32, #tpu.memory_space<vmem>>, %arg6: memref<512x256xbf16, #tpu.memory_space<vmem>>, %arg7: memref<1x256xf32, #tpu.memory_space<vmem>>, %arg8: memref<256x128xbf16, #tpu.memory_space<vmem>>, %arg9: memref<1x128xf32, #tpu.memory_space<vmem>>, %arg10: memref<128x64xbf16, #tpu.memory_space<vmem>>, %arg11: memref<1x64xf32, #tpu.memory_space<vmem>>, %arg12: memref<1x64xf32, #tpu.memory_space<vmem>>, %arg13: memref<1x1xf32, #tpu.memory_space<vmem>>, %arg14: memref<1x512xf32, #tpu.memory_space<vmem>>) attributes {dimension_semantics = [#tpu.dimension_semantics<parallel>], iteration_bounds = array<i64: 4>, scalar_prefetch = 0 : i64, scratch_operands = 0 : i64, tpu.core_type = #tpu.core_type<tc>, window_params = [{transform_indices = @transform_0, window_bounds = array<i64: 512, 29>}, {transform_indices = @transform_1, window_bounds = array<i64: 512, 3>}, {pipeline_mode = #tpu.pipeline_mode<synchronous>, transform_indices = @transform_2, window_bounds = array<i64: 29, 512>}, {pipeline_mode = #tpu.pipeline_mode<synchronous>, transform_indices = @transform_3, window_bounds = array<i64: 3, 512>}, {pipeline_mode = #tpu.pipeline_mode<synchronous>, transform_indices = @transform_4, window_bounds = array<i64: 1, 512>}, {pipeline_mode = #tpu.pipeline_mode<synchronous>, transform_indices = @transform_5, window_bounds = array<i64: 512, 256>}, {pipeline_mode = #tpu.pipeline_mode<synchronous>, transform_indices = @transform_6, window_bounds = array<i64: 1, 256>}, {pipeline_mode = #tpu.pipeline_mode<synchronous>, transform_indices = @transform_7, window_bounds = array<i64: 256, 128>}, {pipeline_mode = #tpu.pipeline_mode<synchronous>, transform_indices = @transform_8, window_bounds = array<i64: 1, 128>}, {pipeline_mode = #tpu.pipeline_mode<synchronous>, transform_indices = @transform_9, window_bounds = array<i64: 128, 64>}, {pipeline_mode = #tpu.pipeline_mode<synchronous>, transform_indices = @transform_10, window_bounds = array<i64: 1, 64>}, {pipeline_mode = #tpu.pipeline_mode<synchronous>, transform_indices = @transform_11, window_bounds = array<i64: 1, 64>}, {pipeline_mode = #tpu.pipeline_mode<synchronous>, transform_indices = @transform_12, window_bounds = array<i64: 1, 1>}, {transform_indices = @transform_13, window_bounds = array<i64: 1, 512>}]} {
    %c0 = arith.constant 0 : index
    %c0_0 = arith.constant 0 : index
    %0 = vector.load %arg1[%c0, %c0_0] : memref<512x29xf32, #tpu.memory_space<vmem>>, vector<512x29xf32>
    %c0_1 = arith.constant 0 : index
    %c0_2 = arith.constant 0 : index
    %1 = vector.load %arg2[%c0_1, %c0_2] : memref<512x3xf32, #tpu.memory_space<vmem>>, vector<512x3xf32>
    %2 = arith.truncf %0 : vector<512x29xf32> to vector<512x29xbf16>
    %c0_3 = arith.constant 0 : index
    %c0_4 = arith.constant 0 : index
    %3 = vector.load %arg3[%c0_3, %c0_4] : memref<29x512xbf16, #tpu.memory_space<vmem>>, vector<29x512xbf16>
    %cst = arith.constant dense<0.000000e+00> : vector<512x512xf32>
    %4 = tpu.matmul %2, %3, %cst {dimension_numbers = #tpu.dot_dimension_numbers<[1], [0], [0], [1], [0, 0, 1, 1], [], []>} : vector<512x29xbf16>, vector<29x512xbf16>, vector<512x512xf32> -> vector<512x512xf32>
    %c0_5 = arith.constant 0 : index
    %c0_6 = arith.constant 0 : index
    %5 = vector.load %arg4[%c0_5, %c0_6] : memref<3x512xf32, #tpu.memory_space<vmem>>, vector<3x512xf32>
    %6 = vector.extract_strided_slice %1 {offsets = [0, 0], sizes = [512, 1], strides = [1, 1]} : vector<512x3xf32> to vector<512x1xf32>
    %7 = vector.extract_strided_slice %5 {offsets = [0, 0], sizes = [1, 512], strides = [1, 1]} : vector<3x512xf32> to vector<1x512xf32>
    %8 = vector.broadcast %6 : vector<512x1xf32> to vector<512x512xf32>
    %9 = vector.broadcast %7 : vector<1x512xf32> to vector<512x512xf32>
    %10 = arith.mulf %8, %9 : vector<512x512xf32>
    %11 = vector.extract_strided_slice %1 {offsets = [0, 1], sizes = [512, 1], strides = [1, 1]} : vector<512x3xf32> to vector<512x1xf32>
    %12 = vector.extract_strided_slice %5 {offsets = [1, 0], sizes = [1, 512], strides = [1, 1]} : vector<3x512xf32> to vector<1x512xf32>
    %13 = vector.broadcast %11 : vector<512x1xf32> to vector<512x512xf32>
    %14 = vector.broadcast %12 : vector<1x512xf32> to vector<512x512xf32>
    %15 = arith.mulf %13, %14 : vector<512x512xf32>
    %16 = arith.addf %10, %15 : vector<512x512xf32>
    %17 = vector.extract_strided_slice %1 {offsets = [0, 2], sizes = [512, 1], strides = [1, 1]} : vector<512x3xf32> to vector<512x1xf32>
    %18 = vector.extract_strided_slice %5 {offsets = [2, 0], sizes = [1, 512], strides = [1, 1]} : vector<3x512xf32> to vector<1x512xf32>
    %19 = vector.broadcast %17 : vector<512x1xf32> to vector<512x512xf32>
    %20 = vector.broadcast %18 : vector<1x512xf32> to vector<512x512xf32>
    %21 = arith.mulf %19, %20 : vector<512x512xf32>
    %22 = arith.addf %16, %21 : vector<512x512xf32>
    %23 = arith.addf %4, %22 : vector<512x512xf32>
    %c0_7 = arith.constant 0 : index
    %c0_8 = arith.constant 0 : index
    %24 = vector.load %arg5[%c0_7, %c0_8] : memref<1x512xf32, #tpu.memory_space<vmem>>, vector<1x512xf32>
    %25 = vector.broadcast %24 : vector<1x512xf32> to vector<512x512xf32>
    %26 = arith.addf %23, %25 : vector<512x512xf32>
    %cst_9 = arith.constant 0.000000e+00 : f32
    %27 = vector.broadcast %cst_9 : f32 to vector<512x512xf32>
    %28 = arith.maximumf %26, %27 : vector<512x512xf32>
    %29 = arith.truncf %28 : vector<512x512xf32> to vector<512x512xbf16>
    %c0_10 = arith.constant 0 : index
    %c0_11 = arith.constant 0 : index
    %30 = vector.load %arg6[%c0_10, %c0_11] : memref<512x256xbf16, #tpu.memory_space<vmem>>, vector<512x256xbf16>
    %cst_12 = arith.constant dense<0.000000e+00> : vector<512x256xf32>
    %31 = tpu.matmul %29, %30, %cst_12 {dimension_numbers = #tpu.dot_dimension_numbers<[1], [0], [0], [1], [0, 0, 1, 1], [], []>} : vector<512x512xbf16>, vector<512x256xbf16>, vector<512x256xf32> -> vector<512x256xf32>
    %c0_13 = arith.constant 0 : index
    %c0_14 = arith.constant 0 : index
    %32 = vector.load %arg7[%c0_13, %c0_14] : memref<1x256xf32, #tpu.memory_space<vmem>>, vector<1x256xf32>
    %33 = vector.broadcast %32 : vector<1x256xf32> to vector<512x256xf32>
    %34 = arith.addf %31, %33 : vector<512x256xf32>
    %cst_15 = arith.constant 0.000000e+00 : f32
    %35 = vector.broadcast %cst_15 : f32 to vector<512x256xf32>
    %36 = arith.maximumf %34, %35 : vector<512x256xf32>
    %37 = arith.truncf %36 : vector<512x256xf32> to vector<512x256xbf16>
    %c0_16 = arith.constant 0 : index
    %c0_17 = arith.constant 0 : index
    %38 = vector.load %arg8[%c0_16, %c0_17] : memref<256x128xbf16, #tpu.memory_space<vmem>>, vector<256x128xbf16>
    %cst_18 = arith.constant dense<0.000000e+00> : vector<512x128xf32>
    %39 = tpu.matmul %37, %38, %cst_18 {dimension_numbers = #tpu.dot_dimension_numbers<[1], [0], [0], [1], [0, 0, 1, 1], [], []>} : vector<512x256xbf16>, vector<256x128xbf16>, vector<512x128xf32> -> vector<512x128xf32>
    %c0_19 = arith.constant 0 : index
    %c0_20 = arith.constant 0 : index
    %40 = vector.load %arg9[%c0_19, %c0_20] : memref<1x128xf32, #tpu.memory_space<vmem>>, vector<1x128xf32>
    %41 = vector.broadcast %40 : vector<1x128xf32> to vector<512x128xf32>
    %42 = arith.addf %39, %41 : vector<512x128xf32>
    %cst_21 = arith.constant 0.000000e+00 : f32
    %43 = vector.broadcast %cst_21 : f32 to vector<512x128xf32>
    %44 = arith.maximumf %42, %43 : vector<512x128xf32>
    %45 = arith.truncf %44 : vector<512x128xf32> to vector<512x128xbf16>
    %c0_22 = arith.constant 0 : index
    %c0_23 = arith.constant 0 : index
    %46 = vector.load %arg10[%c0_22, %c0_23] : memref<128x64xbf16, #tpu.memory_space<vmem>>, vector<128x64xbf16>
    %cst_24 = arith.constant dense<0.000000e+00> : vector<512x64xf32>
    %47 = tpu.matmul %45, %46, %cst_24 {dimension_numbers = #tpu.dot_dimension_numbers<[1], [0], [0], [1], [0, 0, 1, 1], [], []>} : vector<512x128xbf16>, vector<128x64xbf16>, vector<512x64xf32> -> vector<512x64xf32>
    %c0_25 = arith.constant 0 : index
    %c0_26 = arith.constant 0 : index
    %48 = vector.load %arg11[%c0_25, %c0_26] : memref<1x64xf32, #tpu.memory_space<vmem>>, vector<1x64xf32>
    %49 = vector.broadcast %48 : vector<1x64xf32> to vector<512x64xf32>
    %50 = arith.addf %47, %49 : vector<512x64xf32>
    %cst_27 = arith.constant 0.000000e+00 : f32
    %51 = vector.broadcast %cst_27 : f32 to vector<512x64xf32>
    %52 = arith.maximumf %50, %51 : vector<512x64xf32>
    %c0_28 = arith.constant 0 : index
    %c0_29 = arith.constant 0 : index
    %53 = vector.load %arg12[%c0_28, %c0_29] : memref<1x64xf32, #tpu.memory_space<vmem>>, vector<1x64xf32>
    %54 = tpu.transpose %52, [1, 0] : vector<512x64xf32> -> vector<64x512xf32>
    %cst_30 = arith.constant dense<0.000000e+00> : vector<1x512xf32>
    %55 = tpu.matmul %53, %54, %cst_30 {dimension_numbers = #tpu.dot_dimension_numbers<[1], [0], [0], [1], [0, 0, 1, 1], [], []>} : vector<1x64xf32>, vector<64x512xf32>, vector<1x512xf32> -> vector<1x512xf32>
    %c0_31 = arith.constant 0 : index
    %c0_32 = arith.constant 0 : index
    %56 = vector.load %arg13[%c0_31, %c0_32] : memref<1x1xf32, #tpu.memory_space<vmem>>, vector<1x1xf32>
    %57 = vector.broadcast %56 : vector<1x1xf32> to vector<1x512xf32>
    %58 = arith.addf %55, %57 : vector<1x512xf32>
    %59 = arith.negf %58 : vector<1x512xf32>
    %60 = math.exp %59 : vector<1x512xf32>
    %cst_33 = arith.constant 1.000000e+00 : f32
    %61 = vector.broadcast %cst_33 : f32 to vector<1x512xf32>
    %62 = arith.addf %61, %60 : vector<1x512xf32>
    %63 = arith.divf %61, %62 : vector<1x512xf32>
    %c0_34 = arith.constant 0 : index
    %c0_35 = arith.constant 0 : index
    %64 = vector.load %arg14[%c0_34, %c0_35] : memref<1x512xf32, #tpu.memory_space<vmem>>, vector<1x512xf32>
    tpu.vector_store %arg14[%c0_34, %c0_35], %63 {strides = array<i32>} : memref<1x512xf32, #tpu.memory_space<vmem>>, vector<1x512xf32>,
    return
  }
  func.func @transform_0(%arg0: i32) -> (i32, i32) {
    %c0_i32 = arith.constant 0 : i32
    %c0_i32_0 = arith.constant 0 : i32
    return %arg0, %c0_i32 : i32, i32
  }
  func.func @transform_1(%arg0: i32) -> (i32, i32) {
    %c0_i32 = arith.constant 0 : i32
    %c0_i32_0 = arith.constant 0 : i32
    return %arg0, %c0_i32 : i32, i32
  }
  func.func @transform_2(%arg0: i32) -> (i32, i32) {
    %c0_i32 = arith.constant 0 : i32
    %c0_i32_0 = arith.constant 0 : i32
    %c0_i32_1 = arith.constant 0 : i32
    return %c0_i32, %c0_i32_0 : i32, i32
  }
  func.func @transform_3(%arg0: i32) -> (i32, i32) {
    %c0_i32 = arith.constant 0 : i32
    %c0_i32_0 = arith.constant 0 : i32
    %c0_i32_1 = arith.constant 0 : i32
    return %c0_i32, %c0_i32_0 : i32, i32
  }
  func.func @transform_4(%arg0: i32) -> (i32, i32) {
    %c0_i32 = arith.constant 0 : i32
    %c0_i32_0 = arith.constant 0 : i32
    %c0_i32_1 = arith.constant 0 : i32
    return %c0_i32, %c0_i32_0 : i32, i32
  }
  func.func @transform_5(%arg0: i32) -> (i32, i32) {
    %c0_i32 = arith.constant 0 : i32
    %c0_i32_0 = arith.constant 0 : i32
    %c0_i32_1 = arith.constant 0 : i32
    return %c0_i32, %c0_i32_0 : i32, i32
  }
  func.func @transform_6(%arg0: i32) -> (i32, i32) {
    %c0_i32 = arith.constant 0 : i32
    %c0_i32_0 = arith.constant 0 : i32
    %c0_i32_1 = arith.constant 0 : i32
    return %c0_i32, %c0_i32_0 : i32, i32
  }
  func.func @transform_7(%arg0: i32) -> (i32, i32) {
    %c0_i32 = arith.constant 0 : i32
    %c0_i32_0 = arith.constant 0 : i32
    %c0_i32_1 = arith.constant 0 : i32
    return %c0_i32, %c0_i32_0 : i32, i32
  }
  func.func @transform_8(%arg0: i32) -> (i32, i32) {
    %c0_i32 = arith.constant 0 : i32
    %c0_i32_0 = arith.constant 0 : i32
    %c0_i32_1 = arith.constant 0 : i32
    return %c0_i32, %c0_i32_0 : i32, i32
  }
  func.func @transform_9(%arg0: i32) -> (i32, i32) {
    %c0_i32 = arith.constant 0 : i32
    %c0_i32_0 = arith.constant 0 : i32
    %c0_i32_1 = arith.constant 0 : i32
    return %c0_i32, %c0_i32_0 : i32, i32
  }
  func.func @transform_10(%arg0: i32) -> (i32, i32) {
    %c0_i32 = arith.constant 0 : i32
    %c0_i32_0 = arith.constant 0 : i32
    %c0_i32_1 = arith.constant 0 : i32
    return %c0_i32, %c0_i32_0 : i32, i32
  }
  func.func @transform_11(%arg0: i32) -> (i32, i32) {
    %c0_i32 = arith.constant 0 : i32
    %c0_i32_0 = arith.constant 0 : i32
    %c0_i32_1 = arith.constant 0 : i32
    return %c0_i32, %c0_i32_0 : i32, i32
  }
  func.func @transform_12(%arg0: i32) -> (i32, i32) {
    %c0_i32 = arith.constant 0 : i32
    %c0_i32_0 = arith.constant 0 : i32
    %c0_i32_1 = arith.constant 0 : i32
    return %c0_i32, %c0_i32_0 : i32, i32
  }
  func.func @transform_13(%arg0: i32) -> (i32, i32) {
    %c0_i32 = arith.constant 0 : i32
    %c0_i32_0 = arith.constant 0 : i32
    return %c0_i32, %arg0 : i32, i32
  }
}

</mosaic_0001>

<llo_original>
// kernel: implicit_occupancy_decoder.1
$region0: #{implicit_occupancy_decoder.1}
  #allocation0 [shape = 'u32[]', space=smem, size = 0x4, offset = 0x4, fixed_abs, tag = 'smem constant byte address 0x4 - core index']
  #allocation1 [shape = 'u32[144,128]{1,0:T(1,128)}', space=vmem, size = 0x12000, scoped, tag = 'internal scratch']
  #allocation2 [shape = 'f32[1,1]{1,0:T(1,128)S(1)}', space=vmem, size = 0x200, scoped, tag = 'scoped memory for implicit_occupancy_decoder.1']
  %s0 = inlined_call_operand.vmem [shape: f32[2048,29], index: 0, kind: input, shape index: {}]
  %s1 = inlined_call_operand.vmem [shape: f32[2048,3], index: 1, kind: input, shape index: {}]
  %s2 = inlined_call_operand.vmem [shape: bf16[29,512], index: 2, kind: input, shape index: {}]
  %s3 = inlined_call_operand.vmem [shape: f32[3,512], index: 3, kind: input, shape index: {}]
  %s4 = inlined_call_operand.vmem [shape: f32[1,512], index: 4, kind: input, shape index: {}]
  %s5 = inlined_call_operand.vmem [shape: bf16[512,256], index: 5, kind: input, shape index: {}]
  %s6 = inlined_call_operand.vmem [shape: f32[1,256], index: 6, kind: input, shape index: {}]
  %s7 = inlined_call_operand.vmem [shape: bf16[256,128], index: 7, kind: input, shape index: {}]
  %s8 = inlined_call_operand.vmem [shape: f32[1,128], index: 8, kind: input, shape index: {}]
  %s9 = inlined_call_operand.vmem [shape: bf16[128,64], index: 9, kind: input, shape index: {}]
  %s10 = inlined_call_operand.vmem [shape: f32[1,64], index: 10, kind: input, shape index: {}]
  %s11 = inlined_call_operand.vmem [shape: f32[1,64], index: 11, kind: input, shape index: {}]
  %s12 = inlined_call_operand.<no memory space> [shape: f32[1,1], index: 12, kind: input, shape index: {}]
  %s13 = inlined_call_operand.hbm [shape: f32[1,2048], index: 13, kind: output, shape index: {}]
  %s14 = sld [smem:[#allocation0]]
  $region85: #{implicit_occupancy_decoder.1} parent=0
    _
  %s16 = ssub.s32 1, %s14
  %s17 = scalar_select 0, %s16, %s14
  %v18 = vstv %s12
  %19 = vst [vmem:[#allocation2] sm:$0x1] %v18
  $region1: #{implicit_occupancy_decoder.1} parent=0
    #allocation3 [shape = 'u8[4096]{0}', space=vmem, size = 0x1000, scoped, tag = 'output window, operand 0']
    #allocation4 [shape = 's32[2]{0}', space=sflag, size = 0x8, scoped, tag = 'scoped memory for implicit_occupancy_decoder.1']
    %20 = vsyncpa [#allocation4], 0
    %s21 = scalar_lea.sflag [#allocation4], 1
    %22 = vsyncpa %s21, 0
    loop: start=0, step=1, limit=6
    $region2: #{implicit_occupancy_decoder.1} parent=1 // loop_pre_header
      _
    $region3: #{implicit_occupancy_decoder.1} parent=1 // loop_header
      %s24 = sphi 0, %s28
      %p25 = scmp.ge.s32.totalorder %s24, 6
      %s34 = sphi 0, %s36
      %s37 = sphi 0, %s34
      %s38 = sphi 0, %s37
      %s54 = sphi 0, %s38
      %s60 = sphi 0, %s62
      %s63 = sphi 0, %s60
      %s64 = sphi 0, %s63
      %s80 = sphi 0, %s64
      %s84 = sphi 0, %s84
      %s86 = sphi 0, %s84
      %s87 = sphi 0, %s86
      %s101 = sphi 0, %s87
      %s105 = sphi 0, %s105
      %s107 = sphi 0, %s105
      %s108 = sphi 0, %s107
      %s122 = sphi 0, %s108
      %s126 = sphi 0, %s126
      %s128 = sphi 0, %s126
      %s129 = sphi 0, %s128
      %s143 = sphi 0, %s129
      %s147 = sphi 0, %s147
      %s149 = sphi 0, %s147
      %s150 = sphi 0, %s149
      %s164 = sphi 0, %s150
      %s168 = sphi 0, %s168
      %s170 = sphi 0, %s168
      %s171 = sphi 0, %s170
      %s185 = sphi 0, %s171
      %s189 = sphi 0, %s189
      %s191 = sphi 0, %s189
      %s192 = sphi 0, %s191
      %s206 = sphi 0, %s192
      %s210 = sphi 0, %s210
      %s212 = sphi 0, %s210
      %s213 = sphi 0, %s212
      %s227 = sphi 0, %s213
      %s231 = sphi 0, %s231
      %s233 = sphi 0, %s231
      %s234 = sphi 0, %s233
      %s248 = sphi 0, %s234
      %s252 = sphi 0, %s252
      %s254 = sphi 0, %s252
      %s255 = sphi 0, %s254
      %s269 = sphi 0, %s255
      %s273 = sphi 0, %s273
      %s275 = sphi 0, %s273
      %s276 = sphi 0, %s275
      %s290 = sphi 0, %s276
      %s294 = sphi 0, %s294
      %s296 = sphi 0, %s294
      %s297 = sphi 0, %s296
      %s311 = sphi 0, %s297
      %s317 = sphi 0, %s319
      %s320 = sphi 0, %s317
      %s321 = sphi 0, %s320
      %s337 = sphi 0, %s321
    $region4: #{implicit_occupancy_decoder.1} parent=1 // loop_header_branch
      %27 = sbr.rel (%p25) target = $region8
    $region5: #{implicit_occupancy_decoder.1} parent=1 // loop_body
      %s29 = ssub.s32 %s24, 1
      %s30 = ssub.s32 %s24, 2
      %s31 = sadd.s32 %s24, 1
      %s32 = ssub.s32 %s24, %s31
      %p33 = scmp.eq.s32.totalorder %s32, 0
      %s35 = sadd.s32 %s34, 1
      %s36 = scalar_select %p33, %s34, %s35
      %p39 = pneg %p33
      %p40 = scmp.eq.s32.totalorder %s24, 3
      %p41 = por %p39, %p40
      %p42 = scmp.ne.s32.totalorder %s34, %s37
      %p43 = scmp.eq.s32.totalorder %s24, 0
      %p44 = por %p42, %p43
      %p45 = scmp.ne.s32.totalorder %s34, %s37
      %p46 = scmp.eq.s32.totalorder %s29, 3
      %p47 = por %p45, %p46
      %p48 = scmp.ne.s32.totalorder %s37, %s38
      %p49 = scmp.eq.s32.totalorder %s29, 0
      %p50 = por %p48, %p49
      %p51 = scmp.ne.s32.totalorder %s37, %s38
      %p52 = scmp.eq.s32.totalorder %s30, 3
      %p53 = por %p51, %p52
      %p55 = scmp.ne.s32.totalorder %s38, %s54
      %p56 = scmp.eq.s32.totalorder %s30, 0
      %p57 = por %p55, %p56
      %s58 = ssub.s32 %s24, %s31
      %p59 = scmp.eq.s32.totalorder %s58, 0
      %s61 = sadd.s32 %s60, 1
      %s62 = scalar_select %p59, %s60, %s61
      %p65 = pneg %p59
      %p66 = scmp.eq.s32.totalorder %s24, 3
      %p67 = por %p65, %p66
      %p68 = scmp.ne.s32.totalorder %s60, %s63
      %p69 = scmp.eq.s32.totalorder %s24, 0
      %p70 = por %p68, %p69
      %p71 = scmp.ne.s32.totalorder %s60, %s63
      %p72 = scmp.eq.s32.totalorder %s29, 3
      %p73 = por %p71, %p72
      %p74 = scmp.ne.s32.totalorder %s63, %s64
      %p75 = scmp.eq.s32.totalorder %s29, 0
      %p76 = por %p74, %p75
      %p77 = scmp.ne.s32.totalorder %s63, %s64
      %p78 = scmp.eq.s32.totalorder %s30, 3
      %p79 = por %p77, %p78
      %p81 = scmp.ne.s32.totalorder %s64, %s80
      %p82 = scmp.eq.s32.totalorder %s30, 0
      %p83 = por %p81, %p82
      %s85 = sadd.s32 %s84, 1
      %p88 = scmp.eq.s32.totalorder %s24, 3
      %p89 = scmp.ne.s32.totalorder %s84, %s86
      %p90 = scmp.eq.s32.totalorder %s24, 0
      %p91 = por %p89, %p90
      %p92 = scmp.ne.s32.totalorder %s84, %s86
      %p93 = scmp.eq.s32.totalorder %s29, 3
      %p94 = por %p92, %p93
      %p95 = scmp.ne.s32.totalorder %s86, %s87
      %p96 = scmp.eq.s32.totalorder %s29, 0
      %p97 = por %p95, %p96
      %p98 = scmp.ne.s32.totalorder %s86, %s87
      %p99 = scmp.eq.s32.totalorder %s30, 3
      %p100 = por %p98, %p99
      %p102 = scmp.ne.s32.totalorder %s87, %s101
      %p103 = scmp.eq.s32.totalorder %s30, 0
      %p104 = por %p102, %p103
      %s106 = sadd.s32 %s105, 1
      %p109 = scmp.eq.s32.totalorder %s24, 3
      %p110 = scmp.ne.s32.totalorder %s105, %s107
      %p111 = scmp.eq.s32.totalorder %s24, 0
      %p112 = por %p110, %p111
      %p113 = scmp.ne.s32.totalorder %s105, %s107
      %p114 = scmp.eq.s32.totalorder %s29, 3
      %p115 = por %p113, %p114
      %p116 = scmp.ne.s32.totalorder %s107, %s108
      %p117 = scmp.eq.s32.totalorder %s29, 0
      %p118 = por %p116, %p117
      %p119 = scmp.ne.s32.totalorder %s107, %s108
      %p120 = scmp.eq.s32.totalorder %s30, 3
      %p121 = por %p119, %p120
      %p123 = scmp.ne.s32.totalorder %s108, %s122
      %p124 = scmp.eq.s32.totalorder %s30, 0
      %p125 = por %p123, %p124
      %s127 = sadd.s32 %s126, 1
      %p130 = scmp.eq.s32.totalorder %s24, 3
      %p131 = scmp.ne.s32.totalorder %s126, %s128
      %p132 = scmp.eq.s32.totalorder %s24, 0
      %p133 = por %p131, %p132
      %p134 = scmp.ne.s32.totalorder %s126, %s128
      %p135 = scmp.eq.s32.totalorder %s29, 3
      %p136 = por %p134, %p135
      %p137 = scmp.ne.s32.totalorder %s128, %s129
      %p138 = scmp.eq.s32.totalorder %s29, 0
      %p139 = por %p137, %p138
      %p140 = scmp.ne.s32.totalorder %s128, %s129
      %p141 = scmp.eq.s32.totalorder %s30, 3
      %p142 = por %p140, %p141
      %p144 = scmp.ne.s32.totalorder %s129, %s143
      %p145 = scmp.eq.s32.totalorder %s30, 0
      %p146 = por %p144, %p145
      %s148 = sadd.s32 %s147, 1
      %p151 = scmp.eq.s32.totalorder %s24, 3
      %p152 = scmp.ne.s32.totalorder %s147, %s149
      %p153 = scmp.eq.s32.totalorder %s24, 0
      %p154 = por %p152, %p153
      %p155 = scmp.ne.s32.totalorder %s147, %s149
      %p156 = scmp.eq.s32.totalorder %s29, 3
      %p157 = por %p155, %p156
      %p158 = scmp.ne.s32.totalorder %s149, %s150
      %p159 = scmp.eq.s32.totalorder %s29, 0
      %p160 = por %p158, %p159
      %p161 = scmp.ne.s32.totalorder %s149, %s150
      %p162 = scmp.eq.s32.totalorder %s30, 3
      %p163 = por %p161, %p162
      %p165 = scmp.ne.s32.totalorder %s150, %s164
      %p166 = scmp.eq.s32.totalorder %s30, 0
      %p167 = por %p165, %p166
      %s169 = sadd.s32 %s168, 1
      %p172 = scmp.eq.s32.totalorder %s24, 3
      %p173 = scmp.ne.s32.totalorder %s168, %s170
      %p174 = scmp.eq.s32.totalorder %s24, 0
      %p175 = por %p173, %p174
      %p176 = scmp.ne.s32.totalorder %s168, %s170
      %p177 = scmp.eq.s32.totalorder %s29, 3
      %p178 = por %p176, %p177
      %p179 = scmp.ne.s32.totalorder %s170, %s171
      %p180 = scmp.eq.s32.totalorder %s29, 0
      %p181 = por %p179, %p180
      %p182 = scmp.ne.s32.totalorder %s170, %s171
      %p183 = scmp.eq.s32.totalorder %s30, 3
      %p184 = por %p182, %p183
      %p186 = scmp.ne.s32.totalorder %s171, %s185
      %p187 = scmp.eq.s32.totalorder %s30, 0
      %p188 = por %p186, %p187
      %s190 = sadd.s32 %s189, 1
      %p193 = scmp.eq.s32.totalorder %s24, 3
      %p194 = scmp.ne.s32.totalorder %s189, %s191
      %p195 = scmp.eq.s32.totalorder %s24, 0
      %p196 = por %p194, %p195
      %p197 = scmp.ne.s32.totalorder %s189, %s191
      %p198 = scmp.eq.s32.totalorder %s29, 3
      %p199 = por %p197, %p198
      %p200 = scmp.ne.s32.totalorder %s191, %s192
      %p201 = scmp.eq.s32.totalorder %s29, 0
      %p202 = por %p200, %p201
      %p203 = scmp.ne.s32.totalorder %s191, %s192
      %p204 = scmp.eq.s32.totalorder %s30, 3
      %p205 = por %p203, %p204
      %p207 = scmp.ne.s32.totalorder %s192, %s206
      %p208 = scmp.eq.s32.totalorder %s30, 0
      %p209 = por %p207, %p208
      %s211 = sadd.s32 %s210, 1
      %p214 = scmp.eq.s32.totalorder %s24, 3
      %p215 = scmp.ne.s32.totalorder %s210, %s212
      %p216 = scmp.eq.s32.totalorder %s24, 0
      %p217 = por %p215, %p216
      %p218 = scmp.ne.s32.totalorder %s210, %s212
      %p219 = scmp.eq.s32.totalorder %s29, 3
      %p220 = por %p218, %p219
      %p221 = scmp.ne.s32.totalorder %s212, %s213
      %p222 = scmp.eq.s32.totalorder %s29, 0
      %p223 = por %p221, %p222
      %p224 = scmp.ne.s32.totalorder %s212, %s213
      %p225 = scmp.eq.s32.totalorder %s30, 3
      %p226 = por %p224, %p225
      %p228 = scmp.ne.s32.totalorder %s213, %s227
      %p229 = scmp.eq.s32.totalorder %s30, 0
      %p230 = por %p228, %p229
      %s232 = sadd.s32 %s231, 1
      %p235 = scmp.eq.s32.totalorder %s24, 3
      %p236 = scmp.ne.s32.totalorder %s231, %s233
      %p237 = scmp.eq.s32.totalorder %s24, 0
      %p238 = por %p236, %p237
      %p239 = scmp.ne.s32.totalorder %s231, %s233
      %p240 = scmp.eq.s32.totalorder %s29, 3
      %p241 = por %p239, %p240
      %p242 = scmp.ne.s32.totalorder %s233, %s234
      %p243 = scmp.eq.s32.totalorder %s29, 0
      %p244 = por %p242, %p243
      %p245 = scmp.ne.s32.totalorder %s233, %s234
      %p246 = scmp.eq.s32.totalorder %s30, 3
      %p247 = por %p245, %p246
      %p249 = scmp.ne.s32.totalorder %s234, %s248
      %p250 = scmp.eq.s32.totalorder %s30, 0
      %p251 = por %p249, %p250
      %s253 = sadd.s32 %s252, 1
      %p256 = scmp.eq.s32.totalorder %s24, 3
      %p257 = scmp.ne.s32.totalorder %s252, %s254
      %p258 = scmp.eq.s32.totalorder %s24, 0
      %p259 = por %p257, %p258
      %p260 = scmp.ne.s32.totalorder %s252, %s254
      %p261 = scmp.eq.s32.totalorder %s29, 3
      %p262 = por %p260, %p261
      %p263 = scmp.ne.s32.totalorder %s254, %s255
      %p264 = scmp.eq.s32.totalorder %s29, 0
      %p265 = por %p263, %p264
      %p266 = scmp.ne.s32.totalorder %s254, %s255
      %p267 = scmp.eq.s32.totalorder %s30, 3
      %p268 = por %p266, %p267
      %p270 = scmp.ne.s32.totalorder %s255, %s269
      %p271 = scmp.eq.s32.totalorder %s30, 0
      %p272 = por %p270, %p271
      %s274 = sadd.s32 %s273, 1
      %p277 = scmp.eq.s32.totalorder %s24, 3
      %p278 = scmp.ne.s32.totalorder %s273, %s275
      %p279 = scmp.eq.s32.totalorder %s24, 0
      %p280 = por %p278, %p279
      %p281 = scmp.ne.s32.totalorder %s273, %s275
      %p282 = scmp.eq.s32.totalorder %s29, 3
      %p283 = por %p281, %p282
      %p284 = scmp.ne.s32.totalorder %s275, %s276
      %p285 = scmp.eq.s32.totalorder %s29, 0
      %p286 = por %p284, %p285
      %p287 = scmp.ne.s32.totalorder %s275, %s276
      %p288 = scmp.eq.s32.totalorder %s30, 3
      %p289 = por %p287, %p288
      %p291 = scmp.ne.s32.totalorder %s276, %s290
      %p292 = scmp.eq.s32.totalorder %s30, 0
      %p293 = por %p291, %p292
      %s295 = sadd.s32 %s294, 1
      %p298 = scmp.eq.s32.totalorder %s24, 3
      %p299 = scmp.ne.s32.totalorder %s294, %s296
      %p300 = scmp.eq.s32.totalorder %s24, 0
      %p301 = por %p299, %p300
      %p302 = scmp.ne.s32.totalorder %s294, %s296
      %p303 = scmp.eq.s32.totalorder %s29, 3
      %p304 = por %p302, %p303
      %p305 = scmp.ne.s32.totalorder %s296, %s297
      %p306 = scmp.eq.s32.totalorder %s29, 0
      %p307 = por %p305, %p306
      %p308 = scmp.ne.s32.totalorder %s296, %s297
      %p309 = scmp.eq.s32.totalorder %s30, 3
      %p310 = por %p308, %p309
      %p312 = scmp.ne.s32.totalorder %s297, %s311
      %p313 = scmp.eq.s32.totalorder %s30, 0
      %p314 = por %p312, %p313
      %s315 = ssub.s32 %s24, %s31
      %p316 = scmp.eq.s32.totalorder %s315, 0
      %s318 = sadd.s32 %s317, 1
      %s319 = scalar_select %p316, %s317, %s318
      %p322 = pneg %p316
      %p323 = scmp.eq.s32.totalorder %s24, 3
      %p324 = por %p322, %p323
      %p325 = scmp.ne.s32.totalorder %s317, %s320
      %p326 = scmp.eq.s32.totalorder %s24, 0
      %p327 = por %p325, %p326
      %p328 = scmp.ne.s32.totalorder %s317, %s320
      %p329 = scmp.eq.s32.totalorder %s29, 3
      %p330 = por %p328, %p329
      %p331 = scmp.ne.s32.totalorder %s320, %s321
      %p332 = scmp.eq.s32.totalorder %s29, 0
      %p333 = por %p331, %p332
      %p334 = scmp.ne.s32.totalorder %s320, %s321
      %p335 = scmp.eq.s32.totalorder %s30, 3
      %p336 = por %p334, %p335
      %p338 = scmp.ne.s32.totalorder %s321, %s337
      %p339 = scmp.eq.s32.totalorder %s30, 0
      %p340 = por %p338, %p339
      %p341 = scmp.le.s32.totalorder 1, %s24
      %p342 = scmp.lt.s32.totalorder %s24, 5
      %p343 = pnand %p341, %p342
      %p344 = pneg %p343
      // Predicated region
      $region9: #{implicit_occupancy_decoder.1} parent=5 // pred_check
        _
      $region10: #{implicit_occupancy_decoder.1} parent=5 // pred_check_branch
        %346 = sbr.rel (%p343) target = $region12
      $region11: #{implicit_occupancy_decoder.1} parent=5 // pred_region
        %s347 = ssub.s32 %s24, 1
        // Predicated region
        $region13: #{implicit_occupancy_decoder.1} parent=11 // pred_check
          %p348 = pneg %p97
        $region14: #{implicit_occupancy_decoder.1} parent=11 // pred_check_branch
          %350 = sbr.rel (%p348) target = $region16
        $region15: #{implicit_occupancy_decoder.1} parent=11 // pred_region
          _
        $region16: #{implicit_occupancy_decoder.1} parent=11 // pred_fallthru
          _
        // Predicated region
        $region17: #{implicit_occupancy_decoder.1} parent=11 // pred_check
          %p351 = pneg %p118
        $region18: #{implicit_occupancy_decoder.1} parent=11 // pred_check_branch
          %353 = sbr.rel (%p351) target = $region20
        $region19: #{implicit_occupancy_decoder.1} parent=11 // pred_region
          _
        $region20: #{implicit_occupancy_decoder.1} parent=11 // pred_fallthru
          _
        // Predicated region
        $region21: #{implicit_occupancy_decoder.1} parent=11 // pred_check
          %p354 = pneg %p139
        $region22: #{implicit_occupancy_decoder.1} parent=11 // pred_check_branch
          %356 = sbr.rel (%p354) target = $region24
        $region23: #{implicit_occupancy_decoder.1} parent=11 // pred_region
          _
        $region24: #{implicit_occupancy_decoder.1} parent=11 // pred_fallthru
          _
        // Predicated region
        $region25: #{implicit_occupancy_decoder.1} parent=11 // pred_check
          %p357 = pneg %p160
        $region26: #{implicit_occupancy_decoder.1} parent=11 // pred_check_branch
          %359 = sbr.rel (%p357) target = $region28
        $region27: #{implicit_occupancy_decoder.1} parent=11 // pred_region
          _
        $region28: #{implicit_occupancy_decoder.1} parent=11 // pred_fallthru
          _
        // Predicated region
        $region29: #{implicit_occupancy_decoder.1} parent=11 // pred_check
          %p360 = pneg %p181
        $region30: #{implicit_occupancy_decoder.1} parent=11 // pred_check_branch
          %362 = sbr.rel (%p360) target = $region32
        $region31: #{implicit_occupancy_decoder.1} parent=11 // pred_region
          _
        $region32: #{implicit_occupancy_decoder.1} parent=11 // pred_fallthru
          _
        // Predicated region
        $region33: #{implicit_occupancy_decoder.1} parent=11 // pred_check
          %p363 = pneg %p202
        $region34: #{implicit_occupancy_decoder.1} parent=11 // pred_check_branch
          %365 = sbr.rel (%p363) target = $region36
        $region35: #{implicit_occupancy_decoder.1} parent=11 // pred_region
          _
        $region36: #{implicit_occupancy_decoder.1} parent=11 // pred_fallthru
          _
        // Predicated region
        $region37: #{implicit_occupancy_decoder.1} parent=11 // pred_check
          %p366 = pneg %p223
        $region38: #{implicit_occupancy_decoder.1} parent=11 // pred_check_branch
          %368 = sbr.rel (%p366) target = $region40
        $region39: #{implicit_occupancy_decoder.1} parent=11 // pred_region
          _
        $region40: #{implicit_occupancy_decoder.1} parent=11 // pred_fallthru
          _
        // Predicated region
        $region41: #{implicit_occupancy_decoder.1} parent=11 // pred_check
          %p369 = pneg %p244
        $region42: #{implicit_occupancy_decoder.1} parent=11 // pred_check_branch
          %371 = sbr.rel (%p369) target = $region44
        $region43: #{implicit_occupancy_decoder.1} parent=11 // pred_region
          _
        $region44: #{implicit_occupancy_decoder.1} parent=11 // pred_fallthru
          _
        // Predicated region
        $region45: #{implicit_occupancy_decoder.1} parent=11 // pred_check
          %p372 = pneg %p265
        $region46: #{implicit_occupancy_decoder.1} parent=11 // pred_check_branch
          %374 = sbr.rel (%p372) target = $region48
        $region47: #{implicit_occupancy_decoder.1} parent=11 // pred_region
          _
        $region48: #{implicit_occupancy_decoder.1} parent=11 // pred_fallthru
          _
        // Predicated region
        $region49: #{implicit_occupancy_decoder.1} parent=11 // pred_check
          %p375 = pneg %p286
        $region50: #{implicit_occupancy_decoder.1} parent=11 // pred_check_branch
          %377 = sbr.rel (%p375) target = $region52
        $region51: #{implicit_occupancy_decoder.1} parent=11 // pred_region
          _
        $region52: #{implicit_occupancy_decoder.1} parent=11 // pred_fallthru
          _
        // Predicated region
        $region53: #{implicit_occupancy_decoder.1} parent=11 // pred_check
          %p378 = pneg %p307
        $region54: #{implicit_occupancy_decoder.1} parent=11 // pred_check_branch
          %380 = sbr.rel (%p378) target = $region56
        $region55: #{implicit_occupancy_decoder.1} parent=11 // pred_region
          _
        $region56: #{implicit_occupancy_decoder.1} parent=11 // pred_fallthru
          _
      $region12: #{implicit_occupancy_decoder.1} parent=5 // pred_fallthru
        _
      %p381 = scmp.lt.s32.totalorder %s24, 4
      // Predicated region
      $region57: #{implicit_occupancy_decoder.1} parent=5 // pred_check
        %p382 = pneg %p381
      $region58: #{implicit_occupancy_decoder.1} parent=5 // pred_check_branch
        %384 = sbr.rel (%p382) target = $region60
      $region59: #{implicit_occupancy_decoder.1} parent=5 // pred_region
        // Predicated region
        $region61: #{implicit_occupancy_decoder.1} parent=59 // pred_check
          %p385 = pneg %p44
        $region62: #{implicit_occupancy_decoder.1} parent=59 // pred_check_branch
          %387 = sbr.rel (%p385) target = $region64
        $region63: #{implicit_occupancy_decoder.1} parent=59 // pred_region
          %s388 = smul.u32 64, %s24
          %p389 = scmp.lt.s32.totalorder %s388, 255
          %s390 = scalar_select %p389, %s388, 255
          %s391 = smul.addr %s390, 8
          %s392 = scalar_lea.vmem %s0, %s391
          %s393 = smul.u32 64, %s24
        $region64: #{implicit_occupancy_decoder.1} parent=59 // pred_fallthru
          _
        // Predicated region
        $region65: #{implicit_occupancy_decoder.1} parent=59 // pred_check
          %p394 = pneg %p70
        $region66: #{implicit_occupancy_decoder.1} parent=59 // pred_check_branch
          %396 = sbr.rel (%p394) target = $region68
        $region67: #{implicit_occupancy_decoder.1} parent=59 // pred_region
          %s397 = smul.u32 64, %s24
          %p398 = scmp.lt.s32.totalorder %s397, 255
          %s399 = scalar_select %p398, %s397, 255
          %s400 = smul.addr %s399, 8
          %s401 = scalar_lea.vmem %s1, %s400
          %s402 = smul.u32 64, %s24
        $region68: #{implicit_occupancy_decoder.1} parent=59 // pred_fallthru
          _
      $region60: #{implicit_occupancy_decoder.1} parent=5 // pred_fallthru
        _
      %p403 = scmp.le.s32.totalorder 1, %s24
      %p404 = scmp.lt.s32.totalorder %s24, 5
      %p405 = pnand %p403, %p404
      %p406 = pneg %p405
      // Predicated region
      $region69: #{implicit_occupancy_decoder.1} parent=5 // pred_check
        _
      $region70: #{implicit_occupancy_decoder.1} parent=5 // pred_check_branch
        %408 = sbr.rel (%p405) target = $region72
      $region71: #{implicit_occupancy_decoder.1} parent=5 // pred_region
        %s409 = ssub.s32 %s24, 1
        %s410 = smul.u32 64, %s29
        %p411 = scmp.lt.s32.totalorder %s410, 255
        %s412 = scalar_select %p411, %s410, 255
        %s413 = smul.addr %s412, 8
        %s414 = scalar_lea.vmem %s0, %s413
        %p415 = pneg %p50
        %p416 = pneg %p47
        %s417 = smul.u32 64, %s29
        %p418 = scmp.lt.s32.totalorder %s417, 255
        %s419 = scalar_select %p418, %s417, 255
        %s420 = smul.addr %s419, 8
        %s421 = scalar_lea.vmem %s1, %s420
        %p422 = pneg %p76
        %p423 = pneg %p73
        %p424 = pneg %p97
        %p425 = pneg %p94
        %p426 = pneg %p118
        %p427 = pneg %p115
        %p428 = pneg %p139
        %p429 = pneg %p136
        %p430 = pneg %p160
        %p431 = pneg %p157
        %p432 = pneg %p181
        %p433 = pneg %p178
        %p434 = pneg %p202
        %p435 = pneg %p199
        %p436 = pneg %p223
        %p437 = pneg %p220
        %p438 = pneg %p244
        %p439 = pneg %p241
        %p440 = pneg %p265
        %p441 = pneg %p262
        %p442 = pneg %p286
        %p443 = pneg %p283
        %p444 = pneg %p307
        %p445 = pneg %p304
        %p446 = pneg %p333
        %p447 = pneg %p330
        %s448 = sand.u32 %s320, 1
        %s449 = scalar_lea.sflag [#allocation4], %s448
        %s450 = sand.u32 %s320, 1
        %s451 = smul.addr %s450, 4
        %s452 = scalar_lea.vmem [#allocation3], %s451
        %s453 = smul.u32 64, %s29
        %p454 = scmp.lt.s32.totalorder %s453, 255
        %s455 = scalar_select %p454, %s453, 255
        %s456 = smul.addr %s455, 8
        %s457 = scalar_lea.vmem %s0, %s456
        %s458 = smul.u32 64, %s29
        %s459 = smul.u32 64, %s29
        %p460 = scmp.lt.s32.totalorder %s459, 255
        %s461 = scalar_select %p460, %s459, 255
        %s462 = smul.addr %s461, 8
        %s463 = scalar_lea.vmem %s1, %s462
        %s464 = smul.u32 64, %s29
        %s465 = smul.u32 4, %s29
        %v467 = vld [vmem:[%s457] sm:$0xff]
        %v468 = vld [vmem:[%s457 + $0x8] sm:$0xff]
        %v469 = vld [vmem:[%s457 + $0x10] sm:$0xff]
        %v470 = vld [vmem:[%s457 + $0x18] sm:$0xff]
        %v471 = vld [vmem:[%s457 + $0x20] sm:$0xff]
        %v472 = vld [vmem:[%s457 + $0x28] sm:$0xff]
        %v473 = vld [vmem:[%s457 + $0x30] sm:$0xff]
        %v474 = vld [vmem:[%s457 + $0x38] sm:$0xff]
        %v475 = vld [vmem:[%s457 + $0x40] sm:$0xff]
        %v476 = vld [vmem:[%s457 + $0x48] sm:$0xff]
        %v477 = vld [vmem:[%s457 + $0x50] sm:$0xff]
        %v478 = vld [vmem:[%s457 + $0x58] sm:$0xff]
        %v479 = vld [vmem:[%s457 + $0x60] sm:$0xff]
        %v480 = vld [vmem:[%s457 + $0x68] sm:$0xff]
        %v481 = vld [vmem:[%s457 + $0x70] sm:$0xff]
        %v482 = vld [vmem:[%s457 + $0x78] sm:$0xff]
        %v483 = vld [vmem:[%s457 + $0x80] sm:$0xff]
        %v484 = vld [vmem:[%s457 + $0x88] sm:$0xff]
        %v485 = vld [vmem:[%s457 + $0x90] sm:$0xff]
        %v486 = vld [vmem:[%s457 + $0x98] sm:$0xff]
        %v487 = vld [vmem:[%s457 + $0xa0] sm:$0xff]
        %v488 = vld [vmem:[%s457 + $0xa8] sm:$0xff]
        %v489 = vld [vmem:[%s457 + $0xb0] sm:$0xff]
        %v490 = vld [vmem:[%s457 + $0xb8] sm:$0xff]
        %v491 = vld [vmem:[%s457 + $0xc0] sm:$0xff]
        %v492 = vld [vmem:[%s457 + $0xc8] sm:$0xff]
        %v493 = vld [vmem:[%s457 + $0xd0] sm:$0xff]
        %v494 = vld [vmem:[%s457 + $0xd8] sm:$0xff]
        %v495 = vld [vmem:[%s457 + $0xe0] sm:$0xff]
        %v496 = vld [vmem:[%s457 + $0xe8] sm:$0xff]
        %v497 = vld [vmem:[%s457 + $0xf0] sm:$0xff]
        %v498 = vld [vmem:[%s457 + $0xf8] sm:$0xff]
        %v499 = vld [vmem:[%s457 + $0x100] sm:$0xff]
        %v500 = vld [vmem:[%s457 + $0x108] sm:$0xff]
        %v501 = vld [vmem:[%s457 + $0x110] sm:$0xff]
        %v502 = vld [vmem:[%s457 + $0x118] sm:$0xff]
        %v503 = vld [vmem:[%s457 + $0x120] sm:$0xff]
        %v504 = vld [vmem:[%s457 + $0x128] sm:$0xff]
        %v505 = vld [vmem:[%s457 + $0x130] sm:$0xff]
        %v506 = vld [vmem:[%s457 + $0x138] sm:$0xff]
        %v507 = vld [vmem:[%s457 + $0x140] sm:$0xff]
        %v508 = vld [vmem:[%s457 + $0x148] sm:$0xff]
        %v509 = vld [vmem:[%s457 + $0x150] sm:$0xff]
        %v510 = vld [vmem:[%s457 + $0x158] sm:$0xff]
        %v511 = vld [vmem:[%s457 + $0x160] sm:$0xff]
        %v512 = vld [vmem:[%s457 + $0x168] sm:$0xff]
        %v513 = vld [vmem:[%s457 + $0x170] sm:$0xff]
        %v514 = vld [vmem:[%s457 + $0x178] sm:$0xff]
        %v515 = vld [vmem:[%s457 + $0x180] sm:$0xff]
        %v516 = vld [vmem:[%s457 + $0x188] sm:$0xff]
        %v517 = vld [vmem:[%s457 + $0x190] sm:$0xff]
        %v518 = vld [vmem:[%s457 + $0x198] sm:$0xff]
        %v519 = vld [vmem:[%s457 + $0x1a0] sm:$0xff]
        %v520 = vld [vmem:[%s457 + $0x1a8] sm:$0xff]
        %v521 = vld [vmem:[%s457 + $0x1b0] sm:$0xff]
        %v522 = vld [vmem:[%s457 + $0x1b8] sm:$0xff]
        %v523 = vld [vmem:[%s457 + $0x1c0] sm:$0xff]
        %v524 = vld [vmem:[%s457 + $0x1c8] sm:$0xff]
        %v525 = vld [vmem:[%s457 + $0x1d0] sm:$0xff]
        %v526 = vld [vmem:[%s457 + $0x1d8] sm:$0xff]
        %v527 = vld [vmem:[%s457 + $0x1e0] sm:$0xff]
        %v528 = vld [vmem:[%s457 + $0x1e8] sm:$0xff]
        %v529 = vld [vmem:[%s457 + $0x1f0] sm:$0xff]
        %v530 = vld [vmem:[%s457 + $0x1f8] sm:$0xff]
        %v531 = vld [vmem:[%s463] sm:$0xff]
        %v532 = vld [vmem:[%s463 + $0x8] sm:$0xff]
        %v533 = vld [vmem:[%s463 + $0x10] sm:$0xff]
        %v534 = vld [vmem:[%s463 + $0x18] sm:$0xff]
        %v535 = vld [vmem:[%s463 + $0x20] sm:$0xff]
        %v536 = vld [vmem:[%s463 + $0x28] sm:$0xff]
        %v537 = vld [vmem:[%s463 + $0x30] sm:$0xff]
        %v538 = vld [vmem:[%s463 + $0x38] sm:$0xff]
        %v539 = vld [vmem:[%s463 + $0x40] sm:$0xff]
        %v540 = vld [vmem:[%s463 + $0x48] sm:$0xff]
        %v541 = vld [vmem:[%s463 + $0x50] sm:$0xff]
        %v542 = vld [vmem:[%s463 + $0x58] sm:$0xff]
        %v543 = vld [vmem:[%s463 + $0x60] sm:$0xff]
        %v544 = vld [vmem:[%s463 + $0x68] sm:$0xff]
        %v545 = vld [vmem:[%s463 + $0x70] sm:$0xff]
        %v546 = vld [vmem:[%s463 + $0x78] sm:$0xff]
        %v547 = vld [vmem:[%s463 + $0x80] sm:$0xff]
        %v548 = vld [vmem:[%s463 + $0x88] sm:$0xff]
        %v549 = vld [vmem:[%s463 + $0x90] sm:$0xff]
        %v550 = vld [vmem:[%s463 + $0x98] sm:$0xff]
        %v551 = vld [vmem:[%s463 + $0xa0] sm:$0xff]
        %v552 = vld [vmem:[%s463 + $0xa8] sm:$0xff]
        %v553 = vld [vmem:[%s463 + $0xb0] sm:$0xff]
        %v554 = vld [vmem:[%s463 + $0xb8] sm:$0xff]
        %v555 = vld [vmem:[%s463 + $0xc0] sm:$0xff]
        %v556 = vld [vmem:[%s463 + $0xc8] sm:$0xff]
        %v557 = vld [vmem:[%s463 + $0xd0] sm:$0xff]
        %v558 = vld [vmem:[%s463 + $0xd8] sm:$0xff]
        %v559 = vld [vmem:[%s463 + $0xe0] sm:$0xff]
        %v560 = vld [vmem:[%s463 + $0xe8] sm:$0xff]
        %v561 = vld [vmem:[%s463 + $0xf0] sm:$0xff]
        %v562 = vld [vmem:[%s463 + $0xf8] sm:$0xff]
        %v563 = vld [vmem:[%s463 + $0x100] sm:$0xff]
        %v564 = vld [vmem:[%s463 + $0x108] sm:$0xff]
        %v565 = vld [vmem:[%s463 + $0x110] sm:$0xff]
        %v566 = vld [vmem:[%s463 + $0x118] sm:$0xff]
        %v567 = vld [vmem:[%s463 + $0x120] sm:$0xff]
        %v568 = vld [vmem:[%s463 + $0x128] sm:$0xff]
        %v569 = vld [vmem:[%s463 + $0x130] sm:$0xff]
        %v570 = vld [vmem:[%s463 + $0x138] sm:$0xff]
        %v571 = vld [vmem:[%s463 + $0x140] sm:$0xff]
        %v572 = vld [vmem:[%s463 + $0x148] sm:$0xff]
        %v573 = vld [vmem:[%s463 + $0x150] sm:$0xff]
        %v574 = vld [vmem:[%s463 + $0x158] sm:$0xff]
        %v575 = vld [vmem:[%s463 + $0x160] sm:$0xff]
        %v576 = vld [vmem:[%s463 + $0x168] sm:$0xff]
        %v577 = vld [vmem:[%s463 + $0x170] sm:$0xff]
        %v578 = vld [vmem:[%s463 + $0x178] sm:$0xff]
        %v579 = vld [vmem:[%s463 + $0x180] sm:$0xff]
        %v580 = vld [vmem:[%s463 + $0x188] sm:$0xff]
        %v581 = vld [vmem:[%s463 + $0x190] sm:$0xff]
        %v582 = vld [vmem:[%s463 + $0x198] sm:$0xff]
        %v583 = vld [vmem:[%s463 + $0x1a0] sm:$0xff]
        %v584 = vld [vmem:[%s463 + $0x1a8] sm:$0xff]
        %v585 = vld [vmem:[%s463 + $0x1b0] sm:$0xff]
        %v586 = vld [vmem:[%s463 + $0x1b8] sm:$0xff]
        %v587 = vld [vmem:[%s463 + $0x1c0] sm:$0xff]
        %v588 = vld [vmem:[%s463 + $0x1c8] sm:$0xff]
        %v589 = vld [vmem:[%s463 + $0x1d0] sm:$0xff]
        %v590 = vld [vmem:[%s463 + $0x1d8] sm:$0xff]
        %v591 = vld [vmem:[%s463 + $0x1e0] sm:$0xff]
        %v592 = vld [vmem:[%s463 + $0x1e8] sm:$0xff]
        %v593 = vld [vmem:[%s463 + $0x1f0] sm:$0xff]
        %v594 = vld [vmem:[%s463 + $0x1f8] sm:$0xff]
        %v595 = vpack.c.bf16 %v468, %v467
        %v596 = vpack.c.bf16 %v470, %v469
        %v597 = vpack.c.bf16 %v472, %v471
        %v598 = vpack.c.bf16 %v474, %v473
        %v599 = vpack.c.bf16 %v476, %v475
        %v600 = vpack.c.bf16 %v478, %v477
        %v601 = vpack.c.bf16 %v480, %v479
        %v602 = vpack.c.bf16 %v482, %v481
        %v603 = vpack.c.bf16 %v484, %v483
        %v604 = vpack.c.bf16 %v486, %v485
        %v605 = vpack.c.bf16 %v488, %v487
        %v606 = vpack.c.bf16 %v490, %v489
        %v607 = vpack.c.bf16 %v492, %v491
        %v608 = vpack.c.bf16 %v494, %v493
        %v609 = vpack.c.bf16 %v496, %v495
        %v610 = vpack.c.bf16 %v498, %v497
        %v611 = vpack.c.bf16 %v500, %v499
        %v612 = vpack.c.bf16 %v502, %v501
        %v613 = vpack.c.bf16 %v504, %v503
        %v614 = vpack.c.bf16 %v506, %v505
        %v615 = vpack.c.bf16 %v508, %v507
        %v616 = vpack.c.bf16 %v510, %v509
        %v617 = vpack.c.bf16 %v512, %v511
        %v618 = vpack.c.bf16 %v514, %v513
        %v619 = vpack.c.bf16 %v516, %v515
        %v620 = vpack.c.bf16 %v518, %v517
        %v621 = vpack.c.bf16 %v520, %v519
        %v622 = vpack.c.bf16 %v522, %v521
        %v623 = vpack.c.bf16 %v524, %v523
        %v624 = vpack.c.bf16 %v526, %v525
        %v625 = vpack.c.bf16 %v528, %v527
        %v626 = vpack.c.bf16 %v530, %v529
        %v627 = vld [vmem:[%s2] sm:$0xff]
        %v628 = vld [vmem:[%s2 + $0x8] sm:$0xff]
        %v629 = vld [vmem:[%s2 + $0x10] sm:$0xff]
        %v630 = vld [vmem:[%s2 + $0x18] sm:$0xff]
        %v631 = vld [vmem:[%s2 + $0x20] sm:$0xff]
        %v632 = vld [vmem:[%s2 + $0x28] sm:$0xff]
        %v633 = vld [vmem:[%s2 + $0x30] sm:$0x77]
        %v634 = vld [vmem:[%s2 + $0x38] sm:$0x77]
        %v635 = vld [vmem:[%s3] sm:$0x77]
        %v636 = vld [vmem:[%s3 + $0x8] sm:$0x77]
        %638 = vset.pattern.permute.xlu0 0
        %639 = vperm.xlu0 %638, %v531
        %v640 = vpop.permute.xlu0 %639
        %643 = vset.pattern.permute.xlu0 0
        %644 = vperm.xlu0 %643, %v532
        %v645 = vpop.permute.xlu0 %644
        %648 = vset.pattern.permute.xlu0 0
        %649 = vperm.xlu0 %648, %v533
        %v650 = vpop.permute.xlu0 %649
        %653 = vset.pattern.permute.xlu0 0
        %654 = vperm.xlu0 %653, %v534
        %v655 = vpop.permute.xlu0 %654
        %658 = vset.pattern.permute.xlu0 0
        %659 = vperm.xlu0 %658, %v535
        %v660 = vpop.permute.xlu0 %659
        %663 = vset.pattern.permute.xlu0 0
        %664 = vperm.xlu0 %663, %v536
        %v665 = vpop.permute.xlu0 %664
        %668 = vset.pattern.permute.xlu0 0
        %669 = vperm.xlu0 %668, %v537
        %v670 = vpop.permute.xlu0 %669
        %673 = vset.pattern.permute.xlu0 0
        %674 = vperm.xlu0 %673, %v538
        %v675 = vpop.permute.xlu0 %674
        %678 = vset.pattern.permute.xlu0 0
        %679 = vperm.xlu0 %678, %v539
        %v680 = vpop.permute.xlu0 %679
        %683 = vset.pattern.permute.xlu0 0
        %684 = vperm.xlu0 %683, %v540
        %v685 = vpop.permute.xlu0 %684
        %688 = vset.pattern.permute.xlu0 0
        %689 = vperm.xlu0 %688, %v541
        %v690 = vpop.permute.xlu0 %689
        %693 = vset.pattern.permute.xlu0 0
        %694 = vperm.xlu0 %693, %v542
        %v695 = vpop.permute.xlu0 %694
        %698 = vset.pattern.permute.xlu0 0
        %699 = vperm.xlu0 %698, %v543
        %v700 = vpop.permute.xlu0 %699
        %703 = vset.pattern.permute.xlu0 0
        %704 = vperm.xlu0 %703, %v544
        %v705 = vpop.permute.xlu0 %704
        %708 = vset.pattern.permute.xlu0 0
        %709 = vperm.xlu0 %708, %v545
        %v710 = vpop.permute.xlu0 %709
        %713 = vset.pattern.permute.xlu0 0
        %714 = vperm.xlu0 %713, %v546
        %v715 = vpop.permute.xlu0 %714
        %718 = vset.pattern.permute.xlu0 0
        %719 = vperm.xlu0 %718, %v547
        %v720 = vpop.permute.xlu0 %719
        %723 = vset.pattern.permute.xlu0 0
        %724 = vperm.xlu0 %723, %v548
        %v725 = vpop.permute.xlu0 %724
        %728 = vset.pattern.permute.xlu0 0
        %729 = vperm.xlu0 %728, %v549
        %v730 = vpop.permute.xlu0 %729
        %733 = vset.pattern.permute.xlu0 0
        %734 = vperm.xlu0 %733, %v550
        %v735 = vpop.permute.xlu0 %734
        %738 = vset.pattern.permute.xlu0 0
        %739 = vperm.xlu0 %738, %v551
        %v740 = vpop.permute.xlu0 %739
        %743 = vset.pattern.permute.xlu0 0
        %744 = vperm.xlu0 %743, %v552
        %v745 = vpop.permute.xlu0 %744
        %748 = vset.pattern.permute.xlu0 0
        %749 = vperm.xlu0 %748, %v553
        %v750 = vpop.permute.xlu0 %749
        %753 = vset.pattern.permute.xlu0 0
        %754 = vperm.xlu0 %753, %v554
        %v755 = vpop.permute.xlu0 %754
        %758 = vset.pattern.permute.xlu0 0
        %759 = vperm.xlu0 %758, %v555
        %v760 = vpop.permute.xlu0 %759
        %763 = vset.pattern.permute.xlu0 0
        %764 = vperm.xlu0 %763, %v556
        %v765 = vpop.permute.xlu0 %764
        %768 = vset.pattern.permute.xlu0 0
        %769 = vperm.xlu0 %768, %v557
        %v770 = vpop.permute.xlu0 %769
        %773 = vset.pattern.permute.xlu0 0
        %774 = vperm.xlu0 %773, %v558
        %v775 = vpop.permute.xlu0 %774
        %778 = vset.pattern.permute.xlu0 0
        %779 = vperm.xlu0 %778, %v559
        %v780 = vpop.permute.xlu0 %779
        %783 = vset.pattern.permute.xlu0 0
        %784 = vperm.xlu0 %783, %v560
        %v785 = vpop.permute.xlu0 %784
        %788 = vset.pattern.permute.xlu0 0
        %789 = vperm.xlu0 %788, %v561
        %v790 = vpop.permute.xlu0 %789
        %793 = vset.pattern.permute.xlu0 0
        %794 = vperm.xlu0 %793, %v562
        %v795 = vpop.permute.xlu0 %794
        %798 = vset.pattern.permute.xlu0 0
        %799 = vperm.xlu0 %798, %v563
        %v800 = vpop.permute.xlu0 %799
        %803 = vset.pattern.permute.xlu0 0
        %804 = vperm.xlu0 %803, %v564
        %v805 = vpop.permute.xlu0 %804
        %808 = vset.pattern.permute.xlu0 0
        %809 = vperm.xlu0 %808, %v565
        %v810 = vpop.permute.xlu0 %809
        %813 = vset.pattern.permute.xlu0 0
        %814 = vperm.xlu0 %813, %v566
        %v815 = vpop.permute.xlu0 %814
        %818 = vset.pattern.permute.xlu0 0
        %819 = vperm.xlu0 %818, %v567
        %v820 = vpop.permute.xlu0 %819
        %823 = vset.pattern.permute.xlu0 0
        %824 = vperm.xlu0 %823, %v568
        %v825 = vpop.permute.xlu0 %824
        %828 = vset.pattern.permute.xlu0 0
        %829 = vperm.xlu0 %828, %v569
        %v830 = vpop.permute.xlu0 %829
        %833 = vset.pattern.permute.xlu0 0
        %834 = vperm.xlu0 %833, %v570
        %v835 = vpop.permute.xlu0 %834
        %838 = vset.pattern.permute.xlu0 0
        %839 = vperm.xlu0 %838, %v571
        %v840 = vpop.permute.xlu0 %839
        %843 = vset.pattern.permute.xlu0 0
        %844 = vperm.xlu0 %843, %v572
        %v845 = vpop.permute.xlu0 %844
        %848 = vset.pattern.permute.xlu0 0
        %849 = vperm.xlu0 %848, %v573
        %v850 = vpop.permute.xlu0 %849
        %853 = vset.pattern.permute.xlu0 0
        %854 = vperm.xlu0 %853, %v574
        %v855 = vpop.permute.xlu0 %854
        %858 = vset.pattern.permute.xlu0 0
        %859 = vperm.xlu0 %858, %v575
        %v860 = vpop.permute.xlu0 %859
        %863 = vset.pattern.permute.xlu0 0
        %864 = vperm.xlu0 %863, %v576
        %v865 = vpop.permute.xlu0 %864
        %868 = vset.pattern.permute.xlu0 0
        %869 = vperm.xlu0 %868, %v577
        %v870 = vpop.permute.xlu0 %869
        %873 = vset.pattern.permute.xlu0 0
        %874 = vperm.xlu0 %873, %v578
        %v875 = vpop.permute.xlu0 %874
        %878 = vset.pattern.permute.xlu0 0
        %879 = vperm.xlu0 %878, %v579
        %v880 = vpop.permute.xlu0 %879
        %883 = vset.pattern.permute.xlu0 0
        %884 = vperm.xlu0 %883, %v580
        %v885 = vpop.permute.xlu0 %884
        %888 = vset.pattern.permute.xlu0 0
        %889 = vperm.xlu0 %888, %v581
        %v890 = vpop.permute.xlu0 %889
        %893 = vset.pattern.permute.xlu0 0
        %894 = vperm.xlu0 %893, %v582
        %v895 = vpop.permute.xlu0 %894
        %898 = vset.pattern.permute.xlu0 0
        %899 = vperm.xlu0 %898, %v583
        %v900 = vpop.permute.xlu0 %899
        %903 = vset.pattern.permute.xlu0 0
        %904 = vperm.xlu0 %903, %v584
        %v905 = vpop.permute.xlu0 %904
        %908 = vset.pattern.permute.xlu0 0
        %909 = vperm.xlu0 %908, %v585
        %v910 = vpop.permute.xlu0 %909
        %913 = vset.pattern.permute.xlu0 0
        %914 = vperm.xlu0 %913, %v586
        %v915 = vpop.permute.xlu0 %914
        %918 = vset.pattern.permute.xlu0 0
        %919 = vperm.xlu0 %918, %v587
        %v920 = vpop.permute.xlu0 %919
        %923 = vset.pattern.permute.xlu0 0
        %924 = vperm.xlu0 %923, %v588
        %v925 = vpop.permute.xlu0 %924
        %928 = vset.pattern.permute.xlu0 0
        %929 = vperm.xlu0 %928, %v589
        %v930 = vpop.permute.xlu0 %929
        %933 = vset.pattern.permute.xlu0 0
        %934 = vperm.xlu0 %933, %v590
        %v935 = vpop.permute.xlu0 %934
        %938 = vset.pattern.permute.xlu0 0
        %939 = vperm.xlu0 %938, %v591
        %v940 = vpop.permute.xlu0 %939
        %943 = vset.pattern.permute.xlu0 0
        %944 = vperm.xlu0 %943, %v592
        %v945 = vpop.permute.xlu0 %944
        %948 = vset.pattern.permute.xlu0 0
        %949 = vperm.xlu0 %948, %v593
        %v950 = vpop.permute.xlu0 %949
        %953 = vset.pattern.permute.xlu0 0
        %954 = vperm.xlu0 %953, %v594
        %v955 = vpop.permute.xlu0 %954
        %v959 = vlaneseq
        %v960 = vshrl.u32 %v959, 7
        %v961 = vsub.s32 0, %v960
        %v962 = vrot.slane %v635, %v961
        %v963 = vlaneseq
        %v964 = vshrl.u32 %v963, 7
        %v965 = vsub.s32 4, %v964
        %v966 = vrot.slane %v635, %v965
        %v967 = vlaneseq
        %v968 = vshrl.u32 %v967, 7
        %v969 = vsub.s32 0, %v968
        %v970 = vrot.slane %v636, %v969
        %v971 = vlaneseq
        %v972 = vshrl.u32 %v971, 7
        %v973 = vsub.s32 4, %v972
        %v974 = vrot.slane %v636, %v973
        %v979 = vlaneseq
        %v980 = vshrl.u32 %v979, 7
        %v981 = vsub.s32 0, %v980
        %v982 = vrot.slane %v962, %v981
        %v983 = vlaneseq
        %v984 = vshrl.u32 %v983, 7
        %v985 = vsub.s32 0, %v984
        %v986 = vrot.slane %v966, %v985
        %v987 = vlaneseq
        %v988 = vshrl.u32 %v987, 7
        %v989 = vsub.s32 0, %v988
        %v990 = vrot.slane %v970, %v989
        %v991 = vlaneseq
        %v992 = vshrl.u32 %v991, 7
        %v993 = vsub.s32 0, %v992
        %v994 = vrot.slane %v974, %v993
        %v995 = vmul.f32 %v640, %v982
        %v996 = vmul.f32 %v640, %v986
        %v997 = vmul.f32 %v640, %v990
        %v998 = vmul.f32 %v640, %v994
        %v999 = vmul.f32 %v645, %v982
        %v1000 = vmul.f32 %v645, %v986
        %v1001 = vmul.f32 %v645, %v990
        %v1002 = vmul.f32 %v645, %v994
        %v1003 = vmul.f32 %v650, %v982
        %v1004 = vmul.f32 %v650, %v986
        %v1005 = vmul.f32 %v650, %v990
        %v1006 = vmul.f32 %v650, %v994
        %v1007 = vmul.f32 %v655, %v982
        %v1008 = vmul.f32 %v655, %v986
        %v1009 = vmul.f32 %v655, %v990
        %v1010 = vmul.f32 %v655, %v994
        %v1011 = vmul.f32 %v660, %v982
        %v1012 = vmul.f32 %v660, %v986
        %v1013 = vmul.f32 %v660, %v990
        %v1014 = vmul.f32 %v660, %v994
        %v1015 = vmul.f32 %v665, %v982
        %v1016 = vmul.f32 %v665, %v986
        %v1017 = vmul.f32 %v665, %v990
        %v1018 = vmul.f32 %v665, %v994
        %v1019 = vmul.f32 %v670, %v982
        %v1020 = vmul.f32 %v670, %v986
        %v1021 = vmul.f32 %v670, %v990
        %v1022 = vmul.f32 %v670, %v994
        %v1023 = vmul.f32 %v675, %v982
        %v1024 = vmul.f32 %v675, %v986
        %v1025 = vmul.f32 %v675, %v990
        %v1026 = vmul.f32 %v675, %v994
        %v1027 = vmul.f32 %v680, %v982
        %v1028 = vmul.f32 %v680, %v986
        %v1029 = vmul.f32 %v680, %v990
        %v1030 = vmul.f32 %v680, %v994
        %v1031 = vmul.f32 %v685, %v982
        %v1032 = vmul.f32 %v685, %v986
        %v1033 = vmul.f32 %v685, %v990
        %v1034 = vmul.f32 %v685, %v994
        %v1035 = vmul.f32 %v690, %v982
        %v1036 = vmul.f32 %v690, %v986
        %v1037 = vmul.f32 %v690, %v990
        %v1038 = vmul.f32 %v690, %v994
        %v1039 = vmul.f32 %v695, %v982
        %v1040 = vmul.f32 %v695, %v986
        %v1041 = vmul.f32 %v695, %v990
        %v1042 = vmul.f32 %v695, %v994
        %v1043 = vmul.f32 %v700, %v982
        %v1044 = vmul.f32 %v700, %v986
        %v1045 = vmul.f32 %v700, %v990
        %v1046 = vmul.f32 %v700, %v994
        %v1047 = vmul.f32 %v705, %v982
        %v1048 = vmul.f32 %v705, %v986
        %v1049 = vmul.f32 %v705, %v990
        %v1050 = vmul.f32 %v705, %v994
        %v1051 = vmul.f32 %v710, %v982
        %v1052 = vmul.f32 %v710, %v986
        %v1053 = vmul.f32 %v710, %v990
        %v1054 = vmul.f32 %v710, %v994
        %v1055 = vmul.f32 %v715, %v982
        %v1056 = vmul.f32 %v715, %v986
        %v1057 = vmul.f32 %v715, %v990
        %v1058 = vmul.f32 %v715, %v994
        %v1059 = vmul.f32 %v720, %v982
        %v1060 = vmul.f32 %v720, %v986
        %v1061 = vmul.f32 %v720, %v990
        %v1062 = vmul.f32 %v720, %v994
        %v1063 = vmul.f32 %v725, %v982
        %v1064 = vmul.f32 %v725, %v986
        %v1065 = vmul.f32 %v725, %v990
        %v1066 = vmul.f32 %v725, %v994
        %v1067 = vmul.f32 %v730, %v982
        %v1068 = vmul.f32 %v730, %v986
        %v1069 = vmul.f32 %v730, %v990
        %v1070 = vmul.f32 %v730, %v994
        %v1071 = vmul.f32 %v735, %v982
        %v1072 = vmul.f32 %v735, %v986
        %v1073 = vmul.f32 %v735, %v990
        %v1074 = vmul.f32 %v735, %v994
        %v1075 = vmul.f32 %v740, %v982
        %v1076 = vmul.f32 %v740, %v986
        %v1077 = vmul.f32 %v740, %v990
        %v1078 = vmul.f32 %v740, %v994
        %v1079 = vmul.f32 %v745, %v982
        %v1080 = vmul.f32 %v745, %v986
        %v1081 = vmul.f32 %v745, %v990
        %v1082 = vmul.f32 %v745, %v994
        %v1083 = vmul.f32 %v750, %v982
        %v1084 = vmul.f32 %v750, %v986
        %v1085 = vmul.f32 %v750, %v990
        %v1086 = vmul.f32 %v750, %v994
        %v1087 = vmul.f32 %v755, %v982
        %v1088 = vmul.f32 %v755, %v986
        %v1089 = vmul.f32 %v755, %v990
        %v1090 = vmul.f32 %v755, %v994
        %v1091 = vmul.f32 %v760, %v982
        %v1092 = vmul.f32 %v760, %v986
        %v1093 = vmul.f32 %v760, %v990
        %v1094 = vmul.f32 %v760, %v994
        %v1095 = vmul.f32 %v765, %v982
        %v1096 = vmul.f32 %v765, %v986
        %v1097 = vmul.f32 %v765, %v990
        %v1098 = vmul.f32 %v765, %v994
        %v1099 = vmul.f32 %v770, %v982
        %v1100 = vmul.f32 %v770, %v986
        %v1101 = vmul.f32 %v770, %v990
        %v1102 = vmul.f32 %v770, %v994
        %v1103 = vmul.f32 %v775, %v982
        %v1104 = vmul.f32 %v775, %v986
        %v1105 = vmul.f32 %v775, %v990
        %v1106 = vmul.f32 %v775, %v994
        %v1107 = vmul.f32 %v780, %v982
        %v1108 = vmul.f32 %v780, %v986
        %v1109 = vmul.f32 %v780, %v990
        %v1110 = vmul.f32 %v780, %v994
        %v1111 = vmul.f32 %v785, %v982
        %v1112 = vmul.f32 %v785, %v986
        %v1113 = vmul.f32 %v785, %v990
        %v1114 = vmul.f32 %v785, %v994
        %v1115 = vmul.f32 %v790, %v982
        %v1116 = vmul.f32 %v790, %v986
        %v1117 = vmul.f32 %v790, %v990
        %v1118 = vmul.f32 %v790, %v994
        %v1119 = vmul.f32 %v795, %v982
        %v1120 = vmul.f32 %v795, %v986
        %v1121 = vmul.f32 %v795, %v990
        %v1122 = vmul.f32 %v795, %v994
        %v1123 = vmul.f32 %v800, %v982
        %v1124 = vmul.f32 %v800, %v986
        %v1125 = vmul.f32 %v800, %v990
        %v1126 = vmul.f32 %v800, %v994
        %v1127 = vmul.f32 %v805, %v982
        %v1128 = vmul.f32 %v805, %v986
        %v1129 = vmul.f32 %v805, %v990
        %v1130 = vmul.f32 %v805, %v994
        %v1131 = vmul.f32 %v810, %v982
        %v1132 = vmul.f32 %v810, %v986
        %v1133 = vmul.f32 %v810, %v990
        %v1134 = vmul.f32 %v810, %v994
        %v1135 = vmul.f32 %v815, %v982
        %v1136 = vmul.f32 %v815, %v986
        %v1137 = vmul.f32 %v815, %v990
        %v1138 = vmul.f32 %v815, %v994
        %v1139 = vmul.f32 %v820, %v982
        %v1140 = vmul.f32 %v820, %v986
        %v1141 = vmul.f32 %v820, %v990
        %v1142 = vmul.f32 %v820, %v994
        %v1143 = vmul.f32 %v825, %v982
        %v1144 = vmul.f32 %v825, %v986
        %v1145 = vmul.f32 %v825, %v990
        %v1146 = vmul.f32 %v825, %v994
        %v1147 = vmul.f32 %v830, %v982
        %v1148 = vmul.f32 %v830, %v986
        %v1149 = vmul.f32 %v830, %v990
        %v1150 = vmul.f32 %v830, %v994
        %v1151 = vmul.f32 %v835, %v982
        %v1152 = vmul.f32 %v835, %v986
        %v1153 = vmul.f32 %v835, %v990
        %v1154 = vmul.f32 %v835, %v994
        %v1155 = vmul.f32 %v840, %v982
        %v1156 = vmul.f32 %v840, %v986
        %v1157 = vmul.f32 %v840, %v990
        %v1158 = vmul.f32 %v840, %v994
        %v1159 = vmul.f32 %v845, %v982
        %v1160 = vmul.f32 %v845, %v986
        %v1161 = vmul.f32 %v845, %v990
        %v1162 = vmul.f32 %v845, %v994
        %v1163 = vmul.f32 %v850, %v982
        %v1164 = vmul.f32 %v850, %v986
        %v1165 = vmul.f32 %v850, %v990
        %v1166 = vmul.f32 %v850, %v994
        %v1167 = vmul.f32 %v855, %v982
        %v1168 = vmul.f32 %v855, %v986
        %v1169 = vmul.f32 %v855, %v990
        %v1170 = vmul.f32 %v855, %v994
        %v1171 = vmul.f32 %v860, %v982
        %v1172 = vmul.f32 %v860, %v986
        %v1173 = vmul.f32 %v860, %v990
        %v1174 = vmul.f32 %v860, %v994
        %v1175 = vmul.f32 %v865, %v982
        %v1176 = vmul.f32 %v865, %v986
        %v1177 = vmul.f32 %v865, %v990
        %v1178 = vmul.f32 %v865, %v994
        %v1179 = vmul.f32 %v870, %v982
        %v1180 = vmul.f32 %v870, %v986
        %v1181 = vmul.f32 %v870, %v990
        %v1182 = vmul.f32 %v870, %v994
        %v1183 = vmul.f32 %v875, %v982
        %v1184 = vmul.f32 %v875, %v986
        %v1185 = vmul.f32 %v875, %v990
        %v1186 = vmul.f32 %v875, %v994
        %v1187 = vmul.f32 %v880, %v982
        %v1188 = vmul.f32 %v880, %v986
        %v1189 = vmul.f32 %v880, %v990
        %v1190 = vmul.f32 %v880, %v994
        %v1191 = vmul.f32 %v885, %v982
        %v1192 = vmul.f32 %v885, %v986
        %v1193 = vmul.f32 %v885, %v990
        %v1194 = vmul.f32 %v885, %v994
        %v1195 = vmul.f32 %v890, %v982
        %v1196 = vmul.f32 %v890, %v986
        %v1197 = vmul.f32 %v890, %v990
        %v1198 = vmul.f32 %v890, %v994
        %v1199 = vmul.f32 %v895, %v982
        %v1200 = vmul.f32 %v895, %v986
        %v1201 = vmul.f32 %v895, %v990
        %v1202 = vmul.f32 %v895, %v994
        %v1203 = vmul.f32 %v900, %v982
        %v1204 = vmul.f32 %v900, %v986
        %v1205 = vmul.f32 %v900, %v990
        %v1206 = vmul.f32 %v900, %v994
        %v1207 = vmul.f32 %v905, %v982
        %v1208 = vmul.f32 %v905, %v986
        %v1209 = vmul.f32 %v905, %v990
        %v1210 = vmul.f32 %v905, %v994
        %v1211 = vmul.f32 %v910, %v982
        %v1212 = vmul.f32 %v910, %v986
        %v1213 = vmul.f32 %v910, %v990
        %v1214 = vmul.f32 %v910, %v994
        %v1215 = vmul.f32 %v915, %v982
        %v1216 = vmul.f32 %v915, %v986
        %v1217 = vmul.f32 %v915, %v990
        %v1218 = vmul.f32 %v915, %v994
        %v1219 = vmul.f32 %v920, %v982
        %v1220 = vmul.f32 %v920, %v986
        %v1221 = vmul.f32 %v920, %v990
        %v1222 = vmul.f32 %v920, %v994
        %v1223 = vmul.f32 %v925, %v982
        %v1224 = vmul.f32 %v925, %v986
        %v1225 = vmul.f32 %v925, %v990
        %v1226 = vmul.f32 %v925, %v994
        %v1227 = vmul.f32 %v930, %v982
        %v1228 = vmul.f32 %v930, %v986
        %v1229 = vmul.f32 %v930, %v990
        %v1230 = vmul.f32 %v930, %v994
        %v1231 = vmul.f32 %v935, %v982
        %v1232 = vmul.f32 %v935, %v986
        %v1233 = vmul.f32 %v935, %v990
        %v1234 = vmul.f32 %v935, %v994
        %v1235 = vmul.f32 %v940, %v982
        %v1236 = vmul.f32 %v940, %v986
        %v1237 = vmul.f32 %v940, %v990
        %v1238 = vmul.f32 %v940, %v994
        %v1239 = vmul.f32 %v945, %v982
        %v1240 = vmul.f32 %v945, %v986
        %v1241 = vmul.f32 %v945, %v990
        %v1242 = vmul.f32 %v945, %v994
        %v1243 = vmul.f32 %v950, %v982
        %v1244 = vmul.f32 %v950, %v986
        %v1245 = vmul.f32 %v950, %v990
        %v1246 = vmul.f32 %v950, %v994
        %v1247 = vmul.f32 %v955, %v982
        %v1248 = vmul.f32 %v955, %v986
        %v1249 = vmul.f32 %v955, %v990
        %v1250 = vmul.f32 %v955, %v994
        %1251 = vset.pattern.permute.xlu0 1
        %1252 = vperm.xlu0 %1251, %v531
        %v1253 = vpop.permute.xlu0 %1252
        %1255 = vset.pattern.permute.xlu0 1
        %1256 = vperm.xlu0 %1255, %v532
        %v1257 = vpop.permute.xlu0 %1256
        %1259 = vset.pattern.permute.xlu0 1
        %1260 = vperm.xlu0 %1259, %v533
        %v1261 = vpop.permute.xlu0 %1260
        %1263 = vset.pattern.permute.xlu0 1
        %1264 = vperm.xlu0 %1263, %v534
        %v1265 = vpop.permute.xlu0 %1264
        %1267 = vset.pattern.permute.xlu0 1
        %1268 = vperm.xlu0 %1267, %v535
        %v1269 = vpop.permute.xlu0 %1268
        %1271 = vset.pattern.permute.xlu0 1
        %1272 = vperm.xlu0 %1271, %v536
        %v1273 = vpop.permute.xlu0 %1272
        %1275 = vset.pattern.permute.xlu0 1
        %1276 = vperm.xlu0 %1275, %v537
        %v1277 = vpop.permute.xlu0 %1276
        %1279 = vset.pattern.permute.xlu0 1
        %1280 = vperm.xlu0 %1279, %v538
        %v1281 = vpop.permute.xlu0 %1280
        %1283 = vset.pattern.permute.xlu0 1
        %1284 = vperm.xlu0 %1283, %v539
        %v1285 = vpop.permute.xlu0 %1284
        %1287 = vset.pattern.permute.xlu0 1
        %1288 = vperm.xlu0 %1287, %v540
        %v1289 = vpop.permute.xlu0 %1288
        %1291 = vset.pattern.permute.xlu0 1
        %1292 = vperm.xlu0 %1291, %v541
        %v1293 = vpop.permute.xlu0 %1292
        %1295 = vset.pattern.permute.xlu0 1
        %1296 = vperm.xlu0 %1295, %v542
        %v1297 = vpop.permute.xlu0 %1296
        %1299 = vset.pattern.permute.xlu0 1
        %1300 = vperm.xlu0 %1299, %v543
        %v1301 = vpop.permute.xlu0 %1300
        %1303 = vset.pattern.permute.xlu0 1
        %1304 = vperm.xlu0 %1303, %v544
        %v1305 = vpop.permute.xlu0 %1304
        %1307 = vset.pattern.permute.xlu0 1
        %1308 = vperm.xlu0 %1307, %v545
        %v1309 = vpop.permute.xlu0 %1308
        %1311 = vset.pattern.permute.xlu0 1
        %1312 = vperm.xlu0 %1311, %v546
        %v1313 = vpop.permute.xlu0 %1312
        %1315 = vset.pattern.permute.xlu0 1
        %1316 = vperm.xlu0 %1315, %v547
        %v1317 = vpop.permute.xlu0 %1316
        %1319 = vset.pattern.permute.xlu0 1
        %1320 = vperm.xlu0 %1319, %v548
        %v1321 = vpop.permute.xlu0 %1320
        %1323 = vset.pattern.permute.xlu0 1
        %1324 = vperm.xlu0 %1323, %v549
        %v1325 = vpop.permute.xlu0 %1324
        %1327 = vset.pattern.permute.xlu0 1
        %1328 = vperm.xlu0 %1327, %v550
        %v1329 = vpop.permute.xlu0 %1328
        %1331 = vset.pattern.permute.xlu0 1
        %1332 = vperm.xlu0 %1331, %v551
        %v1333 = vpop.permute.xlu0 %1332
        %1335 = vset.pattern.permute.xlu0 1
        %1336 = vperm.xlu0 %1335, %v552
        %v1337 = vpop.permute.xlu0 %1336
        %1339 = vset.pattern.permute.xlu0 1
        %1340 = vperm.xlu0 %1339, %v553
        %v1341 = vpop.permute.xlu0 %1340
        %1343 = vset.pattern.permute.xlu0 1
        %1344 = vperm.xlu0 %1343, %v554
        %v1345 = vpop.permute.xlu0 %1344
        %1347 = vset.pattern.permute.xlu0 1
        %1348 = vperm.xlu0 %1347, %v555
        %v1349 = vpop.permute.xlu0 %1348
        %1351 = vset.pattern.permute.xlu0 1
        %1352 = vperm.xlu0 %1351, %v556
        %v1353 = vpop.permute.xlu0 %1352
        %1355 = vset.pattern.permute.xlu0 1
        %1356 = vperm.xlu0 %1355, %v557
        %v1357 = vpop.permute.xlu0 %1356
        %1359 = vset.pattern.permute.xlu0 1
        %1360 = vperm.xlu0 %1359, %v558
        %v1361 = vpop.permute.xlu0 %1360
        %1363 = vset.pattern.permute.xlu0 1
        %1364 = vperm.xlu0 %1363, %v559
        %v1365 = vpop.permute.xlu0 %1364
        %1367 = vset.pattern.permute.xlu0 1
        %1368 = vperm.xlu0 %1367, %v560
        %v1369 = vpop.permute.xlu0 %1368
        %1371 = vset.pattern.permute.xlu0 1
        %1372 = vperm.xlu0 %1371, %v561
        %v1373 = vpop.permute.xlu0 %1372
        %1375 = vset.pattern.permute.xlu0 1
        %1376 = vperm.xlu0 %1375, %v562
        %v1377 = vpop.permute.xlu0 %1376
        %1379 = vset.pattern.permute.xlu0 1
        %1380 = vperm.xlu0 %1379, %v563
        %v1381 = vpop.permute.xlu0 %1380
        %1383 = vset.pattern.permute.xlu0 1
        %1384 = vperm.xlu0 %1383, %v564
        %v1385 = vpop.permute.xlu0 %1384
        %1387 = vset.pattern.permute.xlu0 1
        %1388 = vperm.xlu0 %1387, %v565
        %v1389 = vpop.permute.xlu0 %1388
        %1391 = vset.pattern.permute.xlu0 1
        %1392 = vperm.xlu0 %1391, %v566
        %v1393 = vpop.permute.xlu0 %1392
        %1395 = vset.pattern.permute.xlu0 1
        %1396 = vperm.xlu0 %1395, %v567
        %v1397 = vpop.permute.xlu0 %1396
        %1399 = vset.pattern.permute.xlu0 1
        %1400 = vperm.xlu0 %1399, %v568
        %v1401 = vpop.permute.xlu0 %1400
        %1403 = vset.pattern.permute.xlu0 1
        %1404 = vperm.xlu0 %1403, %v569
        %v1405 = vpop.permute.xlu0 %1404
        %1407 = vset.pattern.permute.xlu0 1
        %1408 = vperm.xlu0 %1407, %v570
        %v1409 = vpop.permute.xlu0 %1408
        %1411 = vset.pattern.permute.xlu0 1
        %1412 = vperm.xlu0 %1411, %v571
        %v1413 = vpop.permute.xlu0 %1412
        %1415 = vset.pattern.permute.xlu0 1
        %1416 = vperm.xlu0 %1415, %v572
        %v1417 = vpop.permute.xlu0 %1416
        %1419 = vset.pattern.permute.xlu0 1
        %1420 = vperm.xlu0 %1419, %v573
        %v1421 = vpop.permute.xlu0 %1420
        %1423 = vset.pattern.permute.xlu0 1
        %1424 = vperm.xlu0 %1423, %v574
        %v1425 = vpop.permute.xlu0 %1424
        %1427 = vset.pattern.permute.xlu0 1
        %1428 = vperm.xlu0 %1427, %v575
        %v1429 = vpop.permute.xlu0 %1428
        %1431 = vset.pattern.permute.xlu0 1
        %1432 = vperm.xlu0 %1431, %v576
        %v1433 = vpop.permute.xlu0 %1432
        %1435 = vset.pattern.permute.xlu0 1
        %1436 = vperm.xlu0 %1435, %v577
        %v1437 = vpop.permute.xlu0 %1436
        %1439 = vset.pattern.permute.xlu0 1
        %1440 = vperm.xlu0 %1439, %v578
        %v1441 = vpop.permute.xlu0 %1440
        %1443 = vset.pattern.permute.xlu0 1
        %1444 = vperm.xlu0 %1443, %v579
        %v1445 = vpop.permute.xlu0 %1444
        %1447 = vset.pattern.permute.xlu0 1
        %1448 = vperm.xlu0 %1447, %v580
        %v1449 = vpop.permute.xlu0 %1448
        %1451 = vset.pattern.permute.xlu0 1
        %1452 = vperm.xlu0 %1451, %v581
        %v1453 = vpop.permute.xlu0 %1452
        %1455 = vset.pattern.permute.xlu0 1
        %1456 = vperm.xlu0 %1455, %v582
        %v1457 = vpop.permute.xlu0 %1456
        %1459 = vset.pattern.permute.xlu0 1
        %1460 = vperm.xlu0 %1459, %v583
        %v1461 = vpop.permute.xlu0 %1460
        %1463 = vset.pattern.permute.xlu0 1
        %1464 = vperm.xlu0 %1463, %v584
        %v1465 = vpop.permute.xlu0 %1464
        %1467 = vset.pattern.permute.xlu0 1
        %1468 = vperm.xlu0 %1467, %v585
        %v1469 = vpop.permute.xlu0 %1468
        %1471 = vset.pattern.permute.xlu0 1
        %1472 = vperm.xlu0 %1471, %v586
        %v1473 = vpop.permute.xlu0 %1472
        %1475 = vset.pattern.permute.xlu0 1
        %1476 = vperm.xlu0 %1475, %v587
        %v1477 = vpop.permute.xlu0 %1476
        %1479 = vset.pattern.permute.xlu0 1
        %1480 = vperm.xlu0 %1479, %v588
        %v1481 = vpop.permute.xlu0 %1480
        %1483 = vset.pattern.permute.xlu0 1
        %1484 = vperm.xlu0 %1483, %v589
        %v1485 = vpop.permute.xlu0 %1484
        %1487 = vset.pattern.permute.xlu0 1
        %1488 = vperm.xlu0 %1487, %v590
        %v1489 = vpop.permute.xlu0 %1488
        %1491 = vset.pattern.permute.xlu0 1
        %1492 = vperm.xlu0 %1491, %v591
        %v1493 = vpop.permute.xlu0 %1492
        %1495 = vset.pattern.permute.xlu0 1
        %1496 = vperm.xlu0 %1495, %v592
        %v1497 = vpop.permute.xlu0 %1496
        %1499 = vset.pattern.permute.xlu0 1
        %1500 = vperm.xlu0 %1499, %v593
        %v1501 = vpop.permute.xlu0 %1500
        %1503 = vset.pattern.permute.xlu0 1
        %1504 = vperm.xlu0 %1503, %v594
        %v1505 = vpop.permute.xlu0 %1504
        %v1507 = vlaneseq
        %v1508 = vshrl.u32 %v1507, 7
        %v1509 = vsub.s32 1, %v1508
        %v1510 = vrot.slane %v635, %v1509
        %v1511 = vlaneseq
        %v1512 = vshrl.u32 %v1511, 7
        %v1513 = vsub.s32 5, %v1512
        %v1514 = vrot.slane %v635, %v1513
        %v1515 = vlaneseq
        %v1516 = vshrl.u32 %v1515, 7
        %v1517 = vsub.s32 1, %v1516
        %v1518 = vrot.slane %v636, %v1517
        %v1519 = vlaneseq
        %v1520 = vshrl.u32 %v1519, 7
        %v1521 = vsub.s32 5, %v1520
        %v1522 = vrot.slane %v636, %v1521
        %v1527 = vlaneseq
        %v1528 = vshrl.u32 %v1527, 7
        %v1529 = vsub.s32 1, %v1528
        %v1530 = vrot.slane %v1510, %v1529
        %v1531 = vlaneseq
        %v1532 = vshrl.u32 %v1531, 7
        %v1533 = vsub.s32 1, %v1532
        %v1534 = vrot.slane %v1514, %v1533
        %v1535 = vlaneseq
        %v1536 = vshrl.u32 %v1535, 7
        %v1537 = vsub.s32 1, %v1536
        %v1538 = vrot.slane %v1518, %v1537
        %v1539 = vlaneseq
        %v1540 = vshrl.u32 %v1539, 7
        %v1541 = vsub.s32 1, %v1540
        %v1542 = vrot.slane %v1522, %v1541
        %v1543 = vmul.f32 %v1253, %v1530
        %v1544 = vmul.f32 %v1253, %v1534
        %v1545 = vmul.f32 %v1253, %v1538
        %v1546 = vmul.f32 %v1253, %v1542
        %v1547 = vmul.f32 %v1257, %v1530
        %v1548 = vmul.f32 %v1257, %v1534
        %v1549 = vmul.f32 %v1257, %v1538
        %v1550 = vmul.f32 %v1257, %v1542
        %v1551 = vmul.f32 %v1261, %v1530
        %v1552 = vmul.f32 %v1261, %v1534
        %v1553 = vmul.f32 %v1261, %v1538
        %v1554 = vmul.f32 %v1261, %v1542
        %v1555 = vmul.f32 %v1265, %v1530
        %v1556 = vmul.f32 %v1265, %v1534
        %v1557 = vmul.f32 %v1265, %v1538
        %v1558 = vmul.f32 %v1265, %v1542
        %v1559 = vmul.f32 %v1269, %v1530
        %v1560 = vmul.f32 %v1269, %v1534
        %v1561 = vmul.f32 %v1269, %v1538
        %v1562 = vmul.f32 %v1269, %v1542
        %v1563 = vmul.f32 %v1273, %v1530
        %v1564 = vmul.f32 %v1273, %v1534
        %v1565 = vmul.f32 %v1273, %v1538
        %v1566 = vmul.f32 %v1273, %v1542
        %v1567 = vmul.f32 %v1277, %v1530
        %v1568 = vmul.f32 %v1277, %v1534
        %v1569 = vmul.f32 %v1277, %v1538
        %v1570 = vmul.f32 %v1277, %v1542
        %v1571 = vmul.f32 %v1281, %v1530
        %v1572 = vmul.f32 %v1281, %v1534
        %v1573 = vmul.f32 %v1281, %v1538
        %v1574 = vmul.f32 %v1281, %v1542
        %v1575 = vmul.f32 %v1285, %v1530
        %v1576 = vmul.f32 %v1285, %v1534
        %v1577 = vmul.f32 %v1285, %v1538
        %v1578 = vmul.f32 %v1285, %v1542
        %v1579 = vmul.f32 %v1289, %v1530
        %v1580 = vmul.f32 %v1289, %v1534
        %v1581 = vmul.f32 %v1289, %v1538
        %v1582 = vmul.f32 %v1289, %v1542
        %v1583 = vmul.f32 %v1293, %v1530
        %v1584 = vmul.f32 %v1293, %v1534
        %v1585 = vmul.f32 %v1293, %v1538
        %v1586 = vmul.f32 %v1293, %v1542
        %v1587 = vmul.f32 %v1297, %v1530
        %v1588 = vmul.f32 %v1297, %v1534
        %v1589 = vmul.f32 %v1297, %v1538
        %v1590 = vmul.f32 %v1297, %v1542
        %v1591 = vmul.f32 %v1301, %v1530
        %v1592 = vmul.f32 %v1301, %v1534
        %v1593 = vmul.f32 %v1301, %v1538
        %v1594 = vmul.f32 %v1301, %v1542
        %v1595 = vmul.f32 %v1305, %v1530
        %v1596 = vmul.f32 %v1305, %v1534
        %v1597 = vmul.f32 %v1305, %v1538
        %v1598 = vmul.f32 %v1305, %v1542
        %v1599 = vmul.f32 %v1309, %v1530
        %v1600 = vmul.f32 %v1309, %v1534
        %v1601 = vmul.f32 %v1309, %v1538
        %v1602 = vmul.f32 %v1309, %v1542
        %v1603 = vmul.f32 %v1313, %v1530
        %v1604 = vmul.f32 %v1313, %v1534
        %v1605 = vmul.f32 %v1313, %v1538
        %v1606 = vmul.f32 %v1313, %v1542
        %v1607 = vmul.f32 %v1317, %v1530
        %v1608 = vmul.f32 %v1317, %v1534
        %v1609 = vmul.f32 %v1317, %v1538
        %v1610 = vmul.f32 %v1317, %v1542
        %v1611 = vmul.f32 %v1321, %v1530
        %v1612 = vmul.f32 %v1321, %v1534
        %v1613 = vmul.f32 %v1321, %v1538
        %v1614 = vmul.f32 %v1321, %v1542
        %v1615 = vmul.f32 %v1325, %v1530
        %v1616 = vmul.f32 %v1325, %v1534
        %v1617 = vmul.f32 %v1325, %v1538
        %v1618 = vmul.f32 %v1325, %v1542
        %v1619 = vmul.f32 %v1329, %v1530
        %v1620 = vmul.f32 %v1329, %v1534
        %v1621 = vmul.f32 %v1329, %v1538
        %v1622 = vmul.f32 %v1329, %v1542
        %v1623 = vmul.f32 %v1333, %v1530
        %v1624 = vmul.f32 %v1333, %v1534
        %v1625 = vmul.f32 %v1333, %v1538
        %v1626 = vmul.f32 %v1333, %v1542
        %v1627 = vmul.f32 %v1337, %v1530
        %v1628 = vmul.f32 %v1337, %v1534
        %v1629 = vmul.f32 %v1337, %v1538
        %v1630 = vmul.f32 %v1337, %v1542
        %v1631 = vmul.f32 %v1341, %v1530
        %v1632 = vmul.f32 %v1341, %v1534
        %v1633 = vmul.f32 %v1341, %v1538
        %v1634 = vmul.f32 %v1341, %v1542
        %v1635 = vmul.f32 %v1345, %v1530
        %v1636 = vmul.f32 %v1345, %v1534
        %v1637 = vmul.f32 %v1345, %v1538
        %v1638 = vmul.f32 %v1345, %v1542
        %v1639 = vmul.f32 %v1349, %v1530
        %v1640 = vmul.f32 %v1349, %v1534
        %v1641 = vmul.f32 %v1349, %v1538
        %v1642 = vmul.f32 %v1349, %v1542
        %v1643 = vmul.f32 %v1353, %v1530
        %v1644 = vmul.f32 %v1353, %v1534
        %v1645 = vmul.f32 %v1353, %v1538
        %v1646 = vmul.f32 %v1353, %v1542
        %v1647 = vmul.f32 %v1357, %v1530
        %v1648 = vmul.f32 %v1357, %v1534
        %v1649 = vmul.f32 %v1357, %v1538
        %v1650 = vmul.f32 %v1357, %v1542
        %v1651 = vmul.f32 %v1361, %v1530
        %v1652 = vmul.f32 %v1361, %v1534
        %v1653 = vmul.f32 %v1361, %v1538
        %v1654 = vmul.f32 %v1361, %v1542
        %v1655 = vmul.f32 %v1365, %v1530
        %v1656 = vmul.f32 %v1365, %v1534
        %v1657 = vmul.f32 %v1365, %v1538
        %v1658 = vmul.f32 %v1365, %v1542
        %v1659 = vmul.f32 %v1369, %v1530
        %v1660 = vmul.f32 %v1369, %v1534
        %v1661 = vmul.f32 %v1369, %v1538
        %v1662 = vmul.f32 %v1369, %v1542
        %v1663 = vmul.f32 %v1373, %v1530
        %v1664 = vmul.f32 %v1373, %v1534
        %v1665 = vmul.f32 %v1373, %v1538
        %v1666 = vmul.f32 %v1373, %v1542
        %v1667 = vmul.f32 %v1377, %v1530
        %v1668 = vmul.f32 %v1377, %v1534
        %v1669 = vmul.f32 %v1377, %v1538
        %v1670 = vmul.f32 %v1377, %v1542
        %v1671 = vmul.f32 %v1381, %v1530
        %v1672 = vmul.f32 %v1381, %v1534
        %v1673 = vmul.f32 %v1381, %v1538
        %v1674 = vmul.f32 %v1381, %v1542
        %v1675 = vmul.f32 %v1385, %v1530
        %v1676 = vmul.f32 %v1385, %v1534
        %v1677 = vmul.f32 %v1385, %v1538
        %v1678 = vmul.f32 %v1385, %v1542
        %v1679 = vmul.f32 %v1389, %v1530
        %v1680 = vmul.f32 %v1389, %v1534
        %v1681 = vmul.f32 %v1389, %v1538
        %v1682 = vmul.f32 %v1389, %v1542
        %v1683 = vmul.f32 %v1393, %v1530
        %v1684 = vmul.f32 %v1393, %v1534
        %v1685 = vmul.f32 %v1393, %v1538
        %v1686 = vmul.f32 %v1393, %v1542
        %v1687 = vmul.f32 %v1397, %v1530
        %v1688 = vmul.f32 %v1397, %v1534
        %v1689 = vmul.f32 %v1397, %v1538
        %v1690 = vmul.f32 %v1397, %v1542
        %v1691 = vmul.f32 %v1401, %v1530
        %v1692 = vmul.f32 %v1401, %v1534
        %v1693 = vmul.f32 %v1401, %v1538
        %v1694 = vmul.f32 %v1401, %v1542
        %v1695 = vmul.f32 %v1405, %v1530
        %v1696 = vmul.f32 %v1405, %v1534
        %v1697 = vmul.f32 %v1405, %v1538
        %v1698 = vmul.f32 %v1405, %v1542
        %v1699 = vmul.f32 %v1409, %v1530
        %v1700 = vmul.f32 %v1409, %v1534
        %v1701 = vmul.f32 %v1409, %v1538
        %v1702 = vmul.f32 %v1409, %v1542
        %v1703 = vmul.f32 %v1413, %v1530
        %v1704 = vmul.f32 %v1413, %v1534
        %v1705 = vmul.f32 %v1413, %v1538
        %v1706 = vmul.f32 %v1413, %v1542
        %v1707 = vmul.f32 %v1417, %v1530
        %v1708 = vmul.f32 %v1417, %v1534
        %v1709 = vmul.f32 %v1417, %v1538
        %v1710 = vmul.f32 %v1417, %v1542
        %v1711 = vmul.f32 %v1421, %v1530
        %v1712 = vmul.f32 %v1421, %v1534
        %v1713 = vmul.f32 %v1421, %v1538
        %v1714 = vmul.f32 %v1421, %v1542
        %v1715 = vmul.f32 %v1425, %v1530
        %v1716 = vmul.f32 %v1425, %v1534
        %v1717 = vmul.f32 %v1425, %v1538
        %v1718 = vmul.f32 %v1425, %v1542
        %v1719 = vmul.f32 %v1429, %v1530
        %v1720 = vmul.f32 %v1429, %v1534
        %v1721 = vmul.f32 %v1429, %v1538
        %v1722 = vmul.f32 %v1429, %v1542
        %v1723 = vmul.f32 %v1433, %v1530
        %v1724 = vmul.f32 %v1433, %v1534
        %v1725 = vmul.f32 %v1433, %v1538
        %v1726 = vmul.f32 %v1433, %v1542
        %v1727 = vmul.f32 %v1437, %v1530
        %v1728 = vmul.f32 %v1437, %v1534
        %v1729 = vmul.f32 %v1437, %v1538
        %v1730 = vmul.f32 %v1437, %v1542
        %v1731 = vmul.f32 %v1441, %v1530
        %v1732 = vmul.f32 %v1441, %v1534
        %v1733 = vmul.f32 %v1441, %v1538
        %v1734 = vmul.f32 %v1441, %v1542
        %v1735 = vmul.f32 %v1445, %v1530
        %v1736 = vmul.f32 %v1445, %v1534
        %v1737 = vmul.f32 %v1445, %v1538
        %v1738 = vmul.f32 %v1445, %v1542
        %v1739 = vmul.f32 %v1449, %v1530
        %v1740 = vmul.f32 %v1449, %v1534
        %v1741 = vmul.f32 %v1449, %v1538
        %v1742 = vmul.f32 %v1449, %v1542
        %v1743 = vmul.f32 %v1453, %v1530
        %v1744 = vmul.f32 %v1453, %v1534
        %v1745 = vmul.f32 %v1453, %v1538
        %v1746 = vmul.f32 %v1453, %v1542
        %v1747 = vmul.f32 %v1457, %v1530
        %v1748 = vmul.f32 %v1457, %v1534
        %v1749 = vmul.f32 %v1457, %v1538
        %v1750 = vmul.f32 %v1457, %v1542
        %v1751 = vmul.f32 %v1461, %v1530
        %v1752 = vmul.f32 %v1461, %v1534
        %v1753 = vmul.f32 %v1461, %v1538
        %v1754 = vmul.f32 %v1461, %v1542
        %v1755 = vmul.f32 %v1465, %v1530
        %v1756 = vmul.f32 %v1465, %v1534
        %v1757 = vmul.f32 %v1465, %v1538
        %v1758 = vmul.f32 %v1465, %v1542
        %v1759 = vmul.f32 %v1469, %v1530
        %v1760 = vmul.f32 %v1469, %v1534
        %v1761 = vmul.f32 %v1469, %v1538
        %v1762 = vmul.f32 %v1469, %v1542
        %v1763 = vmul.f32 %v1473, %v1530
        %v1764 = vmul.f32 %v1473, %v1534
        %v1765 = vmul.f32 %v1473, %v1538
        %v1766 = vmul.f32 %v1473, %v1542
        %v1767 = vmul.f32 %v1477, %v1530
        %v1768 = vmul.f32 %v1477, %v1534
        %v1769 = vmul.f32 %v1477, %v1538
        %v1770 = vmul.f32 %v1477, %v1542
        %v1771 = vmul.f32 %v1481, %v1530
        %v1772 = vmul.f32 %v1481, %v1534
        %v1773 = vmul.f32 %v1481, %v1538
        %v1774 = vmul.f32 %v1481, %v1542
        %v1775 = vmul.f32 %v1485, %v1530
        %v1776 = vmul.f32 %v1485, %v1534
        %v1777 = vmul.f32 %v1485, %v1538
        %v1778 = vmul.f32 %v1485, %v1542
        %v1779 = vmul.f32 %v1489, %v1530
        %v1780 = vmul.f32 %v1489, %v1534
        %v1781 = vmul.f32 %v1489, %v1538
        %v1782 = vmul.f32 %v1489, %v1542
        %v1783 = vmul.f32 %v1493, %v1530
        %v1784 = vmul.f32 %v1493, %v1534
        %v1785 = vmul.f32 %v1493, %v1538
        %v1786 = vmul.f32 %v1493, %v1542
        %v1787 = vmul.f32 %v1497, %v1530
        %v1788 = vmul.f32 %v1497, %v1534
        %v1789 = vmul.f32 %v1497, %v1538
        %v1790 = vmul.f32 %v1497, %v1542
        %v1791 = vmul.f32 %v1501, %v1530
        %v1792 = vmul.f32 %v1501, %v1534
        %v1793 = vmul.f32 %v1501, %v1538
        %v1794 = vmul.f32 %v1501, %v1542
        %v1795 = vmul.f32 %v1505, %v1530
        %v1796 = vmul.f32 %v1505, %v1534
        %v1797 = vmul.f32 %v1505, %v1538
        %v1798 = vmul.f32 %v1505, %v1542
        %v1799 = vadd.f32 %v995, %v1543
        %v1800 = vadd.f32 %v996, %v1544
        %v1801 = vadd.f32 %v997, %v1545
        %v1802 = vadd.f32 %v998, %v1546
        %v1803 = vadd.f32 %v999, %v1547
        %v1804 = vadd.f32 %v1000, %v1548
        %v1805 = vadd.f32 %v1001, %v1549
        %v1806 = vadd.f32 %v1002, %v1550
        %v1807 = vadd.f32 %v1003, %v1551
        %v1808 = vadd.f32 %v1004, %v1552
        %v1809 = vadd.f32 %v1005, %v1553
        %v1810 = vadd.f32 %v1006, %v1554
        %v1811 = vadd.f32 %v1007, %v1555
        %v1812 = vadd.f32 %v1008, %v1556
        %v1813 = vadd.f32 %v1009, %v1557
        %v1814 = vadd.f32 %v1010, %v1558
        %v1815 = vadd.f32 %v1011, %v1559
        %v1816 = vadd.f32 %v1012, %v1560
        %v1817 = vadd.f32 %v1013, %v1561
        %v1818 = vadd.f32 %v1014, %v1562
        %v1819 = vadd.f32 %v1015, %v1563
        %v1820 = vadd.f32 %v1016, %v1564
        %v1821 = vadd.f32 %v1017, %v1565
        %v1822 = vadd.f32 %v1018, %v1566
        %v1823 = vadd.f32 %v1019, %v1567
        %v1824 = vadd.f32 %v1020, %v1568
        %v1825 = vadd.f32 %v1021, %v1569
        %v1826 = vadd.f32 %v1022, %v1570
        %v1827 = vadd.f32 %v1023, %v1571
        %v1828 = vadd.f32 %v1024, %v1572
        %v1829 = vadd.f32 %v1025, %v1573
        %v1830 = vadd.f32 %v1026, %v1574
        %v1831 = vadd.f32 %v1027, %v1575
        %v1832 = vadd.f32 %v1028, %v1576
        %v1833 = vadd.f32 %v1029, %v1577
        %v1834 = vadd.f32 %v1030, %v1578
        %v1835 = vadd.f32 %v1031, %v1579
        %v1836 = vadd.f32 %v1032, %v1580
        %v1837 = vadd.f32 %v1033, %v1581
        %v1838 = vadd.f32 %v1034, %v1582
        %v1839 = vadd.f32 %v1035, %v1583
        %v1840 = vadd.f32 %v1036, %v1584
        %v1841 = vadd.f32 %v1037, %v1585
        %v1842 = vadd.f32 %v1038, %v1586
        %v1843 = vadd.f32 %v1039, %v1587
        %v1844 = vadd.f32 %v1040, %v1588
        %v1845 = vadd.f32 %v1041, %v1589
        %v1846 = vadd.f32 %v1042, %v1590
        %v1847 = vadd.f32 %v1043, %v1591
        %v1848 = vadd.f32 %v1044, %v1592
        %v1849 = vadd.f32 %v1045, %v1593
        %v1850 = vadd.f32 %v1046, %v1594
        %v1851 = vadd.f32 %v1047, %v1595
        %v1852 = vadd.f32 %v1048, %v1596
        %v1853 = vadd.f32 %v1049, %v1597
        %v1854 = vadd.f32 %v1050, %v1598
        %v1855 = vadd.f32 %v1051, %v1599
        %v1856 = vadd.f32 %v1052, %v1600
        %v1857 = vadd.f32 %v1053, %v1601
        %v1858 = vadd.f32 %v1054, %v1602
        %v1859 = vadd.f32 %v1055, %v1603
        %v1860 = vadd.f32 %v1056, %v1604
        %v1861 = vadd.f32 %v1057, %v1605
        %v1862 = vadd.f32 %v1058, %v1606
        %v1863 = vadd.f32 %v1059, %v1607
        %v1864 = vadd.f32 %v1060, %v1608
        %v1865 = vadd.f32 %v1061, %v1609
        %v1866 = vadd.f32 %v1062, %v1610
        %v1867 = vadd.f32 %v1063, %v1611
        %v1868 = vadd.f32 %v1064, %v1612
        %v1869 = vadd.f32 %v1065, %v1613
        %v1870 = vadd.f32 %v1066, %v1614
        %v1871 = vadd.f32 %v1067, %v1615
        %v1872 = vadd.f32 %v1068, %v1616
        %v1873 = vadd.f32 %v1069, %v1617
        %v1874 = vadd.f32 %v1070, %v1618
        %v1875 = vadd.f32 %v1071, %v1619
        %v1876 = vadd.f32 %v1072, %v1620
        %v1877 = vadd.f32 %v1073, %v1621
        %v1878 = vadd.f32 %v1074, %v1622
        %v1879 = vadd.f32 %v1075, %v1623
        %v1880 = vadd.f32 %v1076, %v1624
        %v1881 = vadd.f32 %v1077, %v1625
        %v1882 = vadd.f32 %v1078, %v1626
        %v1883 = vadd.f32 %v1079, %v1627
        %v1884 = vadd.f32 %v1080, %v1628
        %v1885 = vadd.f32 %v1081, %v1629
        %v1886 = vadd.f32 %v1082, %v1630
        %v1887 = vadd.f32 %v1083, %v1631
        %v1888 = vadd.f32 %v1084, %v1632
        %v1889 = vadd.f32 %v1085, %v1633
        %v1890 = vadd.f32 %v1086, %v1634
        %v1891 = vadd.f32 %v1087, %v1635
        %v1892 = vadd.f32 %v1088, %v1636
        %v1893 = vadd.f32 %v1089, %v1637
        %v1894 = vadd.f32 %v1090, %v1638
        %v1895 = vadd.f32 %v1091, %v1639
        %v1896 = vadd.f32 %v1092, %v1640
        %v1897 = vadd.f32 %v1093, %v1641
        %v1898 = vadd.f32 %v1094, %v1642
        %v1899 = vadd.f32 %v1095, %v1643
        %v1900 = vadd.f32 %v1096, %v1644
        %v1901 = vadd.f32 %v1097, %v1645
        %v1902 = vadd.f32 %v1098, %v1646
        %v1903 = vadd.f32 %v1099, %v1647
        %v1904 = vadd.f32 %v1100, %v1648
        %v1905 = vadd.f32 %v1101, %v1649
        %v1906 = vadd.f32 %v1102, %v1650
        %v1907 = vadd.f32 %v1103, %v1651
        %v1908 = vadd.f32 %v1104, %v1652
        %v1909 = vadd.f32 %v1105, %v1653
        %v1910 = vadd.f32 %v1106, %v1654
        %v1911 = vadd.f32 %v1107, %v1655
        %v1912 = vadd.f32 %v1108, %v1656
        %v1913 = vadd.f32 %v1109, %v1657
        %v1914 = vadd.f32 %v1110, %v1658
        %v1915 = vadd.f32 %v1111, %v1659
        %v1916 = vadd.f32 %v1112, %v1660
        %v1917 = vadd.f32 %v1113, %v1661
        %v1918 = vadd.f32 %v1114, %v1662
        %v1919 = vadd.f32 %v1115, %v1663
        %v1920 = vadd.f32 %v1116, %v1664
        %v1921 = vadd.f32 %v1117, %v1665
        %v1922 = vadd.f32 %v1118, %v1666
        %v1923 = vadd.f32 %v1119, %v1667
        %v1924 = vadd.f32 %v1120, %v1668
        %v1925 = vadd.f32 %v1121, %v1669
        %v1926 = vadd.f32 %v1122, %v1670
        %v1927 = vadd.f32 %v1123, %v1671
        %v1928 = vadd.f32 %v1124, %v1672
        %v1929 = vadd.f32 %v1125, %v1673
        %v1930 = vadd.f32 %v1126, %v1674
        %v1931 = vadd.f32 %v1127, %v1675
        %v1932 = vadd.f32 %v1128, %v1676
        %v1933 = vadd.f32 %v1129, %v1677
        %v1934 = vadd.f32 %v1130, %v1678
        %v1935 = vadd.f32 %v1131, %v1679
        %v1936 = vadd.f32 %v1132, %v1680
        %v1937 = vadd.f32 %v1133, %v1681
        %v1938 = vadd.f32 %v1134, %v1682
        %v1939 = vadd.f32 %v1135, %v1683
        %v1940 = vadd.f32 %v1136, %v1684
        %v1941 = vadd.f32 %v1137, %v1685
        %v1942 = vadd.f32 %v1138, %v1686
        %v1943 = vadd.f32 %v1139, %v1687
        %v1944 = vadd.f32 %v1140, %v1688
        %v1945 = vadd.f32 %v1141, %v1689
        %v1946 = vadd.f32 %v1142, %v1690
        %v1947 = vadd.f32 %v1143, %v1691
        %v1948 = vadd.f32 %v1144, %v1692
        %v1949 = vadd.f32 %v1145, %v1693
        %v1950 = vadd.f32 %v1146, %v1694
        %v1951 = vadd.f32 %v1147, %v1695
        %v1952 = vadd.f32 %v1148, %v1696
        %v1953 = vadd.f32 %v1149, %v1697
        %v1954 = vadd.f32 %v1150, %v1698
        %v1955 = vadd.f32 %v1151, %v1699
        %v1956 = vadd.f32 %v1152, %v1700
        %v1957 = vadd.f32 %v1153, %v1701
        %v1958 = vadd.f32 %v1154, %v1702
        %v1959 = vadd.f32 %v1155, %v1703
        %v1960 = vadd.f32 %v1156, %v1704
        %v1961 = vadd.f32 %v1157, %v1705
        %v1962 = vadd.f32 %v1158, %v1706
        %v1963 = vadd.f32 %v1159, %v1707
        %v1964 = vadd.f32 %v1160, %v1708
        %v1965 = vadd.f32 %v1161, %v1709
        %v1966 = vadd.f32 %v1162, %v1710
        %v1967 = vadd.f32 %v1163, %v1711
        %v1968 = vadd.f32 %v1164, %v1712
        %v1969 = vadd.f32 %v1165, %v1713
        %v1970 = vadd.f32 %v1166, %v1714
        %v1971 = vadd.f32 %v1167, %v1715
        %v1972 = vadd.f32 %v1168, %v1716
        %v1973 = vadd.f32 %v1169, %v1717
        %v1974 = vadd.f32 %v1170, %v1718
        %v1975 = vadd.f32 %v1171, %v1719
        %v1976 = vadd.f32 %v1172, %v1720
        %v1977 = vadd.f32 %v1173, %v1721
        %v1978 = vadd.f32 %v1174, %v1722
        %v1979 = vadd.f32 %v1175, %v1723
        %v1980 = vadd.f32 %v1176, %v1724
        %v1981 = vadd.f32 %v1177, %v1725
        %v1982 = vadd.f32 %v1178, %v1726
        %v1983 = vadd.f32 %v1179, %v1727
        %v1984 = vadd.f32 %v1180, %v1728
        %v1985 = vadd.f32 %v1181, %v1729
        %v1986 = vadd.f32 %v1182, %v1730
        %v1987 = vadd.f32 %v1183, %v1731
        %v1988 = vadd.f32 %v1184, %v1732
        %v1989 = vadd.f32 %v1185, %v1733
        %v1990 = vadd.f32 %v1186, %v1734
        %v1991 = vadd.f32 %v1187, %v1735
        %v1992 = vadd.f32 %v1188, %v1736
        %v1993 = vadd.f32 %v1189, %v1737
        %v1994 = vadd.f32 %v1190, %v1738
        %v1995 = vadd.f32 %v1191, %v1739
        %v1996 = vadd.f32 %v1192, %v1740
        %v1997 = vadd.f32 %v1193, %v1741
        %v1998 = vadd.f32 %v1194, %v1742
        %v1999 = vadd.f32 %v1195, %v1743
        %v2000 = vadd.f32 %v1196, %v1744
        %v2001 = vadd.f32 %v1197, %v1745
        %v2002 = vadd.f32 %v1198, %v1746
        %v2003 = vadd.f32 %v1199, %v1747
        %v2004 = vadd.f32 %v1200, %v1748
        %v2005 = vadd.f32 %v1201, %v1749
        %v2006 = vadd.f32 %v1202, %v1750
        %v2007 = vadd.f32 %v1203, %v1751
        %v2008 = vadd.f32 %v1204, %v1752
        %v2009 = vadd.f32 %v1205, %v1753
        %v2010 = vadd.f32 %v1206, %v1754
        %v2011 = vadd.f32 %v1207, %v1755
        %v2012 = vadd.f32 %v1208, %v1756
        %v2013 = vadd.f32 %v1209, %v1757
        %v2014 = vadd.f32 %v1210, %v1758
        %v2015 = vadd.f32 %v1211, %v1759
        %v2016 = vadd.f32 %v1212, %v1760
        %v2017 = vadd.f32 %v1213, %v1761
        %v2018 = vadd.f32 %v1214, %v1762
        %v2019 = vadd.f32 %v1215, %v1763
        %v2020 = vadd.f32 %v1216, %v1764
        %v2021 = vadd.f32 %v1217, %v1765
        %v2022 = vadd.f32 %v1218, %v1766
        %v2023 = vadd.f32 %v1219, %v1767
        %v2024 = vadd.f32 %v1220, %v1768
        %v2025 = vadd.f32 %v1221, %v1769
        %v2026 = vadd.f32 %v1222, %v1770
        %v2027 = vadd.f32 %v1223, %v1771
        %v2028 = vadd.f32 %v1224, %v1772
        %v2029 = vadd.f32 %v1225, %v1773
        %v2030 = vadd.f32 %v1226, %v1774
        %v2031 = vadd.f32 %v1227, %v1775
        %v2032 = vadd.f32 %v1228, %v1776
        %v2033 = vadd.f32 %v1229, %v1777
        %v2034 = vadd.f32 %v1230, %v1778
        %v2035 = vadd.f32 %v1231, %v1779
        %v2036 = vadd.f32 %v1232, %v1780
        %v2037 = vadd.f32 %v1233, %v1781
        %v2038 = vadd.f32 %v1234, %v1782
        %v2039 = vadd.f32 %v1235, %v1783
        %v2040 = vadd.f32 %v1236, %v1784
        %v2041 = vadd.f32 %v1237, %v1785
        %v2042 = vadd.f32 %v1238, %v1786
        %v2043 = vadd.f32 %v1239, %v1787
        %v2044 = vadd.f32 %v1240, %v1788
        %v2045 = vadd.f32 %v1241, %v1789
        %v2046 = vadd.f32 %v1242, %v1790
        %v2047 = vadd.f32 %v1243, %v1791
        %v2048 = vadd.f32 %v1244, %v1792
        %v2049 = vadd.f32 %v1245, %v1793
        %v2050 = vadd.f32 %v1246, %v1794
        %v2051 = vadd.f32 %v1247, %v1795
        %v2052 = vadd.f32 %v1248, %v1796
        %v2053 = vadd.f32 %v1249, %v1797
        %v2054 = vadd.f32 %v1250, %v1798
        %2055 = vset.pattern.permute.xlu0 2
        %2056 = vperm.xlu0 %2055, %v531
        %v2057 = vpop.permute.xlu0 %2056
        %2059 = vset.pattern.permute.xlu0 2
        %2060 = vperm.xlu0 %2059, %v532
        %v2061 = vpop.permute.xlu0 %2060
        %2063 = vset.pattern.permute.xlu0 2
        %2064 = vperm.xlu0 %2063, %v533
        %v2065 = vpop.permute.xlu0 %2064
        %2067 = vset.pattern.permute.xlu0 2
        %2068 = vperm.xlu0 %2067, %v534
        %v2069 = vpop.permute.xlu0 %2068
        %2071 = vset.pattern.permute.xlu0 2
        %2072 = vperm.xlu0 %2071, %v535
        %v2073 = vpop.permute.xlu0 %2072
        %2075 = vset.pattern.permute.xlu0 2
        %2076 = vperm.xlu0 %2075, %v536
        %v2077 = vpop.permute.xlu0 %2076
        %2079 = vset.pattern.permute.xlu0 2
        %2080 = vperm.xlu0 %2079, %v537
        %v2081 = vpop.permute.xlu0 %2080
        %2083 = vset.pattern.permute.xlu0 2
        %2084 = vperm.xlu0 %2083, %v538
        %v2085 = vpop.permute.xlu0 %2084
        %2087 = vset.pattern.permute.xlu0 2
        %2088 = vperm.xlu0 %2087, %v539
        %v2089 = vpop.permute.xlu0 %2088
        %2091 = vset.pattern.permute.xlu0 2
        %2092 = vperm.xlu0 %2091, %v540
        %v2093 = vpop.permute.xlu0 %2092
        %2095 = vset.pattern.permute.xlu0 2
        %2096 = vperm.xlu0 %2095, %v541
        %v2097 = vpop.permute.xlu0 %2096
        %2099 = vset.pattern.permute.xlu0 2
        %2100 = vperm.xlu0 %2099, %v542
        %v2101 = vpop.permute.xlu0 %2100
        %2103 = vset.pattern.permute.xlu0 2
        %2104 = vperm.xlu0 %2103, %v543
        %v2105 = vpop.permute.xlu0 %2104
        %2107 = vset.pattern.permute.xlu0 2
        %2108 = vperm.xlu0 %2107, %v544
        %v2109 = vpop.permute.xlu0 %2108
        %2111 = vset.pattern.permute.xlu0 2
        %2112 = vperm.xlu0 %2111, %v545
        %v2113 = vpop.permute.xlu0 %2112
        %2115 = vset.pattern.permute.xlu0 2
        %2116 = vperm.xlu0 %2115, %v546
        %v2117 = vpop.permute.xlu0 %2116
        %2119 = vset.pattern.permute.xlu0 2
        %2120 = vperm.xlu0 %2119, %v547
        %v2121 = vpop.permute.xlu0 %2120
        %2123 = vset.pattern.permute.xlu0 2
        %2124 = vperm.xlu0 %2123, %v548
        %v2125 = vpop.permute.xlu0 %2124
        %2127 = vset.pattern.permute.xlu0 2
        %2128 = vperm.xlu0 %2127, %v549
        %v2129 = vpop.permute.xlu0 %2128
        %2131 = vset.pattern.permute.xlu0 2
        %2132 = vperm.xlu0 %2131, %v550
        %v2133 = vpop.permute.xlu0 %2132
        %2135 = vset.pattern.permute.xlu0 2
        %2136 = vperm.xlu0 %2135, %v551
        %v2137 = vpop.permute.xlu0 %2136
        %2139 = vset.pattern.permute.xlu0 2
        %2140 = vperm.xlu0 %2139, %v552
        %v2141 = vpop.permute.xlu0 %2140
        %2143 = vset.pattern.permute.xlu0 2
        %2144 = vperm.xlu0 %2143, %v553
        %v2145 = vpop.permute.xlu0 %2144
        %2147 = vset.pattern.permute.xlu0 2
        %2148 = vperm.xlu0 %2147, %v554
        %v2149 = vpop.permute.xlu0 %2148
        %2151 = vset.pattern.permute.xlu0 2
        %2152 = vperm.xlu0 %2151, %v555
        %v2153 = vpop.permute.xlu0 %2152
        %2155 = vset.pattern.permute.xlu0 2
        %2156 = vperm.xlu0 %2155, %v556
        %v2157 = vpop.permute.xlu0 %2156
        %2159 = vset.pattern.permute.xlu0 2
        %2160 = vperm.xlu0 %2159, %v557
        %v2161 = vpop.permute.xlu0 %2160
        %2163 = vset.pattern.permute.xlu0 2
        %2164 = vperm.xlu0 %2163, %v558
        %v2165 = vpop.permute.xlu0 %2164
        %2167 = vset.pattern.permute.xlu0 2
        %2168 = vperm.xlu0 %2167, %v559
        %v2169 = vpop.permute.xlu0 %2168
        %2171 = vset.pattern.permute.xlu0 2
        %2172 = vperm.xlu0 %2171, %v560
        %v2173 = vpop.permute.xlu0 %2172
        %2175 = vset.pattern.permute.xlu0 2
        %2176 = vperm.xlu0 %2175, %v561
        %v2177 = vpop.permute.xlu0 %2176
        %2179 = vset.pattern.permute.xlu0 2
        %2180 = vperm.xlu0 %2179, %v562
        %v2181 = vpop.permute.xlu0 %2180
        %2183 = vset.pattern.permute.xlu0 2
        %2184 = vperm.xlu0 %2183, %v563
        %v2185 = vpop.permute.xlu0 %2184
        %2187 = vset.pattern.permute.xlu0 2
        %2188 = vperm.xlu0 %2187, %v564
        %v2189 = vpop.permute.xlu0 %2188
        %2191 = vset.pattern.permute.xlu0 2
        %2192 = vperm.xlu0 %2191, %v565
        %v2193 = vpop.permute.xlu0 %2192
        %2195 = vset.pattern.permute.xlu0 2
        %2196 = vperm.xlu0 %2195, %v566
        %v2197 = vpop.permute.xlu0 %2196
        %2199 = vset.pattern.permute.xlu0 2
        %2200 = vperm.xlu0 %2199, %v567
        %v2201 = vpop.permute.xlu0 %2200
        %2203 = vset.pattern.permute.xlu0 2
        %2204 = vperm.xlu0 %2203, %v568
        %v2205 = vpop.permute.xlu0 %2204
        %2207 = vset.pattern.permute.xlu0 2
        %2208 = vperm.xlu0 %2207, %v569
        %v2209 = vpop.permute.xlu0 %2208
        %2211 = vset.pattern.permute.xlu0 2
        %2212 = vperm.xlu0 %2211, %v570
        %v2213 = vpop.permute.xlu0 %2212
        %2215 = vset.pattern.permute.xlu0 2
        %2216 = vperm.xlu0 %2215, %v571
        %v2217 = vpop.permute.xlu0 %2216
        %2219 = vset.pattern.permute.xlu0 2
        %2220 = vperm.xlu0 %2219, %v572
        %v2221 = vpop.permute.xlu0 %2220
        %2223 = vset.pattern.permute.xlu0 2
        %2224 = vperm.xlu0 %2223, %v573
        %v2225 = vpop.permute.xlu0 %2224
        %2227 = vset.pattern.permute.xlu0 2
        %2228 = vperm.xlu0 %2227, %v574
        %v2229 = vpop.permute.xlu0 %2228
        %2231 = vset.pattern.permute.xlu0 2
        %2232 = vperm.xlu0 %2231, %v575
        %v2233 = vpop.permute.xlu0 %2232
        %2235 = vset.pattern.permute.xlu0 2
        %2236 = vperm.xlu0 %2235, %v576
        %v2237 = vpop.permute.xlu0 %2236
        %2239 = vset.pattern.permute.xlu0 2
        %2240 = vperm.xlu0 %2239, %v577
        %v2241 = vpop.permute.xlu0 %2240
        %2243 = vset.pattern.permute.xlu0 2
        %2244 = vperm.xlu0 %2243, %v578
        %v2245 = vpop.permute.xlu0 %2244
        %2247 = vset.pattern.permute.xlu0 2
        %2248 = vperm.xlu0 %2247, %v579
        %v2249 = vpop.permute.xlu0 %2248
        %2251 = vset.pattern.permute.xlu0 2
        %2252 = vperm.xlu0 %2251, %v580
        %v2253 = vpop.permute.xlu0 %2252
        %2255 = vset.pattern.permute.xlu0 2
        %2256 = vperm.xlu0 %2255, %v581
        %v2257 = vpop.permute.xlu0 %2256
        %2259 = vset.pattern.permute.xlu0 2
        %2260 = vperm.xlu0 %2259, %v582
        %v2261 = vpop.permute.xlu0 %2260
        %2263 = vset.pattern.permute.xlu0 2
        %2264 = vperm.xlu0 %2263, %v583
        %v2265 = vpop.permute.xlu0 %2264
        %2267 = vset.pattern.permute.xlu0 2
        %2268 = vperm.xlu0 %2267, %v584
        %v2269 = vpop.permute.xlu0 %2268
        %2271 = vset.pattern.permute.xlu0 2
        %2272 = vperm.xlu0 %2271, %v585
        %v2273 = vpop.permute.xlu0 %2272
        %2275 = vset.pattern.permute.xlu0 2
        %2276 = vperm.xlu0 %2275, %v586
        %v2277 = vpop.permute.xlu0 %2276
        %2279 = vset.pattern.permute.xlu0 2
        %2280 = vperm.xlu0 %2279, %v587
        %v2281 = vpop.permute.xlu0 %2280
        %2283 = vset.pattern.permute.xlu0 2
        %2284 = vperm.xlu0 %2283, %v588
        %v2285 = vpop.permute.xlu0 %2284
        %2287 = vset.pattern.permute.xlu0 2
        %2288 = vperm.xlu0 %2287, %v589
        %v2289 = vpop.permute.xlu0 %2288
        %2291 = vset.pattern.permute.xlu0 2
        %2292 = vperm.xlu0 %2291, %v590
        %v2293 = vpop.permute.xlu0 %2292
        %2295 = vset.pattern.permute.xlu0 2
        %2296 = vperm.xlu0 %2295, %v591
        %v2297 = vpop.permute.xlu0 %2296
        %2299 = vset.pattern.permute.xlu0 2
        %2300 = vperm.xlu0 %2299, %v592
        %v2301 = vpop.permute.xlu0 %2300
        %2303 = vset.pattern.permute.xlu0 2
        %2304 = vperm.xlu0 %2303, %v593
        %v2305 = vpop.permute.xlu0 %2304
        %2307 = vset.pattern.permute.xlu0 2
        %2308 = vperm.xlu0 %2307, %v594
        %v2309 = vpop.permute.xlu0 %2308
        %v2311 = vlaneseq
        %v2312 = vshrl.u32 %v2311, 7
        %v2313 = vsub.s32 2, %v2312
        %v2314 = vrot.slane %v635, %v2313
        %v2315 = vlaneseq
        %v2316 = vshrl.u32 %v2315, 7
        %v2317 = vsub.s32 6, %v2316
        %v2318 = vrot.slane %v635, %v2317
        %v2319 = vlaneseq
        %v2320 = vshrl.u32 %v2319, 7
        %v2321 = vsub.s32 2, %v2320
        %v2322 = vrot.slane %v636, %v2321
        %v2323 = vlaneseq
        %v2324 = vshrl.u32 %v2323, 7
        %v2325 = vsub.s32 6, %v2324
        %v2326 = vrot.slane %v636, %v2325
        %v2331 = vlaneseq
        %v2332 = vshrl.u32 %v2331, 7
        %v2333 = vsub.s32 2, %v2332
        %v2334 = vrot.slane %v2314, %v2333
        %v2335 = vlaneseq
        %v2336 = vshrl.u32 %v2335, 7
        %v2337 = vsub.s32 2, %v2336
        %v2338 = vrot.slane %v2318, %v2337
        %v2339 = vlaneseq
        %v2340 = vshrl.u32 %v2339, 7
        %v2341 = vsub.s32 2, %v2340
        %v2342 = vrot.slane %v2322, %v2341
        %v2343 = vlaneseq
        %v2344 = vshrl.u32 %v2343, 7
        %v2345 = vsub.s32 2, %v2344
        %v2346 = vrot.slane %v2326, %v2345
        %v2347 = vmul.f32 %v2057, %v2334
        %v2348 = vmul.f32 %v2057, %v2338
        %v2349 = vmul.f32 %v2057, %v2342
        %v2350 = vmul.f32 %v2057, %v2346
        %v2351 = vmul.f32 %v2061, %v2334
        %v2352 = vmul.f32 %v2061, %v2338
        %v2353 = vmul.f32 %v2061, %v2342
        %v2354 = vmul.f32 %v2061, %v2346
        %v2355 = vmul.f32 %v2065, %v2334
        %v2356 = vmul.f32 %v2065, %v2338
        %v2357 = vmul.f32 %v2065, %v2342
        %v2358 = vmul.f32 %v2065, %v2346
        %v2359 = vmul.f32 %v2069, %v2334
        %v2360 = vmul.f32 %v2069, %v2338
        %v2361 = vmul.f32 %v2069, %v2342
        %v2362 = vmul.f32 %v2069, %v2346
        %v2363 = vmul.f32 %v2073, %v2334
        %v2364 = vmul.f32 %v2073, %v2338
        %v2365 = vmul.f32 %v2073, %v2342
        %v2366 = vmul.f32 %v2073, %v2346
        %v2367 = vmul.f32 %v2077, %v2334
        %v2368 = vmul.f32 %v2077, %v2338
        %v2369 = vmul.f32 %v2077, %v2342
        %v2370 = vmul.f32 %v2077, %v2346
        %v2371 = vmul.f32 %v2081, %v2334
        %v2372 = vmul.f32 %v2081, %v2338
        %v2373 = vmul.f32 %v2081, %v2342
        %v2374 = vmul.f32 %v2081, %v2346
        %v2375 = vmul.f32 %v2085, %v2334
        %v2376 = vmul.f32 %v2085, %v2338
        %v2377 = vmul.f32 %v2085, %v2342
        %v2378 = vmul.f32 %v2085, %v2346
        %v2379 = vmul.f32 %v2089, %v2334
        %v2380 = vmul.f32 %v2089, %v2338
        %v2381 = vmul.f32 %v2089, %v2342
        %v2382 = vmul.f32 %v2089, %v2346
        %v2383 = vmul.f32 %v2093, %v2334
        %v2384 = vmul.f32 %v2093, %v2338
        %v2385 = vmul.f32 %v2093, %v2342
        %v2386 = vmul.f32 %v2093, %v2346
        %v2387 = vmul.f32 %v2097, %v2334
        %v2388 = vmul.f32 %v2097, %v2338
        %v2389 = vmul.f32 %v2097, %v2342
        %v2390 = vmul.f32 %v2097, %v2346
        %v2391 = vmul.f32 %v2101, %v2334
        %v2392 = vmul.f32 %v2101, %v2338
        %v2393 = vmul.f32 %v2101, %v2342
        %v2394 = vmul.f32 %v2101, %v2346
        %v2395 = vmul.f32 %v2105, %v2334
        %v2396 = vmul.f32 %v2105, %v2338
        %v2397 = vmul.f32 %v2105, %v2342
        %v2398 = vmul.f32 %v2105, %v2346
        %v2399 = vmul.f32 %v2109, %v2334
        %v2400 = vmul.f32 %v2109, %v2338
        %v2401 = vmul.f32 %v2109, %v2342
        %v2402 = vmul.f32 %v2109, %v2346
        %v2403 = vmul.f32 %v2113, %v2334
        %v2404 = vmul.f32 %v2113, %v2338
        %v2405 = vmul.f32 %v2113, %v2342
        %v2406 = vmul.f32 %v2113, %v2346
        %v2407 = vmul.f32 %v2117, %v2334
        %v2408 = vmul.f32 %v2117, %v2338
        %v2409 = vmul.f32 %v2117, %v2342
        %v2410 = vmul.f32 %v2117, %v2346
        %v2411 = vmul.f32 %v2121, %v2334
        %v2412 = vmul.f32 %v2121, %v2338
        %v2413 = vmul.f32 %v2121, %v2342
        %v2414 = vmul.f32 %v2121, %v2346
        %v2415 = vmul.f32 %v2125, %v2334
        %v2416 = vmul.f32 %v2125, %v2338
        %v2417 = vmul.f32 %v2125, %v2342
        %v2418 = vmul.f32 %v2125, %v2346
        %v2419 = vmul.f32 %v2129, %v2334
        %v2420 = vmul.f32 %v2129, %v2338
        %v2421 = vmul.f32 %v2129, %v2342
        %v2422 = vmul.f32 %v2129, %v2346
        %v2423 = vmul.f32 %v2133, %v2334
        %v2424 = vmul.f32 %v2133, %v2338
        %v2425 = vmul.f32 %v2133, %v2342
        %v2426 = vmul.f32 %v2133, %v2346
        %v2427 = vmul.f32 %v2137, %v2334
        %v2428 = vmul.f32 %v2137, %v2338
        %v2429 = vmul.f32 %v2137, %v2342
        %v2430 = vmul.f32 %v2137, %v2346
        %v2431 = vmul.f32 %v2141, %v2334
        %v2432 = vmul.f32 %v2141, %v2338
        %v2433 = vmul.f32 %v2141, %v2342
        %v2434 = vmul.f32 %v2141, %v2346
        %v2435 = vmul.f32 %v2145, %v2334
        %v2436 = vmul.f32 %v2145, %v2338
        %v2437 = vmul.f32 %v2145, %v2342
        %v2438 = vmul.f32 %v2145, %v2346
        %v2439 = vmul.f32 %v2149, %v2334
        %v2440 = vmul.f32 %v2149, %v2338
        %v2441 = vmul.f32 %v2149, %v2342
        %v2442 = vmul.f32 %v2149, %v2346
        %v2443 = vmul.f32 %v2153, %v2334
        %v2444 = vmul.f32 %v2153, %v2338
        %v2445 = vmul.f32 %v2153, %v2342
        %v2446 = vmul.f32 %v2153, %v2346
        %v2447 = vmul.f32 %v2157, %v2334
        %v2448 = vmul.f32 %v2157, %v2338
        %v2449 = vmul.f32 %v2157, %v2342
        %v2450 = vmul.f32 %v2157, %v2346
        %v2451 = vmul.f32 %v2161, %v2334
        %v2452 = vmul.f32 %v2161, %v2338
        %v2453 = vmul.f32 %v2161, %v2342
        %v2454 = vmul.f32 %v2161, %v2346
        %v2455 = vmul.f32 %v2165, %v2334
        %v2456 = vmul.f32 %v2165, %v2338
        %v2457 = vmul.f32 %v2165, %v2342
        %v2458 = vmul.f32 %v2165, %v2346
        %v2459 = vmul.f32 %v2169, %v2334
        %v2460 = vmul.f32 %v2169, %v2338
        %v2461 = vmul.f32 %v2169, %v2342
        %v2462 = vmul.f32 %v2169, %v2346
        %v2463 = vmul.f32 %v2173, %v2334
        %v2464 = vmul.f32 %v2173, %v2338
        %v2465 = vmul.f32 %v2173, %v2342
        %v2466 = vmul.f32 %v2173, %v2346
        %v2467 = vmul.f32 %v2177, %v2334
        %v2468 = vmul.f32 %v2177, %v2338
        %v2469 = vmul.f32 %v2177, %v2342
        %v2470 = vmul.f32 %v2177, %v2346
        %v2471 = vmul.f32 %v2181, %v2334
        %v2472 = vmul.f32 %v2181, %v2338
        %v2473 = vmul.f32 %v2181, %v2342
        %v2474 = vmul.f32 %v2181, %v2346
        %v2475 = vmul.f32 %v2185, %v2334
        %v2476 = vmul.f32 %v2185, %v2338
        %v2477 = vmul.f32 %v2185, %v2342
        %v2478 = vmul.f32 %v2185, %v2346
        %v2479 = vmul.f32 %v2189, %v2334
        %v2480 = vmul.f32 %v2189, %v2338
        %v2481 = vmul.f32 %v2189, %v2342
        %v2482 = vmul.f32 %v2189, %v2346
        %v2483 = vmul.f32 %v2193, %v2334
        %v2484 = vmul.f32 %v2193, %v2338
        %v2485 = vmul.f32 %v2193, %v2342
        %v2486 = vmul.f32 %v2193, %v2346
        %v2487 = vmul.f32 %v2197, %v2334
        %v2488 = vmul.f32 %v2197, %v2338
        %v2489 = vmul.f32 %v2197, %v2342
        %v2490 = vmul.f32 %v2197, %v2346
        %v2491 = vmul.f32 %v2201, %v2334
        %v2492 = vmul.f32 %v2201, %v2338
        %v2493 = vmul.f32 %v2201, %v2342
        %v2494 = vmul.f32 %v2201, %v2346
        %v2495 = vmul.f32 %v2205, %v2334
        %v2496 = vmul.f32 %v2205, %v2338
        %v2497 = vmul.f32 %v2205, %v2342
        %v2498 = vmul.f32 %v2205, %v2346
        %v2499 = vmul.f32 %v2209, %v2334
        %v2500 = vmul.f32 %v2209, %v2338
        %v2501 = vmul.f32 %v2209, %v2342
        %v2502 = vmul.f32 %v2209, %v2346
        %v2503 = vmul.f32 %v2213, %v2334
        %v2504 = vmul.f32 %v2213, %v2338
        %v2505 = vmul.f32 %v2213, %v2342
        %v2506 = vmul.f32 %v2213, %v2346
        %v2507 = vmul.f32 %v2217, %v2334
        %v2508 = vmul.f32 %v2217, %v2338
        %v2509 = vmul.f32 %v2217, %v2342
        %v2510 = vmul.f32 %v2217, %v2346
        %v2511 = vmul.f32 %v2221, %v2334
        %v2512 = vmul.f32 %v2221, %v2338
        %v2513 = vmul.f32 %v2221, %v2342
        %v2514 = vmul.f32 %v2221, %v2346
        %v2515 = vmul.f32 %v2225, %v2334
        %v2516 = vmul.f32 %v2225, %v2338
        %v2517 = vmul.f32 %v2225, %v2342
        %v2518 = vmul.f32 %v2225, %v2346
        %v2519 = vmul.f32 %v2229, %v2334
        %v2520 = vmul.f32 %v2229, %v2338
        %v2521 = vmul.f32 %v2229, %v2342
        %v2522 = vmul.f32 %v2229, %v2346
        %v2523 = vmul.f32 %v2233, %v2334
        %v2524 = vmul.f32 %v2233, %v2338
        %v2525 = vmul.f32 %v2233, %v2342
        %v2526 = vmul.f32 %v2233, %v2346
        %v2527 = vmul.f32 %v2237, %v2334
        %v2528 = vmul.f32 %v2237, %v2338
        %v2529 = vmul.f32 %v2237, %v2342
        %v2530 = vmul.f32 %v2237, %v2346
        %v2531 = vmul.f32 %v2241, %v2334
        %v2532 = vmul.f32 %v2241, %v2338
        %v2533 = vmul.f32 %v2241, %v2342
        %v2534 = vmul.f32 %v2241, %v2346
        %v2535 = vmul.f32 %v2245, %v2334
        %v2536 = vmul.f32 %v2245, %v2338
        %v2537 = vmul.f32 %v2245, %v2342
        %v2538 = vmul.f32 %v2245, %v2346
        %v2539 = vmul.f32 %v2249, %v2334
        %v2540 = vmul.f32 %v2249, %v2338
        %v2541 = vmul.f32 %v2249, %v2342
        %v2542 = vmul.f32 %v2249, %v2346
        %v2543 = vmul.f32 %v2253, %v2334
        %v2544 = vmul.f32 %v2253, %v2338
        %v2545 = vmul.f32 %v2253, %v2342
        %v2546 = vmul.f32 %v2253, %v2346
        %v2547 = vmul.f32 %v2257, %v2334
        %v2548 = vmul.f32 %v2257, %v2338
        %v2549 = vmul.f32 %v2257, %v2342
        %v2550 = vmul.f32 %v2257, %v2346
        %v2551 = vmul.f32 %v2261, %v2334
        %v2552 = vmul.f32 %v2261, %v2338
        %v2553 = vmul.f32 %v2261, %v2342
        %v2554 = vmul.f32 %v2261, %v2346
        %v2555 = vmul.f32 %v2265, %v2334
        %v2556 = vmul.f32 %v2265, %v2338
        %v2557 = vmul.f32 %v2265, %v2342
        %v2558 = vmul.f32 %v2265, %v2346
        %v2559 = vmul.f32 %v2269, %v2334
        %v2560 = vmul.f32 %v2269, %v2338
        %v2561 = vmul.f32 %v2269, %v2342
        %v2562 = vmul.f32 %v2269, %v2346
        %v2563 = vmul.f32 %v2273, %v2334
        %v2564 = vmul.f32 %v2273, %v2338
        %v2565 = vmul.f32 %v2273, %v2342
        %v2566 = vmul.f32 %v2273, %v2346
        %v2567 = vmul.f32 %v2277, %v2334
        %v2568 = vmul.f32 %v2277, %v2338
        %v2569 = vmul.f32 %v2277, %v2342
        %v2570 = vmul.f32 %v2277, %v2346
        %v2571 = vmul.f32 %v2281, %v2334
        %v2572 = vmul.f32 %v2281, %v2338
        %v2573 = vmul.f32 %v2281, %v2342
        %v2574 = vmul.f32 %v2281, %v2346
        %v2575 = vmul.f32 %v2285, %v2334
        %v2576 = vmul.f32 %v2285, %v2338
        %v2577 = vmul.f32 %v2285, %v2342
        %v2578 = vmul.f32 %v2285, %v2346
        %v2579 = vmul.f32 %v2289, %v2334
        %v2580 = vmul.f32 %v2289, %v2338
        %v2581 = vmul.f32 %v2289, %v2342
        %v2582 = vmul.f32 %v2289, %v2346
        %v2583 = vmul.f32 %v2293, %v2334
        %v2584 = vmul.f32 %v2293, %v2338
        %v2585 = vmul.f32 %v2293, %v2342
        %v2586 = vmul.f32 %v2293, %v2346
        %v2587 = vmul.f32 %v2297, %v2334
        %v2588 = vmul.f32 %v2297, %v2338
        %v2589 = vmul.f32 %v2297, %v2342
        %v2590 = vmul.f32 %v2297, %v2346
        %v2591 = vmul.f32 %v2301, %v2334
        %v2592 = vmul.f32 %v2301, %v2338
        %v2593 = vmul.f32 %v2301, %v2342
        %v2594 = vmul.f32 %v2301, %v2346
        %v2595 = vmul.f32 %v2305, %v2334
        %v2596 = vmul.f32 %v2305, %v2338
        %v2597 = vmul.f32 %v2305, %v2342
        %v2598 = vmul.f32 %v2305, %v2346
        %v2599 = vmul.f32 %v2309, %v2334
        %v2600 = vmul.f32 %v2309, %v2338
        %v2601 = vmul.f32 %v2309, %v2342
        %v2602 = vmul.f32 %v2309, %v2346
        %v2603 = vadd.f32 %v1799, %v2347
        %v2604 = vadd.f32 %v1800, %v2348
        %v2605 = vadd.f32 %v1801, %v2349
        %v2606 = vadd.f32 %v1802, %v2350
        %v2607 = vadd.f32 %v1803, %v2351
        %v2608 = vadd.f32 %v1804, %v2352
        %v2609 = vadd.f32 %v1805, %v2353
        %v2610 = vadd.f32 %v1806, %v2354
        %v2611 = vadd.f32 %v1807, %v2355
        %v2612 = vadd.f32 %v1808, %v2356
        %v2613 = vadd.f32 %v1809, %v2357
        %v2614 = vadd.f32 %v1810, %v2358
        %v2615 = vadd.f32 %v1811, %v2359
        %v2616 = vadd.f32 %v1812, %v2360
        %v2617 = vadd.f32 %v1813, %v2361
        %v2618 = vadd.f32 %v1814, %v2362
        %v2619 = vadd.f32 %v1815, %v2363
        %v2620 = vadd.f32 %v1816, %v2364
        %v2621 = vadd.f32 %v1817, %v2365
        %v2622 = vadd.f32 %v1818, %v2366
        %v2623 = vadd.f32 %v1819, %v2367
        %v2624 = vadd.f32 %v1820, %v2368
        %v2625 = vadd.f32 %v1821, %v2369
        %v2626 = vadd.f32 %v1822, %v2370
        %v2627 = vadd.f32 %v1823, %v2371
        %v2628 = vadd.f32 %v1824, %v2372
        %v2629 = vadd.f32 %v1825, %v2373
        %v2630 = vadd.f32 %v1826, %v2374
        %v2631 = vadd.f32 %v1827, %v2375
        %v2632 = vadd.f32 %v1828, %v2376
        %v2633 = vadd.f32 %v1829, %v2377
        %v2634 = vadd.f32 %v1830, %v2378
        %v2635 = vadd.f32 %v1831, %v2379
        %v2636 = vadd.f32 %v1832, %v2380
        %v2637 = vadd.f32 %v1833, %v2381
        %v2638 = vadd.f32 %v1834, %v2382
        %v2639 = vadd.f32 %v1835, %v2383
        %v2640 = vadd.f32 %v1836, %v2384
        %v2641 = vadd.f32 %v1837, %v2385
        %v2642 = vadd.f32 %v1838, %v2386
        %v2643 = vadd.f32 %v1839, %v2387
        %v2644 = vadd.f32 %v1840, %v2388
        %v2645 = vadd.f32 %v1841, %v2389
        %v2646 = vadd.f32 %v1842, %v2390
        %v2647 = vadd.f32 %v1843, %v2391
        %v2648 = vadd.f32 %v1844, %v2392
        %v2649 = vadd.f32 %v1845, %v2393
        %v2650 = vadd.f32 %v1846, %v2394
        %v2651 = vadd.f32 %v1847, %v2395
        %v2652 = vadd.f32 %v1848, %v2396
        %v2653 = vadd.f32 %v1849, %v2397
        %v2654 = vadd.f32 %v1850, %v2398
        %v2655 = vadd.f32 %v1851, %v2399
        %v2656 = vadd.f32 %v1852, %v2400
        %v2657 = vadd.f32 %v1853, %v2401
        %v2658 = vadd.f32 %v1854, %v2402
        %v2659 = vadd.f32 %v1855, %v2403
        %v2660 = vadd.f32 %v1856, %v2404
        %v2661 = vadd.f32 %v1857, %v2405
        %v2662 = vadd.f32 %v1858, %v2406
        %v2663 = vadd.f32 %v1859, %v2407
        %v2664 = vadd.f32 %v1860, %v2408
        %v2665 = vadd.f32 %v1861, %v2409
        %v2666 = vadd.f32 %v1862, %v2410
        %v2667 = vadd.f32 %v1863, %v2411
        %v2668 = vadd.f32 %v1864, %v2412
        %v2669 = vadd.f32 %v1865, %v2413
        %v2670 = vadd.f32 %v1866, %v2414
        %v2671 = vadd.f32 %v1867, %v2415
        %v2672 = vadd.f32 %v1868, %v2416
        %v2673 = vadd.f32 %v1869, %v2417
        %v2674 = vadd.f32 %v1870, %v2418
        %v2675 = vadd.f32 %v1871, %v2419
        %v2676 = vadd.f32 %v1872, %v2420
        %v2677 = vadd.f32 %v1873, %v2421
        %v2678 = vadd.f32 %v1874, %v2422
        %v2679 = vadd.f32 %v1875, %v2423
        %v2680 = vadd.f32 %v1876, %v2424
        %v2681 = vadd.f32 %v1877, %v2425
        %v2682 = vadd.f32 %v1878, %v2426
        %v2683 = vadd.f32 %v1879, %v2427
        %v2684 = vadd.f32 %v1880, %v2428
        %v2685 = vadd.f32 %v1881, %v2429
        %v2686 = vadd.f32 %v1882, %v2430
        %v2687 = vadd.f32 %v1883, %v2431
        %v2688 = vadd.f32 %v1884, %v2432
        %v2689 = vadd.f32 %v1885, %v2433
        %v2690 = vadd.f32 %v1886, %v2434
        %v2691 = vadd.f32 %v1887, %v2435
        %v2692 = vadd.f32 %v1888, %v2436
        %v2693 = vadd.f32 %v1889, %v2437
        %v2694 = vadd.f32 %v1890, %v2438
        %v2695 = vadd.f32 %v1891, %v2439
        %v2696 = vadd.f32 %v1892, %v2440
        %v2697 = vadd.f32 %v1893, %v2441
        %v2698 = vadd.f32 %v1894, %v2442
        %v2699 = vadd.f32 %v1895, %v2443
        %v2700 = vadd.f32 %v1896, %v2444
        %v2701 = vadd.f32 %v1897, %v2445
        %v2702 = vadd.f32 %v1898, %v2446
        %v2703 = vadd.f32 %v1899, %v2447
        %v2704 = vadd.f32 %v1900, %v2448
        %v2705 = vadd.f32 %v1901, %v2449
        %v2706 = vadd.f32 %v1902, %v2450
        %v2707 = vadd.f32 %v1903, %v2451
        %v2708 = vadd.f32 %v1904, %v2452
        %v2709 = vadd.f32 %v1905, %v2453
        %v2710 = vadd.f32 %v1906, %v2454
        %v2711 = vadd.f32 %v1907, %v2455
        %v2712 = vadd.f32 %v1908, %v2456
        %v2713 = vadd.f32 %v1909, %v2457
        %v2714 = vadd.f32 %v1910, %v2458
        %v2715 = vadd.f32 %v1911, %v2459
        %v2716 = vadd.f32 %v1912, %v2460
        %v2717 = vadd.f32 %v1913, %v2461
        %v2718 = vadd.f32 %v1914, %v2462
        %v2719 = vadd.f32 %v1915, %v2463
        %v2720 = vadd.f32 %v1916, %v2464
        %v2721 = vadd.f32 %v1917, %v2465
        %v2722 = vadd.f32 %v1918, %v2466
        %v2723 = vadd.f32 %v1919, %v2467
        %v2724 = vadd.f32 %v1920, %v2468
        %v2725 = vadd.f32 %v1921, %v2469
        %v2726 = vadd.f32 %v1922, %v2470
        %v2727 = vadd.f32 %v1923, %v2471
        %v2728 = vadd.f32 %v1924, %v2472
        %v2729 = vadd.f32 %v1925, %v2473
        %v2730 = vadd.f32 %v1926, %v2474
        %v2731 = vadd.f32 %v1927, %v2475
        %v2732 = vadd.f32 %v1928, %v2476
        %v2733 = vadd.f32 %v1929, %v2477
        %v2734 = vadd.f32 %v1930, %v2478
        %v2735 = vadd.f32 %v1931, %v2479
        %v2736 = vadd.f32 %v1932, %v2480
        %v2737 = vadd.f32 %v1933, %v2481
        %v2738 = vadd.f32 %v1934, %v2482
        %v2739 = vadd.f32 %v1935, %v2483
        %v2740 = vadd.f32 %v1936, %v2484
        %v2741 = vadd.f32 %v1937, %v2485
        %v2742 = vadd.f32 %v1938, %v2486
        %v2743 = vadd.f32 %v1939, %v2487
        %v2744 = vadd.f32 %v1940, %v2488
        %v2745 = vadd.f32 %v1941, %v2489
        %v2746 = vadd.f32 %v1942, %v2490
        %v2747 = vadd.f32 %v1943, %v2491
        %v2748 = vadd.f32 %v1944, %v2492
        %v2749 = vadd.f32 %v1945, %v2493
        %v2750 = vadd.f32 %v1946, %v2494
        %v2751 = vadd.f32 %v1947, %v2495
        %v2752 = vadd.f32 %v1948, %v2496
        %v2753 = vadd.f32 %v1949, %v2497
        %v2754 = vadd.f32 %v1950, %v2498
        %v2755 = vadd.f32 %v1951, %v2499
        %v2756 = vadd.f32 %v1952, %v2500
        %v2757 = vadd.f32 %v1953, %v2501
        %v2758 = vadd.f32 %v1954, %v2502
        %v2759 = vadd.f32 %v1955, %v2503
        %v2760 = vadd.f32 %v1956, %v2504
        %v2761 = vadd.f32 %v1957, %v2505
        %v2762 = vadd.f32 %v1958, %v2506
        %v2763 = vadd.f32 %v1959, %v2507
        %v2764 = vadd.f32 %v1960, %v2508
        %v2765 = vadd.f32 %v1961, %v2509
        %v2766 = vadd.f32 %v1962, %v2510
        %v2767 = vadd.f32 %v1963, %v2511
        %v2768 = vadd.f32 %v1964, %v2512
        %v2769 = vadd.f32 %v1965, %v2513
        %v2770 = vadd.f32 %v1966, %v2514
        %v2771 = vadd.f32 %v1967, %v2515
        %v2772 = vadd.f32 %v1968, %v2516
        %v2773 = vadd.f32 %v1969, %v2517
        %v2774 = vadd.f32 %v1970, %v2518
        %v2775 = vadd.f32 %v1971, %v2519
        %v2776 = vadd.f32 %v1972, %v2520
        %v2777 = vadd.f32 %v1973, %v2521
        %v2778 = vadd.f32 %v1974, %v2522
        %v2779 = vadd.f32 %v1975, %v2523
        %v2780 = vadd.f32 %v1976, %v2524
        %v2781 = vadd.f32 %v1977, %v2525
        %v2782 = vadd.f32 %v1978, %v2526
        %v2783 = vadd.f32 %v1979, %v2527
        %v2784 = vadd.f32 %v1980, %v2528
        %v2785 = vadd.f32 %v1981, %v2529
        %v2786 = vadd.f32 %v1982, %v2530
        %v2787 = vadd.f32 %v1983, %v2531
        %v2788 = vadd.f32 %v1984, %v2532
        %v2789 = vadd.f32 %v1985, %v2533
        %v2790 = vadd.f32 %v1986, %v2534
        %v2791 = vadd.f32 %v1987, %v2535
        %v2792 = vadd.f32 %v1988, %v2536
        %v2793 = vadd.f32 %v1989, %v2537
        %v2794 = vadd.f32 %v1990, %v2538
        %v2795 = vadd.f32 %v1991, %v2539
        %v2796 = vadd.f32 %v1992, %v2540
        %v2797 = vadd.f32 %v1993, %v2541
        %v2798 = vadd.f32 %v1994, %v2542
        %v2799 = vadd.f32 %v1995, %v2543
        %v2800 = vadd.f32 %v1996, %v2544
        %v2801 = vadd.f32 %v1997, %v2545
        %v2802 = vadd.f32 %v1998, %v2546
        %v2803 = vadd.f32 %v1999, %v2547
        %v2804 = vadd.f32 %v2000, %v2548
        %v2805 = vadd.f32 %v2001, %v2549
        %v2806 = vadd.f32 %v2002, %v2550
        %v2807 = vadd.f32 %v2003, %v2551
        %v2808 = vadd.f32 %v2004, %v2552
        %v2809 = vadd.f32 %v2005, %v2553
        %v2810 = vadd.f32 %v2006, %v2554
        %v2811 = vadd.f32 %v2007, %v2555
        %v2812 = vadd.f32 %v2008, %v2556
        %v2813 = vadd.f32 %v2009, %v2557
        %v2814 = vadd.f32 %v2010, %v2558
        %v2815 = vadd.f32 %v2011, %v2559
        %v2816 = vadd.f32 %v2012, %v2560
        %v2817 = vadd.f32 %v2013, %v2561
        %v2818 = vadd.f32 %v2014, %v2562
        %v2819 = vadd.f32 %v2015, %v2563
        %v2820 = vadd.f32 %v2016, %v2564
        %v2821 = vadd.f32 %v2017, %v2565
        %v2822 = vadd.f32 %v2018, %v2566
        %v2823 = vadd.f32 %v2019, %v2567
        %v2824 = vadd.f32 %v2020, %v2568
        %v2825 = vadd.f32 %v2021, %v2569
        %v2826 = vadd.f32 %v2022, %v2570
        %v2827 = vadd.f32 %v2023, %v2571
        %v2828 = vadd.f32 %v2024, %v2572
        %v2829 = vadd.f32 %v2025, %v2573
        %v2830 = vadd.f32 %v2026, %v2574
        %v2831 = vadd.f32 %v2027, %v2575
        %v2832 = vadd.f32 %v2028, %v2576
        %v2833 = vadd.f32 %v2029, %v2577
        %v2834 = vadd.f32 %v2030, %v2578
        %v2835 = vadd.f32 %v2031, %v2579
        %v2836 = vadd.f32 %v2032, %v2580
        %v2837 = vadd.f32 %v2033, %v2581
        %v2838 = vadd.f32 %v2034, %v2582
        %v2839 = vadd.f32 %v2035, %v2583
        %v2840 = vadd.f32 %v2036, %v2584
        %v2841 = vadd.f32 %v2037, %v2585
        %v2842 = vadd.f32 %v2038, %v2586
        %v2843 = vadd.f32 %v2039, %v2587
        %v2844 = vadd.f32 %v2040, %v2588
        %v2845 = vadd.f32 %v2041, %v2589
        %v2846 = vadd.f32 %v2042, %v2590
        %v2847 = vadd.f32 %v2043, %v2591
        %v2848 = vadd.f32 %v2044, %v2592
        %v2849 = vadd.f32 %v2045, %v2593
        %v2850 = vadd.f32 %v2046, %v2594
        %v2851 = vadd.f32 %v2047, %v2595
        %v2852 = vadd.f32 %v2048, %v2596
        %v2853 = vadd.f32 %v2049, %v2597
        %v2854 = vadd.f32 %v2050, %v2598
        %v2855 = vadd.f32 %v2051, %v2599
        %v2856 = vadd.f32 %v2052, %v2600
        %v2857 = vadd.f32 %v2053, %v2601
        %v2858 = vadd.f32 %v2054, %v2602
        %v2867 = vunpack.c.l.b16 %v627
        %v2868 = vunpack.c.h.b16 %v627
        %v2869 = vunpack.c.l.b16 %v628
        %v2870 = vunpack.c.h.b16 %v628
        %v2871 = vunpack.c.l.b16 %v629
        %v2872 = vunpack.c.h.b16 %v629
        %v2873 = vunpack.c.l.b16 %v630
        %v2874 = vunpack.c.h.b16 %v630
        %v2875 = vunpack.c.l.b16 %v631
        %v2876 = vunpack.c.h.b16 %v631
        %v2877 = vunpack.c.l.b16 %v632
        %v2878 = vunpack.c.h.b16 %v632
        %v2879 = vunpack.c.l.b16 %v633
        %v2880 = vunpack.c.h.b16 %v633
        %v2881 = vunpack.c.l.b16 %v634
        %v2882 = vunpack.c.h.b16 %v634
        %v2883 = vpack.c.b16 %v2871, %v2867
        %v2884 = vpack.c.b16 %v2872, %v2868
        %v2885 = vpack.c.b16 %v2873, %v2869
        %v2886 = vpack.c.b16 %v2874, %v2870
        %v2887 = vpack.c.b16 %v2879, %v2875
        %v2888 = vpack.c.b16 %v2880, %v2876
        %v2889 = vpack.c.b16 %v2881, %v2877
        %v2890 = vpack.c.b16 %v2882, %v2878
        %vm2895 = vcmask 236544
        %v2897 = vsel %vm2895, %v595, 0
        %v2900 = vsel %vm2895, %v596, 0
        %v2903 = vsel %vm2895, %v597, 0
        %v2906 = vsel %vm2895, %v598, 0
        %v2909 = vsel %vm2895, %v599, 0
        %v2912 = vsel %vm2895, %v600, 0
        %v2915 = vsel %vm2895, %v601, 0
        %v2918 = vsel %vm2895, %v602, 0
        %v2921 = vsel %vm2895, %v603, 0
        %v2924 = vsel %vm2895, %v604, 0
        %v2927 = vsel %vm2895, %v605, 0
        %v2930 = vsel %vm2895, %v606, 0
        %v2933 = vsel %vm2895, %v607, 0
        %v2936 = vsel %vm2895, %v608, 0
        %v2939 = vsel %vm2895, %v609, 0
        %v2942 = vsel %vm2895, %v610, 0
        %v2945 = vsel %vm2895, %v611, 0
        %v2948 = vsel %vm2895, %v612, 0
        %v2951 = vsel %vm2895, %v613, 0
        %v2954 = vsel %vm2895, %v614, 0
        %v2957 = vsel %vm2895, %v615, 0
        %v2960 = vsel %vm2895, %v616, 0
        %v2963 = vsel %vm2895, %v617, 0
        %v2966 = vsel %vm2895, %v618, 0
        %v2969 = vsel %vm2895, %v619, 0
        %v2972 = vsel %vm2895, %v620, 0
        %v2975 = vsel %vm2895, %v621, 0
        %v2978 = vsel %vm2895, %v622, 0
        %v2981 = vsel %vm2895, %v623, 0
        %v2984 = vsel %vm2895, %v624, 0
        %v2987 = vsel %vm2895, %v625, 0
        %v2990 = vsel %vm2895, %v626, 0
        %vm2992 = vcmask 1045504
        %vm2993 = vcmask 1046528
        %v2994 = vsel %vm2992, 4294967295, 65535
        %v2995 = vsel %vm2993, %v2994, 0
        %v2997 = vand.u32 %v2887, %v2995
        %v3000 = vand.u32 %v2888, %v2995
        %v3003 = vand.u32 %v2889, %v2995
        %v3006 = vand.u32 %v2890, %v2995
        %3008 = vmatprep.subr.bf16.mxu0 %v2884
        %3009 = vmatpush1.bf16.msra.mxu0 %v2883
        %3010 = vmatprep.subr.bf16.mxu0 %v3000
        %3011 = vmatpush1.bf16.msra.mxu0 %v2997
        %3012 = vmatprep.subr.bf16.mxu0 0
        %3013 = vmatpush1.bf16.msra.mxu0 0
        %3014 = vmatprep.subr.bf16.mxu0 0
        %3015 = vmatpush1.bf16.msra.mxu0 0
        %3016 = vmatprep.subr.bf16.mxu0 0
        %3017 = vmatpush1.bf16.msra.mxu0 0
        %3018 = vmatprep.subr.bf16.mxu0 0
        %3019 = vmatpush1.bf16.msra.mxu0 0
        %3020 = vmatprep.subr.bf16.mxu0 0
        %3021 = vmatpush1.bf16.msra.mxu0 0
        %3022 = vmatprep.subr.bf16.mxu0 0
        %3023 = vmatpush1.bf16.msra.mxu0 0
        %3024 = vmatprep.subr.bf16.mxu0 0
        %3025 = vmatpush1.bf16.msra.mxu0 0
        %3026 = vmatprep.subr.bf16.mxu0 0
        %3027 = vmatpush1.bf16.msra.mxu0 0
        %3028 = vmatprep.subr.bf16.mxu0 0
        %3029 = vmatpush1.bf16.msra.mxu0 0
        %3030 = vmatprep.subr.bf16.mxu0 0
        %3031 = vmatpush1.bf16.msra.mxu0 0
        %3032 = vmatprep.subr.bf16.mxu0 0
        %3033 = vmatpush1.bf16.msra.mxu0 0
        %3034 = vmatprep.subr.bf16.mxu0 0
        %3035 = vmatpush1.bf16.msra.mxu0 0
        %3036 = vmatprep.subr.bf16.mxu0 0
        %3037 = vmatpush1.bf16.msra.mxu0 0
        %3038 = vmatprep.subr.bf16.mxu0 0
        %3039 = vmatpush1.bf16.msra.mxu0 0
        %3040 = vmatprep.mubr.bf16.mxu0 0
        %3041 = vmatmul.mubr.bf16.gmra.mrb[0].mxu0 %v2897
        %v3042 = vpop.f32.mrb[0].mxu0
        %v3043 = vadd.f32 %v2603, %v3042
        %v3044 = vpop.f32.mrb[0].mxu0
        %v3045 = vadd.f32 %v2604, %v3044
        %v3046 = vpop.f32.mrb[0].mxu0
        %v3047 = vadd.f32 %v2607, %v3046
        %v3048 = vpop.f32.mrb[0].mxu0
        %v3049 = vadd.f32 %v2608, %v3048
        %3050 = vmatprep.mubr.bf16.mxu0 0
        %3051 = vmatmul.mubr.bf16.gmra.mrb[0].mxu0 %v2900
        %v3052 = vpop.f32.mrb[0].mxu0
        %v3053 = vadd.f32 %v2611, %v3052
        %v3054 = vpop.f32.mrb[0].mxu0
        %v3055 = vadd.f32 %v2612, %v3054
        %v3056 = vpop.f32.mrb[0].mxu0
        %v3057 = vadd.f32 %v2615, %v3056
        %v3058 = vpop.f32.mrb[0].mxu0
        %v3059 = vadd.f32 %v2616, %v3058
        %3060 = vmatprep.mubr.bf16.mxu0 0
        %3061 = vmatmul.mubr.bf16.gmra.mrb[0].mxu0 %v2903
        %v3062 = vpop.f32.mrb[0].mxu0
        %v3063 = vadd.f32 %v2619, %v3062
        %v3064 = vpop.f32.mrb[0].mxu0
        %v3065 = vadd.f32 %v2620, %v3064
        %v3066 = vpop.f32.mrb[0].mxu0
        %v3067 = vadd.f32 %v2623, %v3066
        %v3068 = vpop.f32.mrb[0].mxu0
        %v3069 = vadd.f32 %v2624, %v3068
        %3070 = vmatprep.mubr.bf16.mxu0 0
        %3071 = vmatmul.mubr.bf16.gmra.mrb[0].mxu0 %v2906
        %v3072 = vpop.f32.mrb[0].mxu0
        %v3073 = vadd.f32 %v2627, %v3072
        %v3074 = vpop.f32.mrb[0].mxu0
        %v3075 = vadd.f32 %v2628, %v3074
        %v3076 = vpop.f32.mrb[0].mxu0
        %v3077 = vadd.f32 %v2631, %v3076
        %v3078 = vpop.f32.mrb[0].mxu0
        %v3079 = vadd.f32 %v2632, %v3078
        %3080 = vmatprep.mubr.bf16.mxu0 0
        %3081 = vmatmul.mubr.bf16.gmra.mrb[0].mxu0 %v2909
        %v3082 = vpop.f32.mrb[0].mxu0
        %v3083 = vadd.f32 %v2635, %v3082
        %v3084 = vpop.f32.mrb[0].mxu0
        %v3085 = vadd.f32 %v2636, %v3084
        %v3086 = vpop.f32.mrb[0].mxu0
        %v3087 = vadd.f32 %v2639, %v3086
        %v3088 = vpop.f32.mrb[0].mxu0
        %v3089 = vadd.f32 %v2640, %v3088
        %3090 = vmatprep.mubr.bf16.mxu0 0
        %3091 = vmatmul.mubr.bf16.gmra.mrb[0].mxu0 %v2912
        %v3092 = vpop.f32.mrb[0].mxu0
        %v3093 = vadd.f32 %v2643, %v3092
        %v3094 = vpop.f32.mrb[0].mxu0
        %v3095 = vadd.f32 %v2644, %v3094
        %v3096 = vpop.f32.mrb[0].mxu0
        %v3097 = vadd.f32 %v2647, %v3096
        %v3098 = vpop.f32.mrb[0].mxu0
        %v3099 = vadd.f32 %v2648, %v3098
        %3100 = vmatprep.mubr.bf16.mxu0 0
        %3101 = vmatmul.mubr.bf16.gmra.mrb[0].mxu0 %v2915
        %v3102 = vpop.f32.mrb[0].mxu0
        %v3103 = vadd.f32 %v2651, %v3102
        %v3104 = vpop.f32.mrb[0].mxu0
        %v3105 = vadd.f32 %v2652, %v3104
        %v3106 = vpop.f32.mrb[0].mxu0
        %v3107 = vadd.f32 %v2655, %v3106
        %v3108 = vpop.f32.mrb[0].mxu0
        %v3109 = vadd.f32 %v2656, %v3108
        %3110 = vmatprep.mubr.bf16.mxu0 0
        %3111 = vmatmul.mubr.bf16.gmra.mrb[0].mxu0 %v2918
        %v3112 = vpop.f32.mrb[0].mxu0
        %v3113 = vadd.f32 %v2659, %v3112
        %v3114 = vpop.f32.mrb[0].mxu0
        %v3115 = vadd.f32 %v2660, %v3114
        %v3116 = vpop.f32.mrb[0].mxu0
        %v3117 = vadd.f32 %v2663, %v3116
        %v3118 = vpop.f32.mrb[0].mxu0
        %v3119 = vadd.f32 %v2664, %v3118
        %3120 = vmatprep.mubr.bf16.mxu0 0
        %3121 = vmatmul.mubr.bf16.gmra.mrb[0].mxu0 %v2921
        %v3122 = vpop.f32.mrb[0].mxu0
        %v3123 = vadd.f32 %v2667, %v3122
        %v3124 = vpop.f32.mrb[0].mxu0
        %v3125 = vadd.f32 %v2668, %v3124
        %v3126 = vpop.f32.mrb[0].mxu0
        %v3127 = vadd.f32 %v2671, %v3126
        %v3128 = vpop.f32.mrb[0].mxu0
        %v3129 = vadd.f32 %v2672, %v3128
        %3130 = vmatprep.mubr.bf16.mxu0 0
        %3131 = vmatmul.mubr.bf16.gmra.mrb[0].mxu0 %v2924
        %v3132 = vpop.f32.mrb[0].mxu0
        %v3133 = vadd.f32 %v2675, %v3132
        %v3134 = vpop.f32.mrb[0].mxu0
        %v3135 = vadd.f32 %v2676, %v3134
        %v3136 = vpop.f32.mrb[0].mxu0
        %v3137 = vadd.f32 %v2679, %v3136
        %v3138 = vpop.f32.mrb[0].mxu0
        %v3139 = vadd.f32 %v2680, %v3138
        %3140 = vmatprep.mubr.bf16.mxu0 0
        %3141 = vmatmul.mubr.bf16.gmra.mrb[0].mxu0 %v2927
        %v3142 = vpop.f32.mrb[0].mxu0
        %v3143 = vadd.f32 %v2683, %v3142
        %v3144 = vpop.f32.mrb[0].mxu0
        %v3145 = vadd.f32 %v2684, %v3144
        %v3146 = vpop.f32.mrb[0].mxu0
        %v3147 = vadd.f32 %v2687, %v3146
        %v3148 = vpop.f32.mrb[0].mxu0
        %v3149 = vadd.f32 %v2688, %v3148
        %3150 = vmatprep.mubr.bf16.mxu0 0
        %3151 = vmatmul.mubr.bf16.gmra.mrb[0].mxu0 %v2930
        %v3152 = vpop.f32.mrb[0].mxu0
        %v3153 = vadd.f32 %v2691, %v3152
        %v3154 = vpop.f32.mrb[0].mxu0
        %v3155 = vadd.f32 %v2692, %v3154
        %v3156 = vpop.f32.mrb[0].mxu0
        %v3157 = vadd.f32 %v2695, %v3156
        %v3158 = vpop.f32.mrb[0].mxu0
        %v3159 = vadd.f32 %v2696, %v3158
        %3160 = vmatprep.mubr.bf16.mxu0 0
        %3161 = vmatmul.mubr.bf16.gmra.mrb[0].mxu0 %v2933
        %v3162 = vpop.f32.mrb[0].mxu0
        %v3163 = vadd.f32 %v2699, %v3162
        %v3164 = vpop.f32.mrb[0].mxu0
        %v3165 = vadd.f32 %v2700, %v3164
        %v3166 = vpop.f32.mrb[0].mxu0
        %v3167 = vadd.f32 %v2703, %v3166
        %v3168 = vpop.f32.mrb[0].mxu0
        %v3169 = vadd.f32 %v2704, %v3168
        %3170 = vmatprep.mubr.bf16.mxu0 0
        %3171 = vmatmul.mubr.bf16.gmra.mrb[0].mxu0 %v2936
        %v3172 = vpop.f32.mrb[0].mxu0
        %v3173 = vadd.f32 %v2707, %v3172
        %v3174 = vpop.f32.mrb[0].mxu0
        %v3175 = vadd.f32 %v2708, %v3174
        %v3176 = vpop.f32.mrb[0].mxu0
        %v3177 = vadd.f32 %v2711, %v3176
        %v3178 = vpop.f32.mrb[0].mxu0
        %v3179 = vadd.f32 %v2712, %v3178
        %3180 = vmatprep.mubr.bf16.mxu0 0
        %3181 = vmatmul.mubr.bf16.gmra.mrb[0].mxu0 %v2939
        %v3182 = vpop.f32.mrb[0].mxu0
        %v3183 = vadd.f32 %v2715, %v3182
        %v3184 = vpop.f32.mrb[0].mxu0
        %v3185 = vadd.f32 %v2716, %v3184
        %v3186 = vpop.f32.mrb[0].mxu0
        %v3187 = vadd.f32 %v2719, %v3186
        %v3188 = vpop.f32.mrb[0].mxu0
        %v3189 = vadd.f32 %v2720, %v3188
        %3190 = vmatprep.mubr.bf16.mxu0 0
        %3191 = vmatmul.mubr.bf16.gmra.mrb[0].mxu0 %v2942
        %v3192 = vpop.f32.mrb[0].mxu0
        %v3193 = vadd.f32 %v2723, %v3192
        %v3194 = vpop.f32.mrb[0].mxu0
        %v3195 = vadd.f32 %v2724, %v3194
        %v3196 = vpop.f32.mrb[0].mxu0
        %v3197 = vadd.f32 %v2727, %v3196
        %v3198 = vpop.f32.mrb[0].mxu0
        %v3199 = vadd.f32 %v2728, %v3198
        %3200 = vmatprep.mubr.bf16.mxu0 0
        %3201 = vmatmul.mubr.bf16.gmra.mrb[0].mxu0 %v2945
        %v3202 = vpop.f32.mrb[0].mxu0
        %v3203 = vadd.f32 %v2731, %v3202
        %v3204 = vpop.f32.mrb[0].mxu0
        %v3205 = vadd.f32 %v2732, %v3204
        %v3206 = vpop.f32.mrb[0].mxu0
        %v3207 = vadd.f32 %v2735, %v3206
        %v3208 = vpop.f32.mrb[0].mxu0
        %v3209 = vadd.f32 %v2736, %v3208
        %3210 = vmatprep.mubr.bf16.mxu0 0
        %3211 = vmatmul.mubr.bf16.gmra.mrb[0].mxu0 %v2948
        %v3212 = vpop.f32.mrb[0].mxu0
        %v3213 = vadd.f32 %v2739, %v3212
        %v3214 = vpop.f32.mrb[0].mxu0
        %v3215 = vadd.f32 %v2740, %v3214
        %v3216 = vpop.f32.mrb[0].mxu0
        %v3217 = vadd.f32 %v2743, %v3216
        %v3218 = vpop.f32.mrb[0].mxu0
        %v3219 = vadd.f32 %v2744, %v3218
        %3220 = vmatprep.mubr.bf16.mxu0 0
        %3221 = vmatmul.mubr.bf16.gmra.mrb[0].mxu0 %v2951
        %v3222 = vpop.f32.mrb[0].mxu0
        %v3223 = vadd.f32 %v2747, %v3222
        %v3224 = vpop.f32.mrb[0].mxu0
        %v3225 = vadd.f32 %v2748, %v3224
        %v3226 = vpop.f32.mrb[0].mxu0
        %v3227 = vadd.f32 %v2751, %v3226
        %v3228 = vpop.f32.mrb[0].mxu0
        %v3229 = vadd.f32 %v2752, %v3228
        %3230 = vmatprep.mubr.bf16.mxu0 0
        %3231 = vmatmul.mubr.bf16.gmra.mrb[0].mxu0 %v2954
        %v3232 = vpop.f32.mrb[0].mxu0
        %v3233 = vadd.f32 %v2755, %v3232
        %v3234 = vpop.f32.mrb[0].mxu0
        %v3235 = vadd.f32 %v2756, %v3234
        %v3236 = vpop.f32.mrb[0].mxu0
        %v3237 = vadd.f32 %v2759, %v3236
        %v3238 = vpop.f32.mrb[0].mxu0
        %v3239 = vadd.f32 %v2760, %v3238
        %3240 = vmatprep.mubr.bf16.mxu0 0
        %3241 = vmatmul.mubr.bf16.gmra.mrb[0].mxu0 %v2957
        %v3242 = vpop.f32.mrb[0].mxu0
        %v3243 = vadd.f32 %v2763, %v3242
        %v3244 = vpop.f32.mrb[0].mxu0
        %v3245 = vadd.f32 %v2764, %v3244
        %v3246 = vpop.f32.mrb[0].mxu0
        %v3247 = vadd.f32 %v2767, %v3246
        %v3248 = vpop.f32.mrb[0].mxu0
        %v3249 = vadd.f32 %v2768, %v3248
        %3250 = vmatprep.mubr.bf16.mxu0 0
        %3251 = vmatmul.mubr.bf16.gmra.mrb[0].mxu0 %v2960
        %v3252 = vpop.f32.mrb[0].mxu0
        %v3253 = vadd.f32 %v2771, %v3252
        %v3254 = vpop.f32.mrb[0].mxu0
        %v3255 = vadd.f32 %v2772, %v3254
        %v3256 = vpop.f32.mrb[0].mxu0
        %v3257 = vadd.f32 %v2775, %v3256
        %v3258 = vpop.f32.mrb[0].mxu0
        %v3259 = vadd.f32 %v2776, %v3258
        %3260 = vmatprep.mubr.bf16.mxu0 0
        %3261 = vmatmul.mubr.bf16.gmra.mrb[0].mxu0 %v2963
        %v3262 = vpop.f32.mrb[0].mxu0
        %v3263 = vadd.f32 %v2779, %v3262
        %v3264 = vpop.f32.mrb[0].mxu0
        %v3265 = vadd.f32 %v2780, %v3264
        %v3266 = vpop.f32.mrb[0].mxu0
        %v3267 = vadd.f32 %v2783, %v3266
        %v3268 = vpop.f32.mrb[0].mxu0
        %v3269 = vadd.f32 %v2784, %v3268
        %3270 = vmatprep.mubr.bf16.mxu0 0
        %3271 = vmatmul.mubr.bf16.gmra.mrb[0].mxu0 %v2966
        %v3272 = vpop.f32.mrb[0].mxu0
        %v3273 = vadd.f32 %v2787, %v3272
        %v3274 = vpop.f32.mrb[0].mxu0
        %v3275 = vadd.f32 %v2788, %v3274
        %v3276 = vpop.f32.mrb[0].mxu0
        %v3277 = vadd.f32 %v2791, %v3276
        %v3278 = vpop.f32.mrb[0].mxu0
        %v3279 = vadd.f32 %v2792, %v3278
        %3280 = vmatprep.mubr.bf16.mxu0 0
        %3281 = vmatmul.mubr.bf16.gmra.mrb[0].mxu0 %v2969
        %v3282 = vpop.f32.mrb[0].mxu0
        %v3283 = vadd.f32 %v2795, %v3282
        %v3284 = vpop.f32.mrb[0].mxu0
        %v3285 = vadd.f32 %v2796, %v3284
        %v3286 = vpop.f32.mrb[0].mxu0
        %v3287 = vadd.f32 %v2799, %v3286
        %v3288 = vpop.f32.mrb[0].mxu0
        %v3289 = vadd.f32 %v2800, %v3288
        %3290 = vmatprep.mubr.bf16.mxu0 0
        %3291 = vmatmul.mubr.bf16.gmra.mrb[0].mxu0 %v2972
        %v3292 = vpop.f32.mrb[0].mxu0
        %v3293 = vadd.f32 %v2803, %v3292
        %v3294 = vpop.f32.mrb[0].mxu0
        %v3295 = vadd.f32 %v2804, %v3294
        %v3296 = vpop.f32.mrb[0].mxu0
        %v3297 = vadd.f32 %v2807, %v3296
        %v3298 = vpop.f32.mrb[0].mxu0
        %v3299 = vadd.f32 %v2808, %v3298
        %3300 = vmatprep.mubr.bf16.mxu0 0
        %3301 = vmatmul.mubr.bf16.gmra.mrb[0].mxu0 %v2975
        %v3302 = vpop.f32.mrb[0].mxu0
        %v3303 = vadd.f32 %v2811, %v3302
        %v3304 = vpop.f32.mrb[0].mxu0
        %v3305 = vadd.f32 %v2812, %v3304
        %v3306 = vpop.f32.mrb[0].mxu0
        %v3307 = vadd.f32 %v2815, %v3306
        %v3308 = vpop.f32.mrb[0].mxu0
        %v3309 = vadd.f32 %v2816, %v3308
        %3310 = vmatprep.mubr.bf16.mxu0 0
        %3311 = vmatmul.mubr.bf16.gmra.mrb[0].mxu0 %v2978
        %v3312 = vpop.f32.mrb[0].mxu0
        %v3313 = vadd.f32 %v2819, %v3312
        %v3314 = vpop.f32.mrb[0].mxu0
        %v3315 = vadd.f32 %v2820, %v3314
        %v3316 = vpop.f32.mrb[0].mxu0
        %v3317 = vadd.f32 %v2823, %v3316
        %v3318 = vpop.f32.mrb[0].mxu0
        %v3319 = vadd.f32 %v2824, %v3318
        %3320 = vmatprep.mubr.bf16.mxu0 0
        %3321 = vmatmul.mubr.bf16.gmra.mrb[0].mxu0 %v2981
        %v3322 = vpop.f32.mrb[0].mxu0
        %v3323 = vadd.f32 %v2827, %v3322
        %v3324 = vpop.f32.mrb[0].mxu0
        %v3325 = vadd.f32 %v2828, %v3324
        %v3326 = vpop.f32.mrb[0].mxu0
        %v3327 = vadd.f32 %v2831, %v3326
        %v3328 = vpop.f32.mrb[0].mxu0
        %v3329 = vadd.f32 %v2832, %v3328
        %3330 = vmatprep.mubr.bf16.mxu0 0
        %3331 = vmatmul.mubr.bf16.gmra.mrb[0].mxu0 %v2984
        %v3332 = vpop.f32.mrb[0].mxu0
        %v3333 = vadd.f32 %v2835, %v3332
        %v3334 = vpop.f32.mrb[0].mxu0
        %v3335 = vadd.f32 %v2836, %v3334
        %v3336 = vpop.f32.mrb[0].mxu0
        %v3337 = vadd.f32 %v2839, %v3336
        %v3338 = vpop.f32.mrb[0].mxu0
        %v3339 = vadd.f32 %v2840, %v3338
        %3340 = vmatprep.mubr.bf16.mxu0 0
        %3341 = vmatmul.mubr.bf16.gmra.mrb[0].mxu0 %v2987
        %v3342 = vpop.f32.mrb[0].mxu0
        %v3343 = vadd.f32 %v2843, %v3342
        %v3344 = vpop.f32.mrb[0].mxu0
        %v3345 = vadd.f32 %v2844, %v3344
        %v3346 = vpop.f32.mrb[0].mxu0
        %v3347 = vadd.f32 %v2847, %v3346
        %v3348 = vpop.f32.mrb[0].mxu0
        %v3349 = vadd.f32 %v2848, %v3348
        %3350 = vmatprep.mubr.bf16.mxu0 0
        %3351 = vmatmul.mubr.bf16.gmra.mrb[0].mxu0 %v2990
        %v3352 = vpop.f32.mrb[0].mxu0
        %v3353 = vadd.f32 %v2851, %v3352
        %v3354 = vpop.f32.mrb[0].mxu0
        %v3355 = vadd.f32 %v2852, %v3354
        %v3356 = vpop.f32.mrb[0].mxu0
        %v3357 = vadd.f32 %v2855, %v3356
        %v3358 = vpop.f32.mrb[0].mxu0
        %v3359 = vadd.f32 %v2856, %v3358
        %3360 = vdwg.mxu0
        %3361 = vmatprep.subr.bf16.mxu0 %v2886
        %3362 = vmatpush1.bf16.msra.mxu0 %v2885
        %3363 = vmatprep.subr.bf16.mxu0 %v3006
        %3364 = vmatpush1.bf16.msra.mxu0 %v3003
        %3365 = vmatprep.subr.bf16.mxu0 0
        %3366 = vmatpush1.bf16.msra.mxu0 0
        %3367 = vmatprep.subr.bf16.mxu0 0
        %3368 = vmatpush1.bf16.msra.mxu0 0
        %3369 = vmatprep.subr.bf16.mxu0 0
        %3370 = vmatpush1.bf16.msra.mxu0 0
        %3371 = vmatprep.subr.bf16.mxu0 0
        %3372 = vmatpush1.bf16.msra.mxu0 0
        %3373 = vmatprep.subr.bf16.mxu0 0
        %3374 = vmatpush1.bf16.msra.mxu0 0
        %3375 = vmatprep.subr.bf16.mxu0 0
        %3376 = vmatpush1.bf16.msra.mxu0 0
        %3377 = vmatprep.subr.bf16.mxu0 0
        %3378 = vmatpush1.bf16.msra.mxu0 0
        %3379 = vmatprep.subr.bf16.mxu0 0
        %3380 = vmatpush1.bf16.msra.mxu0 0
        %3381 = vmatprep.subr.bf16.mxu0 0
        %3382 = vmatpush1.bf16.msra.mxu0 0
        %3383 = vmatprep.subr.bf16.mxu0 0
        %3384 = vmatpush1.bf16.msra.mxu0 0
        %3385 = vmatprep.subr.bf16.mxu0 0
        %3386 = vmatpush1.bf16.msra.mxu0 0
        %3387 = vmatprep.subr.bf16.mxu0 0
        %3388 = vmatpush1.bf16.msra.mxu0 0
        %3389 = vmatprep.subr.bf16.mxu0 0
        %3390 = vmatpush1.bf16.msra.mxu0 0
        %3391 = vmatprep.subr.bf16.mxu0 0
        %3392 = vmatpush1.bf16.msra.mxu0 0
        %3393 = vmatprep.mubr.bf16.mxu0 0
        %3394 = vmatmul.mubr.bf16.gmra.mrb[0].mxu0 %v2897
        %v3395 = vpop.f32.mrb[0].mxu0
        %v3396 = vadd.f32 %v2605, %v3395
        %v3397 = vpop.f32.mrb[0].mxu0
        %v3398 = vadd.f32 %v2606, %v3397
        %v3399 = vpop.f32.mrb[0].mxu0
        %v3400 = vadd.f32 %v2609, %v3399
        %v3401 = vpop.f32.mrb[0].mxu0
        %v3402 = vadd.f32 %v2610, %v3401
        %3403 = vmatprep.mubr.bf16.mxu0 0
        %3404 = vmatmul.mubr.bf16.gmra.mrb[0].mxu0 %v2900
        %v3405 = vpop.f32.mrb[0].mxu0
        %v3406 = vadd.f32 %v2613, %v3405
        %v3407 = vpop.f32.mrb[0].mxu0
        %v3408 = vadd.f32 %v2614, %v3407
        %v3409 = vpop.f32.mrb[0].mxu0
        %v3410 = vadd.f32 %v2617, %v3409
        %v3411 = vpop.f32.mrb[0].mxu0
        %v3412 = vadd.f32 %v2618, %v3411
        %3413 = vmatprep.mubr.bf16.mxu0 0
        %3414 = vmatmul.mubr.bf16.gmra.mrb[0].mxu0 %v2903
        %v3415 = vpop.f32.mrb[0].mxu0
        %v3416 = vadd.f32 %v2621, %v3415
        %v3417 = vpop.f32.mrb[0].mxu0
        %v3418 = vadd.f32 %v2622, %v3417
        %v3419 = vpop.f32.mrb[0].mxu0
        %v3420 = vadd.f32 %v2625, %v3419
        %v3421 = vpop.f32.mrb[0].mxu0
        %v3422 = vadd.f32 %v2626, %v3421
        %3423 = vmatprep.mubr.bf16.mxu0 0
        %3424 = vmatmul.mubr.bf16.gmra.mrb[0].mxu0 %v2906
        %v3425 = vpop.f32.mrb[0].mxu0
        %v3426 = vadd.f32 %v2629, %v3425
        %v3427 = vpop.f32.mrb[0].mxu0
        %v3428 = vadd.f32 %v2630, %v3427
        %v3429 = vpop.f32.mrb[0].mxu0
        %v3430 = vadd.f32 %v2633, %v3429
        %v3431 = vpop.f32.mrb[0].mxu0
        %v3432 = vadd.f32 %v2634, %v3431
        %3433 = vmatprep.mubr.bf16.mxu0 0
        %3434 = vmatmul.mubr.bf16.gmra.mrb[0].mxu0 %v2909
        %v3435 = vpop.f32.mrb[0].mxu0
        %v3436 = vadd.f32 %v2637, %v3435
        %v3437 = vpop.f32.mrb[0].mxu0
        %v3438 = vadd.f32 %v2638, %v3437
        %v3439 = vpop.f32.mrb[0].mxu0
        %v3440 = vadd.f32 %v2641, %v3439
        %v3441 = vpop.f32.mrb[0].mxu0
        %v3442 = vadd.f32 %v2642, %v3441
        %3443 = vmatprep.mubr.bf16.mxu0 0
        %3444 = vmatmul.mubr.bf16.gmra.mrb[0].mxu0 %v2912
        %v3445 = vpop.f32.mrb[0].mxu0
        %v3446 = vadd.f32 %v2645, %v3445
        %v3447 = vpop.f32.mrb[0].mxu0
        %v3448 = vadd.f32 %v2646, %v3447
        %v3449 = vpop.f32.mrb[0].mxu0
        %v3450 = vadd.f32 %v2649, %v3449
        %v3451 = vpop.f32.mrb[0].mxu0
        %v3452 = vadd.f32 %v2650, %v3451
        %3453 = vmatprep.mubr.bf16.mxu0 0
        %3454 = vmatmul.mubr.bf16.gmra.mrb[0].mxu0 %v2915
        %v3455 = vpop.f32.mrb[0].mxu0
        %v3456 = vadd.f32 %v2653, %v3455
        %v3457 = vpop.f32.mrb[0].mxu0
        %v3458 = vadd.f32 %v2654, %v3457
        %v3459 = vpop.f32.mrb[0].mxu0
        %v3460 = vadd.f32 %v2657, %v3459
        %v3461 = vpop.f32.mrb[0].mxu0
        %v3462 = vadd.f32 %v2658, %v3461
        %3463 = vmatprep.mubr.bf16.mxu0 0
        %3464 = vmatmul.mubr.bf16.gmra.mrb[0].mxu0 %v2918
        %v3465 = vpop.f32.mrb[0].mxu0
        %v3466 = vadd.f32 %v2661, %v3465
        %v3467 = vpop.f32.mrb[0].mxu0
        %v3468 = vadd.f32 %v2662, %v3467
        %v3469 = vpop.f32.mrb[0].mxu0
        %v3470 = vadd.f32 %v2665, %v3469
        %v3471 = vpop.f32.mrb[0].mxu0
        %v3472 = vadd.f32 %v2666, %v3471
        %3473 = vmatprep.mubr.bf16.mxu0 0
        %3474 = vmatmul.mubr.bf16.gmra.mrb[0].mxu0 %v2921
        %v3475 = vpop.f32.mrb[0].mxu0
        %v3476 = vadd.f32 %v2669, %v3475
        %v3477 = vpop.f32.mrb[0].mxu0
        %v3478 = vadd.f32 %v2670, %v3477
        %v3479 = vpop.f32.mrb[0].mxu0
        %v3480 = vadd.f32 %v2673, %v3479
        %v3481 = vpop.f32.mrb[0].mxu0
        %v3482 = vadd.f32 %v2674, %v3481
        %3483 = vmatprep.mubr.bf16.mxu0 0
        %3484 = vmatmul.mubr.bf16.gmra.mrb[0].mxu0 %v2924
        %v3485 = vpop.f32.mrb[0].mxu0
        %v3486 = vadd.f32 %v2677, %v3485
        %v3487 = vpop.f32.mrb[0].mxu0
        %v3488 = vadd.f32 %v2678, %v3487
        %v3489 = vpop.f32.mrb[0].mxu0
        %v3490 = vadd.f32 %v2681, %v3489
        %v3491 = vpop.f32.mrb[0].mxu0
        %v3492 = vadd.f32 %v2682, %v3491
        %3493 = vmatprep.mubr.bf16.mxu0 0
        %3494 = vmatmul.mubr.bf16.gmra.mrb[0].mxu0 %v2927
        %v3495 = vpop.f32.mrb[0].mxu0
        %v3496 = vadd.f32 %v2685, %v3495
        %v3497 = vpop.f32.mrb[0].mxu0
        %v3498 = vadd.f32 %v2686, %v3497
        %v3499 = vpop.f32.mrb[0].mxu0
        %v3500 = vadd.f32 %v2689, %v3499
        %v3501 = vpop.f32.mrb[0].mxu0
        %v3502 = vadd.f32 %v2690, %v3501
        %3503 = vmatprep.mubr.bf16.mxu0 0
        %3504 = vmatmul.mubr.bf16.gmra.mrb[0].mxu0 %v2930
        %v3505 = vpop.f32.mrb[0].mxu0
        %v3506 = vadd.f32 %v2693, %v3505
        %v3507 = vpop.f32.mrb[0].mxu0
        %v3508 = vadd.f32 %v2694, %v3507
        %v3509 = vpop.f32.mrb[0].mxu0
        %v3510 = vadd.f32 %v2697, %v3509
        %v3511 = vpop.f32.mrb[0].mxu0
        %v3512 = vadd.f32 %v2698, %v3511
        %3513 = vmatprep.mubr.bf16.mxu0 0
        %3514 = vmatmul.mubr.bf16.gmra.mrb[0].mxu0 %v2933
        %v3515 = vpop.f32.mrb[0].mxu0
        %v3516 = vadd.f32 %v2701, %v3515
        %v3517 = vpop.f32.mrb[0].mxu0
        %v3518 = vadd.f32 %v2702, %v3517
        %v3519 = vpop.f32.mrb[0].mxu0
        %v3520 = vadd.f32 %v2705, %v3519
        %v3521 = vpop.f32.mrb[0].mxu0
        %v3522 = vadd.f32 %v2706, %v3521
        %3523 = vmatprep.mubr.bf16.mxu0 0
        %3524 = vmatmul.mubr.bf16.gmra.mrb[0].mxu0 %v2936
        %v3525 = vpop.f32.mrb[0].mxu0
        %v3526 = vadd.f32 %v2709, %v3525
        %v3527 = vpop.f32.mrb[0].mxu0
        %v3528 = vadd.f32 %v2710, %v3527
        %v3529 = vpop.f32.mrb[0].mxu0
        %v3530 = vadd.f32 %v2713, %v3529
        %v3531 = vpop.f32.mrb[0].mxu0
        %v3532 = vadd.f32 %v2714, %v3531
        %3533 = vmatprep.mubr.bf16.mxu0 0
        %3534 = vmatmul.mubr.bf16.gmra.mrb[0].mxu0 %v2939
        %v3535 = vpop.f32.mrb[0].mxu0
        %v3536 = vadd.f32 %v2717, %v3535
        %v3537 = vpop.f32.mrb[0].mxu0
        %v3538 = vadd.f32 %v2718, %v3537
        %v3539 = vpop.f32.mrb[0].mxu0
        %v3540 = vadd.f32 %v2721, %v3539
        %v3541 = vpop.f32.mrb[0].mxu0
        %v3542 = vadd.f32 %v2722, %v3541
        %3543 = vmatprep.mubr.bf16.mxu0 0
        %3544 = vmatmul.mubr.bf16.gmra.mrb[0].mxu0 %v2942
        %v3545 = vpop.f32.mrb[0].mxu0
        %v3546 = vadd.f32 %v2725, %v3545
        %v3547 = vpop.f32.mrb[0].mxu0
        %v3548 = vadd.f32 %v2726, %v3547
        %v3549 = vpop.f32.mrb[0].mxu0
        %v3550 = vadd.f32 %v2729, %v3549
        %v3551 = vpop.f32.mrb[0].mxu0
        %v3552 = vadd.f32 %v2730, %v3551
        %3553 = vmatprep.mubr.bf16.mxu0 0
        %3554 = vmatmul.mubr.bf16.gmra.mrb[0].mxu0 %v2945
        %v3555 = vpop.f32.mrb[0].mxu0
        %v3556 = vadd.f32 %v2733, %v3555
        %v3557 = vpop.f32.mrb[0].mxu0
        %v3558 = vadd.f32 %v2734, %v3557
        %v3559 = vpop.f32.mrb[0].mxu0
        %v3560 = vadd.f32 %v2737, %v3559
        %v3561 = vpop.f32.mrb[0].mxu0
        %v3562 = vadd.f32 %v2738, %v3561
        %3563 = vmatprep.mubr.bf16.mxu0 0
        %3564 = vmatmul.mubr.bf16.gmra.mrb[0].mxu0 %v2948
        %v3565 = vpop.f32.mrb[0].mxu0
        %v3566 = vadd.f32 %v2741, %v3565
        %v3567 = vpop.f32.mrb[0].mxu0
        %v3568 = vadd.f32 %v2742, %v3567
        %v3569 = vpop.f32.mrb[0].mxu0
        %v3570 = vadd.f32 %v2745, %v3569
        %v3571 = vpop.f32.mrb[0].mxu0
        %v3572 = vadd.f32 %v2746, %v3571
        %3573 = vmatprep.mubr.bf16.mxu0 0
        %3574 = vmatmul.mubr.bf16.gmra.mrb[0].mxu0 %v2951
        %v3575 = vpop.f32.mrb[0].mxu0
        %v3576 = vadd.f32 %v2749, %v3575
        %v3577 = vpop.f32.mrb[0].mxu0
        %v3578 = vadd.f32 %v2750, %v3577
        %v3579 = vpop.f32.mrb[0].mxu0
        %v3580 = vadd.f32 %v2753, %v3579
        %v3581 = vpop.f32.mrb[0].mxu0
        %v3582 = vadd.f32 %v2754, %v3581
        %3583 = vmatprep.mubr.bf16.mxu0 0
        %3584 = vmatmul.mubr.bf16.gmra.mrb[0].mxu0 %v2954
        %v3585 = vpop.f32.mrb[0].mxu0
        %v3586 = vadd.f32 %v2757, %v3585
        %v3587 = vpop.f32.mrb[0].mxu0
        %v3588 = vadd.f32 %v2758, %v3587
        %v3589 = vpop.f32.mrb[0].mxu0
        %v3590 = vadd.f32 %v2761, %v3589
        %v3591 = vpop.f32.mrb[0].mxu0
        %v3592 = vadd.f32 %v2762, %v3591
        %3593 = vmatprep.mubr.bf16.mxu0 0
        %3594 = vmatmul.mubr.bf16.gmra.mrb[0].mxu0 %v2957
        %v3595 = vpop.f32.mrb[0].mxu0
        %v3596 = vadd.f32 %v2765, %v3595
        %v3597 = vpop.f32.mrb[0].mxu0
        %v3598 = vadd.f32 %v2766, %v3597
        %v3599 = vpop.f32.mrb[0].mxu0
        %v3600 = vadd.f32 %v2769, %v3599
        %v3601 = vpop.f32.mrb[0].mxu0
        %v3602 = vadd.f32 %v2770, %v3601
        %3603 = vmatprep.mubr.bf16.mxu0 0
        %3604 = vmatmul.mubr.bf16.gmra.mrb[0].mxu0 %v2960
        %v3605 = vpop.f32.mrb[0].mxu0
        %v3606 = vadd.f32 %v2773, %v3605
        %v3607 = vpop.f32.mrb[0].mxu0
        %v3608 = vadd.f32 %v2774, %v3607
        %v3609 = vpop.f32.mrb[0].mxu0
        %v3610 = vadd.f32 %v2777, %v3609
        %v3611 = vpop.f32.mrb[0].mxu0
        %v3612 = vadd.f32 %v2778, %v3611
        %3613 = vmatprep.mubr.bf16.mxu0 0
        %3614 = vmatmul.mubr.bf16.gmra.mrb[0].mxu0 %v2963
        %v3615 = vpop.f32.mrb[0].mxu0
        %v3616 = vadd.f32 %v2781, %v3615
        %v3617 = vpop.f32.mrb[0].mxu0
        %v3618 = vadd.f32 %v2782, %v3617
        %v3619 = vpop.f32.mrb[0].mxu0
        %v3620 = vadd.f32 %v2785, %v3619
        %v3621 = vpop.f32.mrb[0].mxu0
        %v3622 = vadd.f32 %v2786, %v3621
        %3623 = vmatprep.mubr.bf16.mxu0 0
        %3624 = vmatmul.mubr.bf16.gmra.mrb[0].mxu0 %v2966
        %v3625 = vpop.f32.mrb[0].mxu0
        %v3626 = vadd.f32 %v2789, %v3625
        %v3627 = vpop.f32.mrb[0].mxu0
        %v3628 = vadd.f32 %v2790, %v3627
        %v3629 = vpop.f32.mrb[0].mxu0
        %v3630 = vadd.f32 %v2793, %v3629
        %v3631 = vpop.f32.mrb[0].mxu0
        %v3632 = vadd.f32 %v2794, %v3631
        %3633 = vmatprep.mubr.bf16.mxu0 0
        %3634 = vmatmul.mubr.bf16.gmra.mrb[0].mxu0 %v2969
        %v3635 = vpop.f32.mrb[0].mxu0
        %v3636 = vadd.f32 %v2797, %v3635
        %v3637 = vpop.f32.mrb[0].mxu0
        %v3638 = vadd.f32 %v2798, %v3637
        %v3639 = vpop.f32.mrb[0].mxu0
        %v3640 = vadd.f32 %v2801, %v3639
        %v3641 = vpop.f32.mrb[0].mxu0
        %v3642 = vadd.f32 %v2802, %v3641
        %3643 = vmatprep.mubr.bf16.mxu0 0
        %3644 = vmatmul.mubr.bf16.gmra.mrb[0].mxu0 %v2972
        %v3645 = vpop.f32.mrb[0].mxu0
        %v3646 = vadd.f32 %v2805, %v3645
        %v3647 = vpop.f32.mrb[0].mxu0
        %v3648 = vadd.f32 %v2806, %v3647
        %v3649 = vpop.f32.mrb[0].mxu0
        %v3650 = vadd.f32 %v2809, %v3649
        %v3651 = vpop.f32.mrb[0].mxu0
        %v3652 = vadd.f32 %v2810, %v3651
        %3653 = vmatprep.mubr.bf16.mxu0 0
        %3654 = vmatmul.mubr.bf16.gmra.mrb[0].mxu0 %v2975
        %v3655 = vpop.f32.mrb[0].mxu0
        %v3656 = vadd.f32 %v2813, %v3655
        %v3657 = vpop.f32.mrb[0].mxu0
        %v3658 = vadd.f32 %v2814, %v3657
        %v3659 = vpop.f32.mrb[0].mxu0
        %v3660 = vadd.f32 %v2817, %v3659
        %v3661 = vpop.f32.mrb[0].mxu0
        %v3662 = vadd.f32 %v2818, %v3661
        %3663 = vmatprep.mubr.bf16.mxu0 0
        %3664 = vmatmul.mubr.bf16.gmra.mrb[0].mxu0 %v2978
        %v3665 = vpop.f32.mrb[0].mxu0
        %v3666 = vadd.f32 %v2821, %v3665
        %v3667 = vpop.f32.mrb[0].mxu0
        %v3668 = vadd.f32 %v2822, %v3667
        %v3669 = vpop.f32.mrb[0].mxu0
        %v3670 = vadd.f32 %v2825, %v3669
        %v3671 = vpop.f32.mrb[0].mxu0
        %v3672 = vadd.f32 %v2826, %v3671
        %3673 = vmatprep.mubr.bf16.mxu0 0
        %3674 = vmatmul.mubr.bf16.gmra.mrb[0].mxu0 %v2981
        %v3675 = vpop.f32.mrb[0].mxu0
        %v3676 = vadd.f32 %v2829, %v3675
        %v3677 = vpop.f32.mrb[0].mxu0
        %v3678 = vadd.f32 %v2830, %v3677
        %v3679 = vpop.f32.mrb[0].mxu0
        %v3680 = vadd.f32 %v2833, %v3679
        %v3681 = vpop.f32.mrb[0].mxu0
        %v3682 = vadd.f32 %v2834, %v3681
        %3683 = vmatprep.mubr.bf16.mxu0 0
        %3684 = vmatmul.mubr.bf16.gmra.mrb[0].mxu0 %v2984
        %v3685 = vpop.f32.mrb[0].mxu0
        %v3686 = vadd.f32 %v2837, %v3685
        %v3687 = vpop.f32.mrb[0].mxu0
        %v3688 = vadd.f32 %v2838, %v3687
        %v3689 = vpop.f32.mrb[0].mxu0
        %v3690 = vadd.f32 %v2841, %v3689
        %v3691 = vpop.f32.mrb[0].mxu0
        %v3692 = vadd.f32 %v2842, %v3691
        %3693 = vmatprep.mubr.bf16.mxu0 0
        %3694 = vmatmul.mubr.bf16.gmra.mrb[0].mxu0 %v2987
        %v3695 = vpop.f32.mrb[0].mxu0
        %v3696 = vadd.f32 %v2845, %v3695
        %v3697 = vpop.f32.mrb[0].mxu0
        %v3698 = vadd.f32 %v2846, %v3697
        %v3699 = vpop.f32.mrb[0].mxu0
        %v3700 = vadd.f32 %v2849, %v3699
        %v3701 = vpop.f32.mrb[0].mxu0
        %v3702 = vadd.f32 %v2850, %v3701
        %3703 = vmatprep.mubr.bf16.mxu0 0
        %3704 = vmatmul.mubr.bf16.gmra.mrb[0].mxu0 %v2990
        %v3705 = vpop.f32.mrb[0].mxu0
        %v3706 = vadd.f32 %v2853, %v3705
        %v3707 = vpop.f32.mrb[0].mxu0
        %v3708 = vadd.f32 %v2854, %v3707
        %v3709 = vpop.f32.mrb[0].mxu0
        %v3710 = vadd.f32 %v2857, %v3709
        %v3711 = vpop.f32.mrb[0].mxu0
        %v3712 = vadd.f32 %v2858, %v3711
        %3713 = vdwg.mxu0
        %v3714 = vld [vmem:[%s4] sm:$0xf]
        %v3716 = vlaneseq
        %v3717 = vshrl.u32 %v3716, 7
        %v3718 = vsub.s32 0, %v3717
        %v3719 = vrot.slane %v3714, %v3718
        %v3720 = vlaneseq
        %v3721 = vshrl.u32 %v3720, 7
        %v3722 = vsub.s32 1, %v3721
        %v3723 = vrot.slane %v3714, %v3722
        %v3724 = vlaneseq
        %v3725 = vshrl.u32 %v3724, 7
        %v3726 = vsub.s32 2, %v3725
        %v3727 = vrot.slane %v3714, %v3726
        %v3728 = vlaneseq
        %v3729 = vshrl.u32 %v3728, 7
        %v3730 = vsub.s32 3, %v3729
        %v3731 = vrot.slane %v3714, %v3730
        %v3736 = vadd.f32 %v3043, %v3719
        %v3737 = vadd.f32 %v3045, %v3723
        %v3738 = vadd.f32 %v3396, %v3727
        %v3739 = vadd.f32 %v3398, %v3731
        %v3740 = vadd.f32 %v3047, %v3719
        %v3741 = vadd.f32 %v3049, %v3723
        %v3742 = vadd.f32 %v3400, %v3727
        %v3743 = vadd.f32 %v3402, %v3731
        %v3744 = vadd.f32 %v3053, %v3719
        %v3745 = vadd.f32 %v3055, %v3723
        %v3746 = vadd.f32 %v3406, %v3727
        %v3747 = vadd.f32 %v3408, %v3731
        %v3748 = vadd.f32 %v3057, %v3719
        %v3749 = vadd.f32 %v3059, %v3723
        %v3750 = vadd.f32 %v3410, %v3727
        %v3751 = vadd.f32 %v3412, %v3731
        %v3752 = vadd.f32 %v3063, %v3719
        %v3753 = vadd.f32 %v3065, %v3723
        %v3754 = vadd.f32 %v3416, %v3727
        %v3755 = vadd.f32 %v3418, %v3731
        %v3756 = vadd.f32 %v3067, %v3719
        %v3757 = vadd.f32 %v3069, %v3723
        %v3758 = vadd.f32 %v3420, %v3727
        %v3759 = vadd.f32 %v3422, %v3731
        %v3760 = vadd.f32 %v3073, %v3719
        %v3761 = vadd.f32 %v3075, %v3723
        %v3762 = vadd.f32 %v3426, %v3727
        %v3763 = vadd.f32 %v3428, %v3731
        %v3764 = vadd.f32 %v3077, %v3719
        %v3765 = vadd.f32 %v3079, %v3723
        %v3766 = vadd.f32 %v3430, %v3727
        %v3767 = vadd.f32 %v3432, %v3731
        %v3768 = vadd.f32 %v3083, %v3719
        %v3769 = vadd.f32 %v3085, %v3723
        %v3770 = vadd.f32 %v3436, %v3727
        %v3771 = vadd.f32 %v3438, %v3731
        %v3772 = vadd.f32 %v3087, %v3719
        %v3773 = vadd.f32 %v3089, %v3723
        %v3774 = vadd.f32 %v3440, %v3727
        %v3775 = vadd.f32 %v3442, %v3731
        %v3776 = vadd.f32 %v3093, %v3719
        %v3777 = vadd.f32 %v3095, %v3723
        %v3778 = vadd.f32 %v3446, %v3727
        %v3779 = vadd.f32 %v3448, %v3731
        %v3780 = vadd.f32 %v3097, %v3719
        %v3781 = vadd.f32 %v3099, %v3723
        %v3782 = vadd.f32 %v3450, %v3727
        %v3783 = vadd.f32 %v3452, %v3731
        %v3784 = vadd.f32 %v3103, %v3719
        %v3785 = vadd.f32 %v3105, %v3723
        %v3786 = vadd.f32 %v3456, %v3727
        %v3787 = vadd.f32 %v3458, %v3731
        %v3788 = vadd.f32 %v3107, %v3719
        %v3789 = vadd.f32 %v3109, %v3723
        %v3790 = vadd.f32 %v3460, %v3727
        %v3791 = vadd.f32 %v3462, %v3731
        %v3792 = vadd.f32 %v3113, %v3719
        %v3793 = vadd.f32 %v3115, %v3723
        %v3794 = vadd.f32 %v3466, %v3727
        %v3795 = vadd.f32 %v3468, %v3731
        %v3796 = vadd.f32 %v3117, %v3719
        %v3797 = vadd.f32 %v3119, %v3723
        %v3798 = vadd.f32 %v3470, %v3727
        %v3799 = vadd.f32 %v3472, %v3731
        %v3800 = vadd.f32 %v3123, %v3719
        %v3801 = vadd.f32 %v3125, %v3723
        %v3802 = vadd.f32 %v3476, %v3727
        %v3803 = vadd.f32 %v3478, %v3731
        %v3804 = vadd.f32 %v3127, %v3719
        %v3805 = vadd.f32 %v3129, %v3723
        %v3806 = vadd.f32 %v3480, %v3727
        %v3807 = vadd.f32 %v3482, %v3731
        %v3808 = vadd.f32 %v3133, %v3719
        %v3809 = vadd.f32 %v3135, %v3723
        %v3810 = vadd.f32 %v3486, %v3727
        %v3811 = vadd.f32 %v3488, %v3731
        %v3812 = vadd.f32 %v3137, %v3719
        %v3813 = vadd.f32 %v3139, %v3723
        %v3814 = vadd.f32 %v3490, %v3727
        %v3815 = vadd.f32 %v3492, %v3731
        %v3816 = vadd.f32 %v3143, %v3719
        %v3817 = vadd.f32 %v3145, %v3723
        %v3818 = vadd.f32 %v3496, %v3727
        %v3819 = vadd.f32 %v3498, %v3731
        %v3820 = vadd.f32 %v3147, %v3719
        %v3821 = vadd.f32 %v3149, %v3723
        %v3822 = vadd.f32 %v3500, %v3727
        %v3823 = vadd.f32 %v3502, %v3731
        %v3824 = vadd.f32 %v3153, %v3719
        %v3825 = vadd.f32 %v3155, %v3723
        %v3826 = vadd.f32 %v3506, %v3727
        %v3827 = vadd.f32 %v3508, %v3731
        %v3828 = vadd.f32 %v3157, %v3719
        %v3829 = vadd.f32 %v3159, %v3723
        %v3830 = vadd.f32 %v3510, %v3727
        %v3831 = vadd.f32 %v3512, %v3731
        %v3832 = vadd.f32 %v3163, %v3719
        %v3833 = vadd.f32 %v3165, %v3723
        %v3834 = vadd.f32 %v3516, %v3727
        %v3835 = vadd.f32 %v3518, %v3731
        %v3836 = vadd.f32 %v3167, %v3719
        %v3837 = vadd.f32 %v3169, %v3723
        %v3838 = vadd.f32 %v3520, %v3727
        %v3839 = vadd.f32 %v3522, %v3731
        %v3840 = vadd.f32 %v3173, %v3719
        %v3841 = vadd.f32 %v3175, %v3723
        %v3842 = vadd.f32 %v3526, %v3727
        %v3843 = vadd.f32 %v3528, %v3731
        %v3844 = vadd.f32 %v3177, %v3719
        %v3845 = vadd.f32 %v3179, %v3723
        %v3846 = vadd.f32 %v3530, %v3727
        %v3847 = vadd.f32 %v3532, %v3731
        %v3848 = vadd.f32 %v3183, %v3719
        %v3849 = vadd.f32 %v3185, %v3723
        %v3850 = vadd.f32 %v3536, %v3727
        %v3851 = vadd.f32 %v3538, %v3731
        %v3852 = vadd.f32 %v3187, %v3719
        %v3853 = vadd.f32 %v3189, %v3723
        %v3854 = vadd.f32 %v3540, %v3727
        %v3855 = vadd.f32 %v3542, %v3731
        %v3856 = vadd.f32 %v3193, %v3719
        %v3857 = vadd.f32 %v3195, %v3723
        %v3858 = vadd.f32 %v3546, %v3727
        %v3859 = vadd.f32 %v3548, %v3731
        %v3860 = vadd.f32 %v3197, %v3719
        %v3861 = vadd.f32 %v3199, %v3723
        %v3862 = vadd.f32 %v3550, %v3727
        %v3863 = vadd.f32 %v3552, %v3731
        %v3864 = vadd.f32 %v3203, %v3719
        %v3865 = vadd.f32 %v3205, %v3723
        %v3866 = vadd.f32 %v3556, %v3727
        %v3867 = vadd.f32 %v3558, %v3731
        %v3868 = vadd.f32 %v3207, %v3719
        %v3869 = vadd.f32 %v3209, %v3723
        %v3870 = vadd.f32 %v3560, %v3727
        %v3871 = vadd.f32 %v3562, %v3731
        %v3872 = vadd.f32 %v3213, %v3719
        %v3873 = vadd.f32 %v3215, %v3723
        %v3874 = vadd.f32 %v3566, %v3727
        %v3875 = vadd.f32 %v3568, %v3731
        %v3876 = vadd.f32 %v3217, %v3719
        %v3877 = vadd.f32 %v3219, %v3723
        %v3878 = vadd.f32 %v3570, %v3727
        %v3879 = vadd.f32 %v3572, %v3731
        %v3880 = vadd.f32 %v3223, %v3719
        %v3881 = vadd.f32 %v3225, %v3723
        %v3882 = vadd.f32 %v3576, %v3727
        %v3883 = vadd.f32 %v3578, %v3731
        %v3884 = vadd.f32 %v3227, %v3719
        %v3885 = vadd.f32 %v3229, %v3723
        %v3886 = vadd.f32 %v3580, %v3727
        %v3887 = vadd.f32 %v3582, %v3731
        %v3888 = vadd.f32 %v3233, %v3719
        %v3889 = vadd.f32 %v3235, %v3723
        %v3890 = vadd.f32 %v3586, %v3727
        %v3891 = vadd.f32 %v3588, %v3731
        %v3892 = vadd.f32 %v3237, %v3719
        %v3893 = vadd.f32 %v3239, %v3723
        %v3894 = vadd.f32 %v3590, %v3727
        %v3895 = vadd.f32 %v3592, %v3731
        %v3896 = vadd.f32 %v3243, %v3719
        %v3897 = vadd.f32 %v3245, %v3723
        %v3898 = vadd.f32 %v3596, %v3727
        %v3899 = vadd.f32 %v3598, %v3731
        %v3900 = vadd.f32 %v3247, %v3719
        %v3901 = vadd.f32 %v3249, %v3723
        %v3902 = vadd.f32 %v3600, %v3727
        %v3903 = vadd.f32 %v3602, %v3731
        %v3904 = vadd.f32 %v3253, %v3719
        %v3905 = vadd.f32 %v3255, %v3723
        %v3906 = vadd.f32 %v3606, %v3727
        %v3907 = vadd.f32 %v3608, %v3731
        %v3908 = vadd.f32 %v3257, %v3719
        %v3909 = vadd.f32 %v3259, %v3723
        %v3910 = vadd.f32 %v3610, %v3727
        %v3911 = vadd.f32 %v3612, %v3731
        %v3912 = vadd.f32 %v3263, %v3719
        %v3913 = vadd.f32 %v3265, %v3723
        %v3914 = vadd.f32 %v3616, %v3727
        %v3915 = vadd.f32 %v3618, %v3731
        %v3916 = vadd.f32 %v3267, %v3719
        %v3917 = vadd.f32 %v3269, %v3723
        %v3918 = vadd.f32 %v3620, %v3727
        %v3919 = vadd.f32 %v3622, %v3731
        %v3920 = vadd.f32 %v3273, %v3719
        %v3921 = vadd.f32 %v3275, %v3723
        %v3922 = vadd.f32 %v3626, %v3727
        %v3923 = vadd.f32 %v3628, %v3731
        %v3924 = vadd.f32 %v3277, %v3719
        %v3925 = vadd.f32 %v3279, %v3723
        %v3926 = vadd.f32 %v3630, %v3727
        %v3927 = vadd.f32 %v3632, %v3731
        %v3928 = vadd.f32 %v3283, %v3719
        %v3929 = vadd.f32 %v3285, %v3723
        %v3930 = vadd.f32 %v3636, %v3727
        %v3931 = vadd.f32 %v3638, %v3731
        %v3932 = vadd.f32 %v3287, %v3719
        %v3933 = vadd.f32 %v3289, %v3723
        %v3934 = vadd.f32 %v3640, %v3727
        %v3935 = vadd.f32 %v3642, %v3731
        %v3936 = vadd.f32 %v3293, %v3719
        %v3937 = vadd.f32 %v3295, %v3723
        %v3938 = vadd.f32 %v3646, %v3727
        %v3939 = vadd.f32 %v3648, %v3731
        %v3940 = vadd.f32 %v3297, %v3719
        %v3941 = vadd.f32 %v3299, %v3723
        %v3942 = vadd.f32 %v3650, %v3727
        %v3943 = vadd.f32 %v3652, %v3731
        %v3944 = vadd.f32 %v3303, %v3719
        %v3945 = vadd.f32 %v3305, %v3723
        %v3946 = vadd.f32 %v3656, %v3727
        %v3947 = vadd.f32 %v3658, %v3731
        %v3948 = vadd.f32 %v3307, %v3719
        %v3949 = vadd.f32 %v3309, %v3723
        %v3950 = vadd.f32 %v3660, %v3727
        %v3951 = vadd.f32 %v3662, %v3731
        %v3952 = vadd.f32 %v3313, %v3719
        %v3953 = vadd.f32 %v3315, %v3723
        %v3954 = vadd.f32 %v3666, %v3727
        %v3955 = vadd.f32 %v3668, %v3731
        %v3956 = vadd.f32 %v3317, %v3719
        %v3957 = vadd.f32 %v3319, %v3723
        %v3958 = vadd.f32 %v3670, %v3727
        %v3959 = vadd.f32 %v3672, %v3731
        %v3960 = vadd.f32 %v3323, %v3719
        %v3961 = vadd.f32 %v3325, %v3723
        %v3962 = vadd.f32 %v3676, %v3727
        %v3963 = vadd.f32 %v3678, %v3731
        %v3964 = vadd.f32 %v3327, %v3719
        %v3965 = vadd.f32 %v3329, %v3723
        %v3966 = vadd.f32 %v3680, %v3727
        %v3967 = vadd.f32 %v3682, %v3731
        %v3968 = vadd.f32 %v3333, %v3719
        %v3969 = vadd.f32 %v3335, %v3723
        %v3970 = vadd.f32 %v3686, %v3727
        %v3971 = vadd.f32 %v3688, %v3731
        %v3972 = vadd.f32 %v3337, %v3719
        %v3973 = vadd.f32 %v3339, %v3723
        %v3974 = vadd.f32 %v3690, %v3727
        %v3975 = vadd.f32 %v3692, %v3731
        %v3976 = vadd.f32 %v3343, %v3719
        %v3977 = vadd.f32 %v3345, %v3723
        %v3978 = vadd.f32 %v3696, %v3727
        %v3979 = vadd.f32 %v3698, %v3731
        %v3980 = vadd.f32 %v3347, %v3719
        %v3981 = vadd.f32 %v3349, %v3723
        %v3982 = vadd.f32 %v3700, %v3727
        %v3983 = vadd.f32 %v3702, %v3731
        %v3984 = vadd.f32 %v3353, %v3719
        %v3985 = vadd.f32 %v3355, %v3723
        %v3986 = vadd.f32 %v3706, %v3727
        %v3987 = vadd.f32 %v3708, %v3731
        %v3988 = vadd.f32 %v3357, %v3719
        %v3989 = vadd.f32 %v3359, %v3723
        %v3990 = vadd.f32 %v3710, %v3727
        %v3991 = vadd.f32 %v3712, %v3731
        %v3992 = vmax.f32 %v3736, 0.0
        %v3993 = vmax.f32 %v3737, 0.0
        %v3994 = vmax.f32 %v3738, 0.0
        %v3995 = vmax.f32 %v3739, 0.0
        %v3996 = vmax.f32 %v3740, 0.0
        %v3997 = vmax.f32 %v3741, 0.0
        %v3998 = vmax.f32 %v3742, 0.0
        %v3999 = vmax.f32 %v3743, 0.0
        %v4000 = vmax.f32 %v3744, 0.0
        %v4001 = vmax.f32 %v3745, 0.0
        %v4002 = vmax.f32 %v3746, 0.0
        %v4003 = vmax.f32 %v3747, 0.0
        %v4004 = vmax.f32 %v3748, 0.0
        %v4005 = vmax.f32 %v3749, 0.0
        %v4006 = vmax.f32 %v3750, 0.0
        %v4007 = vmax.f32 %v3751, 0.0
        %v4008 = vmax.f32 %v3752, 0.0
        %v4009 = vmax.f32 %v3753, 0.0
        %v4010 = vmax.f32 %v3754, 0.0
        %v4011 = vmax.f32 %v3755, 0.0
        %v4012 = vmax.f32 %v3756, 0.0
        %v4013 = vmax.f32 %v3757, 0.0
        %v4014 = vmax.f32 %v3758, 0.0
        %v4015 = vmax.f32 %v3759, 0.0
        %v4016 = vmax.f32 %v3760, 0.0
        %v4017 = vmax.f32 %v3761, 0.0
        %v4018 = vmax.f32 %v3762, 0.0
        %v4019 = vmax.f32 %v3763, 0.0
        %v4020 = vmax.f32 %v3764, 0.0
        %v4021 = vmax.f32 %v3765, 0.0
        %v4022 = vmax.f32 %v3766, 0.0
        %v4023 = vmax.f32 %v3767, 0.0
        %v4024 = vmax.f32 %v3768, 0.0
        %v4025 = vmax.f32 %v3769, 0.0
        %v4026 = vmax.f32 %v3770, 0.0
        %v4027 = vmax.f32 %v3771, 0.0
        %v4028 = vmax.f32 %v3772, 0.0
        %v4029 = vmax.f32 %v3773, 0.0
        %v4030 = vmax.f32 %v3774, 0.0
        %v4031 = vmax.f32 %v3775, 0.0
        %v4032 = vmax.f32 %v3776, 0.0
        %v4033 = vmax.f32 %v3777, 0.0
        %v4034 = vmax.f32 %v3778, 0.0
        %v4035 = vmax.f32 %v3779, 0.0
        %v4036 = vmax.f32 %v3780, 0.0
        %v4037 = vmax.f32 %v3781, 0.0
        %v4038 = vmax.f32 %v3782, 0.0
        %v4039 = vmax.f32 %v3783, 0.0
        %v4040 = vmax.f32 %v3784, 0.0
        %v4041 = vmax.f32 %v3785, 0.0
        %v4042 = vmax.f32 %v3786, 0.0
        %v4043 = vmax.f32 %v3787, 0.0
        %v4044 = vmax.f32 %v3788, 0.0
        %v4045 = vmax.f32 %v3789, 0.0
        %v4046 = vmax.f32 %v3790, 0.0
        %v4047 = vmax.f32 %v3791, 0.0
        %v4048 = vmax.f32 %v3792, 0.0
        %v4049 = vmax.f32 %v3793, 0.0
        %v4050 = vmax.f32 %v3794, 0.0
        %v4051 = vmax.f32 %v3795, 0.0
        %v4052 = vmax.f32 %v3796, 0.0
        %v4053 = vmax.f32 %v3797, 0.0
        %v4054 = vmax.f32 %v3798, 0.0
        %v4055 = vmax.f32 %v3799, 0.0
        %v4056 = vmax.f32 %v3800, 0.0
        %v4057 = vmax.f32 %v3801, 0.0
        %v4058 = vmax.f32 %v3802, 0.0
        %v4059 = vmax.f32 %v3803, 0.0
        %v4060 = vmax.f32 %v3804, 0.0
        %v4061 = vmax.f32 %v3805, 0.0
        %v4062 = vmax.f32 %v3806, 0.0
        %v4063 = vmax.f32 %v3807, 0.0
        %v4064 = vmax.f32 %v3808, 0.0
        %v4065 = vmax.f32 %v3809, 0.0
        %v4066 = vmax.f32 %v3810, 0.0
        %v4067 = vmax.f32 %v3811, 0.0
        %v4068 = vmax.f32 %v3812, 0.0
        %v4069 = vmax.f32 %v3813, 0.0
        %v4070 = vmax.f32 %v3814, 0.0
        %v4071 = vmax.f32 %v3815, 0.0
        %v4072 = vmax.f32 %v3816, 0.0
        %v4073 = vmax.f32 %v3817, 0.0
        %v4074 = vmax.f32 %v3818, 0.0
        %v4075 = vmax.f32 %v3819, 0.0
        %v4076 = vmax.f32 %v3820, 0.0
        %v4077 = vmax.f32 %v3821, 0.0
        %v4078 = vmax.f32 %v3822, 0.0
        %v4079 = vmax.f32 %v3823, 0.0
        %v4080 = vmax.f32 %v3824, 0.0
        %v4081 = vmax.f32 %v3825, 0.0
        %v4082 = vmax.f32 %v3826, 0.0
        %v4083 = vmax.f32 %v3827, 0.0
        %v4084 = vmax.f32 %v3828, 0.0
        %v4085 = vmax.f32 %v3829, 0.0
        %v4086 = vmax.f32 %v3830, 0.0
        %v4087 = vmax.f32 %v3831, 0.0
        %v4088 = vmax.f32 %v3832, 0.0
        %v4089 = vmax.f32 %v3833, 0.0
        %v4090 = vmax.f32 %v3834, 0.0
        %v4091 = vmax.f32 %v3835, 0.0
        %v4092 = vmax.f32 %v3836, 0.0
        %v4093 = vmax.f32 %v3837, 0.0
        %v4094 = vmax.f32 %v3838, 0.0
        %v4095 = vmax.f32 %v3839, 0.0
        %v4096 = vmax.f32 %v3840, 0.0
        %v4097 = vmax.f32 %v3841, 0.0
        %v4098 = vmax.f32 %v3842, 0.0
        %v4099 = vmax.f32 %v3843, 0.0
        %v4100 = vmax.f32 %v3844, 0.0
        %v4101 = vmax.f32 %v3845, 0.0
        %v4102 = vmax.f32 %v3846, 0.0
        %v4103 = vmax.f32 %v3847, 0.0
        %v4104 = vmax.f32 %v3848, 0.0
        %v4105 = vmax.f32 %v3849, 0.0
        %v4106 = vmax.f32 %v3850, 0.0
        %v4107 = vmax.f32 %v3851, 0.0
        %v4108 = vmax.f32 %v3852, 0.0
        %v4109 = vmax.f32 %v3853, 0.0
        %v4110 = vmax.f32 %v3854, 0.0
        %v4111 = vmax.f32 %v3855, 0.0
        %v4112 = vmax.f32 %v3856, 0.0
        %v4113 = vmax.f32 %v3857, 0.0
        %v4114 = vmax.f32 %v3858, 0.0
        %v4115 = vmax.f32 %v3859, 0.0
        %v4116 = vmax.f32 %v3860, 0.0
        %v4117 = vmax.f32 %v3861, 0.0
        %v4118 = vmax.f32 %v3862, 0.0
        %v4119 = vmax.f32 %v3863, 0.0
        %v4120 = vmax.f32 %v3864, 0.0
        %v4121 = vmax.f32 %v3865, 0.0
        %v4122 = vmax.f32 %v3866, 0.0
        %v4123 = vmax.f32 %v3867, 0.0
        %v4124 = vmax.f32 %v3868, 0.0
        %v4125 = vmax.f32 %v3869, 0.0
        %v4126 = vmax.f32 %v3870, 0.0
        %v4127 = vmax.f32 %v3871, 0.0
        %v4128 = vmax.f32 %v3872, 0.0
        %v4129 = vmax.f32 %v3873, 0.0
        %v4130 = vmax.f32 %v3874, 0.0
        %v4131 = vmax.f32 %v3875, 0.0
        %v4132 = vmax.f32 %v3876, 0.0
        %v4133 = vmax.f32 %v3877, 0.0
        %v4134 = vmax.f32 %v3878, 0.0
        %v4135 = vmax.f32 %v3879, 0.0
        %v4136 = vmax.f32 %v3880, 0.0
        %v4137 = vmax.f32 %v3881, 0.0
        %v4138 = vmax.f32 %v3882, 0.0
        %v4139 = vmax.f32 %v3883, 0.0
        %v4140 = vmax.f32 %v3884, 0.0
        %v4141 = vmax.f32 %v3885, 0.0
        %v4142 = vmax.f32 %v3886, 0.0
        %v4143 = vmax.f32 %v3887, 0.0
        %v4144 = vmax.f32 %v3888, 0.0
        %v4145 = vmax.f32 %v3889, 0.0
        %v4146 = vmax.f32 %v3890, 0.0
        %v4147 = vmax.f32 %v3891, 0.0
        %v4148 = vmax.f32 %v3892, 0.0
        %v4149 = vmax.f32 %v3893, 0.0
        %v4150 = vmax.f32 %v3894, 0.0
        %v4151 = vmax.f32 %v3895, 0.0
        %v4152 = vmax.f32 %v3896, 0.0
        %v4153 = vmax.f32 %v3897, 0.0
        %v4154 = vmax.f32 %v3898, 0.0
        %v4155 = vmax.f32 %v3899, 0.0
        %v4156 = vmax.f32 %v3900, 0.0
        %v4157 = vmax.f32 %v3901, 0.0
        %v4158 = vmax.f32 %v3902, 0.0
        %v4159 = vmax.f32 %v3903, 0.0
        %v4160 = vmax.f32 %v3904, 0.0
        %v4161 = vmax.f32 %v3905, 0.0
        %v4162 = vmax.f32 %v3906, 0.0
        %v4163 = vmax.f32 %v3907, 0.0
        %v4164 = vmax.f32 %v3908, 0.0
        %v4165 = vmax.f32 %v3909, 0.0
        %v4166 = vmax.f32 %v3910, 0.0
        %v4167 = vmax.f32 %v3911, 0.0
        %v4168 = vmax.f32 %v3912, 0.0
        %v4169 = vmax.f32 %v3913, 0.0
        %v4170 = vmax.f32 %v3914, 0.0
        %v4171 = vmax.f32 %v3915, 0.0
        %v4172 = vmax.f32 %v3916, 0.0
        %v4173 = vmax.f32 %v3917, 0.0
        %v4174 = vmax.f32 %v3918, 0.0
        %v4175 = vmax.f32 %v3919, 0.0
        %v4176 = vmax.f32 %v3920, 0.0
        %v4177 = vmax.f32 %v3921, 0.0
        %v4178 = vmax.f32 %v3922, 0.0
        %v4179 = vmax.f32 %v3923, 0.0
        %v4180 = vmax.f32 %v3924, 0.0
        %v4181 = vmax.f32 %v3925, 0.0
        %v4182 = vmax.f32 %v3926, 0.0
        %v4183 = vmax.f32 %v3927, 0.0
        %v4184 = vmax.f32 %v3928, 0.0
        %v4185 = vmax.f32 %v3929, 0.0
        %v4186 = vmax.f32 %v3930, 0.0
        %v4187 = vmax.f32 %v3931, 0.0
        %v4188 = vmax.f32 %v3932, 0.0
        %v4189 = vmax.f32 %v3933, 0.0
        %v4190 = vmax.f32 %v3934, 0.0
        %v4191 = vmax.f32 %v3935, 0.0
        %v4192 = vmax.f32 %v3936, 0.0
        %v4193 = vmax.f32 %v3937, 0.0
        %v4194 = vmax.f32 %v3938, 0.0
        %v4195 = vmax.f32 %v3939, 0.0
        %v4196 = vmax.f32 %v3940, 0.0
        %v4197 = vmax.f32 %v3941, 0.0
        %v4198 = vmax.f32 %v3942, 0.0
        %v4199 = vmax.f32 %v3943, 0.0
        %v4200 = vmax.f32 %v3944, 0.0
        %v4201 = vmax.f32 %v3945, 0.0
        %v4202 = vmax.f32 %v3946, 0.0
        %v4203 = vmax.f32 %v3947, 0.0
        %v4204 = vmax.f32 %v3948, 0.0
        %v4205 = vmax.f32 %v3949, 0.0
        %v4206 = vmax.f32 %v3950, 0.0
        %v4207 = vmax.f32 %v3951, 0.0
        %v4208 = vmax.f32 %v3952, 0.0
        %v4209 = vmax.f32 %v3953, 0.0
        %v4210 = vmax.f32 %v3954, 0.0
        %v4211 = vmax.f32 %v3955, 0.0
        %v4212 = vmax.f32 %v3956, 0.0
        %v4213 = vmax.f32 %v3957, 0.0
        %v4214 = vmax.f32 %v3958, 0.0
        %v4215 = vmax.f32 %v3959, 0.0
        %v4216 = vmax.f32 %v3960, 0.0
        %v4217 = vmax.f32 %v3961, 0.0
        %v4218 = vmax.f32 %v3962, 0.0
        %v4219 = vmax.f32 %v3963, 0.0
        %v4220 = vmax.f32 %v3964, 0.0
        %v4221 = vmax.f32 %v3965, 0.0
        %v4222 = vmax.f32 %v3966, 0.0
        %v4223 = vmax.f32 %v3967, 0.0
        %v4224 = vmax.f32 %v3968, 0.0
        %v4225 = vmax.f32 %v3969, 0.0
        %v4226 = vmax.f32 %v3970, 0.0
        %v4227 = vmax.f32 %v3971, 0.0
        %v4228 = vmax.f32 %v3972, 0.0
        %v4229 = vmax.f32 %v3973, 0.0
        %v4230 = vmax.f32 %v3974, 0.0
        %v4231 = vmax.f32 %v3975, 0.0
        %v4232 = vmax.f32 %v3976, 0.0
        %v4233 = vmax.f32 %v3977, 0.0
        %v4234 = vmax.f32 %v3978, 0.0
        %v4235 = vmax.f32 %v3979, 0.0
        %v4236 = vmax.f32 %v3980, 0.0
        %v4237 = vmax.f32 %v3981, 0.0
        %v4238 = vmax.f32 %v3982, 0.0
        %v4239 = vmax.f32 %v3983, 0.0
        %v4240 = vmax.f32 %v3984, 0.0
        %v4241 = vmax.f32 %v3985, 0.0
        %v4242 = vmax.f32 %v3986, 0.0
        %v4243 = vmax.f32 %v3987, 0.0
        %v4244 = vmax.f32 %v3988, 0.0
        %v4245 = vmax.f32 %v3989, 0.0
        %v4246 = vmax.f32 %v3990, 0.0
        %v4247 = vmax.f32 %v3991, 0.0
        %v4248 = vpack.c.bf16 %v3996, %v3992
        %v4249 = vpack.c.bf16 %v3997, %v3993
        %v4250 = vpack.c.bf16 %v3998, %v3994
        %v4251 = vpack.c.bf16 %v3999, %v3995
        %v4252 = vpack.c.bf16 %v4004, %v4000
        %v4253 = vpack.c.bf16 %v4005, %v4001
        %v4254 = vpack.c.bf16 %v4006, %v4002
        %v4255 = vpack.c.bf16 %v4007, %v4003
        %v4256 = vpack.c.bf16 %v4012, %v4008
        %v4257 = vpack.c.bf16 %v4013, %v4009
        %v4258 = vpack.c.bf16 %v4014, %v4010
        %v4259 = vpack.c.bf16 %v4015, %v4011
        %v4260 = vpack.c.bf16 %v4020, %v4016
        %v4261 = vpack.c.bf16 %v4021, %v4017
        %v4262 = vpack.c.bf16 %v4022, %v4018
        %v4263 = vpack.c.bf16 %v4023, %v4019
        %v4264 = vpack.c.bf16 %v4028, %v4024
        %v4265 = vpack.c.bf16 %v4029, %v4025
        %v4266 = vpack.c.bf16 %v4030, %v4026
        %v4267 = vpack.c.bf16 %v4031, %v4027
        %v4268 = vpack.c.bf16 %v4036, %v4032
        %v4269 = vpack.c.bf16 %v4037, %v4033
        %v4270 = vpack.c.bf16 %v4038, %v4034
        %v4271 = vpack.c.bf16 %v4039, %v4035
        %v4272 = vpack.c.bf16 %v4044, %v4040
        %v4273 = vpack.c.bf16 %v4045, %v4041
        %v4274 = vpack.c.bf16 %v4046, %v4042
        %v4275 = vpack.c.bf16 %v4047, %v4043
        %v4276 = vpack.c.bf16 %v4052, %v4048
        %v4277 = vpack.c.bf16 %v4053, %v4049
        %v4278 = vpack.c.bf16 %v4054, %v4050
        %v4279 = vpack.c.bf16 %v4055, %v4051
        %v4280 = vpack.c.bf16 %v4060, %v4056
        %v4281 = vpack.c.bf16 %v4061, %v4057
        %v4282 = vpack.c.bf16 %v4062, %v4058
        %v4283 = vpack.c.bf16 %v4063, %v4059
        %v4284 = vpack.c.bf16 %v4068, %v4064
        %v4285 = vpack.c.bf16 %v4069, %v4065
        %v4286 = vpack.c.bf16 %v4070, %v4066
        %v4287 = vpack.c.bf16 %v4071, %v4067
        %v4288 = vpack.c.bf16 %v4076, %v4072
        %v4289 = vpack.c.bf16 %v4077, %v4073
        %v4290 = vpack.c.bf16 %v4078, %v4074
        %v4291 = vpack.c.bf16 %v4079, %v4075
        %v4292 = vpack.c.bf16 %v4084, %v4080
        %v4293 = vpack.c.bf16 %v4085, %v4081
        %v4294 = vpack.c.bf16 %v4086, %v4082
        %v4295 = vpack.c.bf16 %v4087, %v4083
        %v4296 = vpack.c.bf16 %v4092, %v4088
        %v4297 = vpack.c.bf16 %v4093, %v4089
        %v4298 = vpack.c.bf16 %v4094, %v4090
        %v4299 = vpack.c.bf16 %v4095, %v4091
        %v4300 = vpack.c.bf16 %v4100, %v4096
        %v4301 = vpack.c.bf16 %v4101, %v4097
        %v4302 = vpack.c.bf16 %v4102, %v4098
        %v4303 = vpack.c.bf16 %v4103, %v4099
        %v4304 = vpack.c.bf16 %v4108, %v4104
        %v4305 = vpack.c.bf16 %v4109, %v4105
        %v4306 = vpack.c.bf16 %v4110, %v4106
        %v4307 = vpack.c.bf16 %v4111, %v4107
        %v4308 = vpack.c.bf16 %v4116, %v4112
        %v4309 = vpack.c.bf16 %v4117, %v4113
        %v4310 = vpack.c.bf16 %v4118, %v4114
        %v4311 = vpack.c.bf16 %v4119, %v4115
        %v4312 = vpack.c.bf16 %v4124, %v4120
        %v4313 = vpack.c.bf16 %v4125, %v4121
        %v4314 = vpack.c.bf16 %v4126, %v4122
        %v4315 = vpack.c.bf16 %v4127, %v4123
        %v4316 = vpack.c.bf16 %v4132, %v4128
        %v4317 = vpack.c.bf16 %v4133, %v4129
        %v4318 = vpack.c.bf16 %v4134, %v4130
        %v4319 = vpack.c.bf16 %v4135, %v4131
        %v4320 = vpack.c.bf16 %v4140, %v4136
        %v4321 = vpack.c.bf16 %v4141, %v4137
        %v4322 = vpack.c.bf16 %v4142, %v4138
        %v4323 = vpack.c.bf16 %v4143, %v4139
        %v4324 = vpack.c.bf16 %v4148, %v4144
        %v4325 = vpack.c.bf16 %v4149, %v4145
        %v4326 = vpack.c.bf16 %v4150, %v4146
        %v4327 = vpack.c.bf16 %v4151, %v4147
        %v4328 = vpack.c.bf16 %v4156, %v4152
        %v4329 = vpack.c.bf16 %v4157, %v4153
        %v4330 = vpack.c.bf16 %v4158, %v4154
        %v4331 = vpack.c.bf16 %v4159, %v4155
        %v4332 = vpack.c.bf16 %v4164, %v4160
        %v4333 = vpack.c.bf16 %v4165, %v4161
        %v4334 = vpack.c.bf16 %v4166, %v4162
        %v4335 = vpack.c.bf16 %v4167, %v4163
        %v4336 = vpack.c.bf16 %v4172, %v4168
        %v4337 = vpack.c.bf16 %v4173, %v4169
        %v4338 = vpack.c.bf16 %v4174, %v4170
        %v4339 = vpack.c.bf16 %v4175, %v4171
        %v4340 = vpack.c.bf16 %v4180, %v4176
        %v4341 = vpack.c.bf16 %v4181, %v4177
        %v4342 = vpack.c.bf16 %v4182, %v4178
        %v4343 = vpack.c.bf16 %v4183, %v4179
        %v4344 = vpack.c.bf16 %v4188, %v4184
        %v4345 = vpack.c.bf16 %v4189, %v4185
        %v4346 = vpack.c.bf16 %v4190, %v4186
        %v4347 = vpack.c.bf16 %v4191, %v4187
        %v4348 = vpack.c.bf16 %v4196, %v4192
        %v4349 = vpack.c.bf16 %v4197, %v4193
        %v4350 = vpack.c.bf16 %v4198, %v4194
        %v4351 = vpack.c.bf16 %v4199, %v4195
        %v4352 = vpack.c.bf16 %v4204, %v4200
        %v4353 = vpack.c.bf16 %v4205, %v4201
        %v4354 = vpack.c.bf16 %v4206, %v4202
        %v4355 = vpack.c.bf16 %v4207, %v4203
        %v4356 = vpack.c.bf16 %v4212, %v4208
        %v4357 = vpack.c.bf16 %v4213, %v4209
        %v4358 = vpack.c.bf16 %v4214, %v4210
        %v4359 = vpack.c.bf16 %v4215, %v4211
        %v4360 = vpack.c.bf16 %v4220, %v4216
        %v4361 = vpack.c.bf16 %v4221, %v4217
        %v4362 = vpack.c.bf16 %v4222, %v4218
        %v4363 = vpack.c.bf16 %v4223, %v4219
        %v4364 = vpack.c.bf16 %v4228, %v4224
        %v4365 = vpack.c.bf16 %v4229, %v4225
        %v4366 = vpack.c.bf16 %v4230, %v4226
        %v4367 = vpack.c.bf16 %v4231, %v4227
        %v4368 = vpack.c.bf16 %v4236, %v4232
        %v4369 = vpack.c.bf16 %v4237, %v4233
        %v4370 = vpack.c.bf16 %v4238, %v4234
        %v4371 = vpack.c.bf16 %v4239, %v4235
        %v4372 = vpack.c.bf16 %v4244, %v4240
        %v4373 = vpack.c.bf16 %v4245, %v4241
        %v4374 = vpack.c.bf16 %v4246, %v4242
        %v4375 = vpack.c.bf16 %v4247, %v4243
        %v4376 = vld [vmem:[%s5] sm:$0xff]
        %v4377 = vld [vmem:[%s5 + $0x8] sm:$0xff]
        %v4378 = vld [vmem:[%s5 + $0x10] sm:$0xff]
        %v4379 = vld [vmem:[%s5 + $0x18] sm:$0xff]
        %v4380 = vld [vmem:[%s5 + $0x20] sm:$0xff]
        %v4381 = vld [vmem:[%s5 + $0x28] sm:$0xff]
        %v4382 = vld [vmem:[%s5 + $0x30] sm:$0xff]
        %v4383 = vld [vmem:[%s5 + $0x38] sm:$0xff]
        %v4384 = vld [vmem:[%s5 + $0x40] sm:$0xff]
        %v4385 = vld [vmem:[%s5 + $0x48] sm:$0xff]
        %v4386 = vld [vmem:[%s5 + $0x50] sm:$0xff]
        %v4387 = vld [vmem:[%s5 + $0x58] sm:$0xff]
        %v4388 = vld [vmem:[%s5 + $0x60] sm:$0xff]
        %v4389 = vld [vmem:[%s5 + $0x68] sm:$0xff]
        %v4390 = vld [vmem:[%s5 + $0x70] sm:$0xff]
        %v4391 = vld [vmem:[%s5 + $0x78] sm:$0xff]
        %v4392 = vld [vmem:[%s5 + $0x80] sm:$0xff]
        %v4393 = vld [vmem:[%s5 + $0x88] sm:$0xff]
        %v4394 = vld [vmem:[%s5 + $0x90] sm:$0xff]
        %v4395 = vld [vmem:[%s5 + $0x98] sm:$0xff]
        %v4396 = vld [vmem:[%s5 + $0xa0] sm:$0xff]
        %v4397 = vld [vmem:[%s5 + $0xa8] sm:$0xff]
        %v4398 = vld [vmem:[%s5 + $0xb0] sm:$0xff]
        %v4399 = vld [vmem:[%s5 + $0xb8] sm:$0xff]
        %v4400 = vld [vmem:[%s5 + $0xc0] sm:$0xff]
        %v4401 = vld [vmem:[%s5 + $0xc8] sm:$0xff]
        %v4402 = vld [vmem:[%s5 + $0xd0] sm:$0xff]
        %v4403 = vld [vmem:[%s5 + $0xd8] sm:$0xff]
        %v4404 = vld [vmem:[%s5 + $0xe0] sm:$0xff]
        %v4405 = vld [vmem:[%s5 + $0xe8] sm:$0xff]
        %v4406 = vld [vmem:[%s5 + $0xf0] sm:$0xff]
        %v4407 = vld [vmem:[%s5 + $0xf8] sm:$0xff]
        %v4408 = vld [vmem:[%s5 + $0x100] sm:$0xff]
        %v4409 = vld [vmem:[%s5 + $0x108] sm:$0xff]
        %v4410 = vld [vmem:[%s5 + $0x110] sm:$0xff]
        %v4411 = vld [vmem:[%s5 + $0x118] sm:$0xff]
        %v4412 = vld [vmem:[%s5 + $0x120] sm:$0xff]
        %v4413 = vld [vmem:[%s5 + $0x128] sm:$0xff]
        %v4414 = vld [vmem:[%s5 + $0x130] sm:$0xff]
        %v4415 = vld [vmem:[%s5 + $0x138] sm:$0xff]
        %v4416 = vld [vmem:[%s5 + $0x140] sm:$0xff]
        %v4417 = vld [vmem:[%s5 + $0x148] sm:$0xff]
        %v4418 = vld [vmem:[%s5 + $0x150] sm:$0xff]
        %v4419 = vld [vmem:[%s5 + $0x158] sm:$0xff]
        %v4420 = vld [vmem:[%s5 + $0x160] sm:$0xff]
        %v4421 = vld [vmem:[%s5 + $0x168] sm:$0xff]
        %v4422 = vld [vmem:[%s5 + $0x170] sm:$0xff]
        %v4423 = vld [vmem:[%s5 + $0x178] sm:$0xff]
        %v4424 = vld [vmem:[%s5 + $0x180] sm:$0xff]
        %v4425 = vld [vmem:[%s5 + $0x188] sm:$0xff]
        %v4426 = vld [vmem:[%s5 + $0x190] sm:$0xff]
        %v4427 = vld [vmem:[%s5 + $0x198] sm:$0xff]
        %v4428 = vld [vmem:[%s5 + $0x1a0] sm:$0xff]
        %v4429 = vld [vmem:[%s5 + $0x1a8] sm:$0xff]
        %v4430 = vld [vmem:[%s5 + $0x1b0] sm:$0xff]
        %v4431 = vld [vmem:[%s5 + $0x1b8] sm:$0xff]
        %v4432 = vld [vmem:[%s5 + $0x1c0] sm:$0xff]
        %v4433 = vld [vmem:[%s5 + $0x1c8] sm:$0xff]
        %v4434 = vld [vmem:[%s5 + $0x1d0] sm:$0xff]
        %v4435 = vld [vmem:[%s5 + $0x1d8] sm:$0xff]
        %v4436 = vld [vmem:[%s5 + $0x1e0] sm:$0xff]
        %v4437 = vld [vmem:[%s5 + $0x1e8] sm:$0xff]
        %v4438 = vld [vmem:[%s5 + $0x1f0] sm:$0xff]
        %v4439 = vld [vmem:[%s5 + $0x1f8] sm:$0xff]
        %v4440 = vld [vmem:[%s6] sm:$0x3]
        %v4442 = vlaneseq
        %v4443 = vshrl.u32 %v4442, 7
        %v4444 = vsub.s32 0, %v4443
        %v4445 = vrot.slane %v4440, %v4444
        %v4446 = vlaneseq
        %v4447 = vshrl.u32 %v4446, 7
        %v4448 = vsub.s32 1, %v4447
        %v4449 = vrot.slane %v4440, %v4448
        %v4516 = vunpack.c.l.b16 %v4376
        %v4517 = vunpack.c.h.b16 %v4376
        %v4518 = vunpack.c.l.b16 %v4377
        %v4519 = vunpack.c.h.b16 %v4377
        %v4520 = vunpack.c.l.b16 %v4378
        %v4521 = vunpack.c.h.b16 %v4378
        %v4522 = vunpack.c.l.b16 %v4379
        %v4523 = vunpack.c.h.b16 %v4379
        %v4524 = vunpack.c.l.b16 %v4380
        %v4525 = vunpack.c.h.b16 %v4380
        %v4526 = vunpack.c.l.b16 %v4381
        %v4527 = vunpack.c.h.b16 %v4381
        %v4528 = vunpack.c.l.b16 %v4382
        %v4529 = vunpack.c.h.b16 %v4382
        %v4530 = vunpack.c.l.b16 %v4383
        %v4531 = vunpack.c.h.b16 %v4383
        %v4532 = vunpack.c.l.b16 %v4384
        %v4533 = vunpack.c.h.b16 %v4384
        %v4534 = vunpack.c.l.b16 %v4385
        %v4535 = vunpack.c.h.b16 %v4385
        %v4536 = vunpack.c.l.b16 %v4386
        %v4537 = vunpack.c.h.b16 %v4386
        %v4538 = vunpack.c.l.b16 %v4387
        %v4539 = vunpack.c.h.b16 %v4387
        %v4540 = vunpack.c.l.b16 %v4388
        %v4541 = vunpack.c.h.b16 %v4388
        %v4542 = vunpack.c.l.b16 %v4389
        %v4543 = vunpack.c.h.b16 %v4389
        %v4544 = vunpack.c.l.b16 %v4390
        %v4545 = vunpack.c.h.b16 %v4390
        %v4546 = vunpack.c.l.b16 %v4391
        %v4547 = vunpack.c.h.b16 %v4391
        %v4548 = vunpack.c.l.b16 %v4392
        %v4549 = vunpack.c.h.b16 %v4392
        %v4550 = vunpack.c.l.b16 %v4393
        %v4551 = vunpack.c.h.b16 %v4393
        %v4552 = vunpack.c.l.b16 %v4394
        %v4553 = vunpack.c.h.b16 %v4394
        %v4554 = vunpack.c.l.b16 %v4395
        %v4555 = vunpack.c.h.b16 %v4395
        %v4556 = vunpack.c.l.b16 %v4396
        %v4557 = vunpack.c.h.b16 %v4396
        %v4558 = vunpack.c.l.b16 %v4397
        %v4559 = vunpack.c.h.b16 %v4397
        %v4560 = vunpack.c.l.b16 %v4398
        %v4561 = vunpack.c.h.b16 %v4398
        %v4562 = vunpack.c.l.b16 %v4399
        %v4563 = vunpack.c.h.b16 %v4399
        %v4564 = vunpack.c.l.b16 %v4400
        %v4565 = vunpack.c.h.b16 %v4400
        %v4566 = vunpack.c.l.b16 %v4401
        %v4567 = vunpack.c.h.b16 %v4401
        %v4568 = vunpack.c.l.b16 %v4402
        %v4569 = vunpack.c.h.b16 %v4402
        %v4570 = vunpack.c.l.b16 %v4403
        %v4571 = vunpack.c.h.b16 %v4403
        %v4572 = vunpack.c.l.b16 %v4404
        %v4573 = vunpack.c.h.b16 %v4404
        %v4574 = vunpack.c.l.b16 %v4405
        %v4575 = vunpack.c.h.b16 %v4405
        %v4576 = vunpack.c.l.b16 %v4406
        %v4577 = vunpack.c.h.b16 %v4406
        %v4578 = vunpack.c.l.b16 %v4407
        %v4579 = vunpack.c.h.b16 %v4407
        %v4580 = vunpack.c.l.b16 %v4408
        %v4581 = vunpack.c.h.b16 %v4408
        %v4582 = vunpack.c.l.b16 %v4409
        %v4583 = vunpack.c.h.b16 %v4409
        %v4584 = vunpack.c.l.b16 %v4410
        %v4585 = vunpack.c.h.b16 %v4410
        %v4586 = vunpack.c.l.b16 %v4411
        %v4587 = vunpack.c.h.b16 %v4411
        %v4588 = vunpack.c.l.b16 %v4412
        %v4589 = vunpack.c.h.b16 %v4412
        %v4590 = vunpack.c.l.b16 %v4413
        %v4591 = vunpack.c.h.b16 %v4413
        %v4592 = vunpack.c.l.b16 %v4414
        %v4593 = vunpack.c.h.b16 %v4414
        %v4594 = vunpack.c.l.b16 %v4415
        %v4595 = vunpack.c.h.b16 %v4415
        %v4596 = vunpack.c.l.b16 %v4416
        %v4597 = vunpack.c.h.b16 %v4416
        %v4598 = vunpack.c.l.b16 %v4417
        %v4599 = vunpack.c.h.b16 %v4417
        %v4600 = vunpack.c.l.b16 %v4418
        %v4601 = vunpack.c.h.b16 %v4418
        %v4602 = vunpack.c.l.b16 %v4419
        %v4603 = vunpack.c.h.b16 %v4419
        %v4604 = vunpack.c.l.b16 %v4420
        %v4605 = vunpack.c.h.b16 %v4420
        %v4606 = vunpack.c.l.b16 %v4421
        %v4607 = vunpack.c.h.b16 %v4421
        %v4608 = vunpack.c.l.b16 %v4422
        %v4609 = vunpack.c.h.b16 %v4422
        %v4610 = vunpack.c.l.b16 %v4423
        %v4611 = vunpack.c.h.b16 %v4423
        %v4612 = vunpack.c.l.b16 %v4424
        %v4613 = vunpack.c.h.b16 %v4424
        %v4614 = vunpack.c.l.b16 %v4425
        %v4615 = vunpack.c.h.b16 %v4425
        %v4616 = vunpack.c.l.b16 %v4426
        %v4617 = vunpack.c.h.b16 %v4426
        %v4618 = vunpack.c.l.b16 %v4427
        %v4619 = vunpack.c.h.b16 %v4427
        %v4620 = vunpack.c.l.b16 %v4428
        %v4621 = vunpack.c.h.b16 %v4428
        %v4622 = vunpack.c.l.b16 %v4429
        %v4623 = vunpack.c.h.b16 %v4429
        %v4624 = vunpack.c.l.b16 %v4430
        %v4625 = vunpack.c.h.b16 %v4430
        %v4626 = vunpack.c.l.b16 %v4431
        %v4627 = vunpack.c.h.b16 %v4431
        %v4628 = vunpack.c.l.b16 %v4432
        %v4629 = vunpack.c.h.b16 %v4432
        %v4630 = vunpack.c.l.b16 %v4433
        %v4631 = vunpack.c.h.b16 %v4433
        %v4632 = vunpack.c.l.b16 %v4434
        %v4633 = vunpack.c.h.b16 %v4434
        %v4634 = vunpack.c.l.b16 %v4435
        %v4635 = vunpack.c.h.b16 %v4435
        %v4636 = vunpack.c.l.b16 %v4436
        %v4637 = vunpack.c.h.b16 %v4436
        %v4638 = vunpack.c.l.b16 %v4437
        %v4639 = vunpack.c.h.b16 %v4437
        %v4640 = vunpack.c.l.b16 %v4438
        %v4641 = vunpack.c.h.b16 %v4438
        %v4642 = vunpack.c.l.b16 %v4439
        %v4643 = vunpack.c.h.b16 %v4439
        %v4644 = vpack.c.b16 %v4518, %v4516
        %v4645 = vpack.c.b16 %v4519, %v4517
        %v4646 = vpack.c.b16 %v4522, %v4520
        %v4647 = vpack.c.b16 %v4523, %v4521
        %v4648 = vpack.c.b16 %v4526, %v4524
        %v4649 = vpack.c.b16 %v4527, %v4525
        %v4650 = vpack.c.b16 %v4530, %v4528
        %v4651 = vpack.c.b16 %v4531, %v4529
        %v4652 = vpack.c.b16 %v4534, %v4532
        %v4653 = vpack.c.b16 %v4535, %v4533
        %v4654 = vpack.c.b16 %v4538, %v4536
        %v4655 = vpack.c.b16 %v4539, %v4537
        %v4656 = vpack.c.b16 %v4542, %v4540
        %v4657 = vpack.c.b16 %v4543, %v4541
        %v4658 = vpack.c.b16 %v4546, %v4544
        %v4659 = vpack.c.b16 %v4547, %v4545
        %v4660 = vpack.c.b16 %v4550, %v4548
        %v4661 = vpack.c.b16 %v4551, %v4549
        %v4662 = vpack.c.b16 %v4554, %v4552
        %v4663 = vpack.c.b16 %v4555, %v4553
        %v4664 = vpack.c.b16 %v4558, %v4556
        %v4665 = vpack.c.b16 %v4559, %v4557
        %v4666 = vpack.c.b16 %v4562, %v4560
        %v4667 = vpack.c.b16 %v4563, %v4561
        %v4668 = vpack.c.b16 %v4566, %v4564
        %v4669 = vpack.c.b16 %v4567, %v4565
        %v4670 = vpack.c.b16 %v4570, %v4568
        %v4671 = vpack.c.b16 %v4571, %v4569
        %v4672 = vpack.c.b16 %v4574, %v4572
        %v4673 = vpack.c.b16 %v4575, %v4573
        %v4674 = vpack.c.b16 %v4578, %v4576
        %v4675 = vpack.c.b16 %v4579, %v4577
        %v4676 = vpack.c.b16 %v4582, %v4580
        %v4677 = vpack.c.b16 %v4583, %v4581
        %v4678 = vpack.c.b16 %v4586, %v4584
        %v4679 = vpack.c.b16 %v4587, %v4585
        %v4680 = vpack.c.b16 %v4590, %v4588
        %v4681 = vpack.c.b16 %v4591, %v4589
        %v4682 = vpack.c.b16 %v4594, %v4592
        %v4683 = vpack.c.b16 %v4595, %v4593
        %v4684 = vpack.c.b16 %v4598, %v4596
        %v4685 = vpack.c.b16 %v4599, %v4597
        %v4686 = vpack.c.b16 %v4602, %v4600
        %v4687 = vpack.c.b16 %v4603, %v4601
        %v4688 = vpack.c.b16 %v4606, %v4604
        %v4689 = vpack.c.b16 %v4607, %v4605
        %v4690 = vpack.c.b16 %v4610, %v4608
        %v4691 = vpack.c.b16 %v4611, %v4609
        %v4692 = vpack.c.b16 %v4614, %v4612
        %v4693 = vpack.c.b16 %v4615, %v4613
        %v4694 = vpack.c.b16 %v4618, %v4616
        %v4695 = vpack.c.b16 %v4619, %v4617
        %v4696 = vpack.c.b16 %v4622, %v4620
        %v4697 = vpack.c.b16 %v4623, %v4621
        %v4698 = vpack.c.b16 %v4626, %v4624
        %v4699 = vpack.c.b16 %v4627, %v4625
        %v4700 = vpack.c.b16 %v4630, %v4628
        %v4701 = vpack.c.b16 %v4631, %v4629
        %v4702 = vpack.c.b16 %v4634, %v4632
        %v4703 = vpack.c.b16 %v4635, %v4633
        %v4704 = vpack.c.b16 %v4638, %v4636
        %v4705 = vpack.c.b16 %v4639, %v4637
        %v4706 = vpack.c.b16 %v4642, %v4640
        %v4707 = vpack.c.b16 %v4643, %v4641
        %4772 = vmatprep.subr.bf16.mxu0 %v4645
        %4773 = vmatpush1.bf16.msra.mxu0 %v4644
        %4774 = vmatprep.subr.bf16.mxu0 %v4647
        %4775 = vmatpush1.bf16.msra.mxu0 %v4646
        %4776 = vmatprep.subr.bf16.mxu0 %v4649
        %4777 = vmatpush1.bf16.msra.mxu0 %v4648
        %4778 = vmatprep.subr.bf16.mxu0 %v4651
        %4779 = vmatpush1.bf16.msra.mxu0 %v4650
        %4780 = vmatprep.subr.bf16.mxu0 %v4653
        %4781 = vmatpush1.bf16.msra.mxu0 %v4652
        %4782 = vmatprep.subr.bf16.mxu0 %v4655
        %4783 = vmatpush1.bf16.msra.mxu0 %v4654
        %4784 = vmatprep.subr.bf16.mxu0 %v4657
        %4785 = vmatpush1.bf16.msra.mxu0 %v4656
        %4786 = vmatprep.subr.bf16.mxu0 %v4659
        %4787 = vmatpush1.bf16.msra.mxu0 %v4658
        %4788 = vmatprep.subr.bf16.mxu0 %v4661
        %4789 = vmatpush1.bf16.msra.mxu0 %v4660
        %4790 = vmatprep.subr.bf16.mxu0 %v4663
        %4791 = vmatpush1.bf16.msra.mxu0 %v4662
        %4792 = vmatprep.subr.bf16.mxu0 %v4665
        %4793 = vmatpush1.bf16.msra.mxu0 %v4664
        %4794 = vmatprep.subr.bf16.mxu0 %v4667
        %4795 = vmatpush1.bf16.msra.mxu0 %v4666
        %4796 = vmatprep.subr.bf16.mxu0 %v4669
        %4797 = vmatpush1.bf16.msra.mxu0 %v4668
        %4798 = vmatprep.subr.bf16.mxu0 %v4671
        %4799 = vmatpush1.bf16.msra.mxu0 %v4670
        %4800 = vmatprep.subr.bf16.mxu0 %v4673
        %4801 = vmatpush1.bf16.msra.mxu0 %v4672
        %4802 = vmatprep.subr.bf16.mxu0 %v4675
        %4803 = vmatpush1.bf16.msra.mxu0 %v4674
        %4804 = vmatprep.mubr.bf16.mxu0 %v4249
        %4805 = vmatmul.mubr.bf16.gmra.mrb[0].mxu0 %v4248
        %v4806 = vpop.f32.mrb[0].mxu0
        %v4807 = vadd.f32 %v4445, %v4806
        %v4808 = vpop.f32.mrb[0].mxu0
        %v4809 = vadd.f32 %v4449, %v4808
        %v4810 = vpop.f32.mrb[0].mxu0
        %v4811 = vadd.f32 %v4445, %v4810
        %v4812 = vpop.f32.mrb[0].mxu0
        %v4813 = vadd.f32 %v4449, %v4812
        %4814 = vmatprep.mubr.bf16.mxu0 %v4253
        %4815 = vmatmul.mubr.bf16.gmra.mrb[0].mxu0 %v4252
        %v4816 = vpop.f32.mrb[0].mxu0
        %v4817 = vadd.f32 %v4445, %v4816
        %v4818 = vpop.f32.mrb[0].mxu0
        %v4819 = vadd.f32 %v4449, %v4818
        %v4820 = vpop.f32.mrb[0].mxu0
        %v4821 = vadd.f32 %v4445, %v4820
        %v4822 = vpop.f32.mrb[0].mxu0
        %v4823 = vadd.f32 %v4449, %v4822
        %4824 = vmatprep.mubr.bf16.mxu0 %v4257
        %4825 = vmatmul.mubr.bf16.gmra.mrb[0].mxu0 %v4256
        %v4826 = vpop.f32.mrb[0].mxu0
        %v4827 = vadd.f32 %v4445, %v4826
        %v4828 = vpop.f32.mrb[0].mxu0
        %v4829 = vadd.f32 %v4449, %v4828
        %v4830 = vpop.f32.mrb[0].mxu0
        %v4831 = vadd.f32 %v4445, %v4830
        %v4832 = vpop.f32.mrb[0].mxu0
        %v4833 = vadd.f32 %v4449, %v4832
        %4834 = vmatprep.mubr.bf16.mxu0 %v4261
        %4835 = vmatmul.mubr.bf16.gmra.mrb[0].mxu0 %v4260
        %v4836 = vpop.f32.mrb[0].mxu0
        %v4837 = vadd.f32 %v4445, %v4836
        %v4838 = vpop.f32.mrb[0].mxu0
        %v4839 = vadd.f32 %v4449, %v4838
        %v4840 = vpop.f32.mrb[0].mxu0
        %v4841 = vadd.f32 %v4445, %v4840
        %v4842 = vpop.f32.mrb[0].mxu0
        %v4843 = vadd.f32 %v4449, %v4842
        %4844 = vmatprep.mubr.bf16.mxu0 %v4265
        %4845 = vmatmul.mubr.bf16.gmra.mrb[0].mxu0 %v4264
        %v4846 = vpop.f32.mrb[0].mxu0
        %v4847 = vadd.f32 %v4445, %v4846
        %v4848 = vpop.f32.mrb[0].mxu0
        %v4849 = vadd.f32 %v4449, %v4848
        %v4850 = vpop.f32.mrb[0].mxu0
        %v4851 = vadd.f32 %v4445, %v4850
        %v4852 = vpop.f32.mrb[0].mxu0
        %v4853 = vadd.f32 %v4449, %v4852
        %4854 = vmatprep.mubr.bf16.mxu0 %v4269
        %4855 = vmatmul.mubr.bf16.gmra.mrb[0].mxu0 %v4268
        %v4856 = vpop.f32.mrb[0].mxu0
        %v4857 = vadd.f32 %v4445, %v4856
        %v4858 = vpop.f32.mrb[0].mxu0
        %v4859 = vadd.f32 %v4449, %v4858
        %v4860 = vpop.f32.mrb[0].mxu0
        %v4861 = vadd.f32 %v4445, %v4860
        %v4862 = vpop.f32.mrb[0].mxu0
        %v4863 = vadd.f32 %v4449, %v4862
        %4864 = vmatprep.mubr.bf16.mxu0 %v4273
        %4865 = vmatmul.mubr.bf16.gmra.mrb[0].mxu0 %v4272
        %v4866 = vpop.f32.mrb[0].mxu0
        %v4867 = vadd.f32 %v4445, %v4866
        %v4868 = vpop.f32.mrb[0].mxu0
        %v4869 = vadd.f32 %v4449, %v4868
        %v4870 = vpop.f32.mrb[0].mxu0
        %v4871 = vadd.f32 %v4445, %v4870
        %v4872 = vpop.f32.mrb[0].mxu0
        %v4873 = vadd.f32 %v4449, %v4872
        %4874 = vmatprep.mubr.bf16.mxu0 %v4277
        %4875 = vmatmul.mubr.bf16.gmra.mrb[0].mxu0 %v4276
        %v4876 = vpop.f32.mrb[0].mxu0
        %v4877 = vadd.f32 %v4445, %v4876
        %v4878 = vpop.f32.mrb[0].mxu0
        %v4879 = vadd.f32 %v4449, %v4878
        %v4880 = vpop.f32.mrb[0].mxu0
        %v4881 = vadd.f32 %v4445, %v4880
        %v4882 = vpop.f32.mrb[0].mxu0
        %v4883 = vadd.f32 %v4449, %v4882
        %4884 = vmatprep.mubr.bf16.mxu0 %v4281
        %4885 = vmatmul.mubr.bf16.gmra.mrb[0].mxu0 %v4280
        %v4886 = vpop.f32.mrb[0].mxu0
        %v4887 = vadd.f32 %v4445, %v4886
        %v4888 = vpop.f32.mrb[0].mxu0
        %v4889 = vadd.f32 %v4449, %v4888
        %v4890 = vpop.f32.mrb[0].mxu0
        %v4891 = vadd.f32 %v4445, %v4890
        %v4892 = vpop.f32.mrb[0].mxu0
        %v4893 = vadd.f32 %v4449, %v4892
        %4894 = vmatprep.mubr.bf16.mxu0 %v4285
        %4895 = vmatmul.mubr.bf16.gmra.mrb[0].mxu0 %v4284
        %v4896 = vpop.f32.mrb[0].mxu0
        %v4897 = vadd.f32 %v4445, %v4896
        %v4898 = vpop.f32.mrb[0].mxu0
        %v4899 = vadd.f32 %v4449, %v4898
        %v4900 = vpop.f32.mrb[0].mxu0
        %v4901 = vadd.f32 %v4445, %v4900
        %v4902 = vpop.f32.mrb[0].mxu0
        %v4903 = vadd.f32 %v4449, %v4902
        %4904 = vmatprep.mubr.bf16.mxu0 %v4289
        %4905 = vmatmul.mubr.bf16.gmra.mrb[0].mxu0 %v4288
        %v4906 = vpop.f32.mrb[0].mxu0
        %v4907 = vadd.f32 %v4445, %v4906
        %v4908 = vpop.f32.mrb[0].mxu0
        %v4909 = vadd.f32 %v4449, %v4908
        %v4910 = vpop.f32.mrb[0].mxu0
        %v4911 = vadd.f32 %v4445, %v4910
        %v4912 = vpop.f32.mrb[0].mxu0
        %v4913 = vadd.f32 %v4449, %v4912
        %4914 = vmatprep.mubr.bf16.mxu0 %v4293
        %4915 = vmatmul.mubr.bf16.gmra.mrb[0].mxu0 %v4292
        %v4916 = vpop.f32.mrb[0].mxu0
        %v4917 = vadd.f32 %v4445, %v4916
        %v4918 = vpop.f32.mrb[0].mxu0
        %v4919 = vadd.f32 %v4449, %v4918
        %v4920 = vpop.f32.mrb[0].mxu0
        %v4921 = vadd.f32 %v4445, %v4920
        %v4922 = vpop.f32.mrb[0].mxu0
        %v4923 = vadd.f32 %v4449, %v4922
        %4924 = vmatprep.mubr.bf16.mxu0 %v4297
        %4925 = vmatmul.mubr.bf16.gmra.mrb[0].mxu0 %v4296
        %v4926 = vpop.f32.mrb[0].mxu0
        %v4927 = vadd.f32 %v4445, %v4926
        %v4928 = vpop.f32.mrb[0].mxu0
        %v4929 = vadd.f32 %v4449, %v4928
        %v4930 = vpop.f32.mrb[0].mxu0
        %v4931 = vadd.f32 %v4445, %v4930
        %v4932 = vpop.f32.mrb[0].mxu0
        %v4933 = vadd.f32 %v4449, %v4932
        %4934 = vmatprep.mubr.bf16.mxu0 %v4301
        %4935 = vmatmul.mubr.bf16.gmra.mrb[0].mxu0 %v4300
        %v4936 = vpop.f32.mrb[0].mxu0
        %v4937 = vadd.f32 %v4445, %v4936
        %v4938 = vpop.f32.mrb[0].mxu0
        %v4939 = vadd.f32 %v4449, %v4938
        %v4940 = vpop.f32.mrb[0].mxu0
        %v4941 = vadd.f32 %v4445, %v4940
        %v4942 = vpop.f32.mrb[0].mxu0
        %v4943 = vadd.f32 %v4449, %v4942
        %4944 = vmatprep.mubr.bf16.mxu0 %v4305
        %4945 = vmatmul.mubr.bf16.gmra.mrb[0].mxu0 %v4304
        %v4946 = vpop.f32.mrb[0].mxu0
        %v4947 = vadd.f32 %v4445, %v4946
        %v4948 = vpop.f32.mrb[0].mxu0
        %v4949 = vadd.f32 %v4449, %v4948
        %v4950 = vpop.f32.mrb[0].mxu0
        %v4951 = vadd.f32 %v4445, %v4950
        %v4952 = vpop.f32.mrb[0].mxu0
        %v4953 = vadd.f32 %v4449, %v4952
        %4954 = vmatprep.mubr.bf16.mxu0 %v4309
        %4955 = vmatmul.mubr.bf16.gmra.mrb[0].mxu0 %v4308
        %v4956 = vpop.f32.mrb[0].mxu0
        %v4957 = vadd.f32 %v4445, %v4956
        %v4958 = vpop.f32.mrb[0].mxu0
        %v4959 = vadd.f32 %v4449, %v4958
        %v4960 = vpop.f32.mrb[0].mxu0
        %v4961 = vadd.f32 %v4445, %v4960
        %v4962 = vpop.f32.mrb[0].mxu0
        %v4963 = vadd.f32 %v4449, %v4962
        %4964 = vmatprep.mubr.bf16.mxu0 %v4313
        %4965 = vmatmul.mubr.bf16.gmra.mrb[0].mxu0 %v4312
        %v4966 = vpop.f32.mrb[0].mxu0
        %v4967 = vadd.f32 %v4445, %v4966
        %v4968 = vpop.f32.mrb[0].mxu0
        %v4969 = vadd.f32 %v4449, %v4968
        %v4970 = vpop.f32.mrb[0].mxu0
        %v4971 = vadd.f32 %v4445, %v4970
        %v4972 = vpop.f32.mrb[0].mxu0
        %v4973 = vadd.f32 %v4449, %v4972
        %4974 = vmatprep.mubr.bf16.mxu0 %v4317
        %4975 = vmatmul.mubr.bf16.gmra.mrb[0].mxu0 %v4316
        %v4976 = vpop.f32.mrb[0].mxu0
        %v4977 = vadd.f32 %v4445, %v4976
        %v4978 = vpop.f32.mrb[0].mxu0
        %v4979 = vadd.f32 %v4449, %v4978
        %v4980 = vpop.f32.mrb[0].mxu0
        %v4981 = vadd.f32 %v4445, %v4980
        %v4982 = vpop.f32.mrb[0].mxu0
        %v4983 = vadd.f32 %v4449, %v4982
        %4984 = vmatprep.mubr.bf16.mxu0 %v4321
        %4985 = vmatmul.mubr.bf16.gmra.mrb[0].mxu0 %v4320
        %v4986 = vpop.f32.mrb[0].mxu0
        %v4987 = vadd.f32 %v4445, %v4986
        %v4988 = vpop.f32.mrb[0].mxu0
        %v4989 = vadd.f32 %v4449, %v4988
        %v4990 = vpop.f32.mrb[0].mxu0
        %v4991 = vadd.f32 %v4445, %v4990
        %v4992 = vpop.f32.mrb[0].mxu0
        %v4993 = vadd.f32 %v4449, %v4992
        %4994 = vmatprep.mubr.bf16.mxu0 %v4325
        %4995 = vmatmul.mubr.bf16.gmra.mrb[0].mxu0 %v4324
        %v4996 = vpop.f32.mrb[0].mxu0
        %v4997 = vadd.f32 %v4445, %v4996
        %v4998 = vpop.f32.mrb[0].mxu0
        %v4999 = vadd.f32 %v4449, %v4998
        %v5000 = vpop.f32.mrb[0].mxu0
        %v5001 = vadd.f32 %v4445, %v5000
        %v5002 = vpop.f32.mrb[0].mxu0
        %v5003 = vadd.f32 %v4449, %v5002
        %5004 = vmatprep.mubr.bf16.mxu0 %v4329
        %5005 = vmatmul.mubr.bf16.gmra.mrb[0].mxu0 %v4328
        %v5006 = vpop.f32.mrb[0].mxu0
        %v5007 = vadd.f32 %v4445, %v5006
        %v5008 = vpop.f32.mrb[0].mxu0
        %v5009 = vadd.f32 %v4449, %v5008
        %v5010 = vpop.f32.mrb[0].mxu0
        %v5011 = vadd.f32 %v4445, %v5010
        %v5012 = vpop.f32.mrb[0].mxu0
        %v5013 = vadd.f32 %v4449, %v5012
        %5014 = vmatprep.mubr.bf16.mxu0 %v4333
        %5015 = vmatmul.mubr.bf16.gmra.mrb[0].mxu0 %v4332
        %v5016 = vpop.f32.mrb[0].mxu0
        %v5017 = vadd.f32 %v4445, %v5016
        %v5018 = vpop.f32.mrb[0].mxu0
        %v5019 = vadd.f32 %v4449, %v5018
        %v5020 = vpop.f32.mrb[0].mxu0
        %v5021 = vadd.f32 %v4445, %v5020
        %v5022 = vpop.f32.mrb[0].mxu0
        %v5023 = vadd.f32 %v4449, %v5022
        %5024 = vmatprep.mubr.bf16.mxu0 %v4337
        %5025 = vmatmul.mubr.bf16.gmra.mrb[0].mxu0 %v4336
        %v5026 = vpop.f32.mrb[0].mxu0
        %v5027 = vadd.f32 %v4445, %v5026
        %v5028 = vpop.f32.mrb[0].mxu0
        %v5029 = vadd.f32 %v4449, %v5028
        %v5030 = vpop.f32.mrb[0].mxu0
        %v5031 = vadd.f32 %v4445, %v5030
        %v5032 = vpop.f32.mrb[0].mxu0
        %v5033 = vadd.f32 %v4449, %v5032
        %5034 = vmatprep.mubr.bf16.mxu0 %v4341
        %5035 = vmatmul.mubr.bf16.gmra.mrb[0].mxu0 %v4340
        %v5036 = vpop.f32.mrb[0].mxu0
        %v5037 = vadd.f32 %v4445, %v5036
        %v5038 = vpop.f32.mrb[0].mxu0
        %v5039 = vadd.f32 %v4449, %v5038
        %v5040 = vpop.f32.mrb[0].mxu0
        %v5041 = vadd.f32 %v4445, %v5040
        %v5042 = vpop.f32.mrb[0].mxu0
        %v5043 = vadd.f32 %v4449, %v5042
        %5044 = vmatprep.mubr.bf16.mxu0 %v4345
        %5045 = vmatmul.mubr.bf16.gmra.mrb[0].mxu0 %v4344
        %v5046 = vpop.f32.mrb[0].mxu0
        %v5047 = vadd.f32 %v4445, %v5046
        %v5048 = vpop.f32.mrb[0].mxu0
        %v5049 = vadd.f32 %v4449, %v5048
        %v5050 = vpop.f32.mrb[0].mxu0
        %v5051 = vadd.f32 %v4445, %v5050
        %v5052 = vpop.f32.mrb[0].mxu0
        %v5053 = vadd.f32 %v4449, %v5052
        %5054 = vmatprep.mubr.bf16.mxu0 %v4349
        %5055 = vmatmul.mubr.bf16.gmra.mrb[0].mxu0 %v4348
        %v5056 = vpop.f32.mrb[0].mxu0
        %v5057 = vadd.f32 %v4445, %v5056
        %v5058 = vpop.f32.mrb[0].mxu0
        %v5059 = vadd.f32 %v4449, %v5058
        %v5060 = vpop.f32.mrb[0].mxu0
        %v5061 = vadd.f32 %v4445, %v5060
        %v5062 = vpop.f32.mrb[0].mxu0
        %v5063 = vadd.f32 %v4449, %v5062
        %5064 = vmatprep.mubr.bf16.mxu0 %v4353
        %5065 = vmatmul.mubr.bf16.gmra.mrb[0].mxu0 %v4352
        %v5066 = vpop.f32.mrb[0].mxu0
        %v5067 = vadd.f32 %v4445, %v5066
        %v5068 = vpop.f32.mrb[0].mxu0
        %v5069 = vadd.f32 %v4449, %v5068
        %v5070 = vpop.f32.mrb[0].mxu0
        %v5071 = vadd.f32 %v4445, %v5070
        %v5072 = vpop.f32.mrb[0].mxu0
        %v5073 = vadd.f32 %v4449, %v5072
        %5074 = vmatprep.mubr.bf16.mxu0 %v4357
        %5075 = vmatmul.mubr.bf16.gmra.mrb[0].mxu0 %v4356
        %v5076 = vpop.f32.mrb[0].mxu0
        %v5077 = vadd.f32 %v4445, %v5076
        %v5078 = vpop.f32.mrb[0].mxu0
        %v5079 = vadd.f32 %v4449, %v5078
        %v5080 = vpop.f32.mrb[0].mxu0
        %v5081 = vadd.f32 %v4445, %v5080
        %v5082 = vpop.f32.mrb[0].mxu0
        %v5083 = vadd.f32 %v4449, %v5082
        %5084 = vmatprep.mubr.bf16.mxu0 %v4361
        %5085 = vmatmul.mubr.bf16.gmra.mrb[0].mxu0 %v4360
        %v5086 = vpop.f32.mrb[0].mxu0
        %v5087 = vadd.f32 %v4445, %v5086
        %v5088 = vpop.f32.mrb[0].mxu0
        %v5089 = vadd.f32 %v4449, %v5088
        %v5090 = vpop.f32.mrb[0].mxu0
        %v5091 = vadd.f32 %v4445, %v5090
        %v5092 = vpop.f32.mrb[0].mxu0
        %v5093 = vadd.f32 %v4449, %v5092
        %5094 = vmatprep.mubr.bf16.mxu0 %v4365
        %5095 = vmatmul.mubr.bf16.gmra.mrb[0].mxu0 %v4364
        %v5096 = vpop.f32.mrb[0].mxu0
        %v5097 = vadd.f32 %v4445, %v5096
        %v5098 = vpop.f32.mrb[0].mxu0
        %v5099 = vadd.f32 %v4449, %v5098
        %v5100 = vpop.f32.mrb[0].mxu0
        %v5101 = vadd.f32 %v4445, %v5100
        %v5102 = vpop.f32.mrb[0].mxu0
        %v5103 = vadd.f32 %v4449, %v5102
        %5104 = vmatprep.mubr.bf16.mxu0 %v4369
        %5105 = vmatmul.mubr.bf16.gmra.mrb[0].mxu0 %v4368
        %v5106 = vpop.f32.mrb[0].mxu0
        %v5107 = vadd.f32 %v4445, %v5106
        %v5108 = vpop.f32.mrb[0].mxu0
        %v5109 = vadd.f32 %v4449, %v5108
        %v5110 = vpop.f32.mrb[0].mxu0
        %v5111 = vadd.f32 %v4445, %v5110
        %v5112 = vpop.f32.mrb[0].mxu0
        %v5113 = vadd.f32 %v4449, %v5112
        %5114 = vmatprep.mubr.bf16.mxu0 %v4373
        %5115 = vmatmul.mubr.bf16.gmra.mrb[0].mxu0 %v4372
        %v5116 = vpop.f32.mrb[0].mxu0
        %v5117 = vadd.f32 %v4445, %v5116
        %v5118 = vpop.f32.mrb[0].mxu0
        %v5119 = vadd.f32 %v4449, %v5118
        %v5120 = vpop.f32.mrb[0].mxu0
        %v5121 = vadd.f32 %v4445, %v5120
        %v5122 = vpop.f32.mrb[0].mxu0
        %v5123 = vadd.f32 %v4449, %v5122
        %5124 = vdwg.mxu0
        %5125 = vmatprep.subr.bf16.mxu0 %v4677
        %5126 = vmatpush1.bf16.msra.mxu0 %v4676
        %5127 = vmatprep.subr.bf16.mxu0 %v4679
        %5128 = vmatpush1.bf16.msra.mxu0 %v4678
        %5129 = vmatprep.subr.bf16.mxu0 %v4681
        %5130 = vmatpush1.bf16.msra.mxu0 %v4680
        %5131 = vmatprep.subr.bf16.mxu0 %v4683
        %5132 = vmatpush1.bf16.msra.mxu0 %v4682
        %5133 = vmatprep.subr.bf16.mxu0 %v4685
        %5134 = vmatpush1.bf16.msra.mxu0 %v4684
        %5135 = vmatprep.subr.bf16.mxu0 %v4687
        %5136 = vmatpush1.bf16.msra.mxu0 %v4686
        %5137 = vmatprep.subr.bf16.mxu0 %v4689
        %5138 = vmatpush1.bf16.msra.mxu0 %v4688
        %5139 = vmatprep.subr.bf16.mxu0 %v4691
        %5140 = vmatpush1.bf16.msra.mxu0 %v4690
        %5141 = vmatprep.subr.bf16.mxu0 %v4693
        %5142 = vmatpush1.bf16.msra.mxu0 %v4692
        %5143 = vmatprep.subr.bf16.mxu0 %v4695
        %5144 = vmatpush1.bf16.msra.mxu0 %v4694
        %5145 = vmatprep.subr.bf16.mxu0 %v4697
        %5146 = vmatpush1.bf16.msra.mxu0 %v4696
        %5147 = vmatprep.subr.bf16.mxu0 %v4699
        %5148 = vmatpush1.bf16.msra.mxu0 %v4698
        %5149 = vmatprep.subr.bf16.mxu0 %v4701
        %5150 = vmatpush1.bf16.msra.mxu0 %v4700
        %5151 = vmatprep.subr.bf16.mxu0 %v4703
        %5152 = vmatpush1.bf16.msra.mxu0 %v4702
        %5153 = vmatprep.subr.bf16.mxu0 %v4705
        %5154 = vmatpush1.bf16.msra.mxu0 %v4704
        %5155 = vmatprep.subr.bf16.mxu0 %v4707
        %5156 = vmatpush1.bf16.msra.mxu0 %v4706
        %5157 = vmatprep.mubr.bf16.mxu0 %v4251
        %5158 = vmatmul.mubr.bf16.gmra.mrb[0].mxu0 %v4250
        %v5159 = vpop.f32.mrb[0].mxu0
        %v5160 = vadd.f32 %v4807, %v5159
        %v5161 = vpop.f32.mrb[0].mxu0
        %v5162 = vadd.f32 %v4809, %v5161
        %v5163 = vpop.f32.mrb[0].mxu0
        %v5164 = vadd.f32 %v4811, %v5163
        %v5165 = vpop.f32.mrb[0].mxu0
        %v5166 = vadd.f32 %v4813, %v5165
        %5167 = vmatprep.mubr.bf16.mxu0 %v4255
        %5168 = vmatmul.mubr.bf16.gmra.mrb[0].mxu0 %v4254
        %v5169 = vpop.f32.mrb[0].mxu0
        %v5170 = vadd.f32 %v4817, %v5169
        %v5171 = vpop.f32.mrb[0].mxu0
        %v5172 = vadd.f32 %v4819, %v5171
        %v5173 = vpop.f32.mrb[0].mxu0
        %v5174 = vadd.f32 %v4821, %v5173
        %v5175 = vpop.f32.mrb[0].mxu0
        %v5176 = vadd.f32 %v4823, %v5175
        %5177 = vmatprep.mubr.bf16.mxu0 %v4259
        %5178 = vmatmul.mubr.bf16.gmra.mrb[0].mxu0 %v4258
        %v5179 = vpop.f32.mrb[0].mxu0
        %v5180 = vadd.f32 %v4827, %v5179
        %v5181 = vpop.f32.mrb[0].mxu0
        %v5182 = vadd.f32 %v4829, %v5181
        %v5183 = vpop.f32.mrb[0].mxu0
        %v5184 = vadd.f32 %v4831, %v5183
        %v5185 = vpop.f32.mrb[0].mxu0
        %v5186 = vadd.f32 %v4833, %v5185
        %5187 = vmatprep.mubr.bf16.mxu0 %v4263
        %5188 = vmatmul.mubr.bf16.gmra.mrb[0].mxu0 %v4262
        %v5189 = vpop.f32.mrb[0].mxu0
        %v5190 = vadd.f32 %v4837, %v5189
        %v5191 = vpop.f32.mrb[0].mxu0
        %v5192 = vadd.f32 %v4839, %v5191
        %v5193 = vpop.f32.mrb[0].mxu0
        %v5194 = vadd.f32 %v4841, %v5193
        %v5195 = vpop.f32.mrb[0].mxu0
        %v5196 = vadd.f32 %v4843, %v5195
        %5197 = vmatprep.mubr.bf16.mxu0 %v4267
        %5198 = vmatmul.mubr.bf16.gmra.mrb[0].mxu0 %v4266
        %v5199 = vpop.f32.mrb[0].mxu0
        %v5200 = vadd.f32 %v4847, %v5199
        %v5201 = vpop.f32.mrb[0].mxu0
        %v5202 = vadd.f32 %v4849, %v5201
        %v5203 = vpop.f32.mrb[0].mxu0
        %v5204 = vadd.f32 %v4851, %v5203
        %v5205 = vpop.f32.mrb[0].mxu0
        %v5206 = vadd.f32 %v4853, %v5205
        %5207 = vmatprep.mubr.bf16.mxu0 %v4271
        %5208 = vmatmul.mubr.bf16.gmra.mrb[0].mxu0 %v4270
        %v5209 = vpop.f32.mrb[0].mxu0
        %v5210 = vadd.f32 %v4857, %v5209
        %v5211 = vpop.f32.mrb[0].mxu0
        %v5212 = vadd.f32 %v4859, %v5211
        %v5213 = vpop.f32.mrb[0].mxu0
        %v5214 = vadd.f32 %v4861, %v5213
        %v5215 = vpop.f32.mrb[0].mxu0
        %v5216 = vadd.f32 %v4863, %v5215
        %5217 = vmatprep.mubr.bf16.mxu0 %v4275
        %5218 = vmatmul.mubr.bf16.gmra.mrb[0].mxu0 %v4274
        %v5219 = vpop.f32.mrb[0].mxu0
        %v5220 = vadd.f32 %v4867, %v5219
        %v5221 = vpop.f32.mrb[0].mxu0
        %v5222 = vadd.f32 %v4869, %v5221
        %v5223 = vpop.f32.mrb[0].mxu0
        %v5224 = vadd.f32 %v4871, %v5223
        %v5225 = vpop.f32.mrb[0].mxu0
        %v5226 = vadd.f32 %v4873, %v5225
        %5227 = vmatprep.mubr.bf16.mxu0 %v4279
        %5228 = vmatmul.mubr.bf16.gmra.mrb[0].mxu0 %v4278
        %v5229 = vpop.f32.mrb[0].mxu0
        %v5230 = vadd.f32 %v4877, %v5229
        %v5231 = vpop.f32.mrb[0].mxu0
        %v5232 = vadd.f32 %v4879, %v5231
        %v5233 = vpop.f32.mrb[0].mxu0
        %v5234 = vadd.f32 %v4881, %v5233
        %v5235 = vpop.f32.mrb[0].mxu0
        %v5236 = vadd.f32 %v4883, %v5235
        %5237 = vmatprep.mubr.bf16.mxu0 %v4283
        %5238 = vmatmul.mubr.bf16.gmra.mrb[0].mxu0 %v4282
        %v5239 = vpop.f32.mrb[0].mxu0
        %v5240 = vadd.f32 %v4887, %v5239
        %v5241 = vpop.f32.mrb[0].mxu0
        %v5242 = vadd.f32 %v4889, %v5241
        %v5243 = vpop.f32.mrb[0].mxu0
        %v5244 = vadd.f32 %v4891, %v5243
        %v5245 = vpop.f32.mrb[0].mxu0
        %v5246 = vadd.f32 %v4893, %v5245
        %5247 = vmatprep.mubr.bf16.mxu0 %v4287
        %5248 = vmatmul.mubr.bf16.gmra.mrb[0].mxu0 %v4286
        %v5249 = vpop.f32.mrb[0].mxu0
        %v5250 = vadd.f32 %v4897, %v5249
        %v5251 = vpop.f32.mrb[0].mxu0
        %v5252 = vadd.f32 %v4899, %v5251
        %v5253 = vpop.f32.mrb[0].mxu0
        %v5254 = vadd.f32 %v4901, %v5253
        %v5255 = vpop.f32.mrb[0].mxu0
        %v5256 = vadd.f32 %v4903, %v5255
        %5257 = vmatprep.mubr.bf16.mxu0 %v4291
        %5258 = vmatmul.mubr.bf16.gmra.mrb[0].mxu0 %v4290
        %v5259 = vpop.f32.mrb[0].mxu0
        %v5260 = vadd.f32 %v4907, %v5259
        %v5261 = vpop.f32.mrb[0].mxu0
        %v5262 = vadd.f32 %v4909, %v5261
        %v5263 = vpop.f32.mrb[0].mxu0
        %v5264 = vadd.f32 %v4911, %v5263
        %v5265 = vpop.f32.mrb[0].mxu0
        %v5266 = vadd.f32 %v4913, %v5265
        %5267 = vmatprep.mubr.bf16.mxu0 %v4295
        %5268 = vmatmul.mubr.bf16.gmra.mrb[0].mxu0 %v4294
        %v5269 = vpop.f32.mrb[0].mxu0
        %v5270 = vadd.f32 %v4917, %v5269
        %v5271 = vpop.f32.mrb[0].mxu0
        %v5272 = vadd.f32 %v4919, %v5271
        %v5273 = vpop.f32.mrb[0].mxu0
        %v5274 = vadd.f32 %v4921, %v5273
        %v5275 = vpop.f32.mrb[0].mxu0
        %v5276 = vadd.f32 %v4923, %v5275
        %5277 = vmatprep.mubr.bf16.mxu0 %v4299
        %5278 = vmatmul.mubr.bf16.gmra.mrb[0].mxu0 %v4298
        %v5279 = vpop.f32.mrb[0].mxu0
        %v5280 = vadd.f32 %v4927, %v5279
        %v5281 = vpop.f32.mrb[0].mxu0
        %v5282 = vadd.f32 %v4929, %v5281
        %v5283 = vpop.f32.mrb[0].mxu0
        %v5284 = vadd.f32 %v4931, %v5283
        %v5285 = vpop.f32.mrb[0].mxu0
        %v5286 = vadd.f32 %v4933, %v5285
        %5287 = vmatprep.mubr.bf16.mxu0 %v4303
        %5288 = vmatmul.mubr.bf16.gmra.mrb[0].mxu0 %v4302
        %v5289 = vpop.f32.mrb[0].mxu0
        %v5290 = vadd.f32 %v4937, %v5289
        %v5291 = vpop.f32.mrb[0].mxu0
        %v5292 = vadd.f32 %v4939, %v5291
        %v5293 = vpop.f32.mrb[0].mxu0
        %v5294 = vadd.f32 %v4941, %v5293
        %v5295 = vpop.f32.mrb[0].mxu0
        %v5296 = vadd.f32 %v4943, %v5295
        %5297 = vmatprep.mubr.bf16.mxu0 %v4307
        %5298 = vmatmul.mubr.bf16.gmra.mrb[0].mxu0 %v4306
        %v5299 = vpop.f32.mrb[0].mxu0
        %v5300 = vadd.f32 %v4947, %v5299
        %v5301 = vpop.f32.mrb[0].mxu0
        %v5302 = vadd.f32 %v4949, %v5301
        %v5303 = vpop.f32.mrb[0].mxu0
        %v5304 = vadd.f32 %v4951, %v5303
        %v5305 = vpop.f32.mrb[0].mxu0
        %v5306 = vadd.f32 %v4953, %v5305
        %5307 = vmatprep.mubr.bf16.mxu0 %v4311
        %5308 = vmatmul.mubr.bf16.gmra.mrb[0].mxu0 %v4310
        %v5309 = vpop.f32.mrb[0].mxu0
        %v5310 = vadd.f32 %v4957, %v5309
        %v5311 = vpop.f32.mrb[0].mxu0
        %v5312 = vadd.f32 %v4959, %v5311
        %v5313 = vpop.f32.mrb[0].mxu0
        %v5314 = vadd.f32 %v4961, %v5313
        %v5315 = vpop.f32.mrb[0].mxu0
        %v5316 = vadd.f32 %v4963, %v5315
        %5317 = vmatprep.mubr.bf16.mxu0 %v4315
        %5318 = vmatmul.mubr.bf16.gmra.mrb[0].mxu0 %v4314
        %v5319 = vpop.f32.mrb[0].mxu0
        %v5320 = vadd.f32 %v4967, %v5319
        %v5321 = vpop.f32.mrb[0].mxu0
        %v5322 = vadd.f32 %v4969, %v5321
        %v5323 = vpop.f32.mrb[0].mxu0
        %v5324 = vadd.f32 %v4971, %v5323
        %v5325 = vpop.f32.mrb[0].mxu0
        %v5326 = vadd.f32 %v4973, %v5325
        %5327 = vmatprep.mubr.bf16.mxu0 %v4319
        %5328 = vmatmul.mubr.bf16.gmra.mrb[0].mxu0 %v4318
        %v5329 = vpop.f32.mrb[0].mxu0
        %v5330 = vadd.f32 %v4977, %v5329
        %v5331 = vpop.f32.mrb[0].mxu0
        %v5332 = vadd.f32 %v4979, %v5331
        %v5333 = vpop.f32.mrb[0].mxu0
        %v5334 = vadd.f32 %v4981, %v5333
        %v5335 = vpop.f32.mrb[0].mxu0
        %v5336 = vadd.f32 %v4983, %v5335
        %5337 = vmatprep.mubr.bf16.mxu0 %v4323
        %5338 = vmatmul.mubr.bf16.gmra.mrb[0].mxu0 %v4322
        %v5339 = vpop.f32.mrb[0].mxu0
        %v5340 = vadd.f32 %v4987, %v5339
        %v5341 = vpop.f32.mrb[0].mxu0
        %v5342 = vadd.f32 %v4989, %v5341
        %v5343 = vpop.f32.mrb[0].mxu0
        %v5344 = vadd.f32 %v4991, %v5343
        %v5345 = vpop.f32.mrb[0].mxu0
        %v5346 = vadd.f32 %v4993, %v5345
        %5347 = vmatprep.mubr.bf16.mxu0 %v4327
        %5348 = vmatmul.mubr.bf16.gmra.mrb[0].mxu0 %v4326
        %v5349 = vpop.f32.mrb[0].mxu0
        %v5350 = vadd.f32 %v4997, %v5349
        %v5351 = vpop.f32.mrb[0].mxu0
        %v5352 = vadd.f32 %v4999, %v5351
        %v5353 = vpop.f32.mrb[0].mxu0
        %v5354 = vadd.f32 %v5001, %v5353
        %v5355 = vpop.f32.mrb[0].mxu0
        %v5356 = vadd.f32 %v5003, %v5355
        %5357 = vmatprep.mubr.bf16.mxu0 %v4331
        %5358 = vmatmul.mubr.bf16.gmra.mrb[0].mxu0 %v4330
        %v5359 = vpop.f32.mrb[0].mxu0
        %v5360 = vadd.f32 %v5007, %v5359
        %v5361 = vpop.f32.mrb[0].mxu0
        %v5362 = vadd.f32 %v5009, %v5361
        %v5363 = vpop.f32.mrb[0].mxu0
        %v5364 = vadd.f32 %v5011, %v5363
        %v5365 = vpop.f32.mrb[0].mxu0
        %v5366 = vadd.f32 %v5013, %v5365
        %5367 = vmatprep.mubr.bf16.mxu0 %v4335
        %5368 = vmatmul.mubr.bf16.gmra.mrb[0].mxu0 %v4334
        %v5369 = vpop.f32.mrb[0].mxu0
        %v5370 = vadd.f32 %v5017, %v5369
        %v5371 = vpop.f32.mrb[0].mxu0
        %v5372 = vadd.f32 %v5019, %v5371
        %v5373 = vpop.f32.mrb[0].mxu0
        %v5374 = vadd.f32 %v5021, %v5373
        %v5375 = vpop.f32.mrb[0].mxu0
        %v5376 = vadd.f32 %v5023, %v5375
        %5377 = vmatprep.mubr.bf16.mxu0 %v4339
        %5378 = vmatmul.mubr.bf16.gmra.mrb[0].mxu0 %v4338
        %v5379 = vpop.f32.mrb[0].mxu0
        %v5380 = vadd.f32 %v5027, %v5379
        %v5381 = vpop.f32.mrb[0].mxu0
        %v5382 = vadd.f32 %v5029, %v5381
        %v5383 = vpop.f32.mrb[0].mxu0
        %v5384 = vadd.f32 %v5031, %v5383
        %v5385 = vpop.f32.mrb[0].mxu0
        %v5386 = vadd.f32 %v5033, %v5385
        %5387 = vmatprep.mubr.bf16.mxu0 %v4343
        %5388 = vmatmul.mubr.bf16.gmra.mrb[0].mxu0 %v4342
        %v5389 = vpop.f32.mrb[0].mxu0
        %v5390 = vadd.f32 %v5037, %v5389
        %v5391 = vpop.f32.mrb[0].mxu0
        %v5392 = vadd.f32 %v5039, %v5391
        %v5393 = vpop.f32.mrb[0].mxu0
        %v5394 = vadd.f32 %v5041, %v5393
        %v5395 = vpop.f32.mrb[0].mxu0
        %v5396 = vadd.f32 %v5043, %v5395
        %5397 = vmatprep.mubr.bf16.mxu0 %v4347
        %5398 = vmatmul.mubr.bf16.gmra.mrb[0].mxu0 %v4346
        %v5399 = vpop.f32.mrb[0].mxu0
        %v5400 = vadd.f32 %v5047, %v5399
        %v5401 = vpop.f32.mrb[0].mxu0
        %v5402 = vadd.f32 %v5049, %v5401
        %v5403 = vpop.f32.mrb[0].mxu0
        %v5404 = vadd.f32 %v5051, %v5403
        %v5405 = vpop.f32.mrb[0].mxu0
        %v5406 = vadd.f32 %v5053, %v5405
        %5407 = vmatprep.mubr.bf16.mxu0 %v4351
        %5408 = vmatmul.mubr.bf16.gmra.mrb[0].mxu0 %v4350
        %v5409 = vpop.f32.mrb[0].mxu0
        %v5410 = vadd.f32 %v5057, %v5409
        %v5411 = vpop.f32.mrb[0].mxu0
        %v5412 = vadd.f32 %v5059, %v5411
        %v5413 = vpop.f32.mrb[0].mxu0
        %v5414 = vadd.f32 %v5061, %v5413
        %v5415 = vpop.f32.mrb[0].mxu0
        %v5416 = vadd.f32 %v5063, %v5415
        %5417 = vmatprep.mubr.bf16.mxu0 %v4355
        %5418 = vmatmul.mubr.bf16.gmra.mrb[0].mxu0 %v4354
        %v5419 = vpop.f32.mrb[0].mxu0
        %v5420 = vadd.f32 %v5067, %v5419
        %v5421 = vpop.f32.mrb[0].mxu0
        %v5422 = vadd.f32 %v5069, %v5421
        %v5423 = vpop.f32.mrb[0].mxu0
        %v5424 = vadd.f32 %v5071, %v5423
        %v5425 = vpop.f32.mrb[0].mxu0
        %v5426 = vadd.f32 %v5073, %v5425
        %5427 = vmatprep.mubr.bf16.mxu0 %v4359
        %5428 = vmatmul.mubr.bf16.gmra.mrb[0].mxu0 %v4358
        %v5429 = vpop.f32.mrb[0].mxu0
        %v5430 = vadd.f32 %v5077, %v5429
        %v5431 = vpop.f32.mrb[0].mxu0
        %v5432 = vadd.f32 %v5079, %v5431
        %v5433 = vpop.f32.mrb[0].mxu0
        %v5434 = vadd.f32 %v5081, %v5433
        %v5435 = vpop.f32.mrb[0].mxu0
        %v5436 = vadd.f32 %v5083, %v5435
        %5437 = vmatprep.mubr.bf16.mxu0 %v4363
        %5438 = vmatmul.mubr.bf16.gmra.mrb[0].mxu0 %v4362
        %v5439 = vpop.f32.mrb[0].mxu0
        %v5440 = vadd.f32 %v5087, %v5439
        %v5441 = vpop.f32.mrb[0].mxu0
        %v5442 = vadd.f32 %v5089, %v5441
        %v5443 = vpop.f32.mrb[0].mxu0
        %v5444 = vadd.f32 %v5091, %v5443
        %v5445 = vpop.f32.mrb[0].mxu0
        %v5446 = vadd.f32 %v5093, %v5445
        %5447 = vmatprep.mubr.bf16.mxu0 %v4367
        %5448 = vmatmul.mubr.bf16.gmra.mrb[0].mxu0 %v4366
        %v5449 = vpop.f32.mrb[0].mxu0
        %v5450 = vadd.f32 %v5097, %v5449
        %v5451 = vpop.f32.mrb[0].mxu0
        %v5452 = vadd.f32 %v5099, %v5451
        %v5453 = vpop.f32.mrb[0].mxu0
        %v5454 = vadd.f32 %v5101, %v5453
        %v5455 = vpop.f32.mrb[0].mxu0
        %v5456 = vadd.f32 %v5103, %v5455
        %5457 = vmatprep.mubr.bf16.mxu0 %v4371
        %5458 = vmatmul.mubr.bf16.gmra.mrb[0].mxu0 %v4370
        %v5459 = vpop.f32.mrb[0].mxu0
        %v5460 = vadd.f32 %v5107, %v5459
        %v5461 = vpop.f32.mrb[0].mxu0
        %v5462 = vadd.f32 %v5109, %v5461
        %v5463 = vpop.f32.mrb[0].mxu0
        %v5464 = vadd.f32 %v5111, %v5463
        %v5465 = vpop.f32.mrb[0].mxu0
        %v5466 = vadd.f32 %v5113, %v5465
        %5467 = vmatprep.mubr.bf16.mxu0 %v4375
        %5468 = vmatmul.mubr.bf16.gmra.mrb[0].mxu0 %v4374
        %v5469 = vpop.f32.mrb[0].mxu0
        %v5470 = vadd.f32 %v5117, %v5469
        %v5471 = vpop.f32.mrb[0].mxu0
        %v5472 = vadd.f32 %v5119, %v5471
        %v5473 = vpop.f32.mrb[0].mxu0
        %v5474 = vadd.f32 %v5121, %v5473
        %v5475 = vpop.f32.mrb[0].mxu0
        %v5476 = vadd.f32 %v5123, %v5475
        %5477 = vdwg.mxu0
        %v5478 = vmax.f32 %v5160, 0.0
        %v5479 = vmax.f32 %v5162, 0.0
        %v5480 = vmax.f32 %v5164, 0.0
        %v5481 = vmax.f32 %v5166, 0.0
        %v5482 = vmax.f32 %v5170, 0.0
        %v5483 = vmax.f32 %v5172, 0.0
        %v5484 = vmax.f32 %v5174, 0.0
        %v5485 = vmax.f32 %v5176, 0.0
        %v5486 = vmax.f32 %v5180, 0.0
        %v5487 = vmax.f32 %v5182, 0.0
        %v5488 = vmax.f32 %v5184, 0.0
        %v5489 = vmax.f32 %v5186, 0.0
        %v5490 = vmax.f32 %v5190, 0.0
        %v5491 = vmax.f32 %v5192, 0.0
        %v5492 = vmax.f32 %v5194, 0.0
        %v5493 = vmax.f32 %v5196, 0.0
        %v5494 = vmax.f32 %v5200, 0.0
        %v5495 = vmax.f32 %v5202, 0.0
        %v5496 = vmax.f32 %v5204, 0.0
        %v5497 = vmax.f32 %v5206, 0.0
        %v5498 = vmax.f32 %v5210, 0.0
        %v5499 = vmax.f32 %v5212, 0.0
        %v5500 = vmax.f32 %v5214, 0.0
        %v5501 = vmax.f32 %v5216, 0.0
        %v5502 = vmax.f32 %v5220, 0.0
        %v5503 = vmax.f32 %v5222, 0.0
        %v5504 = vmax.f32 %v5224, 0.0
        %v5505 = vmax.f32 %v5226, 0.0
        %v5506 = vmax.f32 %v5230, 0.0
        %v5507 = vmax.f32 %v5232, 0.0
        %v5508 = vmax.f32 %v5234, 0.0
        %v5509 = vmax.f32 %v5236, 0.0
        %v5510 = vmax.f32 %v5240, 0.0
        %v5511 = vmax.f32 %v5242, 0.0
        %v5512 = vmax.f32 %v5244, 0.0
        %v5513 = vmax.f32 %v5246, 0.0
        %v5514 = vmax.f32 %v5250, 0.0
        %v5515 = vmax.f32 %v5252, 0.0
        %v5516 = vmax.f32 %v5254, 0.0
        %v5517 = vmax.f32 %v5256, 0.0
        %v5518 = vmax.f32 %v5260, 0.0
        %v5519 = vmax.f32 %v5262, 0.0
        %v5520 = vmax.f32 %v5264, 0.0
        %v5521 = vmax.f32 %v5266, 0.0
        %v5522 = vmax.f32 %v5270, 0.0
        %v5523 = vmax.f32 %v5272, 0.0
        %v5524 = vmax.f32 %v5274, 0.0
        %v5525 = vmax.f32 %v5276, 0.0
        %v5526 = vmax.f32 %v5280, 0.0
        %v5527 = vmax.f32 %v5282, 0.0
        %v5528 = vmax.f32 %v5284, 0.0
        %v5529 = vmax.f32 %v5286, 0.0
        %v5530 = vmax.f32 %v5290, 0.0
        %v5531 = vmax.f32 %v5292, 0.0
        %v5532 = vmax.f32 %v5294, 0.0
        %v5533 = vmax.f32 %v5296, 0.0
        %v5534 = vmax.f32 %v5300, 0.0
        %v5535 = vmax.f32 %v5302, 0.0
        %v5536 = vmax.f32 %v5304, 0.0
        %v5537 = vmax.f32 %v5306, 0.0
        %v5538 = vmax.f32 %v5310, 0.0
        %v5539 = vmax.f32 %v5312, 0.0
        %v5540 = vmax.f32 %v5314, 0.0
        %v5541 = vmax.f32 %v5316, 0.0
        %v5542 = vmax.f32 %v5320, 0.0
        %v5543 = vmax.f32 %v5322, 0.0
        %v5544 = vmax.f32 %v5324, 0.0
        %v5545 = vmax.f32 %v5326, 0.0
        %v5546 = vmax.f32 %v5330, 0.0
        %v5547 = vmax.f32 %v5332, 0.0
        %v5548 = vmax.f32 %v5334, 0.0
        %v5549 = vmax.f32 %v5336, 0.0
        %v5550 = vmax.f32 %v5340, 0.0
        %v5551 = vmax.f32 %v5342, 0.0
        %v5552 = vmax.f32 %v5344, 0.0
        %v5553 = vmax.f32 %v5346, 0.0
        %v5554 = vmax.f32 %v5350, 0.0
        %v5555 = vmax.f32 %v5352, 0.0
        %v5556 = vmax.f32 %v5354, 0.0
        %v5557 = vmax.f32 %v5356, 0.0
        %v5558 = vmax.f32 %v5360, 0.0
        %v5559 = vmax.f32 %v5362, 0.0
        %v5560 = vmax.f32 %v5364, 0.0
        %v5561 = vmax.f32 %v5366, 0.0
        %v5562 = vmax.f32 %v5370, 0.0
        %v5563 = vmax.f32 %v5372, 0.0
        %v5564 = vmax.f32 %v5374, 0.0
        %v5565 = vmax.f32 %v5376, 0.0
        %v5566 = vmax.f32 %v5380, 0.0
        %v5567 = vmax.f32 %v5382, 0.0
        %v5568 = vmax.f32 %v5384, 0.0
        %v5569 = vmax.f32 %v5386, 0.0
        %v5570 = vmax.f32 %v5390, 0.0
        %v5571 = vmax.f32 %v5392, 0.0
        %v5572 = vmax.f32 %v5394, 0.0
        %v5573 = vmax.f32 %v5396, 0.0
        %v5574 = vmax.f32 %v5400, 0.0
        %v5575 = vmax.f32 %v5402, 0.0
        %v5576 = vmax.f32 %v5404, 0.0
        %v5577 = vmax.f32 %v5406, 0.0
        %v5578 = vmax.f32 %v5410, 0.0
        %v5579 = vmax.f32 %v5412, 0.0
        %v5580 = vmax.f32 %v5414, 0.0
        %v5581 = vmax.f32 %v5416, 0.0
        %v5582 = vmax.f32 %v5420, 0.0
        %v5583 = vmax.f32 %v5422, 0.0
        %v5584 = vmax.f32 %v5424, 0.0
        %v5585 = vmax.f32 %v5426, 0.0
        %v5586 = vmax.f32 %v5430, 0.0
        %v5587 = vmax.f32 %v5432, 0.0
        %v5588 = vmax.f32 %v5434, 0.0
        %v5589 = vmax.f32 %v5436, 0.0
        %v5590 = vmax.f32 %v5440, 0.0
        %v5591 = vmax.f32 %v5442, 0.0
        %v5592 = vmax.f32 %v5444, 0.0
        %v5593 = vmax.f32 %v5446, 0.0
        %v5594 = vmax.f32 %v5450, 0.0
        %v5595 = vmax.f32 %v5452, 0.0
        %v5596 = vmax.f32 %v5454, 0.0
        %v5597 = vmax.f32 %v5456, 0.0
        %v5598 = vmax.f32 %v5460, 0.0
        %v5599 = vmax.f32 %v5462, 0.0
        %v5600 = vmax.f32 %v5464, 0.0
        %v5601 = vmax.f32 %v5466, 0.0
        %v5602 = vmax.f32 %v5470, 0.0
        %v5603 = vmax.f32 %v5472, 0.0
        %v5604 = vmax.f32 %v5474, 0.0
        %v5605 = vmax.f32 %v5476, 0.0
        %v5606 = vpack.c.bf16 %v5480, %v5478
        %v5607 = vpack.c.bf16 %v5481, %v5479
        %v5608 = vpack.c.bf16 %v5484, %v5482
        %v5609 = vpack.c.bf16 %v5485, %v5483
        %v5610 = vpack.c.bf16 %v5488, %v5486
        %v5611 = vpack.c.bf16 %v5489, %v5487
        %v5612 = vpack.c.bf16 %v5492, %v5490
        %v5613 = vpack.c.bf16 %v5493, %v5491
        %v5614 = vpack.c.bf16 %v5496, %v5494
        %v5615 = vpack.c.bf16 %v5497, %v5495
        %v5616 = vpack.c.bf16 %v5500, %v5498
        %v5617 = vpack.c.bf16 %v5501, %v5499
        %v5618 = vpack.c.bf16 %v5504, %v5502
        %v5619 = vpack.c.bf16 %v5505, %v5503
        %v5620 = vpack.c.bf16 %v5508, %v5506
        %v5621 = vpack.c.bf16 %v5509, %v5507
        %v5622 = vpack.c.bf16 %v5512, %v5510
        %v5623 = vpack.c.bf16 %v5513, %v5511
        %v5624 = vpack.c.bf16 %v5516, %v5514
        %v5625 = vpack.c.bf16 %v5517, %v5515
        %v5626 = vpack.c.bf16 %v5520, %v5518
        %v5627 = vpack.c.bf16 %v5521, %v5519
        %v5628 = vpack.c.bf16 %v5524, %v5522
        %v5629 = vpack.c.bf16 %v5525, %v5523
        %v5630 = vpack.c.bf16 %v5528, %v5526
        %v5631 = vpack.c.bf16 %v5529, %v5527
        %v5632 = vpack.c.bf16 %v5532, %v5530
        %v5633 = vpack.c.bf16 %v5533, %v5531
        %v5634 = vpack.c.bf16 %v5536, %v5534
        %v5635 = vpack.c.bf16 %v5537, %v5535
        %v5636 = vpack.c.bf16 %v5540, %v5538
        %v5637 = vpack.c.bf16 %v5541, %v5539
        %v5638 = vpack.c.bf16 %v5544, %v5542
        %v5639 = vpack.c.bf16 %v5545, %v5543
        %v5640 = vpack.c.bf16 %v5548, %v5546
        %v5641 = vpack.c.bf16 %v5549, %v5547
        %v5642 = vpack.c.bf16 %v5552, %v5550
        %v5643 = vpack.c.bf16 %v5553, %v5551
        %v5644 = vpack.c.bf16 %v5556, %v5554
        %v5645 = vpack.c.bf16 %v5557, %v5555
        %v5646 = vpack.c.bf16 %v5560, %v5558
        %v5647 = vpack.c.bf16 %v5561, %v5559
        %v5648 = vpack.c.bf16 %v5564, %v5562
        %v5649 = vpack.c.bf16 %v5565, %v5563
        %v5650 = vpack.c.bf16 %v5568, %v5566
        %v5651 = vpack.c.bf16 %v5569, %v5567
        %v5652 = vpack.c.bf16 %v5572, %v5570
        %v5653 = vpack.c.bf16 %v5573, %v5571
        %v5654 = vpack.c.bf16 %v5576, %v5574
        %v5655 = vpack.c.bf16 %v5577, %v5575
        %v5656 = vpack.c.bf16 %v5580, %v5578
        %v5657 = vpack.c.bf16 %v5581, %v5579
        %v5658 = vpack.c.bf16 %v5584, %v5582
        %v5659 = vpack.c.bf16 %v5585, %v5583
        %v5660 = vpack.c.bf16 %v5588, %v5586
        %v5661 = vpack.c.bf16 %v5589, %v5587
        %v5662 = vpack.c.bf16 %v5592, %v5590
        %v5663 = vpack.c.bf16 %v5593, %v5591
        %v5664 = vpack.c.bf16 %v5596, %v5594
        %v5665 = vpack.c.bf16 %v5597, %v5595
        %v5666 = vpack.c.bf16 %v5600, %v5598
        %v5667 = vpack.c.bf16 %v5601, %v5599
        %v5668 = vpack.c.bf16 %v5604, %v5602
        %v5669 = vpack.c.bf16 %v5605, %v5603
        %v5670 = vld [vmem:[%s7] sm:$0xf]
        %v5671 = vld [vmem:[%s7 + $0x4] sm:$0xf]
        %v5672 = vld [vmem:[%s7 + $0x8] sm:$0xf]
        %v5673 = vld [vmem:[%s7 + $0xc] sm:$0xf]
        %v5674 = vld [vmem:[%s7 + $0x10] sm:$0xf]
        %v5675 = vld [vmem:[%s7 + $0x14] sm:$0xf]
        %v5676 = vld [vmem:[%s7 + $0x18] sm:$0xf]
        %v5677 = vld [vmem:[%s7 + $0x1c] sm:$0xf]
        %v5678 = vld [vmem:[%s7 + $0x20] sm:$0xf]
        %v5679 = vld [vmem:[%s7 + $0x24] sm:$0xf]
        %v5680 = vld [vmem:[%s7 + $0x28] sm:$0xf]
        %v5681 = vld [vmem:[%s7 + $0x2c] sm:$0xf]
        %v5682 = vld [vmem:[%s7 + $0x30] sm:$0xf]
        %v5683 = vld [vmem:[%s7 + $0x34] sm:$0xf]
        %v5684 = vld [vmem:[%s7 + $0x38] sm:$0xf]
        %v5685 = vld [vmem:[%s7 + $0x3c] sm:$0xf]
        %v5686 = vld [vmem:[%s7 + $0x40] sm:$0xf]
        %v5687 = vld [vmem:[%s7 + $0x44] sm:$0xf]
        %v5688 = vld [vmem:[%s7 + $0x48] sm:$0xf]
        %v5689 = vld [vmem:[%s7 + $0x4c] sm:$0xf]
        %v5690 = vld [vmem:[%s7 + $0x50] sm:$0xf]
        %v5691 = vld [vmem:[%s7 + $0x54] sm:$0xf]
        %v5692 = vld [vmem:[%s7 + $0x58] sm:$0xf]
        %v5693 = vld [vmem:[%s7 + $0x5c] sm:$0xf]
        %v5694 = vld [vmem:[%s7 + $0x60] sm:$0xf]
        %v5695 = vld [vmem:[%s7 + $0x64] sm:$0xf]
        %v5696 = vld [vmem:[%s7 + $0x68] sm:$0xf]
        %v5697 = vld [vmem:[%s7 + $0x6c] sm:$0xf]
        %v5698 = vld [vmem:[%s7 + $0x70] sm:$0xf]
        %v5699 = vld [vmem:[%s7 + $0x74] sm:$0xf]
        %v5700 = vld [vmem:[%s7 + $0x78] sm:$0xf]
        %v5701 = vld [vmem:[%s7 + $0x7c] sm:$0xf]
        %v5702 = vld [vmem:[%s8] sm:$0x1]
        %v5704 = vlaneseq
        %v5705 = vshrl.u32 %v5704, 7
        %v5706 = vsub.s32 0, %v5705
        %v5707 = vrot.slane %v5702, %v5706
        %v5741 = vunpack.c.l.b16 %v5670
        %v5742 = vunpack.c.l.b16 %v5671
        %v5743 = vunpack.c.l.b16 %v5672
        %v5744 = vunpack.c.l.b16 %v5673
        %v5745 = vunpack.c.l.b16 %v5674
        %v5746 = vunpack.c.l.b16 %v5675
        %v5747 = vunpack.c.l.b16 %v5676
        %v5748 = vunpack.c.l.b16 %v5677
        %v5749 = vunpack.c.l.b16 %v5678
        %v5750 = vunpack.c.l.b16 %v5679
        %v5751 = vunpack.c.l.b16 %v5680
        %v5752 = vunpack.c.l.b16 %v5681
        %v5753 = vunpack.c.l.b16 %v5682
        %v5754 = vunpack.c.l.b16 %v5683
        %v5755 = vunpack.c.l.b16 %v5684
        %v5756 = vunpack.c.l.b16 %v5685
        %v5757 = vunpack.c.l.b16 %v5686
        %v5758 = vunpack.c.l.b16 %v5687
        %v5759 = vunpack.c.l.b16 %v5688
        %v5760 = vunpack.c.l.b16 %v5689
        %v5761 = vunpack.c.l.b16 %v5690
        %v5762 = vunpack.c.l.b16 %v5691
        %v5763 = vunpack.c.l.b16 %v5692
        %v5764 = vunpack.c.l.b16 %v5693
        %v5765 = vunpack.c.l.b16 %v5694
        %v5766 = vunpack.c.l.b16 %v5695
        %v5767 = vunpack.c.l.b16 %v5696
        %v5768 = vunpack.c.l.b16 %v5697
        %v5769 = vunpack.c.l.b16 %v5698
        %v5770 = vunpack.c.l.b16 %v5699
        %v5771 = vunpack.c.l.b16 %v5700
        %v5772 = vunpack.c.l.b16 %v5701
        %v5773 = vpack.c.b16 %v5742, %v5741
        %v5774 = vpack.c.b16 %v5744, %v5743
        %v5775 = vpack.c.b16 %v5746, %v5745
        %v5776 = vpack.c.b16 %v5748, %v5747
        %v5777 = vpack.c.b16 %v5750, %v5749
        %v5778 = vpack.c.b16 %v5752, %v5751
        %v5779 = vpack.c.b16 %v5754, %v5753
        %v5780 = vpack.c.b16 %v5756, %v5755
        %v5781 = vpack.c.b16 %v5758, %v5757
        %v5782 = vpack.c.b16 %v5760, %v5759
        %v5783 = vpack.c.b16 %v5762, %v5761
        %v5784 = vpack.c.b16 %v5764, %v5763
        %v5785 = vpack.c.b16 %v5766, %v5765
        %v5786 = vpack.c.b16 %v5768, %v5767
        %v5787 = vpack.c.b16 %v5770, %v5769
        %v5788 = vpack.c.b16 %v5772, %v5771
        %5805 = vmatprep.subr.bf16.mxu0 0
        %5806 = vmatpush1.bf16.msra.mxu0 %v5773
        %5807 = vmatprep.subr.bf16.mxu0 0
        %5808 = vmatpush1.bf16.msra.mxu0 %v5774
        %5809 = vmatprep.subr.bf16.mxu0 0
        %5810 = vmatpush1.bf16.msra.mxu0 %v5775
        %5811 = vmatprep.subr.bf16.mxu0 0
        %5812 = vmatpush1.bf16.msra.mxu0 %v5776
        %5813 = vmatprep.subr.bf16.mxu0 0
        %5814 = vmatpush1.bf16.msra.mxu0 %v5777
        %5815 = vmatprep.subr.bf16.mxu0 0
        %5816 = vmatpush1.bf16.msra.mxu0 %v5778
        %5817 = vmatprep.subr.bf16.mxu0 0
        %5818 = vmatpush1.bf16.msra.mxu0 %v5779
        %5819 = vmatprep.subr.bf16.mxu0 0
        %5820 = vmatpush1.bf16.msra.mxu0 %v5780
        %5821 = vmatprep.subr.bf16.mxu0 0
        %5822 = vmatpush1.bf16.msra.mxu0 %v5781
        %5823 = vmatprep.subr.bf16.mxu0 0
        %5824 = vmatpush1.bf16.msra.mxu0 %v5782
        %5825 = vmatprep.subr.bf16.mxu0 0
        %5826 = vmatpush1.bf16.msra.mxu0 %v5783
        %5827 = vmatprep.subr.bf16.mxu0 0
        %5828 = vmatpush1.bf16.msra.mxu0 %v5784
        %5829 = vmatprep.subr.bf16.mxu0 0
        %5830 = vmatpush1.bf16.msra.mxu0 %v5785
        %5831 = vmatprep.subr.bf16.mxu0 0
        %5832 = vmatpush1.bf16.msra.mxu0 %v5786
        %5833 = vmatprep.subr.bf16.mxu0 0
        %5834 = vmatpush1.bf16.msra.mxu0 %v5787
        %5835 = vmatprep.subr.bf16.mxu0 0
        %5836 = vmatpush1.bf16.msra.mxu0 %v5788
        %5837 = vmatprep.mubr.bf16.mxu0 %v5607
        %5838 = vmatmul.mubr.bf16.gmra.mrb[0].mxu0 %v5606
        %v5839 = vpop.f32.mrb[0].mxu0
        %v5840 = vadd.f32 %v5707, %v5839
        %v5841 = vpop.f32.mrb[0].mxu0
        %v5842 = vpop.f32.mrb[0].mxu0
        %v5843 = vadd.f32 %v5707, %v5842
        %v5844 = vpop.f32.mrb[0].mxu0
        %5845 = vmatprep.mubr.bf16.mxu0 %v5609
        %5846 = vmatmul.mubr.bf16.gmra.mrb[0].mxu0 %v5608
        %v5847 = vpop.f32.mrb[0].mxu0
        %v5848 = vadd.f32 %v5707, %v5847
        %v5849 = vpop.f32.mrb[0].mxu0
        %v5850 = vpop.f32.mrb[0].mxu0
        %v5851 = vadd.f32 %v5707, %v5850
        %v5852 = vpop.f32.mrb[0].mxu0
        %5853 = vmatprep.mubr.bf16.mxu0 %v5611
        %5854 = vmatmul.mubr.bf16.gmra.mrb[0].mxu0 %v5610
        %v5855 = vpop.f32.mrb[0].mxu0
        %v5856 = vadd.f32 %v5707, %v5855
        %v5857 = vpop.f32.mrb[0].mxu0
        %v5858 = vpop.f32.mrb[0].mxu0
        %v5859 = vadd.f32 %v5707, %v5858
        %v5860 = vpop.f32.mrb[0].mxu0
        %5861 = vmatprep.mubr.bf16.mxu0 %v5613
        %5862 = vmatmul.mubr.bf16.gmra.mrb[0].mxu0 %v5612
        %v5863 = vpop.f32.mrb[0].mxu0
        %v5864 = vadd.f32 %v5707, %v5863
        %v5865 = vpop.f32.mrb[0].mxu0
        %v5866 = vpop.f32.mrb[0].mxu0
        %v5867 = vadd.f32 %v5707, %v5866
        %v5868 = vpop.f32.mrb[0].mxu0
        %5869 = vmatprep.mubr.bf16.mxu0 %v5615
        %5870 = vmatmul.mubr.bf16.gmra.mrb[0].mxu0 %v5614
        %v5871 = vpop.f32.mrb[0].mxu0
        %v5872 = vadd.f32 %v5707, %v5871
        %v5873 = vpop.f32.mrb[0].mxu0
        %v5874 = vpop.f32.mrb[0].mxu0
        %v5875 = vadd.f32 %v5707, %v5874
        %v5876 = vpop.f32.mrb[0].mxu0
        %5877 = vmatprep.mubr.bf16.mxu0 %v5617
        %5878 = vmatmul.mubr.bf16.gmra.mrb[0].mxu0 %v5616
        %v5879 = vpop.f32.mrb[0].mxu0
        %v5880 = vadd.f32 %v5707, %v5879
        %v5881 = vpop.f32.mrb[0].mxu0
        %v5882 = vpop.f32.mrb[0].mxu0
        %v5883 = vadd.f32 %v5707, %v5882
        %v5884 = vpop.f32.mrb[0].mxu0
        %5885 = vmatprep.mubr.bf16.mxu0 %v5619
        %5886 = vmatmul.mubr.bf16.gmra.mrb[0].mxu0 %v5618
        %v5887 = vpop.f32.mrb[0].mxu0
        %v5888 = vadd.f32 %v5707, %v5887
        %v5889 = vpop.f32.mrb[0].mxu0
        %v5890 = vpop.f32.mrb[0].mxu0
        %v5891 = vadd.f32 %v5707, %v5890
        %v5892 = vpop.f32.mrb[0].mxu0
        %5893 = vmatprep.mubr.bf16.mxu0 %v5621
        %5894 = vmatmul.mubr.bf16.gmra.mrb[0].mxu0 %v5620
        %v5895 = vpop.f32.mrb[0].mxu0
        %v5896 = vadd.f32 %v5707, %v5895
        %v5897 = vpop.f32.mrb[0].mxu0
        %v5898 = vpop.f32.mrb[0].mxu0
        %v5899 = vadd.f32 %v5707, %v5898
        %v5900 = vpop.f32.mrb[0].mxu0
        %5901 = vmatprep.mubr.bf16.mxu0 %v5623
        %5902 = vmatmul.mubr.bf16.gmra.mrb[0].mxu0 %v5622
        %v5903 = vpop.f32.mrb[0].mxu0
        %v5904 = vadd.f32 %v5707, %v5903
        %v5905 = vpop.f32.mrb[0].mxu0
        %v5906 = vpop.f32.mrb[0].mxu0
        %v5907 = vadd.f32 %v5707, %v5906
        %v5908 = vpop.f32.mrb[0].mxu0
        %5909 = vmatprep.mubr.bf16.mxu0 %v5625
        %5910 = vmatmul.mubr.bf16.gmra.mrb[0].mxu0 %v5624
        %v5911 = vpop.f32.mrb[0].mxu0
        %v5912 = vadd.f32 %v5707, %v5911
        %v5913 = vpop.f32.mrb[0].mxu0
        %v5914 = vpop.f32.mrb[0].mxu0
        %v5915 = vadd.f32 %v5707, %v5914
        %v5916 = vpop.f32.mrb[0].mxu0
        %5917 = vmatprep.mubr.bf16.mxu0 %v5627
        %5918 = vmatmul.mubr.bf16.gmra.mrb[0].mxu0 %v5626
        %v5919 = vpop.f32.mrb[0].mxu0
        %v5920 = vadd.f32 %v5707, %v5919
        %v5921 = vpop.f32.mrb[0].mxu0
        %v5922 = vpop.f32.mrb[0].mxu0
        %v5923 = vadd.f32 %v5707, %v5922
        %v5924 = vpop.f32.mrb[0].mxu0
        %5925 = vmatprep.mubr.bf16.mxu0 %v5629
        %5926 = vmatmul.mubr.bf16.gmra.mrb[0].mxu0 %v5628
        %v5927 = vpop.f32.mrb[0].mxu0
        %v5928 = vadd.f32 %v5707, %v5927
        %v5929 = vpop.f32.mrb[0].mxu0
        %v5930 = vpop.f32.mrb[0].mxu0
        %v5931 = vadd.f32 %v5707, %v5930
        %v5932 = vpop.f32.mrb[0].mxu0
        %5933 = vmatprep.mubr.bf16.mxu0 %v5631
        %5934 = vmatmul.mubr.bf16.gmra.mrb[0].mxu0 %v5630
        %v5935 = vpop.f32.mrb[0].mxu0
        %v5936 = vadd.f32 %v5707, %v5935
        %v5937 = vpop.f32.mrb[0].mxu0
        %v5938 = vpop.f32.mrb[0].mxu0
        %v5939 = vadd.f32 %v5707, %v5938
        %v5940 = vpop.f32.mrb[0].mxu0
        %5941 = vmatprep.mubr.bf16.mxu0 %v5633
        %5942 = vmatmul.mubr.bf16.gmra.mrb[0].mxu0 %v5632
        %v5943 = vpop.f32.mrb[0].mxu0
        %v5944 = vadd.f32 %v5707, %v5943
        %v5945 = vpop.f32.mrb[0].mxu0
        %v5946 = vpop.f32.mrb[0].mxu0
        %v5947 = vadd.f32 %v5707, %v5946
        %v5948 = vpop.f32.mrb[0].mxu0
        %5949 = vmatprep.mubr.bf16.mxu0 %v5635
        %5950 = vmatmul.mubr.bf16.gmra.mrb[0].mxu0 %v5634
        %v5951 = vpop.f32.mrb[0].mxu0
        %v5952 = vadd.f32 %v5707, %v5951
        %v5953 = vpop.f32.mrb[0].mxu0
        %v5954 = vpop.f32.mrb[0].mxu0
        %v5955 = vadd.f32 %v5707, %v5954
        %v5956 = vpop.f32.mrb[0].mxu0
        %5957 = vmatprep.mubr.bf16.mxu0 %v5637
        %5958 = vmatmul.mubr.bf16.gmra.mrb[0].mxu0 %v5636
        %v5959 = vpop.f32.mrb[0].mxu0
        %v5960 = vadd.f32 %v5707, %v5959
        %v5961 = vpop.f32.mrb[0].mxu0
        %v5962 = vpop.f32.mrb[0].mxu0
        %v5963 = vadd.f32 %v5707, %v5962
        %v5964 = vpop.f32.mrb[0].mxu0
        %5965 = vmatprep.mubr.bf16.mxu0 %v5639
        %5966 = vmatmul.mubr.bf16.gmra.mrb[0].mxu0 %v5638
        %v5967 = vpop.f32.mrb[0].mxu0
        %v5968 = vadd.f32 %v5707, %v5967
        %v5969 = vpop.f32.mrb[0].mxu0
        %v5970 = vpop.f32.mrb[0].mxu0
        %v5971 = vadd.f32 %v5707, %v5970
        %v5972 = vpop.f32.mrb[0].mxu0
        %5973 = vmatprep.mubr.bf16.mxu0 %v5641
        %5974 = vmatmul.mubr.bf16.gmra.mrb[0].mxu0 %v5640
        %v5975 = vpop.f32.mrb[0].mxu0
        %v5976 = vadd.f32 %v5707, %v5975
        %v5977 = vpop.f32.mrb[0].mxu0
        %v5978 = vpop.f32.mrb[0].mxu0
        %v5979 = vadd.f32 %v5707, %v5978
        %v5980 = vpop.f32.mrb[0].mxu0
        %5981 = vmatprep.mubr.bf16.mxu0 %v5643
        %5982 = vmatmul.mubr.bf16.gmra.mrb[0].mxu0 %v5642
        %v5983 = vpop.f32.mrb[0].mxu0
        %v5984 = vadd.f32 %v5707, %v5983
        %v5985 = vpop.f32.mrb[0].mxu0
        %v5986 = vpop.f32.mrb[0].mxu0
        %v5987 = vadd.f32 %v5707, %v5986
        %v5988 = vpop.f32.mrb[0].mxu0
        %5989 = vmatprep.mubr.bf16.mxu0 %v5645
        %5990 = vmatmul.mubr.bf16.gmra.mrb[0].mxu0 %v5644
        %v5991 = vpop.f32.mrb[0].mxu0
        %v5992 = vadd.f32 %v5707, %v5991
        %v5993 = vpop.f32.mrb[0].mxu0
        %v5994 = vpop.f32.mrb[0].mxu0
        %v5995 = vadd.f32 %v5707, %v5994
        %v5996 = vpop.f32.mrb[0].mxu0
        %5997 = vmatprep.mubr.bf16.mxu0 %v5647
        %5998 = vmatmul.mubr.bf16.gmra.mrb[0].mxu0 %v5646
        %v5999 = vpop.f32.mrb[0].mxu0
        %v6000 = vadd.f32 %v5707, %v5999
        %v6001 = vpop.f32.mrb[0].mxu0
        %v6002 = vpop.f32.mrb[0].mxu0
        %v6003 = vadd.f32 %v5707, %v6002
        %v6004 = vpop.f32.mrb[0].mxu0
        %6005 = vmatprep.mubr.bf16.mxu0 %v5649
        %6006 = vmatmul.mubr.bf16.gmra.mrb[0].mxu0 %v5648
        %v6007 = vpop.f32.mrb[0].mxu0
        %v6008 = vadd.f32 %v5707, %v6007
        %v6009 = vpop.f32.mrb[0].mxu0
        %v6010 = vpop.f32.mrb[0].mxu0
        %v6011 = vadd.f32 %v5707, %v6010
        %v6012 = vpop.f32.mrb[0].mxu0
        %6013 = vmatprep.mubr.bf16.mxu0 %v5651
        %6014 = vmatmul.mubr.bf16.gmra.mrb[0].mxu0 %v5650
        %v6015 = vpop.f32.mrb[0].mxu0
        %v6016 = vadd.f32 %v5707, %v6015
        %v6017 = vpop.f32.mrb[0].mxu0
        %v6018 = vpop.f32.mrb[0].mxu0
        %v6019 = vadd.f32 %v5707, %v6018
        %v6020 = vpop.f32.mrb[0].mxu0
        %6021 = vmatprep.mubr.bf16.mxu0 %v5653
        %6022 = vmatmul.mubr.bf16.gmra.mrb[0].mxu0 %v5652
        %v6023 = vpop.f32.mrb[0].mxu0
        %v6024 = vadd.f32 %v5707, %v6023
        %v6025 = vpop.f32.mrb[0].mxu0
        %v6026 = vpop.f32.mrb[0].mxu0
        %v6027 = vadd.f32 %v5707, %v6026
        %v6028 = vpop.f32.mrb[0].mxu0
        %6029 = vmatprep.mubr.bf16.mxu0 %v5655
        %6030 = vmatmul.mubr.bf16.gmra.mrb[0].mxu0 %v5654
        %v6031 = vpop.f32.mrb[0].mxu0
        %v6032 = vadd.f32 %v5707, %v6031
        %v6033 = vpop.f32.mrb[0].mxu0
        %v6034 = vpop.f32.mrb[0].mxu0
        %v6035 = vadd.f32 %v5707, %v6034
        %v6036 = vpop.f32.mrb[0].mxu0
        %6037 = vmatprep.mubr.bf16.mxu0 %v5657
        %6038 = vmatmul.mubr.bf16.gmra.mrb[0].mxu0 %v5656
        %v6039 = vpop.f32.mrb[0].mxu0
        %v6040 = vadd.f32 %v5707, %v6039
        %v6041 = vpop.f32.mrb[0].mxu0
        %v6042 = vpop.f32.mrb[0].mxu0
        %v6043 = vadd.f32 %v5707, %v6042
        %v6044 = vpop.f32.mrb[0].mxu0
        %6045 = vmatprep.mubr.bf16.mxu0 %v5659
        %6046 = vmatmul.mubr.bf16.gmra.mrb[0].mxu0 %v5658
        %v6047 = vpop.f32.mrb[0].mxu0
        %v6048 = vadd.f32 %v5707, %v6047
        %v6049 = vpop.f32.mrb[0].mxu0
        %v6050 = vpop.f32.mrb[0].mxu0
        %v6051 = vadd.f32 %v5707, %v6050
        %v6052 = vpop.f32.mrb[0].mxu0
        %6053 = vmatprep.mubr.bf16.mxu0 %v5661
        %6054 = vmatmul.mubr.bf16.gmra.mrb[0].mxu0 %v5660
        %v6055 = vpop.f32.mrb[0].mxu0
        %v6056 = vadd.f32 %v5707, %v6055
        %v6057 = vpop.f32.mrb[0].mxu0
        %v6058 = vpop.f32.mrb[0].mxu0
        %v6059 = vadd.f32 %v5707, %v6058
        %v6060 = vpop.f32.mrb[0].mxu0
        %6061 = vmatprep.mubr.bf16.mxu0 %v5663
        %6062 = vmatmul.mubr.bf16.gmra.mrb[0].mxu0 %v5662
        %v6063 = vpop.f32.mrb[0].mxu0
        %v6064 = vadd.f32 %v5707, %v6063
        %v6065 = vpop.f32.mrb[0].mxu0
        %v6066 = vpop.f32.mrb[0].mxu0
        %v6067 = vadd.f32 %v5707, %v6066
        %v6068 = vpop.f32.mrb[0].mxu0
        %6069 = vmatprep.mubr.bf16.mxu0 %v5665
        %6070 = vmatmul.mubr.bf16.gmra.mrb[0].mxu0 %v5664
        %v6071 = vpop.f32.mrb[0].mxu0
        %v6072 = vadd.f32 %v5707, %v6071
        %v6073 = vpop.f32.mrb[0].mxu0
        %v6074 = vpop.f32.mrb[0].mxu0
        %v6075 = vadd.f32 %v5707, %v6074
        %v6076 = vpop.f32.mrb[0].mxu0
        %6077 = vmatprep.mubr.bf16.mxu0 %v5667
        %6078 = vmatmul.mubr.bf16.gmra.mrb[0].mxu0 %v5666
        %v6079 = vpop.f32.mrb[0].mxu0
        %v6080 = vadd.f32 %v5707, %v6079
        %v6081 = vpop.f32.mrb[0].mxu0
        %v6082 = vpop.f32.mrb[0].mxu0
        %v6083 = vadd.f32 %v5707, %v6082
        %v6084 = vpop.f32.mrb[0].mxu0
        %6085 = vmatprep.mubr.bf16.mxu0 %v5669
        %6086 = vmatmul.mubr.bf16.gmra.mrb[0].mxu0 %v5668
        %v6087 = vpop.f32.mrb[0].mxu0
        %v6088 = vadd.f32 %v5707, %v6087
        %v6089 = vpop.f32.mrb[0].mxu0
        %v6090 = vpop.f32.mrb[0].mxu0
        %v6091 = vadd.f32 %v5707, %v6090
        %v6092 = vpop.f32.mrb[0].mxu0
        %6093 = vdwg.mxu0
        %v6094 = vmax.f32 %v5840, 0.0
        %v6095 = vmax.f32 %v5843, 0.0
        %v6096 = vmax.f32 %v5848, 0.0
        %v6097 = vmax.f32 %v5851, 0.0
        %v6098 = vmax.f32 %v5856, 0.0
        %v6099 = vmax.f32 %v5859, 0.0
        %v6100 = vmax.f32 %v5864, 0.0
        %v6101 = vmax.f32 %v5867, 0.0
        %v6102 = vmax.f32 %v5872, 0.0
        %v6103 = vmax.f32 %v5875, 0.0
        %v6104 = vmax.f32 %v5880, 0.0
        %v6105 = vmax.f32 %v5883, 0.0
        %v6106 = vmax.f32 %v5888, 0.0
        %v6107 = vmax.f32 %v5891, 0.0
        %v6108 = vmax.f32 %v5896, 0.0
        %v6109 = vmax.f32 %v5899, 0.0
        %v6110 = vmax.f32 %v5904, 0.0
        %v6111 = vmax.f32 %v5907, 0.0
        %v6112 = vmax.f32 %v5912, 0.0
        %v6113 = vmax.f32 %v5915, 0.0
        %v6114 = vmax.f32 %v5920, 0.0
        %v6115 = vmax.f32 %v5923, 0.0
        %v6116 = vmax.f32 %v5928, 0.0
        %v6117 = vmax.f32 %v5931, 0.0
        %v6118 = vmax.f32 %v5936, 0.0
        %v6119 = vmax.f32 %v5939, 0.0
        %v6120 = vmax.f32 %v5944, 0.0
        %v6121 = vmax.f32 %v5947, 0.0
        %v6122 = vmax.f32 %v5952, 0.0
        %v6123 = vmax.f32 %v5955, 0.0
        %v6124 = vmax.f32 %v5960, 0.0
        %v6125 = vmax.f32 %v5963, 0.0
        %v6126 = vmax.f32 %v5968, 0.0
        %v6127 = vmax.f32 %v5971, 0.0
        %v6128 = vmax.f32 %v5976, 0.0
        %v6129 = vmax.f32 %v5979, 0.0
        %v6130 = vmax.f32 %v5984, 0.0
        %v6131 = vmax.f32 %v5987, 0.0
        %v6132 = vmax.f32 %v5992, 0.0
        %v6133 = vmax.f32 %v5995, 0.0
        %v6134 = vmax.f32 %v6000, 0.0
        %v6135 = vmax.f32 %v6003, 0.0
        %v6136 = vmax.f32 %v6008, 0.0
        %v6137 = vmax.f32 %v6011, 0.0
        %v6138 = vmax.f32 %v6016, 0.0
        %v6139 = vmax.f32 %v6019, 0.0
        %v6140 = vmax.f32 %v6024, 0.0
        %v6141 = vmax.f32 %v6027, 0.0
        %v6142 = vmax.f32 %v6032, 0.0
        %v6143 = vmax.f32 %v6035, 0.0
        %v6144 = vmax.f32 %v6040, 0.0
        %v6145 = vmax.f32 %v6043, 0.0
        %v6146 = vmax.f32 %v6048, 0.0
        %v6147 = vmax.f32 %v6051, 0.0
        %v6148 = vmax.f32 %v6056, 0.0
        %v6149 = vmax.f32 %v6059, 0.0
        %v6150 = vmax.f32 %v6064, 0.0
        %v6151 = vmax.f32 %v6067, 0.0
        %v6152 = vmax.f32 %v6072, 0.0
        %v6153 = vmax.f32 %v6075, 0.0
        %v6154 = vmax.f32 %v6080, 0.0
        %v6155 = vmax.f32 %v6083, 0.0
        %v6156 = vmax.f32 %v6088, 0.0
        %v6157 = vmax.f32 %v6091, 0.0
        %v6158 = vpack.c.bf16 %v6095, %v6094
        %v6159 = vpack.c.bf16 %v6097, %v6096
        %v6160 = vpack.c.bf16 %v6099, %v6098
        %v6161 = vpack.c.bf16 %v6101, %v6100
        %v6162 = vpack.c.bf16 %v6103, %v6102
        %v6163 = vpack.c.bf16 %v6105, %v6104
        %v6164 = vpack.c.bf16 %v6107, %v6106
        %v6165 = vpack.c.bf16 %v6109, %v6108
        %v6166 = vpack.c.bf16 %v6111, %v6110
        %v6167 = vpack.c.bf16 %v6113, %v6112
        %v6168 = vpack.c.bf16 %v6115, %v6114
        %v6169 = vpack.c.bf16 %v6117, %v6116
        %v6170 = vpack.c.bf16 %v6119, %v6118
        %v6171 = vpack.c.bf16 %v6121, %v6120
        %v6172 = vpack.c.bf16 %v6123, %v6122
        %v6173 = vpack.c.bf16 %v6125, %v6124
        %v6174 = vpack.c.bf16 %v6127, %v6126
        %v6175 = vpack.c.bf16 %v6129, %v6128
        %v6176 = vpack.c.bf16 %v6131, %v6130
        %v6177 = vpack.c.bf16 %v6133, %v6132
        %v6178 = vpack.c.bf16 %v6135, %v6134
        %v6179 = vpack.c.bf16 %v6137, %v6136
        %v6180 = vpack.c.bf16 %v6139, %v6138
        %v6181 = vpack.c.bf16 %v6141, %v6140
        %v6182 = vpack.c.bf16 %v6143, %v6142
        %v6183 = vpack.c.bf16 %v6145, %v6144
        %v6184 = vpack.c.bf16 %v6147, %v6146
        %v6185 = vpack.c.bf16 %v6149, %v6148
        %v6186 = vpack.c.bf16 %v6151, %v6150
        %v6187 = vpack.c.bf16 %v6153, %v6152
        %v6188 = vpack.c.bf16 %v6155, %v6154
        %v6189 = vpack.c.bf16 %v6157, %v6156
        %v6190 = vld [vmem:[%s9] sm:$0xf]
        %v6191 = vld [vmem:[%s9 + $0x4] sm:$0xf]
        %v6192 = vld [vmem:[%s9 + $0x8] sm:$0xf]
        %v6193 = vld [vmem:[%s9 + $0xc] sm:$0xf]
        %v6194 = vld [vmem:[%s9 + $0x10] sm:$0xf]
        %v6195 = vld [vmem:[%s9 + $0x14] sm:$0xf]
        %v6196 = vld [vmem:[%s9 + $0x18] sm:$0xf]
        %v6197 = vld [vmem:[%s9 + $0x1c] sm:$0xf]
        %v6198 = vld [vmem:[%s9 + $0x20] sm:$0xf]
        %v6199 = vld [vmem:[%s9 + $0x24] sm:$0xf]
        %v6200 = vld [vmem:[%s9 + $0x28] sm:$0xf]
        %v6201 = vld [vmem:[%s9 + $0x2c] sm:$0xf]
        %v6202 = vld [vmem:[%s9 + $0x30] sm:$0xf]
        %v6203 = vld [vmem:[%s9 + $0x34] sm:$0xf]
        %v6204 = vld [vmem:[%s9 + $0x38] sm:$0xf]
        %v6205 = vld [vmem:[%s9 + $0x3c] sm:$0xf]
        %v6206 = vld [vmem:[%s10] sm:$0x1]
        %v6208 = vlaneseq
        %v6209 = vshrl.u32 %v6208, 7
        %v6210 = vsub.s32 0, %v6209
        %v6211 = vrot.slane %v6206, %v6210
        %v6229 = vunpack.c.l.b16 %v6190
        %v6230 = vunpack.c.l.b16 %v6191
        %v6231 = vunpack.c.l.b16 %v6192
        %v6232 = vunpack.c.l.b16 %v6193
        %v6233 = vunpack.c.l.b16 %v6194
        %v6234 = vunpack.c.l.b16 %v6195
        %v6235 = vunpack.c.l.b16 %v6196
        %v6236 = vunpack.c.l.b16 %v6197
        %v6237 = vunpack.c.l.b16 %v6198
        %v6238 = vunpack.c.l.b16 %v6199
        %v6239 = vunpack.c.l.b16 %v6200
        %v6240 = vunpack.c.l.b16 %v6201
        %v6241 = vunpack.c.l.b16 %v6202
        %v6242 = vunpack.c.l.b16 %v6203
        %v6243 = vunpack.c.l.b16 %v6204
        %v6244 = vunpack.c.l.b16 %v6205
        %v6245 = vpack.c.b16 %v6230, %v6229
        %v6246 = vpack.c.b16 %v6232, %v6231
        %v6247 = vpack.c.b16 %v6234, %v6233
        %v6248 = vpack.c.b16 %v6236, %v6235
        %v6249 = vpack.c.b16 %v6238, %v6237
        %v6250 = vpack.c.b16 %v6240, %v6239
        %v6251 = vpack.c.b16 %v6242, %v6241
        %v6252 = vpack.c.b16 %v6244, %v6243
        %6261 = vmatprep.subr.bf16.mxu0 0
        %6262 = vmatpush1.bf16.msra.mxu0 %v6245
        %6263 = vmatprep.subr.bf16.mxu0 0
        %6264 = vmatpush1.bf16.msra.mxu0 %v6246
        %6265 = vmatprep.subr.bf16.mxu0 0
        %6266 = vmatpush1.bf16.msra.mxu0 %v6247
        %6267 = vmatprep.subr.bf16.mxu0 0
        %6268 = vmatpush1.bf16.msra.mxu0 %v6248
        %6269 = vmatprep.subr.bf16.mxu0 0
        %6270 = vmatpush1.bf16.msra.mxu0 %v6249
        %6271 = vmatprep.subr.bf16.mxu0 0
        %6272 = vmatpush1.bf16.msra.mxu0 %v6250
        %6273 = vmatprep.subr.bf16.mxu0 0
        %6274 = vmatpush1.bf16.msra.mxu0 %v6251
        %6275 = vmatprep.subr.bf16.mxu0 0
        %6276 = vmatpush1.bf16.msra.mxu0 %v6252
        %6277 = vmatprep.subr.bf16.mxu0 0
        %6278 = vmatpush1.bf16.msra.mxu0 0
        %6279 = vmatprep.subr.bf16.mxu0 0
        %6280 = vmatpush1.bf16.msra.mxu0 0
        %6281 = vmatprep.subr.bf16.mxu0 0
        %6282 = vmatpush1.bf16.msra.mxu0 0
        %6283 = vmatprep.subr.bf16.mxu0 0
        %6284 = vmatpush1.bf16.msra.mxu0 0
        %6285 = vmatprep.subr.bf16.mxu0 0
        %6286 = vmatpush1.bf16.msra.mxu0 0
        %6287 = vmatprep.subr.bf16.mxu0 0
        %6288 = vmatpush1.bf16.msra.mxu0 0
        %6289 = vmatprep.subr.bf16.mxu0 0
        %6290 = vmatpush1.bf16.msra.mxu0 0
        %6291 = vmatprep.subr.bf16.mxu0 0
        %6292 = vmatpush1.bf16.msra.mxu0 0
        %6293 = vmatprep.mubr.bf16.mxu0 0
        %6294 = vmatmul.mubr.bf16.gmra.mrb[0].mxu0 %v6158
        %v6295 = vpop.f32.mrb[0].mxu0
        %v6296 = vadd.f32 %v6211, %v6295
        %v6297 = vpop.f32.mrb[0].mxu0
        %v6298 = vpop.f32.mrb[0].mxu0
        %v6299 = vadd.f32 %v6211, %v6298
        %v6300 = vpop.f32.mrb[0].mxu0
        %6301 = vmatprep.mubr.bf16.mxu0 0
        %6302 = vmatmul.mubr.bf16.gmra.mrb[0].mxu0 %v6159
        %v6303 = vpop.f32.mrb[0].mxu0
        %v6304 = vadd.f32 %v6211, %v6303
        %v6305 = vpop.f32.mrb[0].mxu0
        %v6306 = vpop.f32.mrb[0].mxu0
        %v6307 = vadd.f32 %v6211, %v6306
        %v6308 = vpop.f32.mrb[0].mxu0
        %6309 = vmatprep.mubr.bf16.mxu0 0
        %6310 = vmatmul.mubr.bf16.gmra.mrb[0].mxu0 %v6160
        %v6311 = vpop.f32.mrb[0].mxu0
        %v6312 = vadd.f32 %v6211, %v6311
        %v6313 = vpop.f32.mrb[0].mxu0
        %v6314 = vpop.f32.mrb[0].mxu0
        %v6315 = vadd.f32 %v6211, %v6314
        %v6316 = vpop.f32.mrb[0].mxu0
        %6317 = vmatprep.mubr.bf16.mxu0 0
        %6318 = vmatmul.mubr.bf16.gmra.mrb[0].mxu0 %v6161
        %v6319 = vpop.f32.mrb[0].mxu0
        %v6320 = vadd.f32 %v6211, %v6319
        %v6321 = vpop.f32.mrb[0].mxu0
        %v6322 = vpop.f32.mrb[0].mxu0
        %v6323 = vadd.f32 %v6211, %v6322
        %v6324 = vpop.f32.mrb[0].mxu0
        %6325 = vmatprep.mubr.bf16.mxu0 0
        %6326 = vmatmul.mubr.bf16.gmra.mrb[0].mxu0 %v6162
        %v6327 = vpop.f32.mrb[0].mxu0
        %v6328 = vadd.f32 %v6211, %v6327
        %v6329 = vpop.f32.mrb[0].mxu0
        %v6330 = vpop.f32.mrb[0].mxu0
        %v6331 = vadd.f32 %v6211, %v6330
        %v6332 = vpop.f32.mrb[0].mxu0
        %6333 = vmatprep.mubr.bf16.mxu0 0
        %6334 = vmatmul.mubr.bf16.gmra.mrb[0].mxu0 %v6163
        %v6335 = vpop.f32.mrb[0].mxu0
        %v6336 = vadd.f32 %v6211, %v6335
        %v6337 = vpop.f32.mrb[0].mxu0
        %v6338 = vpop.f32.mrb[0].mxu0
        %v6339 = vadd.f32 %v6211, %v6338
        %v6340 = vpop.f32.mrb[0].mxu0
        %6341 = vmatprep.mubr.bf16.mxu0 0
        %6342 = vmatmul.mubr.bf16.gmra.mrb[0].mxu0 %v6164
        %v6343 = vpop.f32.mrb[0].mxu0
        %v6344 = vadd.f32 %v6211, %v6343
        %v6345 = vpop.f32.mrb[0].mxu0
        %v6346 = vpop.f32.mrb[0].mxu0
        %v6347 = vadd.f32 %v6211, %v6346
        %v6348 = vpop.f32.mrb[0].mxu0
        %6349 = vmatprep.mubr.bf16.mxu0 0
        %6350 = vmatmul.mubr.bf16.gmra.mrb[0].mxu0 %v6165
        %v6351 = vpop.f32.mrb[0].mxu0
        %v6352 = vadd.f32 %v6211, %v6351
        %v6353 = vpop.f32.mrb[0].mxu0
        %v6354 = vpop.f32.mrb[0].mxu0
        %v6355 = vadd.f32 %v6211, %v6354
        %v6356 = vpop.f32.mrb[0].mxu0
        %6357 = vmatprep.mubr.bf16.mxu0 0
        %6358 = vmatmul.mubr.bf16.gmra.mrb[0].mxu0 %v6166
        %v6359 = vpop.f32.mrb[0].mxu0
        %v6360 = vadd.f32 %v6211, %v6359
        %v6361 = vpop.f32.mrb[0].mxu0
        %v6362 = vpop.f32.mrb[0].mxu0
        %v6363 = vadd.f32 %v6211, %v6362
        %v6364 = vpop.f32.mrb[0].mxu0
        %6365 = vmatprep.mubr.bf16.mxu0 0
        %6366 = vmatmul.mubr.bf16.gmra.mrb[0].mxu0 %v6167
        %v6367 = vpop.f32.mrb[0].mxu0
        %v6368 = vadd.f32 %v6211, %v6367
        %v6369 = vpop.f32.mrb[0].mxu0
        %v6370 = vpop.f32.mrb[0].mxu0
        %v6371 = vadd.f32 %v6211, %v6370
        %v6372 = vpop.f32.mrb[0].mxu0
        %6373 = vmatprep.mubr.bf16.mxu0 0
        %6374 = vmatmul.mubr.bf16.gmra.mrb[0].mxu0 %v6168
        %v6375 = vpop.f32.mrb[0].mxu0
        %v6376 = vadd.f32 %v6211, %v6375
        %v6377 = vpop.f32.mrb[0].mxu0
        %v6378 = vpop.f32.mrb[0].mxu0
        %v6379 = vadd.f32 %v6211, %v6378
        %v6380 = vpop.f32.mrb[0].mxu0
        %6381 = vmatprep.mubr.bf16.mxu0 0
        %6382 = vmatmul.mubr.bf16.gmra.mrb[0].mxu0 %v6169
        %v6383 = vpop.f32.mrb[0].mxu0
        %v6384 = vadd.f32 %v6211, %v6383
        %v6385 = vpop.f32.mrb[0].mxu0
        %v6386 = vpop.f32.mrb[0].mxu0
        %v6387 = vadd.f32 %v6211, %v6386
        %v6388 = vpop.f32.mrb[0].mxu0
        %6389 = vmatprep.mubr.bf16.mxu0 0
        %6390 = vmatmul.mubr.bf16.gmra.mrb[0].mxu0 %v6170
        %v6391 = vpop.f32.mrb[0].mxu0
        %v6392 = vadd.f32 %v6211, %v6391
        %v6393 = vpop.f32.mrb[0].mxu0
        %v6394 = vpop.f32.mrb[0].mxu0
        %v6395 = vadd.f32 %v6211, %v6394
        %v6396 = vpop.f32.mrb[0].mxu0
        %6397 = vmatprep.mubr.bf16.mxu0 0
        %6398 = vmatmul.mubr.bf16.gmra.mrb[0].mxu0 %v6171
        %v6399 = vpop.f32.mrb[0].mxu0
        %v6400 = vadd.f32 %v6211, %v6399
        %v6401 = vpop.f32.mrb[0].mxu0
        %v6402 = vpop.f32.mrb[0].mxu0
        %v6403 = vadd.f32 %v6211, %v6402
        %v6404 = vpop.f32.mrb[0].mxu0
        %6405 = vmatprep.mubr.bf16.mxu0 0
        %6406 = vmatmul.mubr.bf16.gmra.mrb[0].mxu0 %v6172
        %v6407 = vpop.f32.mrb[0].mxu0
        %v6408 = vadd.f32 %v6211, %v6407
        %v6409 = vpop.f32.mrb[0].mxu0
        %v6410 = vpop.f32.mrb[0].mxu0
        %v6411 = vadd.f32 %v6211, %v6410
        %v6412 = vpop.f32.mrb[0].mxu0
        %6413 = vmatprep.mubr.bf16.mxu0 0
        %6414 = vmatmul.mubr.bf16.gmra.mrb[0].mxu0 %v6173
        %v6415 = vpop.f32.mrb[0].mxu0
        %v6416 = vadd.f32 %v6211, %v6415
        %v6417 = vpop.f32.mrb[0].mxu0
        %v6418 = vpop.f32.mrb[0].mxu0
        %v6419 = vadd.f32 %v6211, %v6418
        %v6420 = vpop.f32.mrb[0].mxu0
        %6421 = vmatprep.mubr.bf16.mxu0 0
        %6422 = vmatmul.mubr.bf16.gmra.mrb[0].mxu0 %v6174
        %v6423 = vpop.f32.mrb[0].mxu0
        %v6424 = vadd.f32 %v6211, %v6423
        %v6425 = vpop.f32.mrb[0].mxu0
        %v6426 = vpop.f32.mrb[0].mxu0
        %v6427 = vadd.f32 %v6211, %v6426
        %v6428 = vpop.f32.mrb[0].mxu0
        %6429 = vmatprep.mubr.bf16.mxu0 0
        %6430 = vmatmul.mubr.bf16.gmra.mrb[0].mxu0 %v6175
        %v6431 = vpop.f32.mrb[0].mxu0
        %v6432 = vadd.f32 %v6211, %v6431
        %v6433 = vpop.f32.mrb[0].mxu0
        %v6434 = vpop.f32.mrb[0].mxu0
        %v6435 = vadd.f32 %v6211, %v6434
        %v6436 = vpop.f32.mrb[0].mxu0
        %6437 = vmatprep.mubr.bf16.mxu0 0
        %6438 = vmatmul.mubr.bf16.gmra.mrb[0].mxu0 %v6176
        %v6439 = vpop.f32.mrb[0].mxu0
        %v6440 = vadd.f32 %v6211, %v6439
        %v6441 = vpop.f32.mrb[0].mxu0
        %v6442 = vpop.f32.mrb[0].mxu0
        %v6443 = vadd.f32 %v6211, %v6442
        %v6444 = vpop.f32.mrb[0].mxu0
        %6445 = vmatprep.mubr.bf16.mxu0 0
        %6446 = vmatmul.mubr.bf16.gmra.mrb[0].mxu0 %v6177
        %v6447 = vpop.f32.mrb[0].mxu0
        %v6448 = vadd.f32 %v6211, %v6447
        %v6449 = vpop.f32.mrb[0].mxu0
        %v6450 = vpop.f32.mrb[0].mxu0
        %v6451 = vadd.f32 %v6211, %v6450
        %v6452 = vpop.f32.mrb[0].mxu0
        %6453 = vmatprep.mubr.bf16.mxu0 0
        %6454 = vmatmul.mubr.bf16.gmra.mrb[0].mxu0 %v6178
        %v6455 = vpop.f32.mrb[0].mxu0
        %v6456 = vadd.f32 %v6211, %v6455
        %v6457 = vpop.f32.mrb[0].mxu0
        %v6458 = vpop.f32.mrb[0].mxu0
        %v6459 = vadd.f32 %v6211, %v6458
        %v6460 = vpop.f32.mrb[0].mxu0
        %6461 = vmatprep.mubr.bf16.mxu0 0
        %6462 = vmatmul.mubr.bf16.gmra.mrb[0].mxu0 %v6179
        %v6463 = vpop.f32.mrb[0].mxu0
        %v6464 = vadd.f32 %v6211, %v6463
        %v6465 = vpop.f32.mrb[0].mxu0
        %v6466 = vpop.f32.mrb[0].mxu0
        %v6467 = vadd.f32 %v6211, %v6466
        %v6468 = vpop.f32.mrb[0].mxu0
        %6469 = vmatprep.mubr.bf16.mxu0 0
        %6470 = vmatmul.mubr.bf16.gmra.mrb[0].mxu0 %v6180
        %v6471 = vpop.f32.mrb[0].mxu0
        %v6472 = vadd.f32 %v6211, %v6471
        %v6473 = vpop.f32.mrb[0].mxu0
        %v6474 = vpop.f32.mrb[0].mxu0
        %v6475 = vadd.f32 %v6211, %v6474
        %v6476 = vpop.f32.mrb[0].mxu0
        %6477 = vmatprep.mubr.bf16.mxu0 0
        %6478 = vmatmul.mubr.bf16.gmra.mrb[0].mxu0 %v6181
        %v6479 = vpop.f32.mrb[0].mxu0
        %v6480 = vadd.f32 %v6211, %v6479
        %v6481 = vpop.f32.mrb[0].mxu0
        %v6482 = vpop.f32.mrb[0].mxu0
        %v6483 = vadd.f32 %v6211, %v6482
        %v6484 = vpop.f32.mrb[0].mxu0
        %6485 = vmatprep.mubr.bf16.mxu0 0
        %6486 = vmatmul.mubr.bf16.gmra.mrb[0].mxu0 %v6182
        %v6487 = vpop.f32.mrb[0].mxu0
        %v6488 = vadd.f32 %v6211, %v6487
        %v6489 = vpop.f32.mrb[0].mxu0
        %v6490 = vpop.f32.mrb[0].mxu0
        %v6491 = vadd.f32 %v6211, %v6490
        %v6492 = vpop.f32.mrb[0].mxu0
        %6493 = vmatprep.mubr.bf16.mxu0 0
        %6494 = vmatmul.mubr.bf16.gmra.mrb[0].mxu0 %v6183
        %v6495 = vpop.f32.mrb[0].mxu0
        %v6496 = vadd.f32 %v6211, %v6495
        %v6497 = vpop.f32.mrb[0].mxu0
        %v6498 = vpop.f32.mrb[0].mxu0
        %v6499 = vadd.f32 %v6211, %v6498
        %v6500 = vpop.f32.mrb[0].mxu0
        %6501 = vmatprep.mubr.bf16.mxu0 0
        %6502 = vmatmul.mubr.bf16.gmra.mrb[0].mxu0 %v6184
        %v6503 = vpop.f32.mrb[0].mxu0
        %v6504 = vadd.f32 %v6211, %v6503
        %v6505 = vpop.f32.mrb[0].mxu0
        %v6506 = vpop.f32.mrb[0].mxu0
        %v6507 = vadd.f32 %v6211, %v6506
        %v6508 = vpop.f32.mrb[0].mxu0
        %6509 = vmatprep.mubr.bf16.mxu0 0
        %6510 = vmatmul.mubr.bf16.gmra.mrb[0].mxu0 %v6185
        %v6511 = vpop.f32.mrb[0].mxu0
        %v6512 = vadd.f32 %v6211, %v6511
        %v6513 = vpop.f32.mrb[0].mxu0
        %v6514 = vpop.f32.mrb[0].mxu0
        %v6515 = vadd.f32 %v6211, %v6514
        %v6516 = vpop.f32.mrb[0].mxu0
        %6517 = vmatprep.mubr.bf16.mxu0 0
        %6518 = vmatmul.mubr.bf16.gmra.mrb[0].mxu0 %v6186
        %v6519 = vpop.f32.mrb[0].mxu0
        %v6520 = vadd.f32 %v6211, %v6519
        %v6521 = vpop.f32.mrb[0].mxu0
        %v6522 = vpop.f32.mrb[0].mxu0
        %v6523 = vadd.f32 %v6211, %v6522
        %v6524 = vpop.f32.mrb[0].mxu0
        %6525 = vmatprep.mubr.bf16.mxu0 0
        %6526 = vmatmul.mubr.bf16.gmra.mrb[0].mxu0 %v6187
        %v6527 = vpop.f32.mrb[0].mxu0
        %v6528 = vadd.f32 %v6211, %v6527
        %v6529 = vpop.f32.mrb[0].mxu0
        %v6530 = vpop.f32.mrb[0].mxu0
        %v6531 = vadd.f32 %v6211, %v6530
        %v6532 = vpop.f32.mrb[0].mxu0
        %6533 = vmatprep.mubr.bf16.mxu0 0
        %6534 = vmatmul.mubr.bf16.gmra.mrb[0].mxu0 %v6188
        %v6535 = vpop.f32.mrb[0].mxu0
        %v6536 = vadd.f32 %v6211, %v6535
        %v6537 = vpop.f32.mrb[0].mxu0
        %v6538 = vpop.f32.mrb[0].mxu0
        %v6539 = vadd.f32 %v6211, %v6538
        %v6540 = vpop.f32.mrb[0].mxu0
        %6541 = vmatprep.mubr.bf16.mxu0 0
        %6542 = vmatmul.mubr.bf16.gmra.mrb[0].mxu0 %v6189
        %v6543 = vpop.f32.mrb[0].mxu0
        %v6544 = vadd.f32 %v6211, %v6543
        %v6545 = vpop.f32.mrb[0].mxu0
        %v6546 = vpop.f32.mrb[0].mxu0
        %v6547 = vadd.f32 %v6211, %v6546
        %v6548 = vpop.f32.mrb[0].mxu0
        %6549 = vdwg.mxu0
        %v6550 = vmax.f32 %v6296, 0.0
        %v6551 = vmax.f32 %v6299, 0.0
        %v6552 = vmax.f32 %v6304, 0.0
        %v6553 = vmax.f32 %v6307, 0.0
        %v6554 = vmax.f32 %v6312, 0.0
        %v6555 = vmax.f32 %v6315, 0.0
        %v6556 = vmax.f32 %v6320, 0.0
        %v6557 = vmax.f32 %v6323, 0.0
        %v6558 = vmax.f32 %v6328, 0.0
        %v6559 = vmax.f32 %v6331, 0.0
        %v6560 = vmax.f32 %v6336, 0.0
        %v6561 = vmax.f32 %v6339, 0.0
        %v6562 = vmax.f32 %v6344, 0.0
        %v6563 = vmax.f32 %v6347, 0.0
        %v6564 = vmax.f32 %v6352, 0.0
        %v6565 = vmax.f32 %v6355, 0.0
        %v6566 = vmax.f32 %v6360, 0.0
        %v6567 = vmax.f32 %v6363, 0.0
        %v6568 = vmax.f32 %v6368, 0.0
        %v6569 = vmax.f32 %v6371, 0.0
        %v6570 = vmax.f32 %v6376, 0.0
        %v6571 = vmax.f32 %v6379, 0.0
        %v6572 = vmax.f32 %v6384, 0.0
        %v6573 = vmax.f32 %v6387, 0.0
        %v6574 = vmax.f32 %v6392, 0.0
        %v6575 = vmax.f32 %v6395, 0.0
        %v6576 = vmax.f32 %v6400, 0.0
        %v6577 = vmax.f32 %v6403, 0.0
        %v6578 = vmax.f32 %v6408, 0.0
        %v6579 = vmax.f32 %v6411, 0.0
        %v6580 = vmax.f32 %v6416, 0.0
        %v6581 = vmax.f32 %v6419, 0.0
        %v6582 = vmax.f32 %v6424, 0.0
        %v6583 = vmax.f32 %v6427, 0.0
        %v6584 = vmax.f32 %v6432, 0.0
        %v6585 = vmax.f32 %v6435, 0.0
        %v6586 = vmax.f32 %v6440, 0.0
        %v6587 = vmax.f32 %v6443, 0.0
        %v6588 = vmax.f32 %v6448, 0.0
        %v6589 = vmax.f32 %v6451, 0.0
        %v6590 = vmax.f32 %v6456, 0.0
        %v6591 = vmax.f32 %v6459, 0.0
        %v6592 = vmax.f32 %v6464, 0.0
        %v6593 = vmax.f32 %v6467, 0.0
        %v6594 = vmax.f32 %v6472, 0.0
        %v6595 = vmax.f32 %v6475, 0.0
        %v6596 = vmax.f32 %v6480, 0.0
        %v6597 = vmax.f32 %v6483, 0.0
        %v6598 = vmax.f32 %v6488, 0.0
        %v6599 = vmax.f32 %v6491, 0.0
        %v6600 = vmax.f32 %v6496, 0.0
        %v6601 = vmax.f32 %v6499, 0.0
        %v6602 = vmax.f32 %v6504, 0.0
        %v6603 = vmax.f32 %v6507, 0.0
        %v6604 = vmax.f32 %v6512, 0.0
        %v6605 = vmax.f32 %v6515, 0.0
        %v6606 = vmax.f32 %v6520, 0.0
        %v6607 = vmax.f32 %v6523, 0.0
        %v6608 = vmax.f32 %v6528, 0.0
        %v6609 = vmax.f32 %v6531, 0.0
        %v6610 = vmax.f32 %v6536, 0.0
        %v6611 = vmax.f32 %v6539, 0.0
        %v6612 = vmax.f32 %v6544, 0.0
        %v6613 = vmax.f32 %v6547, 0.0
        %v6614 = vld [vmem:[%s11] sm:$0x1]
        %v6615 = vld [vmem:[#allocation2] sm:$0x1]
        %6617 = vset.pattern.permute.xlu0 0
        %6618 = vperm.xlu0 %6617, %v6615
        %v6619 = vpop.permute.xlu0 %6618
        %v6621 = vlaneseq
        %v6622 = vshrl.u32 %v6621, 7
        %v6623 = vsub.s32 0, %v6622
        %v6624 = vrot.slane %v6619, %v6623
        %vm6625 = vcmask 523264
        %v6627 = vsel %vm6625, %v6614, 0
        %v6630 = vsel %vm6625, %v6550, 0
        %v6633 = vsel %vm6625, %v6551, 0
        %v6636 = vsel %vm6625, %v6552, 0
        %v6639 = vsel %vm6625, %v6553, 0
        %v6642 = vsel %vm6625, %v6554, 0
        %v6645 = vsel %vm6625, %v6555, 0
        %v6648 = vsel %vm6625, %v6556, 0
        %v6651 = vsel %vm6625, %v6557, 0
        %v6654 = vsel %vm6625, %v6558, 0
        %v6657 = vsel %vm6625, %v6559, 0
        %v6660 = vsel %vm6625, %v6560, 0
        %v6663 = vsel %vm6625, %v6561, 0
        %v6666 = vsel %vm6625, %v6562, 0
        %v6669 = vsel %vm6625, %v6563, 0
        %v6672 = vsel %vm6625, %v6564, 0
        %v6675 = vsel %vm6625, %v6565, 0
        %v6678 = vsel %vm6625, %v6566, 0
        %v6681 = vsel %vm6625, %v6567, 0
        %v6684 = vsel %vm6625, %v6568, 0
        %v6687 = vsel %vm6625, %v6569, 0
        %v6690 = vsel %vm6625, %v6570, 0
        %v6693 = vsel %vm6625, %v6571, 0
        %v6696 = vsel %vm6625, %v6572, 0
        %v6699 = vsel %vm6625, %v6573, 0
        %v6702 = vsel %vm6625, %v6574, 0
        %v6705 = vsel %vm6625, %v6575, 0
        %v6708 = vsel %vm6625, %v6576, 0
        %v6711 = vsel %vm6625, %v6577, 0
        %v6714 = vsel %vm6625, %v6578, 0
        %v6717 = vsel %vm6625, %v6579, 0
        %v6720 = vsel %vm6625, %v6580, 0
        %v6723 = vsel %vm6625, %v6581, 0
        %v6726 = vsel %vm6625, %v6582, 0
        %v6729 = vsel %vm6625, %v6583, 0
        %v6732 = vsel %vm6625, %v6584, 0
        %v6735 = vsel %vm6625, %v6585, 0
        %v6738 = vsel %vm6625, %v6586, 0
        %v6741 = vsel %vm6625, %v6587, 0
        %v6744 = vsel %vm6625, %v6588, 0
        %v6747 = vsel %vm6625, %v6589, 0
        %v6750 = vsel %vm6625, %v6590, 0
        %v6753 = vsel %vm6625, %v6591, 0
        %v6756 = vsel %vm6625, %v6592, 0
        %v6759 = vsel %vm6625, %v6593, 0
        %v6762 = vsel %vm6625, %v6594, 0
        %v6765 = vsel %vm6625, %v6595, 0
        %v6768 = vsel %vm6625, %v6596, 0
        %v6771 = vsel %vm6625, %v6597, 0
        %v6774 = vsel %vm6625, %v6598, 0
        %v6777 = vsel %vm6625, %v6599, 0
        %v6780 = vsel %vm6625, %v6600, 0
        %v6783 = vsel %vm6625, %v6601, 0
        %v6786 = vsel %vm6625, %v6602, 0
        %v6789 = vsel %vm6625, %v6603, 0
        %v6792 = vsel %vm6625, %v6604, 0
        %v6795 = vsel %vm6625, %v6605, 0
        %v6798 = vsel %vm6625, %v6606, 0
        %v6801 = vsel %vm6625, %v6607, 0
        %v6804 = vsel %vm6625, %v6608, 0
        %v6807 = vsel %vm6625, %v6609, 0
        %v6810 = vsel %vm6625, %v6610, 0
        %v6813 = vsel %vm6625, %v6611, 0
        %v6816 = vsel %vm6625, %v6612, 0
        %v6819 = vsel %vm6625, %v6613, 0
        %6821 = vmatprep.subr.mxu0 0.0
        %6822 = vmatpush1.xpose.msra.mxu0 %v6630
        %6823 = vmatprep.subr.mxu0 0.0
        %6824 = vmatpush1.xpose.msra.mxu0 %v6633
        %6825 = vmatprep.subr.mxu0 0.0
        %6826 = vmatpush1.xpose.msra.mxu0 %v6636
        %6827 = vmatprep.subr.mxu0 0.0
        %6828 = vmatpush1.xpose.msra.mxu0 %v6639
        %6829 = vmatprep.subr.mxu0 0.0
        %6830 = vmatpush1.xpose.msra.mxu0 %v6642
        %6831 = vmatprep.subr.mxu0 0.0
        %6832 = vmatpush1.xpose.msra.mxu0 %v6645
        %6833 = vmatprep.subr.mxu0 0.0
        %6834 = vmatpush1.xpose.msra.mxu0 %v6648
        %6835 = vmatprep.subr.mxu0 0.0
        %6836 = vmatpush1.xpose.msra.mxu0 %v6651
        %6837 = vmatprep.subr.mxu0 0.0
        %6838 = vmatpush1.xpose.msra.mxu0 %v6654
        %6839 = vmatprep.subr.mxu0 0.0
        %6840 = vmatpush1.xpose.msra.mxu0 %v6657
        %6841 = vmatprep.subr.mxu0 0.0
        %6842 = vmatpush1.xpose.msra.mxu0 %v6660
        %6843 = vmatprep.subr.mxu0 0.0
        %6844 = vmatpush1.xpose.msra.mxu0 %v6663
        %6845 = vmatprep.subr.mxu0 0.0
        %6846 = vmatpush1.xpose.msra.mxu0 %v6666
        %6847 = vmatprep.subr.mxu0 0.0
        %6848 = vmatpush1.xpose.msra.mxu0 %v6669
        %6849 = vmatprep.subr.mxu0 0.0
        %6850 = vmatpush1.xpose.msra.mxu0 %v6672
        %6851 = vmatprep.subr.mxu0 0.0
        %6852 = vmatpush1.xpose.msra.mxu0 %v6675
        %6853 = vmatprep.subr.mxu0 0.0
        %6854 = vmatpush1.xpose.msra.mxu0 %v6678
        %6855 = vmatprep.subr.mxu0 0.0
        %6856 = vmatpush1.xpose.msra.mxu0 %v6681
        %6857 = vmatprep.subr.mxu0 0.0
        %6858 = vmatpush1.xpose.msra.mxu0 %v6684
        %6859 = vmatprep.subr.mxu0 0.0
        %6860 = vmatpush1.xpose.msra.mxu0 %v6687
        %6861 = vmatprep.subr.mxu0 0.0
        %6862 = vmatpush1.xpose.msra.mxu0 %v6690
        %6863 = vmatprep.subr.mxu0 0.0
        %6864 = vmatpush1.xpose.msra.mxu0 %v6693
        %6865 = vmatprep.subr.mxu0 0.0
        %6866 = vmatpush1.xpose.msra.mxu0 %v6696
        %6867 = vmatprep.subr.mxu0 0.0
        %6868 = vmatpush1.xpose.msra.mxu0 %v6699
        %6869 = vmatprep.subr.mxu0 0.0
        %6870 = vmatpush1.xpose.msra.mxu0 %v6702
        %6871 = vmatprep.subr.mxu0 0.0
        %6872 = vmatpush1.xpose.msra.mxu0 %v6705
        %6873 = vmatprep.subr.mxu0 0.0
        %6874 = vmatpush1.xpose.msra.mxu0 %v6708
        %6875 = vmatprep.subr.mxu0 0.0
        %6876 = vmatpush1.xpose.msra.mxu0 %v6711
        %6877 = vmatprep.subr.mxu0 0.0
        %6878 = vmatpush1.xpose.msra.mxu0 %v6714
        %6879 = vmatprep.subr.mxu0 0.0
        %6880 = vmatpush1.xpose.msra.mxu0 %v6717
        %6881 = vmatprep.subr.mxu0 0.0
        %6882 = vmatpush1.xpose.msra.mxu0 %v6720
        %6883 = vmatprep.subr.mxu0 0.0
        %6884 = vmatpush1.xpose.msra.mxu0 %v6723
        %6885 = vmatprep.mubr.f32.mxu0 0.0
        %6886 = vmatmul.mubr.f32.gmra.mrb[0].mxu0 %v6627
        %v6887 = vpop.f32.mrb[0].mxu0
        %v6888 = vadd.f32 %v6624, %v6887
        %v6889 = vpop.f32.mrb[0].mxu0
        %v6890 = vadd.f32 %v6624, %v6889
        %6891 = vdwg.mxu0
        %6892 = vmatprep.subr.mxu0 0.0
        %6893 = vmatpush1.xpose.msra.mxu0 %v6726
        %6894 = vmatprep.subr.mxu0 0.0
        %6895 = vmatpush1.xpose.msra.mxu0 %v6729
        %6896 = vmatprep.subr.mxu0 0.0
        %6897 = vmatpush1.xpose.msra.mxu0 %v6732
        %6898 = vmatprep.subr.mxu0 0.0
        %6899 = vmatpush1.xpose.msra.mxu0 %v6735
        %6900 = vmatprep.subr.mxu0 0.0
        %6901 = vmatpush1.xpose.msra.mxu0 %v6738
        %6902 = vmatprep.subr.mxu0 0.0
        %6903 = vmatpush1.xpose.msra.mxu0 %v6741
        %6904 = vmatprep.subr.mxu0 0.0
        %6905 = vmatpush1.xpose.msra.mxu0 %v6744
        %6906 = vmatprep.subr.mxu0 0.0
        %6907 = vmatpush1.xpose.msra.mxu0 %v6747
        %6908 = vmatprep.subr.mxu0 0.0
        %6909 = vmatpush1.xpose.msra.mxu0 %v6750
        %6910 = vmatprep.subr.mxu0 0.0
        %6911 = vmatpush1.xpose.msra.mxu0 %v6753
        %6912 = vmatprep.subr.mxu0 0.0
        %6913 = vmatpush1.xpose.msra.mxu0 %v6756
        %6914 = vmatprep.subr.mxu0 0.0
        %6915 = vmatpush1.xpose.msra.mxu0 %v6759
        %6916 = vmatprep.subr.mxu0 0.0
        %6917 = vmatpush1.xpose.msra.mxu0 %v6762
        %6918 = vmatprep.subr.mxu0 0.0
        %6919 = vmatpush1.xpose.msra.mxu0 %v6765
        %6920 = vmatprep.subr.mxu0 0.0
        %6921 = vmatpush1.xpose.msra.mxu0 %v6768
        %6922 = vmatprep.subr.mxu0 0.0
        %6923 = vmatpush1.xpose.msra.mxu0 %v6771
        %6924 = vmatprep.subr.mxu0 0.0
        %6925 = vmatpush1.xpose.msra.mxu0 %v6774
        %6926 = vmatprep.subr.mxu0 0.0
        %6927 = vmatpush1.xpose.msra.mxu0 %v6777
        %6928 = vmatprep.subr.mxu0 0.0
        %6929 = vmatpush1.xpose.msra.mxu0 %v6780
        %6930 = vmatprep.subr.mxu0 0.0
        %6931 = vmatpush1.xpose.msra.mxu0 %v6783
        %6932 = vmatprep.subr.mxu0 0.0
        %6933 = vmatpush1.xpose.msra.mxu0 %v6786
        %6934 = vmatprep.subr.mxu0 0.0
        %6935 = vmatpush1.xpose.msra.mxu0 %v6789
        %6936 = vmatprep.subr.mxu0 0.0
        %6937 = vmatpush1.xpose.msra.mxu0 %v6792
        %6938 = vmatprep.subr.mxu0 0.0
        %6939 = vmatpush1.xpose.msra.mxu0 %v6795
        %6940 = vmatprep.subr.mxu0 0.0
        %6941 = vmatpush1.xpose.msra.mxu0 %v6798
        %6942 = vmatprep.subr.mxu0 0.0
        %6943 = vmatpush1.xpose.msra.mxu0 %v6801
        %6944 = vmatprep.subr.mxu0 0.0
        %6945 = vmatpush1.xpose.msra.mxu0 %v6804
        %6946 = vmatprep.subr.mxu0 0.0
        %6947 = vmatpush1.xpose.msra.mxu0 %v6807
        %6948 = vmatprep.subr.mxu0 0.0
        %6949 = vmatpush1.xpose.msra.mxu0 %v6810
        %6950 = vmatprep.subr.mxu0 0.0
        %6951 = vmatpush1.xpose.msra.mxu0 %v6813
        %6952 = vmatprep.subr.mxu0 0.0
        %6953 = vmatpush1.xpose.msra.mxu0 %v6816
        %6954 = vmatprep.subr.mxu0 0.0
        %6955 = vmatpush1.xpose.msra.mxu0 %v6819
        %6956 = vmatprep.mubr.f32.mxu0 0.0
        %6957 = vmatmul.mubr.f32.gmra.mrb[0].mxu0 %v6627
        %v6958 = vpop.f32.mrb[0].mxu0
        %v6959 = vadd.f32 %v6624, %v6958
        %v6960 = vpop.f32.mrb[0].mxu0
        %v6961 = vadd.f32 %v6624, %v6960
        %6962 = vdwg.mxu0
        %v6963 = vxor.u32 %v6888, 2147483648
        %v6964 = vxor.u32 %v6890, 2147483648
        %v6965 = vxor.u32 %v6959, 2147483648
        %v6966 = vxor.u32 %v6961, 2147483648
        %v6967 = vmul.f32 %v6963, 1.442695
        %v6968 = vpow.pop %v6967
        %v6969 = vmul.f32 %v6964, 1.442695
        %v6970 = vpow.pop %v6969
        %v6971 = vmul.f32 %v6965, 1.442695
        %v6972 = vpow.pop %v6971
        %v6973 = vmul.f32 %v6966, 1.442695
        %v6974 = vpow.pop %v6973
        %v6975 = vadd.f32 %v6968, 1.0
        %v6976 = vadd.f32 %v6970, 1.0
        %v6977 = vadd.f32 %v6972, 1.0
        %v6978 = vadd.f32 %v6974, 1.0
        %v6979 = vrcp.pop %v6975
        %v6980 = vmul.f32 1.0, %v6979
        %v6981 = vrcp.pop %v6976
        %v6982 = vmul.f32 1.0, %v6981
        %v6983 = vrcp.pop %v6977
        %v6984 = vmul.f32 1.0, %v6983
        %v6985 = vrcp.pop %v6978
        %v6986 = vmul.f32 1.0, %v6985
        %v6991 = vcombine.low %v6980, %v6982
        %v6992 = vcombine.low %v6984, %v6986
        %v6994 = vunpack.c.l.s4 1966171168
        %v6995 = vunpack.c.0.s8 %v6994
        %v6996 = vlaneseq
        %v6997 = vshrl.u32 %v6996, 7
        %v6998 = vsub.s32 %v6995, %v6997
        %v6999 = vrot.slane %v6991, %v6998
        %v7001 = vunpack.c.l.s4 1966171168
        %v7002 = vunpack.c.0.s8 %v7001
        %v7003 = vlaneseq
        %v7004 = vshrl.u32 %v7003, 7
        %v7005 = vsub.s32 %v7002, %v7004
        %v7006 = vrot.slane %v6992, %v7005
        %v7007 = vcombine.low %v6999, %v7006
        %v7009 = vunpack.c.l.s4 1966171168
        %v7010 = vunpack.c.0.s8 %v7009
        %v7011 = vlaneseq
        %v7012 = vshrl.u32 %v7011, 7
        %v7013 = vsub.s32 %v7010, %v7012
        %v7014 = vrot.slane %v7007, %v7013
        %v7016 = vlaneseq
        %vm7017 = vcmp.ge.s32.totalorder %v7016, 0
        %vm7018 = vcmp.lt.s32.totalorder %v7016, 512
        %vm7019 = vmand %vm7017, %vm7018
        %7020 = vst.msk [vmem:[%s452] sm:$0xf] %vm7019, %v7014
        %s7021 = sand.u32 %s320, 1
        %s7022 = scalar_lea.sflag [#allocation4], %s7021
        %s7023 = sand.u32 %s320, 1
        %s7024 = smul.addr %s7023, 4
        %s7025 = scalar_lea.vmem [#allocation3], %s7024
        // Predicated region
        $region73: #{implicit_occupancy_decoder.1} parent=71 // pred_check
          %p7026 = pneg %p330
        $region74: #{implicit_occupancy_decoder.1} parent=71 // pred_check_branch
          %7028 = sbr.rel (%p7026) target = $region76
        $region75: #{implicit_occupancy_decoder.1} parent=71 // pred_region
          %s7029 = smul.u32 4, %s29
          %s7031 = ssub.s32 64, 64
          %7032 = vsyncadd %s7022, %s7031
          %s7033 = smul.addr %s7029, 16
          %s7034 = scalar_lea.hbm %s13, %s7033
          %s7036 = sshll.u32 %s7025, 4
          %s7037 = int_to_ptr.vmem [resolvable:$true] %s7036
          %7039 = dma.vmem_to_hbm [thread:$0]  %s7037, 64, %s7034, %s7022
        $region76: #{implicit_occupancy_decoder.1} parent=71 // pred_fallthru
          _
      $region72: #{implicit_occupancy_decoder.1} parent=5 // pred_fallthru
        _
      %p7040 = scmp.le.s32.totalorder 2, %s24
      // Predicated region
      $region77: #{implicit_occupancy_decoder.1} parent=5 // pred_check
        %p7041 = pneg %p7040
      $region78: #{implicit_occupancy_decoder.1} parent=5 // pred_check_branch
        %7043 = sbr.rel (%p7041) target = $region80
      $region79: #{implicit_occupancy_decoder.1} parent=5 // pred_region
        %s7044 = ssub.s32 %s24, 2
        // Predicated region
        $region81: #{implicit_occupancy_decoder.1} parent=79 // pred_check
          %p7045 = pneg %p336
        $region82: #{implicit_occupancy_decoder.1} parent=79 // pred_check_branch
          %7047 = sbr.rel (%p7045) target = $region84
        $region83: #{implicit_occupancy_decoder.1} parent=79 // pred_region
          %s7048 = sand.u32 %s321, 1
          %s7049 = scalar_lea.sflag [#allocation4], %s7048
          %s7050 = sand.u32 %s321, 1
          %s7051 = smul.addr %s7050, 4
          %s7052 = scalar_lea.vmem [#allocation3], %s7051
          %7053 = dma.done %s7049, 64
        $region84: #{implicit_occupancy_decoder.1} parent=79 // pred_fallthru
          _
      $region80: #{implicit_occupancy_decoder.1} parent=5 // pred_fallthru
        _
    $region6: #{implicit_occupancy_decoder.1} parent=1 // loop_footer
      %s28 = sadd.s32 1, %s24
    $region7: #{implicit_occupancy_decoder.1} parent=1 // loop_footer_branch
      %23 = sbr.rel target = $region3
    $region8: #{implicit_occupancy_decoder.1} parent=1 // loop_exit
      _
    %7054 = vsyncpa [#allocation4], 1
    %s7055 = scalar_lea.sflag [#allocation4], 1
    %7056 = vsyncpa %s7055, 1

</llo_original>
